<compile_context>
chip_gen: v5e
topology: v5e:2x2
jax: 0.10.0
libtpu: 0.0.40
codegen_flags: <defaults>
</compile_context>

<pallas_src>
import functools

import jax
import jax.numpy as jnp
from jax import lax
from jax.experimental import pallas as pl
from jax.experimental.pallas import tpu as pltpu


_LANE = 128      # TPU lane width (minor dim)
_SUBLANE = 8     # TPU sublane width (second-minor dim, f32)


def _round_up(x, m):
    return ((x + m - 1) // m) * m


def _vmem_limit_bytes():
    """Generation-aware scoped-VMEM budget: ~half of physical VMEM per core
    (32 MiB on v7x, 64 MiB on 128-MiB v5e/v6e parts)."""
    cap = 128 * 1024 * 1024
    try:
        cap = int(getattr(pltpu.get_tpu_info(), "vmem_capacity_bytes", cap))
    except Exception:
        pass
    return max(32 * 1024 * 1024, min(cap // 2, 64 * 1024 * 1024))


_VMEM_LIMIT = _vmem_limit_bytes()


# ----------------------------------------------------------------------------
# Encoder: fused conv3x3+ReLU -> maxpool -> conv3x3+ReLU -> maxpool (per image)
# ----------------------------------------------------------------------------
def _encoder_features_kernel(x_ref, w1_ref, b1_ref, w2_ref, b2_ref, o_ref,
                             s1_sc, s2_sc, x2_sc, *, H, W, Cin, C1, C2):
    """One image: everything between the halo-padded input block and the final
    (H/4*W/4, C2) pooled output lives in VMEM / vregs."""
    Hh, Wh = H // 2, W // 2

    def conv3x3_relu(src, w_ref, b_ref, h, w, cin, cout):
        # 9 MXU dots on the flat (h*w, cin) layout; single fused bias+ReLU.
        acc = jnp.zeros((h * w, cout), jnp.float32)
        for di in range(3):
            for dj in range(3):
                tap = lax.slice(src, (di, dj, 0), (di + h, dj + w, cin))
                acc = acc + jnp.dot(tap.reshape(h * w, cin), w_ref[di * 3 + dj],
                                    preferred_element_type=jnp.float32)
        return jnp.maximum(acc + b_ref[...], 0.0)            # (h*w, cout)

    def maxpool2x2(y, stage_sc, h, w, c):
        # Pool H with a layout-preserving reshape + max over a major dim,
        # pool W with stride-2 sublane reads from VMEM scratch.
        y = y.reshape(h, w, c).reshape(h // 2, 2, w, c).max(axis=1)
        stage_sc[...] = y.reshape(h // 2 * w, c)
        n = (h // 2) * (w // 2)
        return jnp.maximum(stage_sc[pl.ds(0, n, 2), :],
                           stage_sc[pl.ds(1, n, 2), :])       # (h/2*w/2, c)

    # conv1 + pool1
    y1 = conv3x3_relu(x_ref[0], w1_ref, b1_ref, H, W, Cin, C1)
    p1 = maxpool2x2(y1, s1_sc, H, W, C1)                      # (Hh*Wh, C1)

    # layer-2 halo handled in-kernel: zero scratch, write pooled into center.
    x2_sc[...] = jnp.zeros_like(x2_sc)
    x2_sc[1:Hh + 1, 1:Wh + 1, :] = p1.reshape(Hh, Wh, C1)

    # conv2 + pool2
    y2 = conv3x3_relu(x2_sc[...], w2_ref, b2_ref, Hh, Wh, C1, C2)
    p2 = maxpool2x2(y2, s2_sc, Hh, Wh, C2)                    # (H/4*W/4, C2)
    o_ref[0] = p2


def pallas_encoder_features(images_nhwc, conv1, conv2):
    """images_nhwc: (N, H, W, Cin) -> pooled features (N, H/4*W/4, C2)."""
    N, H, W, Cin = images_nhwc.shape
    (w1, b1), (w2, b2) = conv1, conv2
    C1, C2 = w1.shape[-1], w2.shape[-1]
    Hq, Wq = H // 4, W // 4
    xp = jnp.pad(images_nhwc, ((0, 0), (1, 1), (1, 1), (0, 0)))   # conv1 halo
    return pl.pallas_call(
        functools.partial(_encoder_features_kernel,
                          H=H, W=W, Cin=Cin, C1=C1, C2=C2),
        out_shape=jax.ShapeDtypeStruct((N, Hq * Wq, C2), jnp.float32),
        grid_spec=pltpu.PrefetchScalarGridSpec(
            num_scalar_prefetch=0,
            grid=(N,),
            in_specs=[pl.BlockSpec((1, H + 2, W + 2, Cin), lambda n: (n, 0, 0, 0)),
                      pl.BlockSpec((9, Cin, C1), lambda n: (0, 0, 0)),
                      pl.BlockSpec((1, C1), lambda n: (0, 0)),
                      pl.BlockSpec((9, C1, C2), lambda n: (0, 0, 0)),
                      pl.BlockSpec((1, C2), lambda n: (0, 0))],
            out_specs=pl.BlockSpec((1, Hq * Wq, C2), lambda n: (n, 0, 0)),
            scratch_shapes=[pltpu.VMEM(((H // 2) * W, C1), jnp.float32),
                            pltpu.VMEM(((H // 4) * (W // 2), C2), jnp.float32),
                            pltpu.VMEM((H // 2 + 2, W // 2 + 2, C1), jnp.float32)]),
        compiler_params=pltpu.CompilerParams(
            dimension_semantics=("parallel",),                # images independent
            vmem_limit_bytes=_VMEM_LIMIT),
    )(xp.astype(jnp.float32), w1.astype(jnp.float32),
      b1.reshape(1, C1).astype(jnp.float32),
      w2.astype(jnp.float32), b2.reshape(1, C2).astype(jnp.float32))


# ----------------------------------------------------------------------------
# Encoder: fused classifier tail (fc1 -> fc2 -> EncoderCNN.linear, all +ReLU)
# ----------------------------------------------------------------------------
def _fc_tail_kernel(x_ref, w1_ref, b1_ref, w2_ref, b2_ref, w3_ref, b3_ref, o_ref):
    def lin_relu(h, w_ref, b_ref):
        w = w_ref[...]                                        # bf16, resident
        y = jnp.dot(h.astype(w.dtype), w, preferred_element_type=jnp.float32)
        return jnp.maximum(y + b_ref[...], 0.0)
    h = lin_relu(x_ref[...], w1_ref, b1_ref)
    h = lin_relu(h, w2_ref, b2_ref)
    h = lin_relu(h, w3_ref, b3_ref)
    o_ref[...] = h


def pallas_fc_tail(x, fc1, fc2, fc3):
    """x: (Bp, flat) -> (Bp, Ep). Three Linear+ReLU fused; intermediates stay
    in VMEM/vregs."""
    bp = x.shape[0]
    (w1, b1), (w2, b2), (w3, b3) = fc1, fc2, fc3
    ep = w3.shape[1]
    vmem = pl.BlockSpec(memory_space=pltpu.MemorySpace.VMEM)
    return pl.pallas_call(
        _fc_tail_kernel,
        out_shape=jax.ShapeDtypeStruct((bp, ep), jnp.float32),
        in_specs=[vmem] * 7,
        out_specs=vmem,
        compiler_params=pltpu.CompilerParams(vmem_limit_bytes=_VMEM_LIMIT),
    )(x.astype(jnp.float32), w1, b1.reshape(1, -1), w2, b2.reshape(1, -1),
      w3, b3.reshape(1, -1))


# ----------------------------------------------------------------------------
# Decoder: one fused kernel (input projections + LSTM layers + vocab linear)
# ----------------------------------------------------------------------------
def _decoder_kernel(*refs, num_layers, t1, bp, hp):
    """refs = [x, (wih, b, whh) * L, wd, bd, o_ref, hid_sc].

    Per layer: one hoisted (T1*Bp, in) x (in, 4Hp) input-projection matmul,
    then a fully unrolled T1-step recurrence (PyTorch gate order i,f,g,o) with
    h/c as plain values — no per-step HBM traffic or grid overhead. Weights
    are bf16 and VMEM-resident; accumulation and gate math are f32."""
    x_ref = refs[0]
    wd_ref = refs[1 + 3 * num_layers]
    bd_ref = refs[2 + 3 * num_layers]
    o_ref = refs[3 + 3 * num_layers]
    hid_sc = refs[4 + 3 * num_layers]

    layer_in = x_ref[...]                              # (t1, bp, E) f32
    for l in range(num_layers):
        wih = refs[1 + 3 * l][...]                     # (in_dim, 4*hp) bf16
        b = refs[2 + 3 * l][...]                       # (1, 4*hp) f32
        whh = refs[3 + 3 * l][...]                     # (hp, 4*hp) bf16
        in_dim = layer_in.shape[-1]

        # Hoisted input projection for the whole sequence (one MXU matmul).
        gx = jnp.dot(layer_in.reshape(t1 * bp, in_dim).astype(wih.dtype), wih,
                     preferred_element_type=jnp.float32)
        gx = (gx + b).reshape(t1, bp, 4 * hp)

        h = jnp.zeros((bp, hp), jnp.float32)
        c = jnp.zeros((bp, hp), jnp.float32)
        for t in range(t1):                            # static T+1 -> full unroll
            gates = gx[t] + jnp.dot(h.astype(whh.dtype), whh,
                                    preferred_element_type=jnp.float32)
            # hp is a multiple of 128 so gate slices are lane-aligned.
            i = jax.nn.sigmoid(gates[:, 0 * hp:1 * hp])
            f = jax.nn.sigmoid(gates[:, 1 * hp:2 * hp])
            g = jnp.tanh(gates[:, 2 * hp:3 * hp])
            o = jax.nn.sigmoid(gates[:, 3 * hp:4 * hp])
            c = f * c + i * g
            h = o * jnp.tanh(c)
            hid_sc[t] = h
        layer_in = hid_sc[...]                         # next layer input (f32)

    # Final vocab projection over all (t1*bp) hiddens, lane-dense (Vp) store.
    wd = wd_ref[...]
    logits = jnp.dot(layer_in.reshape(t1 * bp, hp).astype(wd.dtype), wd,
                     preferred_element_type=jnp.float32) + bd_ref[...]
    o_ref[...] = logits.reshape(t1, bp, -1)


def pallas_decoder(x, lstm_layers, dec_linear):
    """x: (T+1, Bp, E); lstm_layers: padded bf16 wih/whh + f32 gate bias per
    layer; dec_linear: (Hp, Vp) bf16 + (Vp,) f32. Returns (T+1, Bp, Vp)."""
    t1, bp, _ = x.shape
    hp = lstm_layers[0]["whh"].shape[0]
    wd, bd = dec_linear
    vp = wd.shape[1]
    num_layers = len(lstm_layers)

    args = [x.astype(jnp.float32)]
    for layer in lstm_layers:
        args += [layer["wih"], layer["b"].reshape(1, -1), layer["whh"]]
    args += [wd, bd.reshape(1, -1)]

    vmem = pl.BlockSpec(memory_space=pltpu.MemorySpace.VMEM)
    return pl.pallas_call(
        functools.partial(_decoder_kernel, num_layers=num_layers,
                          t1=t1, bp=bp, hp=hp),
        out_shape=jax.ShapeDtypeStruct((t1, bp, vp), jnp.float32),
        in_specs=[vmem] * len(args),
        out_specs=vmem,
        scratch_shapes=[pltpu.VMEM((t1, bp, hp), jnp.float32)],   # hidden states
        compiler_params=pltpu.CompilerParams(vmem_limit_bytes=_VMEM_LIMIT),
    )(*args)


# ----------------------------------------------------------------------------
# Parameter init (deterministic, synthetic) + TPU padding / bf16 prep
# ----------------------------------------------------------------------------
def init_params(key, *, in_channels, image_hw, embed_size, hidden_size,
                vocab_size, num_layers, conv_channels=(8, 16), fc_dim=64):
    def nrm(k, shape, scale=0.05):
        return (scale * jax.random.normal(k, shape)).astype(jnp.float32)

    keys = iter(jax.random.split(key, 64))
    params = {}

    # Scaled-down VGG-style "features": 3x3 conv (per-tap weights) + ReLU + pool.
    convs = []
    c_in, hw = in_channels, image_hw
    for c_out in conv_channels:
        convs.append((nrm(next(keys), (9, c_in, c_out)), nrm(next(keys), (c_out,))))
        c_in = c_out
        hw //= 2
    params["convs"] = convs
    flat_dim = c_in * hw * hw

    # Scaled-down VGG16 "classifier[:-1]" + EncoderCNN.linear.
    params["fc1"] = (nrm(next(keys), (flat_dim, fc_dim)), nrm(next(keys), (fc_dim,)))
    params["fc2"] = (nrm(next(keys), (fc_dim, fc_dim)), nrm(next(keys), (fc_dim,)))
    params["enc_linear"] = (nrm(next(keys), (fc_dim, embed_size)),
                            nrm(next(keys), (embed_size,)))

    # DecoderRNN.
    params["embed"] = nrm(next(keys), (vocab_size, embed_size))
    lstm = []
    in_dim = embed_size
    for _ in range(num_layers):
        lstm.append({
            "wih": nrm(next(keys), (in_dim, 4 * hidden_size)),
            "whh": nrm(next(keys), (hidden_size, 4 * hidden_size)),
            "b": nrm(next(keys), (4 * hidden_size,)),    # combined b_ih + b_hh
        })
        in_dim = hidden_size
    params["lstm"] = lstm
    params["dec_linear"] = (nrm(next(keys), (hidden_size, vocab_size)),
                            nrm(next(keys), (vocab_size,)))
    return params


def _pad_gate_cols(w, h, hp):
    """(in, 4h) with column blocks [i|f|g|o] -> (in, 4hp), zero-padding each gate."""
    in_dim = w.shape[0]
    return jnp.pad(w.reshape(in_dim, 4, h),
                   ((0, 0), (0, 0), (0, hp - h))).reshape(in_dim, 4 * hp)


def prepare_params(params):
    """Zero-pad to TPU-friendly shapes (hidden/FC/vocab widths -> 128 lanes)
    and cast matmul weights to bf16 (biases and elementwise math stay f32).

    Padding is zeros everywhere: padded h/c/gate/logit columns stay exactly
    zero through the recurrence and padded rows contribute nothing, so the
    forward matches the unpadded model (up to the bf16 operand cast)."""
    pp = {"convs": [(w.astype(jnp.float32), b.astype(jnp.float32))
                    for (w, b) in params["convs"]],
          "embed": params["embed"].astype(jnp.float32)}

    fc_dim = params["fc1"][0].shape[1]
    embed_size = params["enc_linear"][0].shape[1]
    fp = _round_up(fc_dim, _LANE)
    ep = _round_up(embed_size, _LANE)

    def pad_fc(wb, rows_to, cols_to):
        w, b = wb
        w = jnp.pad(w, ((0, rows_to - w.shape[0]), (0, cols_to - w.shape[1])))
        b = jnp.pad(b, (0, cols_to - b.shape[0]))
        return w.astype(jnp.bfloat16), b.astype(jnp.float32)

    pp["fc1"] = pad_fc(params["fc1"], params["fc1"][0].shape[0], fp)
    pp["fc2"] = pad_fc(params["fc2"], fp, fp)
    pp["enc_linear"] = pad_fc(params["enc_linear"], fp, ep)

    h = params["lstm"][0]["whh"].shape[0]
    hp = _round_up(h, _LANE)
    lstm = []
    for li, layer in enumerate(params["lstm"]):
        wih = _pad_gate_cols(layer["wih"], h, hp)
        if li > 0:                        # inputs of layers >= 1 are padded hidden
            wih = jnp.pad(wih, ((0, hp - layer["wih"].shape[0]), (0, 0)))
        whh = jnp.pad(_pad_gate_cols(layer["whh"], h, hp), ((0, hp - h), (0, 0)))
        b = jnp.pad(layer["b"].reshape(4, h), ((0, 0), (0, hp - h))).reshape(4 * hp)
        lstm.append({"wih": wih.astype(jnp.bfloat16),
                     "whh": whh.astype(jnp.bfloat16),
                     "b": b.astype(jnp.float32)})
    pp["lstm"] = lstm

    wd, bd = params["dec_linear"]
    vocab = wd.shape[1]
    vp = _round_up(vocab, _LANE)
    pp["dec_linear"] = (jnp.pad(wd, ((0, hp - h), (0, vp - vocab))).astype(jnp.bfloat16),
                        jnp.pad(bd, (0, vp - vocab)).astype(jnp.float32))
    return pp


# ----------------------------------------------------------------------------
# Forward pass
# ----------------------------------------------------------------------------
def encoder_forward(pp, images):
    """images: (N, C, H, W) -> batch-padded features (Bp, embed_size)."""
    x = jnp.transpose(images, (0, 2, 3, 1)).astype(jnp.float32)    # NCHW -> NHWC
    pooled = pallas_encoder_features(x, pp["convs"][0], pp["convs"][1])
    n = pooled.shape[0]
    flat = pooled.reshape(n, -1)                                    # NHWC flatten
    bp = _round_up(max(n, _SUBLANE), _SUBLANE)                      # batch -> sublanes
    flat = jnp.pad(flat, ((0, bp - n), (0, 0)))
    feat = pallas_fc_tail(flat, pp["fc1"], pp["fc2"], pp["enc_linear"])  # (Bp, Ep)
    return feat[:, :pp["embed"].shape[1]]                           # (Bp, E)


def decoder_forward(pp, features_p, captions, vocab_size):
    """features_p: (Bp, E) batch-padded; captions: (T, B) -> (T+1, B, V)."""
    t, b = captions.shape
    bp = features_p.shape[0]
    cap_p = jnp.pad(captions, ((0, 0), (0, bp - b)))
    emb = jnp.take(pp["embed"], cap_p, axis=0)                      # (T, Bp, E)
    # TODO(synk): nn.Dropout(0.5) on the embeddings is applied as identity
    # (eval-mode semantics).
    x = jnp.concatenate([features_p[None], emb], axis=0)            # (T+1, Bp, E)
    logits = pallas_decoder(x, pp["lstm"], pp["dec_linear"])        # (T+1, Bp, Vp)
    return logits[:, :b, :vocab_size]                               # drop padding


@functools.partial(jax.jit, static_argnames=("vocab_size",))
def cnn_to_rnn_forward(pp, images, captions, *, vocab_size):
    features = encoder_forward(pp, images)
    return decoder_forward(pp, features, captions, vocab_size)


# ----------------------------------------------------------------------------
# Main
# ----------------------------------------------------------------------------
if __name__ == "__main__":
    embed_size = 32
    hidden_size = 32
    vocab_size = 50
    num_layers = 2
    batch = 2
    in_channels = 3
    image_hw = 16
    seq_len = 8

    key = jax.random.PRNGKey(0)
    k_param, k_img, k_cap = jax.random.split(key, 3)

    params = init_params(
        k_param,
        in_channels=in_channels, image_hw=image_hw,
        embed_size=embed_size, hidden_size=hidden_size,
        vocab_size=vocab_size, num_layers=num_layers,
    )
    pparams = prepare_params(params)     # pad + bf16-cast once, outside jit

    images = jax.random.normal(k_img, (batch, in_channels, image_hw, image_hw),
                               dtype=jnp.float32)
    captions = jax.random.randint(k_cap, (seq_len, batch), 0, vocab_size,
                                  dtype=jnp.int32)

    out = cnn_to_rnn_forward(pparams, images, captions, vocab_size=vocab_size)
    out = jax.block_until_ready(out)

    assert out.shape == (seq_len + 1, batch, vocab_size), out.shape
    assert out.dtype == jnp.float32
    assert bool(jnp.all(jnp.isfinite(out)))
    print("KERNEL_OK")
</pallas_src>

<mosaic_0001>
module attributes {stable_mosaic.version = 11 : i64} {
  func.func @_encoder_features_kernel(%arg0: i32, %arg1: memref<1x18x18x3xf32, #tpu.memory_space<vmem>>, %arg2: memref<9x3x8xf32, #tpu.memory_space<vmem>>, %arg3: memref<1x8xf32, #tpu.memory_space<vmem>>, %arg4: memref<9x8x16xf32, #tpu.memory_space<vmem>>, %arg5: memref<1x16xf32, #tpu.memory_space<vmem>>, %arg6: memref<1x16x16xf32, #tpu.memory_space<vmem>>, %arg7: memref<128x8xf32, #tpu.memory_space<vmem>>, %arg8: memref<32x16xf32, #tpu.memory_space<vmem>>, %arg9: memref<10x10x8xf32, #tpu.memory_space<vmem>>) attributes {dimension_semantics = [#tpu.dimension_semantics<parallel>], iteration_bounds = array<i64: 2>, scalar_prefetch = 0 : i64, scratch_operands = 3 : i64, tpu.core_type = #tpu.core_type<tc>, window_params = [{transform_indices = @transform_0, window_bounds = array<i64: 1, 18, 18, 3>}, {pipeline_mode = #tpu.pipeline_mode<synchronous>, transform_indices = @transform_1, window_bounds = array<i64: 9, 3, 8>}, {pipeline_mode = #tpu.pipeline_mode<synchronous>, transform_indices = @transform_2, window_bounds = array<i64: 1, 8>}, {pipeline_mode = #tpu.pipeline_mode<synchronous>, transform_indices = @transform_3, window_bounds = array<i64: 9, 8, 16>}, {pipeline_mode = #tpu.pipeline_mode<synchronous>, transform_indices = @transform_4, window_bounds = array<i64: 1, 16>}, {transform_indices = @transform_5, window_bounds = array<i64: 1, 16, 16>}]} {
    %c0 = arith.constant 0 : index
    %c0_0 = arith.constant 0 : index
    %c0_1 = arith.constant 0 : index
    %c0_2 = arith.constant 0 : index
    %0 = vector.load %arg1[%c0, %c0_0, %c0_1, %c0_2] : memref<1x18x18x3xf32, #tpu.memory_space<vmem>>, vector<1x18x18x3xf32>
    %1 = vector.shape_cast %0 : vector<1x18x18x3xf32> to vector<18x18x3xf32>
    %cst = arith.constant 0.000000e+00 : f32
    %2 = vector.broadcast %cst : f32 to vector<256x8xf32>
    %3 = vector.extract_strided_slice %1 {offsets = [0, 0, 0], sizes = [16, 16, 3], strides = [1, 1, 1]} : vector<18x18x3xf32> to vector<16x16x3xf32>
    %4 = vector.shape_cast %3 : vector<16x16x3xf32> to vector<256x3xf32>
    %c0_3 = arith.constant 0 : index
    %c0_4 = arith.constant 0 : index
    %c0_5 = arith.constant 0 : index
    %5 = vector.load %arg2[%c0_3, %c0_4, %c0_5] : memref<9x3x8xf32, #tpu.memory_space<vmem>>, vector<1x3x8xf32>
    %6 = vector.shape_cast %5 : vector<1x3x8xf32> to vector<3x8xf32>
    %cst_6 = arith.constant dense<0.000000e+00> : vector<256x8xf32>
    %7 = tpu.matmul %4, %6, %cst_6 {dimension_numbers = #tpu.dot_dimension_numbers<[1], [0], [0], [1], [0, 0, 1, 1], [], []>} : vector<256x3xf32>, vector<3x8xf32>, vector<256x8xf32> -> vector<256x8xf32>
    %8 = arith.addf %2, %7 : vector<256x8xf32>
    %9 = vector.extract_strided_slice %1 {offsets = [0, 1, 0], sizes = [16, 16, 3], strides = [1, 1, 1]} : vector<18x18x3xf32> to vector<16x16x3xf32>
    %10 = vector.shape_cast %9 : vector<16x16x3xf32> to vector<256x3xf32>
    %c1 = arith.constant 1 : index
    %c0_7 = arith.constant 0 : index
    %c0_8 = arith.constant 0 : index
    %11 = vector.load %arg2[%c1, %c0_7, %c0_8] : memref<9x3x8xf32, #tpu.memory_space<vmem>>, vector<1x3x8xf32>
    %12 = vector.shape_cast %11 : vector<1x3x8xf32> to vector<3x8xf32>
    %cst_9 = arith.constant dense<0.000000e+00> : vector<256x8xf32>
    %13 = tpu.matmul %10, %12, %cst_9 {dimension_numbers = #tpu.dot_dimension_numbers<[1], [0], [0], [1], [0, 0, 1, 1], [], []>} : vector<256x3xf32>, vector<3x8xf32>, vector<256x8xf32> -> vector<256x8xf32>
    %14 = arith.addf %8, %13 : vector<256x8xf32>
    %15 = vector.extract_strided_slice %1 {offsets = [0, 2, 0], sizes = [16, 16, 3], strides = [1, 1, 1]} : vector<18x18x3xf32> to vector<16x16x3xf32>
    %16 = vector.shape_cast %15 : vector<16x16x3xf32> to vector<256x3xf32>
    %c2 = arith.constant 2 : index
    %c0_10 = arith.constant 0 : index
    %c0_11 = arith.constant 0 : index
    %17 = vector.load %arg2[%c2, %c0_10, %c0_11] : memref<9x3x8xf32, #tpu.memory_space<vmem>>, vector<1x3x8xf32>
    %18 = vector.shape_cast %17 : vector<1x3x8xf32> to vector<3x8xf32>
    %cst_12 = arith.constant dense<0.000000e+00> : vector<256x8xf32>
    %19 = tpu.matmul %16, %18, %cst_12 {dimension_numbers = #tpu.dot_dimension_numbers<[1], [0], [0], [1], [0, 0, 1, 1], [], []>} : vector<256x3xf32>, vector<3x8xf32>, vector<256x8xf32> -> vector<256x8xf32>
    %20 = arith.addf %14, %19 : vector<256x8xf32>
    %21 = vector.extract_strided_slice %1 {offsets = [1, 0, 0], sizes = [16, 16, 3], strides = [1, 1, 1]} : vector<18x18x3xf32> to vector<16x16x3xf32>
    %22 = vector.shape_cast %21 : vector<16x16x3xf32> to vector<256x3xf32>
    %c3 = arith.constant 3 : index
    %c0_13 = arith.constant 0 : index
    %c0_14 = arith.constant 0 : index
    %23 = vector.load %arg2[%c3, %c0_13, %c0_14] : memref<9x3x8xf32, #tpu.memory_space<vmem>>, vector<1x3x8xf32>
    %24 = vector.shape_cast %23 : vector<1x3x8xf32> to vector<3x8xf32>
    %cst_15 = arith.constant dense<0.000000e+00> : vector<256x8xf32>
    %25 = tpu.matmul %22, %24, %cst_15 {dimension_numbers = #tpu.dot_dimension_numbers<[1], [0], [0], [1], [0, 0, 1, 1], [], []>} : vector<256x3xf32>, vector<3x8xf32>, vector<256x8xf32> -> vector<256x8xf32>
    %26 = arith.addf %20, %25 : vector<256x8xf32>
    %27 = vector.extract_strided_slice %1 {offsets = [1, 1, 0], sizes = [16, 16, 3], strides = [1, 1, 1]} : vector<18x18x3xf32> to vector<16x16x3xf32>
    %28 = vector.shape_cast %27 : vector<16x16x3xf32> to vector<256x3xf32>
    %c4 = arith.constant 4 : index
    %c0_16 = arith.constant 0 : index
    %c0_17 = arith.constant 0 : index
    %29 = vector.load %arg2[%c4, %c0_16, %c0_17] : memref<9x3x8xf32, #tpu.memory_space<vmem>>, vector<1x3x8xf32>
    %30 = vector.shape_cast %29 : vector<1x3x8xf32> to vector<3x8xf32>
    %cst_18 = arith.constant dense<0.000000e+00> : vector<256x8xf32>
    %31 = tpu.matmul %28, %30, %cst_18 {dimension_numbers = #tpu.dot_dimension_numbers<[1], [0], [0], [1], [0, 0, 1, 1], [], []>} : vector<256x3xf32>, vector<3x8xf32>, vector<256x8xf32> -> vector<256x8xf32>
    %32 = arith.addf %26, %31 : vector<256x8xf32>
    %33 = vector.extract_strided_slice %1 {offsets = [1, 2, 0], sizes = [16, 16, 3], strides = [1, 1, 1]} : vector<18x18x3xf32> to vector<16x16x3xf32>
    %34 = vector.shape_cast %33 : vector<16x16x3xf32> to vector<256x3xf32>
    %c5 = arith.constant 5 : index
    %c0_19 = arith.constant 0 : index
    %c0_20 = arith.constant 0 : index
    %35 = vector.load %arg2[%c5, %c0_19, %c0_20] : memref<9x3x8xf32, #tpu.memory_space<vmem>>, vector<1x3x8xf32>
    %36 = vector.shape_cast %35 : vector<1x3x8xf32> to vector<3x8xf32>
    %cst_21 = arith.constant dense<0.000000e+00> : vector<256x8xf32>
    %37 = tpu.matmul %34, %36, %cst_21 {dimension_numbers = #tpu.dot_dimension_numbers<[1], [0], [0], [1], [0, 0, 1, 1], [], []>} : vector<256x3xf32>, vector<3x8xf32>, vector<256x8xf32> -> vector<256x8xf32>
    %38 = arith.addf %32, %37 : vector<256x8xf32>
    %39 = vector.extract_strided_slice %1 {offsets = [2, 0, 0], sizes = [16, 16, 3], strides = [1, 1, 1]} : vector<18x18x3xf32> to vector<16x16x3xf32>
    %40 = vector.shape_cast %39 : vector<16x16x3xf32> to vector<256x3xf32>
    %c6 = arith.constant 6 : index
    %c0_22 = arith.constant 0 : index
    %c0_23 = arith.constant 0 : index
    %41 = vector.load %arg2[%c6, %c0_22, %c0_23] : memref<9x3x8xf32, #tpu.memory_space<vmem>>, vector<1x3x8xf32>
    %42 = vector.shape_cast %41 : vector<1x3x8xf32> to vector<3x8xf32>
    %cst_24 = arith.constant dense<0.000000e+00> : vector<256x8xf32>
    %43 = tpu.matmul %40, %42, %cst_24 {dimension_numbers = #tpu.dot_dimension_numbers<[1], [0], [0], [1], [0, 0, 1, 1], [], []>} : vector<256x3xf32>, vector<3x8xf32>, vector<256x8xf32> -> vector<256x8xf32>
    %44 = arith.addf %38, %43 : vector<256x8xf32>
    %45 = vector.extract_strided_slice %1 {offsets = [2, 1, 0], sizes = [16, 16, 3], strides = [1, 1, 1]} : vector<18x18x3xf32> to vector<16x16x3xf32>
    %46 = vector.shape_cast %45 : vector<16x16x3xf32> to vector<256x3xf32>
    %c7 = arith.constant 7 : index
    %c0_25 = arith.constant 0 : index
    %c0_26 = arith.constant 0 : index
    %47 = vector.load %arg2[%c7, %c0_25, %c0_26] : memref<9x3x8xf32, #tpu.memory_space<vmem>>, vector<1x3x8xf32>
    %48 = vector.shape_cast %47 : vector<1x3x8xf32> to vector<3x8xf32>
    %cst_27 = arith.constant dense<0.000000e+00> : vector<256x8xf32>
    %49 = tpu.matmul %46, %48, %cst_27 {dimension_numbers = #tpu.dot_dimension_numbers<[1], [0], [0], [1], [0, 0, 1, 1], [], []>} : vector<256x3xf32>, vector<3x8xf32>, vector<256x8xf32> -> vector<256x8xf32>
    %50 = arith.addf %44, %49 : vector<256x8xf32>
    %51 = vector.extract_strided_slice %1 {offsets = [2, 2, 0], sizes = [16, 16, 3], strides = [1, 1, 1]} : vector<18x18x3xf32> to vector<16x16x3xf32>
    %52 = vector.shape_cast %51 : vector<16x16x3xf32> to vector<256x3xf32>
    %c8 = arith.constant 8 : index
    %c0_28 = arith.constant 0 : index
    %c0_29 = arith.constant 0 : index
    %53 = vector.load %arg2[%c8, %c0_28, %c0_29] : memref<9x3x8xf32, #tpu.memory_space<vmem>>, vector<1x3x8xf32>
    %54 = vector.shape_cast %53 : vector<1x3x8xf32> to vector<3x8xf32>
    %cst_30 = arith.constant dense<0.000000e+00> : vector<256x8xf32>
    %55 = tpu.matmul %52, %54, %cst_30 {dimension_numbers = #tpu.dot_dimension_numbers<[1], [0], [0], [1], [0, 0, 1, 1], [], []>} : vector<256x3xf32>, vector<3x8xf32>, vector<256x8xf32> -> vector<256x8xf32>
    %56 = arith.addf %50, %55 : vector<256x8xf32>
    %c0_31 = arith.constant 0 : index
    %c0_32 = arith.constant 0 : index
    %57 = vector.load %arg3[%c0_31, %c0_32] : memref<1x8xf32, #tpu.memory_space<vmem>>, vector<1x8xf32>
    %58 = vector.broadcast %57 : vector<1x8xf32> to vector<256x8xf32>
    %59 = arith.addf %56, %58 : vector<256x8xf32>
    %cst_33 = arith.constant 0.000000e+00 : f32
    %60 = vector.broadcast %cst_33 : f32 to vector<256x8xf32>
    %61 = arith.maximumf %59, %60 : vector<256x8xf32>
    %62 = vector.shape_cast %61 : vector<256x8xf32> to vector<16x16x8xf32>
    %63 = vector.shape_cast %62 : vector<16x16x8xf32> to vector<8x2x16x8xf32>
    %cst_34 = arith.constant dense<0xFF800000> : vector<8x16x8xf32>
    %64 = vector.multi_reduction <maximumf>, %63, %cst_34 [1] : vector<8x2x16x8xf32> to vector<8x16x8xf32>
    %65 = vector.shape_cast %64 : vector<8x16x8xf32> to vector<128x8xf32>
    %c0_35 = arith.constant 0 : index
    %c0_36 = arith.constant 0 : index
    %66 = vector.load %arg7[%c0_35, %c0_36] : memref<128x8xf32, #tpu.memory_space<vmem>>, vector<128x8xf32>
    tpu.vector_store %arg7[%c0_35, %c0_36], %65 {strides = array<i32>} : memref<128x8xf32, #tpu.memory_space<vmem>>, vector<128x8xf32>,
    %c0_37 = arith.constant 0 : index
    %c0_38 = arith.constant 0 : index
    %67 = tpu.strided_load %arg7[%c0_37, %c0_38] {strides = array<i32: 2, 1>} : memref<128x8xf32, #tpu.memory_space<vmem>>, vector<64x8xf32>
    %c1_39 = arith.constant 1 : index
    %c0_40 = arith.constant 0 : index
    %68 = tpu.strided_load %arg7[%c1_39, %c0_40] {strides = array<i32: 2, 1>} : memref<128x8xf32, #tpu.memory_space<vmem>>, vector<64x8xf32>
    %69 = arith.maximumf %67, %68 : vector<64x8xf32>
    %cst_41 = arith.constant 0.000000e+00 : f32
    %70 = vector.broadcast %cst_41 : f32 to vector<10x10x8xf32>
    %c0_42 = arith.constant 0 : index
    %c0_43 = arith.constant 0 : index
    %c0_44 = arith.constant 0 : index
    %71 = vector.load %arg9[%c0_42, %c0_43, %c0_44] : memref<10x10x8xf32, #tpu.memory_space<vmem>>, vector<10x10x8xf32>
    tpu.vector_store %arg9[%c0_42, %c0_43, %c0_44], %70 {strides = array<i32>} : memref<10x10x8xf32, #tpu.memory_space<vmem>>, vector<10x10x8xf32>,
    %72 = vector.shape_cast %69 : vector<64x8xf32> to vector<8x8x8xf32>
    %c1_45 = arith.constant 1 : index
    %c1_46 = arith.constant 1 : index
    %c0_47 = arith.constant 0 : index
    %73 = vector.load %arg9[%c1_45, %c1_46, %c0_47] : memref<10x10x8xf32, #tpu.memory_space<vmem>>, vector<8x8x8xf32>
    tpu.vector_store %arg9[%c1_45, %c1_46, %c0_47], %72 {strides = array<i32>} : memref<10x10x8xf32, #tpu.memory_space<vmem>>, vector<8x8x8xf32>,
    %c0_48 = arith.constant 0 : index
    %c0_49 = arith.constant 0 : index
    %c0_50 = arith.constant 0 : index
    %74 = vector.load %arg9[%c0_48, %c0_49, %c0_50] : memref<10x10x8xf32, #tpu.memory_space<vmem>>, vector<10x10x8xf32>
    %cst_51 = arith.constant 0.000000e+00 : f32
    %75 = vector.broadcast %cst_51 : f32 to vector<64x16xf32>
    %76 = vector.extract_strided_slice %74 {offsets = [0, 0, 0], sizes = [8, 8, 8], strides = [1, 1, 1]} : vector<10x10x8xf32> to vector<8x8x8xf32>
    %77 = vector.shape_cast %76 : vector<8x8x8xf32> to vector<64x8xf32>
    %c0_52 = arith.constant 0 : index
    %c0_53 = arith.constant 0 : index
    %c0_54 = arith.constant 0 : index
    %78 = vector.load %arg4[%c0_52, %c0_53, %c0_54] : memref<9x8x16xf32, #tpu.memory_space<vmem>>, vector<1x8x16xf32>
    %79 = vector.shape_cast %78 : vector<1x8x16xf32> to vector<8x16xf32>
    %cst_55 = arith.constant dense<0.000000e+00> : vector<64x16xf32>
    %80 = tpu.matmul %77, %79, %cst_55 {dimension_numbers = #tpu.dot_dimension_numbers<[1], [0], [0], [1], [0, 0, 1, 1], [], []>} : vector<64x8xf32>, vector<8x16xf32>, vector<64x16xf32> -> vector<64x16xf32>
    %81 = arith.addf %75, %80 : vector<64x16xf32>
    %82 = vector.extract_strided_slice %74 {offsets = [0, 1, 0], sizes = [8, 8, 8], strides = [1, 1, 1]} : vector<10x10x8xf32> to vector<8x8x8xf32>
    %83 = vector.shape_cast %82 : vector<8x8x8xf32> to vector<64x8xf32>
    %c1_56 = arith.constant 1 : index
    %c0_57 = arith.constant 0 : index
    %c0_58 = arith.constant 0 : index
    %84 = vector.load %arg4[%c1_56, %c0_57, %c0_58] : memref<9x8x16xf32, #tpu.memory_space<vmem>>, vector<1x8x16xf32>
    %85 = vector.shape_cast %84 : vector<1x8x16xf32> to vector<8x16xf32>
    %cst_59 = arith.constant dense<0.000000e+00> : vector<64x16xf32>
    %86 = tpu.matmul %83, %85, %cst_59 {dimension_numbers = #tpu.dot_dimension_numbers<[1], [0], [0], [1], [0, 0, 1, 1], [], []>} : vector<64x8xf32>, vector<8x16xf32>, vector<64x16xf32> -> vector<64x16xf32>
    %87 = arith.addf %81, %86 : vector<64x16xf32>
    %88 = vector.extract_strided_slice %74 {offsets = [0, 2, 0], sizes = [8, 8, 8], strides = [1, 1, 1]} : vector<10x10x8xf32> to vector<8x8x8xf32>
    %89 = vector.shape_cast %88 : vector<8x8x8xf32> to vector<64x8xf32>
    %c2_60 = arith.constant 2 : index
    %c0_61 = arith.constant 0 : index
    %c0_62 = arith.constant 0 : index
    %90 = vector.load %arg4[%c2_60, %c0_61, %c0_62] : memref<9x8x16xf32, #tpu.memory_space<vmem>>, vector<1x8x16xf32>
    %91 = vector.shape_cast %90 : vector<1x8x16xf32> to vector<8x16xf32>
    %cst_63 = arith.constant dense<0.000000e+00> : vector<64x16xf32>
    %92 = tpu.matmul %89, %91, %cst_63 {dimension_numbers = #tpu.dot_dimension_numbers<[1], [0], [0], [1], [0, 0, 1, 1], [], []>} : vector<64x8xf32>, vector<8x16xf32>, vector<64x16xf32> -> vector<64x16xf32>
    %93 = arith.addf %87, %92 : vector<64x16xf32>
    %94 = vector.extract_strided_slice %74 {offsets = [1, 0, 0], sizes = [8, 8, 8], strides = [1, 1, 1]} : vector<10x10x8xf32> to vector<8x8x8xf32>
    %95 = vector.shape_cast %94 : vector<8x8x8xf32> to vector<64x8xf32>
    %c3_64 = arith.constant 3 : index
    %c0_65 = arith.constant 0 : index
    %c0_66 = arith.constant 0 : index
    %96 = vector.load %arg4[%c3_64, %c0_65, %c0_66] : memref<9x8x16xf32, #tpu.memory_space<vmem>>, vector<1x8x16xf32>
    %97 = vector.shape_cast %96 : vector<1x8x16xf32> to vector<8x16xf32>
    %cst_67 = arith.constant dense<0.000000e+00> : vector<64x16xf32>
    %98 = tpu.matmul %95, %97, %cst_67 {dimension_numbers = #tpu.dot_dimension_numbers<[1], [0], [0], [1], [0, 0, 1, 1], [], []>} : vector<64x8xf32>, vector<8x16xf32>, vector<64x16xf32> -> vector<64x16xf32>
    %99 = arith.addf %93, %98 : vector<64x16xf32>
    %100 = vector.extract_strided_slice %74 {offsets = [1, 1, 0], sizes = [8, 8, 8], strides = [1, 1, 1]} : vector<10x10x8xf32> to vector<8x8x8xf32>
    %101 = vector.shape_cast %100 : vector<8x8x8xf32> to vector<64x8xf32>
    %c4_68 = arith.constant 4 : index
    %c0_69 = arith.constant 0 : index
    %c0_70 = arith.constant 0 : index
    %102 = vector.load %arg4[%c4_68, %c0_69, %c0_70] : memref<9x8x16xf32, #tpu.memory_space<vmem>>, vector<1x8x16xf32>
    %103 = vector.shape_cast %102 : vector<1x8x16xf32> to vector<8x16xf32>
    %cst_71 = arith.constant dense<0.000000e+00> : vector<64x16xf32>
    %104 = tpu.matmul %101, %103, %cst_71 {dimension_numbers = #tpu.dot_dimension_numbers<[1], [0], [0], [1], [0, 0, 1, 1], [], []>} : vector<64x8xf32>, vector<8x16xf32>, vector<64x16xf32> -> vector<64x16xf32>
    %105 = arith.addf %99, %104 : vector<64x16xf32>
    %106 = vector.extract_strided_slice %74 {offsets = [1, 2, 0], sizes = [8, 8, 8], strides = [1, 1, 1]} : vector<10x10x8xf32> to vector<8x8x8xf32>
    %107 = vector.shape_cast %106 : vector<8x8x8xf32> to vector<64x8xf32>
    %c5_72 = arith.constant 5 : index
    %c0_73 = arith.constant 0 : index
    %c0_74 = arith.constant 0 : index
    %108 = vector.load %arg4[%c5_72, %c0_73, %c0_74] : memref<9x8x16xf32, #tpu.memory_space<vmem>>, vector<1x8x16xf32>
    %109 = vector.shape_cast %108 : vector<1x8x16xf32> to vector<8x16xf32>
    %cst_75 = arith.constant dense<0.000000e+00> : vector<64x16xf32>
    %110 = tpu.matmul %107, %109, %cst_75 {dimension_numbers = #tpu.dot_dimension_numbers<[1], [0], [0], [1], [0, 0, 1, 1], [], []>} : vector<64x8xf32>, vector<8x16xf32>, vector<64x16xf32> -> vector<64x16xf32>
    %111 = arith.addf %105, %110 : vector<64x16xf32>
    %112 = vector.extract_strided_slice %74 {offsets = [2, 0, 0], sizes = [8, 8, 8], strides = [1, 1, 1]} : vector<10x10x8xf32> to vector<8x8x8xf32>
    %113 = vector.shape_cast %112 : vector<8x8x8xf32> to vector<64x8xf32>
    %c6_76 = arith.constant 6 : index
    %c0_77 = arith.constant 0 : index
    %c0_78 = arith.constant 0 : index
    %114 = vector.load %arg4[%c6_76, %c0_77, %c0_78] : memref<9x8x16xf32, #tpu.memory_space<vmem>>, vector<1x8x16xf32>
    %115 = vector.shape_cast %114 : vector<1x8x16xf32> to vector<8x16xf32>
    %cst_79 = arith.constant dense<0.000000e+00> : vector<64x16xf32>
    %116 = tpu.matmul %113, %115, %cst_79 {dimension_numbers = #tpu.dot_dimension_numbers<[1], [0], [0], [1], [0, 0, 1, 1], [], []>} : vector<64x8xf32>, vector<8x16xf32>, vector<64x16xf32> -> vector<64x16xf32>
    %117 = arith.addf %111, %116 : vector<64x16xf32>
    %118 = vector.extract_strided_slice %74 {offsets = [2, 1, 0], sizes = [8, 8, 8], strides = [1, 1, 1]} : vector<10x10x8xf32> to vector<8x8x8xf32>
    %119 = vector.shape_cast %118 : vector<8x8x8xf32> to vector<64x8xf32>
    %c7_80 = arith.constant 7 : index
    %c0_81 = arith.constant 0 : index
    %c0_82 = arith.constant 0 : index
    %120 = vector.load %arg4[%c7_80, %c0_81, %c0_82] : memref<9x8x16xf32, #tpu.memory_space<vmem>>, vector<1x8x16xf32>
    %121 = vector.shape_cast %120 : vector<1x8x16xf32> to vector<8x16xf32>
    %cst_83 = arith.constant dense<0.000000e+00> : vector<64x16xf32>
    %122 = tpu.matmul %119, %121, %cst_83 {dimension_numbers = #tpu.dot_dimension_numbers<[1], [0], [0], [1], [0, 0, 1, 1], [], []>} : vector<64x8xf32>, vector<8x16xf32>, vector<64x16xf32> -> vector<64x16xf32>
    %123 = arith.addf %117, %122 : vector<64x16xf32>
    %124 = vector.extract_strided_slice %74 {offsets = [2, 2, 0], sizes = [8, 8, 8], strides = [1, 1, 1]} : vector<10x10x8xf32> to vector<8x8x8xf32>
    %125 = vector.shape_cast %124 : vector<8x8x8xf32> to vector<64x8xf32>
    %c8_84 = arith.constant 8 : index
    %c0_85 = arith.constant 0 : index
    %c0_86 = arith.constant 0 : index
    %126 = vector.load %arg4[%c8_84, %c0_85, %c0_86] : memref<9x8x16xf32, #tpu.memory_space<vmem>>, vector<1x8x16xf32>
    %127 = vector.shape_cast %126 : vector<1x8x16xf32> to vector<8x16xf32>
    %cst_87 = arith.constant dense<0.000000e+00> : vector<64x16xf32>
    %128 = tpu.matmul %125, %127, %cst_87 {dimension_numbers = #tpu.dot_dimension_numbers<[1], [0], [0], [1], [0, 0, 1, 1], [], []>} : vector<64x8xf32>, vector<8x16xf32>, vector<64x16xf32> -> vector<64x16xf32>
    %129 = arith.addf %123, %128 : vector<64x16xf32>
    %c0_88 = arith.constant 0 : index
    %c0_89 = arith.constant 0 : index
    %130 = vector.load %arg5[%c0_88, %c0_89] : memref<1x16xf32, #tpu.memory_space<vmem>>, vector<1x16xf32>
    %131 = vector.broadcast %130 : vector<1x16xf32> to vector<64x16xf32>
    %132 = arith.addf %129, %131 : vector<64x16xf32>
    %cst_90 = arith.constant 0.000000e+00 : f32
    %133 = vector.broadcast %cst_90 : f32 to vector<64x16xf32>
    %134 = arith.maximumf %132, %133 : vector<64x16xf32>
    %135 = vector.shape_cast %134 : vector<64x16xf32> to vector<8x8x16xf32>
    %136 = vector.shape_cast %135 : vector<8x8x16xf32> to vector<4x2x8x16xf32>
    %cst_91 = arith.constant dense<0xFF800000> : vector<4x8x16xf32>
    %137 = vector.multi_reduction <maximumf>, %136, %cst_91 [1] : vector<4x2x8x16xf32> to vector<4x8x16xf32>
    %138 = vector.shape_cast %137 : vector<4x8x16xf32> to vector<32x16xf32>
    %c0_92 = arith.constant 0 : index
    %c0_93 = arith.constant 0 : index
    %139 = vector.load %arg8[%c0_92, %c0_93] : memref<32x16xf32, #tpu.memory_space<vmem>>, vector<32x16xf32>
    tpu.vector_store %arg8[%c0_92, %c0_93], %138 {strides = array<i32>} : memref<32x16xf32, #tpu.memory_space<vmem>>, vector<32x16xf32>,
    %c0_94 = arith.constant 0 : index
    %c0_95 = arith.constant 0 : index
    %140 = tpu.strided_load %arg8[%c0_94, %c0_95] {strides = array<i32: 2, 1>} : memref<32x16xf32, #tpu.memory_space<vmem>>, vector<16x16xf32>
    %c1_96 = arith.constant 1 : index
    %c0_97 = arith.constant 0 : index
    %141 = tpu.strided_load %arg8[%c1_96, %c0_97] {strides = array<i32: 2, 1>} : memref<32x16xf32, #tpu.memory_space<vmem>>, vector<16x16xf32>
    %142 = arith.maximumf %140, %141 : vector<16x16xf32>
    %c0_98 = arith.constant 0 : index
    %c0_99 = arith.constant 0 : index
    %c0_100 = arith.constant 0 : index
    %143 = vector.load %arg6[%c0_98, %c0_99, %c0_100] : memref<1x16x16xf32, #tpu.memory_space<vmem>>, vector<1x16x16xf32>
    %144 = vector.shape_cast %143 : vector<1x16x16xf32> to vector<16x16xf32>
    %145 = vector.shape_cast %142 : vector<16x16xf32> to vector<1x16x16xf32>
    tpu.vector_store %arg6[%c0_98, %c0_99, %c0_100], %145 {strides = array<i32>} : memref<1x16x16xf32, #tpu.memory_space<vmem>>, vector<1x16x16xf32>,
    return
  }
  func.func @transform_0(%arg0: i32) -> (i32, i32, i32, i32) {
    %c0_i32 = arith.constant 0 : i32
    %c0_i32_0 = arith.constant 0 : i32
    %c0_i32_1 = arith.constant 0 : i32
    %c0_i32_2 = arith.constant 0 : i32
    return %arg0, %c0_i32, %c0_i32_0, %c0_i32_1 : i32, i32, i32, i32
  }
  func.func @transform_1(%arg0: i32) -> (i32, i32, i32) {
    %c0_i32 = arith.constant 0 : i32
    %c0_i32_0 = arith.constant 0 : i32
    %c0_i32_1 = arith.constant 0 : i32
    %c0_i32_2 = arith.constant 0 : i32
    return %c0_i32, %c0_i32_0, %c0_i32_1 : i32, i32, i32
  }
  func.func @transform_2(%arg0: i32) -> (i32, i32) {
    %c0_i32 = arith.constant 0 : i32
    %c0_i32_0 = arith.constant 0 : i32
    %c0_i32_1 = arith.constant 0 : i32
    return %c0_i32, %c0_i32_0 : i32, i32
  }
  func.func @transform_3(%arg0: i32) -> (i32, i32, i32) {
    %c0_i32 = arith.constant 0 : i32
    %c0_i32_0 = arith.constant 0 : i32
    %c0_i32_1 = arith.constant 0 : i32
    %c0_i32_2 = arith.constant 0 : i32
    return %c0_i32, %c0_i32_0, %c0_i32_1 : i32, i32, i32
  }
  func.func @transform_4(%arg0: i32) -> (i32, i32) {
    %c0_i32 = arith.constant 0 : i32
    %c0_i32_0 = arith.constant 0 : i32
    %c0_i32_1 = arith.constant 0 : i32
    return %c0_i32, %c0_i32_0 : i32, i32
  }
  func.func @transform_5(%arg0: i32) -> (i32, i32, i32) {
    %c0_i32 = arith.constant 0 : i32
    %c0_i32_0 = arith.constant 0 : i32
    %c0_i32_1 = arith.constant 0 : i32
    return %arg0, %c0_i32, %c0_i32_0 : i32, i32, i32
  }
}

module attributes {stable_mosaic.version = 11 : i64} {
  func.func @_fc_tail_kernel(%arg0: memref<8x256xf32, #tpu.memory_space<vmem>>, %arg1: memref<256x128xbf16, #tpu.memory_space<vmem>>, %arg2: memref<1x128xf32, #tpu.memory_space<vmem>>, %arg3: memref<128x128xbf16, #tpu.memory_space<vmem>>, %arg4: memref<1x128xf32, #tpu.memory_space<vmem>>, %arg5: memref<128x128xbf16, #tpu.memory_space<vmem>>, %arg6: memref<1x128xf32, #tpu.memory_space<vmem>>, %arg7: memref<8x128xf32, #tpu.memory_space<vmem>>) attributes {dimension_semantics = [], scalar_prefetch = 0 : i64, scratch_operands = 0 : i64, tpu.core_type = #tpu.core_type<tc>} {
    %c0 = arith.constant 0 : index
    %c0_0 = arith.constant 0 : index
    %0 = vector.load %arg0[%c0, %c0_0] : memref<8x256xf32, #tpu.memory_space<vmem>>, vector<8x256xf32>
    %c0_1 = arith.constant 0 : index
    %c0_2 = arith.constant 0 : index
    %1 = vector.load %arg1[%c0_1, %c0_2] : memref<256x128xbf16, #tpu.memory_space<vmem>>, vector<256x128xbf16>
    %2 = arith.truncf %0 : vector<8x256xf32> to vector<8x256xbf16>
    %cst = arith.constant dense<0.000000e+00> : vector<8x128xf32>
    %3 = tpu.matmul %2, %1, %cst {dimension_numbers = #tpu.dot_dimension_numbers<[1], [0], [0], [1], [0, 0, 1, 1], [], []>} : vector<8x256xbf16>, vector<256x128xbf16>, vector<8x128xf32> -> vector<8x128xf32>
    %c0_3 = arith.constant 0 : index
    %c0_4 = arith.constant 0 : index
    %4 = vector.load %arg2[%c0_3, %c0_4] : memref<1x128xf32, #tpu.memory_space<vmem>>, vector<1x128xf32>
    %5 = vector.broadcast %4 : vector<1x128xf32> to vector<8x128xf32>
    %6 = arith.addf %3, %5 : vector<8x128xf32>
    %cst_5 = arith.constant 0.000000e+00 : f32
    %7 = vector.broadcast %cst_5 : f32 to vector<8x128xf32>
    %8 = arith.maximumf %6, %7 : vector<8x128xf32>
    %c0_6 = arith.constant 0 : index
    %c0_7 = arith.constant 0 : index
    %9 = vector.load %arg3[%c0_6, %c0_7] : memref<128x128xbf16, #tpu.memory_space<vmem>>, vector<128x128xbf16>
    %10 = arith.truncf %8 : vector<8x128xf32> to vector<8x128xbf16>
    %cst_8 = arith.constant dense<0.000000e+00> : vector<8x128xf32>
    %11 = tpu.matmul %10, %9, %cst_8 {dimension_numbers = #tpu.dot_dimension_numbers<[1], [0], [0], [1], [0, 0, 1, 1], [], []>} : vector<8x128xbf16>, vector<128x128xbf16>, vector<8x128xf32> -> vector<8x128xf32>
    %c0_9 = arith.constant 0 : index
    %c0_10 = arith.constant 0 : index
    %12 = vector.load %arg4[%c0_9, %c0_10] : memref<1x128xf32, #tpu.memory_space<vmem>>, vector<1x128xf32>
    %13 = vector.broadcast %12 : vector<1x128xf32> to vector<8x128xf32>
    %14 = arith.addf %11, %13 : vector<8x128xf32>
    %cst_11 = arith.constant 0.000000e+00 : f32
    %15 = vector.broadcast %cst_11 : f32 to vector<8x128xf32>
    %16 = arith.maximumf %14, %15 : vector<8x128xf32>
    %c0_12 = arith.constant 0 : index
    %c0_13 = arith.constant 0 : index
    %17 = vector.load %arg5[%c0_12, %c0_13] : memref<128x128xbf16, #tpu.memory_space<vmem>>, vector<128x128xbf16>
    %18 = arith.truncf %16 : vector<8x128xf32> to vector<8x128xbf16>
    %cst_14 = arith.constant dense<0.000000e+00> : vector<8x128xf32>
    %19 = tpu.matmul %18, %17, %cst_14 {dimension_numbers = #tpu.dot_dimension_numbers<[1], [0], [0], [1], [0, 0, 1, 1], [], []>} : vector<8x128xbf16>, vector<128x128xbf16>, vector<8x128xf32> -> vector<8x128xf32>
    %c0_15 = arith.constant 0 : index
    %c0_16 = arith.constant 0 : index
    %20 = vector.load %arg6[%c0_15, %c0_16] : memref<1x128xf32, #tpu.memory_space<vmem>>, vector<1x128xf32>
    %21 = vector.broadcast %20 : vector<1x128xf32> to vector<8x128xf32>
    %22 = arith.addf %19, %21 : vector<8x128xf32>
    %cst_17 = arith.constant 0.000000e+00 : f32
    %23 = vector.broadcast %cst_17 : f32 to vector<8x128xf32>
    %24 = arith.maximumf %22, %23 : vector<8x128xf32>
    %c0_18 = arith.constant 0 : index
    %c0_19 = arith.constant 0 : index
    %25 = vector.load %arg7[%c0_18, %c0_19] : memref<8x128xf32, #tpu.memory_space<vmem>>, vector<8x128xf32>
    tpu.vector_store %arg7[%c0_18, %c0_19], %24 {strides = array<i32>} : memref<8x128xf32, #tpu.memory_space<vmem>>, vector<8x128xf32>,
    return
  }
}

module attributes {stable_mosaic.version = 11 : i64} {
  func.func @_decoder_kernel(%arg0: memref<9x8x32xf32, #tpu.memory_space<vmem>>, %arg1: memref<32x512xbf16, #tpu.memory_space<vmem>>, %arg2: memref<1x512xf32, #tpu.memory_space<vmem>>, %arg3: memref<128x512xbf16, #tpu.memory_space<vmem>>, %arg4: memref<128x512xbf16, #tpu.memory_space<vmem>>, %arg5: memref<1x512xf32, #tpu.memory_space<vmem>>, %arg6: memref<128x512xbf16, #tpu.memory_space<vmem>>, %arg7: memref<128x128xbf16, #tpu.memory_space<vmem>>, %arg8: memref<1x128xf32, #tpu.memory_space<vmem>>, %arg9: memref<9x8x128xf32, #tpu.memory_space<vmem>>, %arg10: memref<9x8x128xf32, #tpu.memory_space<vmem>>) attributes {dimension_semantics = [], scalar_prefetch = 0 : i64, scratch_operands = 1 : i64, tpu.core_type = #tpu.core_type<tc>} {
    %c0 = arith.constant 0 : index
    %c0_0 = arith.constant 0 : index
    %c0_1 = arith.constant 0 : index
    %0 = vector.load %arg0[%c0, %c0_0, %c0_1] : memref<9x8x32xf32, #tpu.memory_space<vmem>>, vector<9x8x32xf32>
    %c0_2 = arith.constant 0 : index
    %c0_3 = arith.constant 0 : index
    %1 = vector.load %arg1[%c0_2, %c0_3] : memref<32x512xbf16, #tpu.memory_space<vmem>>, vector<32x512xbf16>
    %c0_4 = arith.constant 0 : index
    %c0_5 = arith.constant 0 : index
    %2 = vector.load %arg2[%c0_4, %c0_5] : memref<1x512xf32, #tpu.memory_space<vmem>>, vector<1x512xf32>
    %c0_6 = arith.constant 0 : index
    %c0_7 = arith.constant 0 : index
    %3 = vector.load %arg3[%c0_6, %c0_7] : memref<128x512xbf16, #tpu.memory_space<vmem>>, vector<128x512xbf16>
    %4 = vector.shape_cast %0 : vector<9x8x32xf32> to vector<72x32xf32>
    %5 = arith.truncf %4 : vector<72x32xf32> to vector<72x32xbf16>
    %cst = arith.constant dense<0.000000e+00> : vector<72x512xf32>
    %6 = tpu.matmul %5, %1, %cst {dimension_numbers = #tpu.dot_dimension_numbers<[1], [0], [0], [1], [0, 0, 1, 1], [], []>} : vector<72x32xbf16>, vector<32x512xbf16>, vector<72x512xf32> -> vector<72x512xf32>
    %7 = vector.broadcast %2 : vector<1x512xf32> to vector<72x512xf32>
    %8 = arith.addf %6, %7 : vector<72x512xf32>
    %9 = vector.shape_cast %8 : vector<72x512xf32> to vector<9x8x512xf32>
    %cst_8 = arith.constant 0.000000e+00 : f32
    %10 = vector.broadcast %cst_8 : f32 to vector<8x128xf32>
    %cst_9 = arith.constant 0.000000e+00 : f32
    %11 = vector.broadcast %cst_9 : f32 to vector<8x128xf32>
    %12 = vector.extract_strided_slice %9 {offsets = [0, 0, 0], sizes = [1, 8, 512], strides = [1, 1, 1]} : vector<9x8x512xf32> to vector<1x8x512xf32>
    %13 = vector.shape_cast %12 : vector<1x8x512xf32> to vector<8x512xf32>
    %14 = arith.truncf %10 : vector<8x128xf32> to vector<8x128xbf16>
    %cst_10 = arith.constant dense<0.000000e+00> : vector<8x512xf32>
    %15 = tpu.matmul %14, %3, %cst_10 {dimension_numbers = #tpu.dot_dimension_numbers<[1], [0], [0], [1], [0, 0, 1, 1], [], []>} : vector<8x128xbf16>, vector<128x512xbf16>, vector<8x512xf32> -> vector<8x512xf32>
    %16 = arith.addf %13, %15 : vector<8x512xf32>
    %17 = vector.extract_strided_slice %16 {offsets = [0, 0], sizes = [8, 128], strides = [1, 1]} : vector<8x512xf32> to vector<8x128xf32>
    %18 = arith.negf %17 : vector<8x128xf32>
    %19 = math.exp %18 : vector<8x128xf32>
    %cst_11 = arith.constant 1.000000e+00 : f32
    %20 = vector.broadcast %cst_11 : f32 to vector<8x128xf32>
    %21 = arith.addf %20, %19 : vector<8x128xf32>
    %22 = arith.divf %20, %21 : vector<8x128xf32>
    %23 = vector.extract_strided_slice %16 {offsets = [0, 128], sizes = [8, 128], strides = [1, 1]} : vector<8x512xf32> to vector<8x128xf32>
    %24 = arith.negf %23 : vector<8x128xf32>
    %25 = math.exp %24 : vector<8x128xf32>
    %cst_12 = arith.constant 1.000000e+00 : f32
    %26 = vector.broadcast %cst_12 : f32 to vector<8x128xf32>
    %27 = arith.addf %26, %25 : vector<8x128xf32>
    %28 = arith.divf %26, %27 : vector<8x128xf32>
    %29 = vector.extract_strided_slice %16 {offsets = [0, 256], sizes = [8, 128], strides = [1, 1]} : vector<8x512xf32> to vector<8x128xf32>
    %30 = math.tanh %29 : vector<8x128xf32>
    %31 = vector.extract_strided_slice %16 {offsets = [0, 384], sizes = [8, 128], strides = [1, 1]} : vector<8x512xf32> to vector<8x128xf32>
    %32 = arith.negf %31 : vector<8x128xf32>
    %33 = math.exp %32 : vector<8x128xf32>
    %cst_13 = arith.constant 1.000000e+00 : f32
    %34 = vector.broadcast %cst_13 : f32 to vector<8x128xf32>
    %35 = arith.addf %34, %33 : vector<8x128xf32>
    %36 = arith.divf %34, %35 : vector<8x128xf32>
    %37 = arith.mulf %28, %11 : vector<8x128xf32>
    %38 = arith.mulf %22, %30 : vector<8x128xf32>
    %39 = arith.addf %37, %38 : vector<8x128xf32>
    %40 = math.tanh %39 : vector<8x128xf32>
    %41 = arith.mulf %36, %40 : vector<8x128xf32>
    %c0_14 = arith.constant 0 : index
    %c0_15 = arith.constant 0 : index
    %c0_16 = arith.constant 0 : index
    %42 = vector.load %arg10[%c0_14, %c0_15, %c0_16] : memref<9x8x128xf32, #tpu.memory_space<vmem>>, vector<1x8x128xf32>
    %43 = vector.shape_cast %42 : vector<1x8x128xf32> to vector<8x128xf32>
    %44 = vector.shape_cast %41 : vector<8x128xf32> to vector<1x8x128xf32>
    tpu.vector_store %arg10[%c0_14, %c0_15, %c0_16], %44 {strides = array<i32>} : memref<9x8x128xf32, #tpu.memory_space<vmem>>, vector<1x8x128xf32>,
    %45 = vector.extract_strided_slice %9 {offsets = [1, 0, 0], sizes = [1, 8, 512], strides = [1, 1, 1]} : vector<9x8x512xf32> to vector<1x8x512xf32>
    %46 = vector.shape_cast %45 : vector<1x8x512xf32> to vector<8x512xf32>
    %47 = arith.truncf %41 : vector<8x128xf32> to vector<8x128xbf16>
    %cst_17 = arith.constant dense<0.000000e+00> : vector<8x512xf32>
    %48 = tpu.matmul %47, %3, %cst_17 {dimension_numbers = #tpu.dot_dimension_numbers<[1], [0], [0], [1], [0, 0, 1, 1], [], []>} : vector<8x128xbf16>, vector<128x512xbf16>, vector<8x512xf32> -> vector<8x512xf32>
    %49 = arith.addf %46, %48 : vector<8x512xf32>
    %50 = vector.extract_strided_slice %49 {offsets = [0, 0], sizes = [8, 128], strides = [1, 1]} : vector<8x512xf32> to vector<8x128xf32>
    %51 = arith.negf %50 : vector<8x128xf32>
    %52 = math.exp %51 : vector<8x128xf32>
    %cst_18 = arith.constant 1.000000e+00 : f32
    %53 = vector.broadcast %cst_18 : f32 to vector<8x128xf32>
    %54 = arith.addf %53, %52 : vector<8x128xf32>
    %55 = arith.divf %53, %54 : vector<8x128xf32>
    %56 = vector.extract_strided_slice %49 {offsets = [0, 128], sizes = [8, 128], strides = [1, 1]} : vector<8x512xf32> to vector<8x128xf32>
    %57 = arith.negf %56 : vector<8x128xf32>
    %58 = math.exp %57 : vector<8x128xf32>
    %cst_19 = arith.constant 1.000000e+00 : f32
    %59 = vector.broadcast %cst_19 : f32 to vector<8x128xf32>
    %60 = arith.addf %59, %58 : vector<8x128xf32>
    %61 = arith.divf %59, %60 : vector<8x128xf32>
    %62 = vector.extract_strided_slice %49 {offsets = [0, 256], sizes = [8, 128], strides = [1, 1]} : vector<8x512xf32> to vector<8x128xf32>
    %63 = math.tanh %62 : vector<8x128xf32>
    %64 = vector.extract_strided_slice %49 {offsets = [0, 384], sizes = [8, 128], strides = [1, 1]} : vector<8x512xf32> to vector<8x128xf32>
    %65 = arith.negf %64 : vector<8x128xf32>
    %66 = math.exp %65 : vector<8x128xf32>
    %cst_20 = arith.constant 1.000000e+00 : f32
    %67 = vector.broadcast %cst_20 : f32 to vector<8x128xf32>
    %68 = arith.addf %67, %66 : vector<8x128xf32>
    %69 = arith.divf %67, %68 : vector<8x128xf32>
    %70 = arith.mulf %61, %39 : vector<8x128xf32>
    %71 = arith.mulf %55, %63 : vector<8x128xf32>
    %72 = arith.addf %70, %71 : vector<8x128xf32>
    %73 = math.tanh %72 : vector<8x128xf32>
    %74 = arith.mulf %69, %73 : vector<8x128xf32>
    %c1 = arith.constant 1 : index
    %c0_21 = arith.constant 0 : index
    %c0_22 = arith.constant 0 : index
    %75 = vector.load %arg10[%c1, %c0_21, %c0_22] : memref<9x8x128xf32, #tpu.memory_space<vmem>>, vector<1x8x128xf32>
    %76 = vector.shape_cast %75 : vector<1x8x128xf32> to vector<8x128xf32>
    %77 = vector.shape_cast %74 : vector<8x128xf32> to vector<1x8x128xf32>
    tpu.vector_store %arg10[%c1, %c0_21, %c0_22], %77 {strides = array<i32>} : memref<9x8x128xf32, #tpu.memory_space<vmem>>, vector<1x8x128xf32>,
    %78 = vector.extract_strided_slice %9 {offsets = [2, 0, 0], sizes = [1, 8, 512], strides = [1, 1, 1]} : vector<9x8x512xf32> to vector<1x8x512xf32>
    %79 = vector.shape_cast %78 : vector<1x8x512xf32> to vector<8x512xf32>
    %80 = arith.truncf %74 : vector<8x128xf32> to vector<8x128xbf16>
    %cst_23 = arith.constant dense<0.000000e+00> : vector<8x512xf32>
    %81 = tpu.matmul %80, %3, %cst_23 {dimension_numbers = #tpu.dot_dimension_numbers<[1], [0], [0], [1], [0, 0, 1, 1], [], []>} : vector<8x128xbf16>, vector<128x512xbf16>, vector<8x512xf32> -> vector<8x512xf32>
    %82 = arith.addf %79, %81 : vector<8x512xf32>
    %83 = vector.extract_strided_slice %82 {offsets = [0, 0], sizes = [8, 128], strides = [1, 1]} : vector<8x512xf32> to vector<8x128xf32>
    %84 = arith.negf %83 : vector<8x128xf32>
    %85 = math.exp %84 : vector<8x128xf32>
    %cst_24 = arith.constant 1.000000e+00 : f32
    %86 = vector.broadcast %cst_24 : f32 to vector<8x128xf32>
    %87 = arith.addf %86, %85 : vector<8x128xf32>
    %88 = arith.divf %86, %87 : vector<8x128xf32>
    %89 = vector.extract_strided_slice %82 {offsets = [0, 128], sizes = [8, 128], strides = [1, 1]} : vector<8x512xf32> to vector<8x128xf32>
    %90 = arith.negf %89 : vector<8x128xf32>
    %91 = math.exp %90 : vector<8x128xf32>
    %cst_25 = arith.constant 1.000000e+00 : f32
    %92 = vector.broadcast %cst_25 : f32 to vector<8x128xf32>
    %93 = arith.addf %92, %91 : vector<8x128xf32>
    %94 = arith.divf %92, %93 : vector<8x128xf32>
    %95 = vector.extract_strided_slice %82 {offsets = [0, 256], sizes = [8, 128], strides = [1, 1]} : vector<8x512xf32> to vector<8x128xf32>
    %96 = math.tanh %95 : vector<8x128xf32>
    %97 = vector.extract_strided_slice %82 {offsets = [0, 384], sizes = [8, 128], strides = [1, 1]} : vector<8x512xf32> to vector<8x128xf32>
    %98 = arith.negf %97 : vector<8x128xf32>
    %99 = math.exp %98 : vector<8x128xf32>
    %cst_26 = arith.constant 1.000000e+00 : f32
    %100 = vector.broadcast %cst_26 : f32 to vector<8x128xf32>
    %101 = arith.addf %100, %99 : vector<8x128xf32>
    %102 = arith.divf %100, %101 : vector<8x128xf32>
    %103 = arith.mulf %94, %72 : vector<8x128xf32>
    %104 = arith.mulf %88, %96 : vector<8x128xf32>
    %105 = arith.addf %103, %104 : vector<8x128xf32>
    %106 = math.tanh %105 : vector<8x128xf32>
    %107 = arith.mulf %102, %106 : vector<8x128xf32>
    %c2 = arith.constant 2 : index
    %c0_27 = arith.constant 0 : index
    %c0_28 = arith.constant 0 : index
    %108 = vector.load %arg10[%c2, %c0_27, %c0_28] : memref<9x8x128xf32, #tpu.memory_space<vmem>>, vector<1x8x128xf32>
    %109 = vector.shape_cast %108 : vector<1x8x128xf32> to vector<8x128xf32>
    %110 = vector.shape_cast %107 : vector<8x128xf32> to vector<1x8x128xf32>
    tpu.vector_store %arg10[%c2, %c0_27, %c0_28], %110 {strides = array<i32>} : memref<9x8x128xf32, #tpu.memory_space<vmem>>, vector<1x8x128xf32>,
    %111 = vector.extract_strided_slice %9 {offsets = [3, 0, 0], sizes = [1, 8, 512], strides = [1, 1, 1]} : vector<9x8x512xf32> to vector<1x8x512xf32>
    %112 = vector.shape_cast %111 : vector<1x8x512xf32> to vector<8x512xf32>
    %113 = arith.truncf %107 : vector<8x128xf32> to vector<8x128xbf16>
    %cst_29 = arith.constant dense<0.000000e+00> : vector<8x512xf32>
    %114 = tpu.matmul %113, %3, %cst_29 {dimension_numbers = #tpu.dot_dimension_numbers<[1], [0], [0], [1], [0, 0, 1, 1], [], []>} : vector<8x128xbf16>, vector<128x512xbf16>, vector<8x512xf32> -> vector<8x512xf32>
    %115 = arith.addf %112, %114 : vector<8x512xf32>
    %116 = vector.extract_strided_slice %115 {offsets = [0, 0], sizes = [8, 128], strides = [1, 1]} : vector<8x512xf32> to vector<8x128xf32>
    %117 = arith.negf %116 : vector<8x128xf32>
    %118 = math.exp %117 : vector<8x128xf32>
    %cst_30 = arith.constant 1.000000e+00 : f32
    %119 = vector.broadcast %cst_30 : f32 to vector<8x128xf32>
    %120 = arith.addf %119, %118 : vector<8x128xf32>
    %121 = arith.divf %119, %120 : vector<8x128xf32>
    %122 = vector.extract_strided_slice %115 {offsets = [0, 128], sizes = [8, 128], strides = [1, 1]} : vector<8x512xf32> to vector<8x128xf32>
    %123 = arith.negf %122 : vector<8x128xf32>
    %124 = math.exp %123 : vector<8x128xf32>
    %cst_31 = arith.constant 1.000000e+00 : f32
    %125 = vector.broadcast %cst_31 : f32 to vector<8x128xf32>
    %126 = arith.addf %125, %124 : vector<8x128xf32>
    %127 = arith.divf %125, %126 : vector<8x128xf32>
    %128 = vector.extract_strided_slice %115 {offsets = [0, 256], sizes = [8, 128], strides = [1, 1]} : vector<8x512xf32> to vector<8x128xf32>
    %129 = math.tanh %128 : vector<8x128xf32>
    %130 = vector.extract_strided_slice %115 {offsets = [0, 384], sizes = [8, 128], strides = [1, 1]} : vector<8x512xf32> to vector<8x128xf32>
    %131 = arith.negf %130 : vector<8x128xf32>
    %132 = math.exp %131 : vector<8x128xf32>
    %cst_32 = arith.constant 1.000000e+00 : f32
    %133 = vector.broadcast %cst_32 : f32 to vector<8x128xf32>
    %134 = arith.addf %133, %132 : vector<8x128xf32>
    %135 = arith.divf %133, %134 : vector<8x128xf32>
    %136 = arith.mulf %127, %105 : vector<8x128xf32>
    %137 = arith.mulf %121, %129 : vector<8x128xf32>
    %138 = arith.addf %136, %137 : vector<8x128xf32>
    %139 = math.tanh %138 : vector<8x128xf32>
    %140 = arith.mulf %135, %139 : vector<8x128xf32>
    %c3 = arith.constant 3 : index
    %c0_33 = arith.constant 0 : index
    %c0_34 = arith.constant 0 : index
    %141 = vector.load %arg10[%c3, %c0_33, %c0_34] : memref<9x8x128xf32, #tpu.memory_space<vmem>>, vector<1x8x128xf32>
    %142 = vector.shape_cast %141 : vector<1x8x128xf32> to vector<8x128xf32>
    %143 = vector.shape_cast %140 : vector<8x128xf32> to vector<1x8x128xf32>
    tpu.vector_store %arg10[%c3, %c0_33, %c0_34], %143 {strides = array<i32>} : memref<9x8x128xf32, #tpu.memory_space<vmem>>, vector<1x8x128xf32>,
    %144 = vector.extract_strided_slice %9 {offsets = [4, 0, 0], sizes = [1, 8, 512], strides = [1, 1, 1]} : vector<9x8x512xf32> to vector<1x8x512xf32>
    %145 = vector.shape_cast %144 : vector<1x8x512xf32> to vector<8x512xf32>
    %146 = arith.truncf %140 : vector<8x128xf32> to vector<8x128xbf16>
    %cst_35 = arith.constant dense<0.000000e+00> : vector<8x512xf32>
    %147 = tpu.matmul %146, %3, %cst_35 {dimension_numbers = #tpu.dot_dimension_numbers<[1], [0], [0], [1], [0, 0, 1, 1], [], []>} : vector<8x128xbf16>, vector<128x512xbf16>, vector<8x512xf32> -> vector<8x512xf32>
    %148 = arith.addf %145, %147 : vector<8x512xf32>
    %149 = vector.extract_strided_slice %148 {offsets = [0, 0], sizes = [8, 128], strides = [1, 1]} : vector<8x512xf32> to vector<8x128xf32>
    %150 = arith.negf %149 : vector<8x128xf32>
    %151 = math.exp %150 : vector<8x128xf32>
    %cst_36 = arith.constant 1.000000e+00 : f32
    %152 = vector.broadcast %cst_36 : f32 to vector<8x128xf32>
    %153 = arith.addf %152, %151 : vector<8x128xf32>
    %154 = arith.divf %152, %153 : vector<8x128xf32>
    %155 = vector.extract_strided_slice %148 {offsets = [0, 128], sizes = [8, 128], strides = [1, 1]} : vector<8x512xf32> to vector<8x128xf32>
    %156 = arith.negf %155 : vector<8x128xf32>
    %157 = math.exp %156 : vector<8x128xf32>
    %cst_37 = arith.constant 1.000000e+00 : f32
    %158 = vector.broadcast %cst_37 : f32 to vector<8x128xf32>
    %159 = arith.addf %158, %157 : vector<8x128xf32>
    %160 = arith.divf %158, %159 : vector<8x128xf32>
    %161 = vector.extract_strided_slice %148 {offsets = [0, 256], sizes = [8, 128], strides = [1, 1]} : vector<8x512xf32> to vector<8x128xf32>
    %162 = math.tanh %161 : vector<8x128xf32>
    %163 = vector.extract_strided_slice %148 {offsets = [0, 384], sizes = [8, 128], strides = [1, 1]} : vector<8x512xf32> to vector<8x128xf32>
    %164 = arith.negf %163 : vector<8x128xf32>
    %165 = math.exp %164 : vector<8x128xf32>
    %cst_38 = arith.constant 1.000000e+00 : f32
    %166 = vector.broadcast %cst_38 : f32 to vector<8x128xf32>
    %167 = arith.addf %166, %165 : vector<8x128xf32>
    %168 = arith.divf %166, %167 : vector<8x128xf32>
    %169 = arith.mulf %160, %138 : vector<8x128xf32>
    %170 = arith.mulf %154, %162 : vector<8x128xf32>
    %171 = arith.addf %169, %170 : vector<8x128xf32>
    %172 = math.tanh %171 : vector<8x128xf32>
    %173 = arith.mulf %168, %172 : vector<8x128xf32>
    %c4 = arith.constant 4 : index
    %c0_39 = arith.constant 0 : index
    %c0_40 = arith.constant 0 : index
    %174 = vector.load %arg10[%c4, %c0_39, %c0_40] : memref<9x8x128xf32, #tpu.memory_space<vmem>>, vector<1x8x128xf32>
    %175 = vector.shape_cast %174 : vector<1x8x128xf32> to vector<8x128xf32>
    %176 = vector.shape_cast %173 : vector<8x128xf32> to vector<1x8x128xf32>
    tpu.vector_store %arg10[%c4, %c0_39, %c0_40], %176 {strides = array<i32>} : memref<9x8x128xf32, #tpu.memory_space<vmem>>, vector<1x8x128xf32>,
    %177 = vector.extract_strided_slice %9 {offsets = [5, 0, 0], sizes = [1, 8, 512], strides = [1, 1, 1]} : vector<9x8x512xf32> to vector<1x8x512xf32>
    %178 = vector.shape_cast %177 : vector<1x8x512xf32> to vector<8x512xf32>
    %179 = arith.truncf %173 : vector<8x128xf32> to vector<8x128xbf16>
    %cst_41 = arith.constant dense<0.000000e+00> : vector<8x512xf32>
    %180 = tpu.matmul %179, %3, %cst_41 {dimension_numbers = #tpu.dot_dimension_numbers<[1], [0], [0], [1], [0, 0, 1, 1], [], []>} : vector<8x128xbf16>, vector<128x512xbf16>, vector<8x512xf32> -> vector<8x512xf32>
    %181 = arith.addf %178, %180 : vector<8x512xf32>
    %182 = vector.extract_strided_slice %181 {offsets = [0, 0], sizes = [8, 128], strides = [1, 1]} : vector<8x512xf32> to vector<8x128xf32>
    %183 = arith.negf %182 : vector<8x128xf32>
    %184 = math.exp %183 : vector<8x128xf32>
    %cst_42 = arith.constant 1.000000e+00 : f32
    %185 = vector.broadcast %cst_42 : f32 to vector<8x128xf32>
    %186 = arith.addf %185, %184 : vector<8x128xf32>
    %187 = arith.divf %185, %186 : vector<8x128xf32>
    %188 = vector.extract_strided_slice %181 {offsets = [0, 128], sizes = [8, 128], strides = [1, 1]} : vector<8x512xf32> to vector<8x128xf32>
    %189 = arith.negf %188 : vector<8x128xf32>
    %190 = math.exp %189 : vector<8x128xf32>
    %cst_43 = arith.constant 1.000000e+00 : f32
    %191 = vector.broadcast %cst_43 : f32 to vector<8x128xf32>
    %192 = arith.addf %191, %190 : vector<8x128xf32>
    %193 = arith.divf %191, %192 : vector<8x128xf32>
    %194 = vector.extract_strided_slice %181 {offsets = [0, 256], sizes = [8, 128], strides = [1, 1]} : vector<8x512xf32> to vector<8x128xf32>
    %195 = math.tanh %194 : vector<8x128xf32>
    %196 = vector.extract_strided_slice %181 {offsets = [0, 384], sizes = [8, 128], strides = [1, 1]} : vector<8x512xf32> to vector<8x128xf32>
    %197 = arith.negf %196 : vector<8x128xf32>
    %198 = math.exp %197 : vector<8x128xf32>
    %cst_44 = arith.constant 1.000000e+00 : f32
    %199 = vector.broadcast %cst_44 : f32 to vector<8x128xf32>
    %200 = arith.addf %199, %198 : vector<8x128xf32>
    %201 = arith.divf %199, %200 : vector<8x128xf32>
    %202 = arith.mulf %193, %171 : vector<8x128xf32>
    %203 = arith.mulf %187, %195 : vector<8x128xf32>
    %204 = arith.addf %202, %203 : vector<8x128xf32>
    %205 = math.tanh %204 : vector<8x128xf32>
    %206 = arith.mulf %201, %205 : vector<8x128xf32>
    %c5 = arith.constant 5 : index
    %c0_45 = arith.constant 0 : index
    %c0_46 = arith.constant 0 : index
    %207 = vector.load %arg10[%c5, %c0_45, %c0_46] : memref<9x8x128xf32, #tpu.memory_space<vmem>>, vector<1x8x128xf32>
    %208 = vector.shape_cast %207 : vector<1x8x128xf32> to vector<8x128xf32>
    %209 = vector.shape_cast %206 : vector<8x128xf32> to vector<1x8x128xf32>
    tpu.vector_store %arg10[%c5, %c0_45, %c0_46], %209 {strides = array<i32>} : memref<9x8x128xf32, #tpu.memory_space<vmem>>, vector<1x8x128xf32>,
    %210 = vector.extract_strided_slice %9 {offsets = [6, 0, 0], sizes = [1, 8, 512], strides = [1, 1, 1]} : vector<9x8x512xf32> to vector<1x8x512xf32>
    %211 = vector.shape_cast %210 : vector<1x8x512xf32> to vector<8x512xf32>
    %212 = arith.truncf %206 : vector<8x128xf32> to vector<8x128xbf16>
    %cst_47 = arith.constant dense<0.000000e+00> : vector<8x512xf32>
    %213 = tpu.matmul %212, %3, %cst_47 {dimension_numbers = #tpu.dot_dimension_numbers<[1], [0], [0], [1], [0, 0, 1, 1], [], []>} : vector<8x128xbf16>, vector<128x512xbf16>, vector<8x512xf32> -> vector<8x512xf32>
    %214 = arith.addf %211, %213 : vector<8x512xf32>
    %215 = vector.extract_strided_slice %214 {offsets = [0, 0], sizes = [8, 128], strides = [1, 1]} : vector<8x512xf32> to vector<8x128xf32>
    %216 = arith.negf %215 : vector<8x128xf32>
    %217 = math.exp %216 : vector<8x128xf32>
    %cst_48 = arith.constant 1.000000e+00 : f32
    %218 = vector.broadcast %cst_48 : f32 to vector<8x128xf32>
    %219 = arith.addf %218, %217 : vector<8x128xf32>
    %220 = arith.divf %218, %219 : vector<8x128xf32>
    %221 = vector.extract_strided_slice %214 {offsets = [0, 128], sizes = [8, 128], strides = [1, 1]} : vector<8x512xf32> to vector<8x128xf32>
    %222 = arith.negf %221 : vector<8x128xf32>
    %223 = math.exp %222 : vector<8x128xf32>
    %cst_49 = arith.constant 1.000000e+00 : f32
    %224 = vector.broadcast %cst_49 : f32 to vector<8x128xf32>
    %225 = arith.addf %224, %223 : vector<8x128xf32>
    %226 = arith.divf %224, %225 : vector<8x128xf32>
    %227 = vector.extract_strided_slice %214 {offsets = [0, 256], sizes = [8, 128], strides = [1, 1]} : vector<8x512xf32> to vector<8x128xf32>
    %228 = math.tanh %227 : vector<8x128xf32>
    %229 = vector.extract_strided_slice %214 {offsets = [0, 384], sizes = [8, 128], strides = [1, 1]} : vector<8x512xf32> to vector<8x128xf32>
    %230 = arith.negf %229 : vector<8x128xf32>
    %231 = math.exp %230 : vector<8x128xf32>
    %cst_50 = arith.constant 1.000000e+00 : f32
    %232 = vector.broadcast %cst_50 : f32 to vector<8x128xf32>
    %233 = arith.addf %232, %231 : vector<8x128xf32>
    %234 = arith.divf %232, %233 : vector<8x128xf32>
    %235 = arith.mulf %226, %204 : vector<8x128xf32>
    %236 = arith.mulf %220, %228 : vector<8x128xf32>
    %237 = arith.addf %235, %236 : vector<8x128xf32>
    %238 = math.tanh %237 : vector<8x128xf32>
    %239 = arith.mulf %234, %238 : vector<8x128xf32>
    %c6 = arith.constant 6 : index
    %c0_51 = arith.constant 0 : index
    %c0_52 = arith.constant 0 : index
    %240 = vector.load %arg10[%c6, %c0_51, %c0_52] : memref<9x8x128xf32, #tpu.memory_space<vmem>>, vector<1x8x128xf32>
    %241 = vector.shape_cast %240 : vector<1x8x128xf32> to vector<8x128xf32>
    %242 = vector.shape_cast %239 : vector<8x128xf32> to vector<1x8x128xf32>
    tpu.vector_store %arg10[%c6, %c0_51, %c0_52], %242 {strides = array<i32>} : memref<9x8x128xf32, #tpu.memory_space<vmem>>, vector<1x8x128xf32>,
    %243 = vector.extract_strided_slice %9 {offsets = [7, 0, 0], sizes = [1, 8, 512], strides = [1, 1, 1]} : vector<9x8x512xf32> to vector<1x8x512xf32>
    %244 = vector.shape_cast %243 : vector<1x8x512xf32> to vector<8x512xf32>
    %245 = arith.truncf %239 : vector<8x128xf32> to vector<8x128xbf16>
    %cst_53 = arith.constant dense<0.000000e+00> : vector<8x512xf32>
    %246 = tpu.matmul %245, %3, %cst_53 {dimension_numbers = #tpu.dot_dimension_numbers<[1], [0], [0], [1], [0, 0, 1, 1], [], []>} : vector<8x128xbf16>, vector<128x512xbf16>, vector<8x512xf32> -> vector<8x512xf32>
    %247 = arith.addf %244, %246 : vector<8x512xf32>
    %248 = vector.extract_strided_slice %247 {offsets = [0, 0], sizes = [8, 128], strides = [1, 1]} : vector<8x512xf32> to vector<8x128xf32>
    %249 = arith.negf %248 : vector<8x128xf32>
    %250 = math.exp %249 : vector<8x128xf32>
    %cst_54 = arith.constant 1.000000e+00 : f32
    %251 = vector.broadcast %cst_54 : f32 to vector<8x128xf32>
    %252 = arith.addf %251, %250 : vector<8x128xf32>
    %253 = arith.divf %251, %252 : vector<8x128xf32>
    %254 = vector.extract_strided_slice %247 {offsets = [0, 128], sizes = [8, 128], strides = [1, 1]} : vector<8x512xf32> to vector<8x128xf32>
    %255 = arith.negf %254 : vector<8x128xf32>
    %256 = math.exp %255 : vector<8x128xf32>
    %cst_55 = arith.constant 1.000000e+00 : f32
    %257 = vector.broadcast %cst_55 : f32 to vector<8x128xf32>
    %258 = arith.addf %257, %256 : vector<8x128xf32>
    %259 = arith.divf %257, %258 : vector<8x128xf32>
    %260 = vector.extract_strided_slice %247 {offsets = [0, 256], sizes = [8, 128], strides = [1, 1]} : vector<8x512xf32> to vector<8x128xf32>
    %261 = math.tanh %260 : vector<8x128xf32>
    %262 = vector.extract_strided_slice %247 {offsets = [0, 384], sizes = [8, 128], strides = [1, 1]} : vector<8x512xf32> to vector<8x128xf32>
    %263 = arith.negf %262 : vector<8x128xf32>
    %264 = math.exp %263 : vector<8x128xf32>
    %cst_56 = arith.constant 1.000000e+00 : f32
    %265 = vector.broadcast %cst_56 : f32 to vector<8x128xf32>
    %266 = arith.addf %265, %264 : vector<8x128xf32>
    %267 = arith.divf %265, %266 : vector<8x128xf32>
    %268 = arith.mulf %259, %237 : vector<8x128xf32>
    %269 = arith.mulf %253, %261 : vector<8x128xf32>
    %270 = arith.addf %268, %269 : vector<8x128xf32>
    %271 = math.tanh %270 : vector<8x128xf32>
    %272 = arith.mulf %267, %271 : vector<8x128xf32>
    %c7 = arith.constant 7 : index
    %c0_57 = arith.constant 0 : index
    %c0_58 = arith.constant 0 : index
    %273 = vector.load %arg10[%c7, %c0_57, %c0_58] : memref<9x8x128xf32, #tpu.memory_space<vmem>>, vector<1x8x128xf32>
    %274 = vector.shape_cast %273 : vector<1x8x128xf32> to vector<8x128xf32>
    %275 = vector.shape_cast %272 : vector<8x128xf32> to vector<1x8x128xf32>
    tpu.vector_store %arg10[%c7, %c0_57, %c0_58], %275 {strides = array<i32>} : memref<9x8x128xf32, #tpu.memory_space<vmem>>, vector<1x8x128xf32>,
    %276 = vector.extract_strided_slice %9 {offsets = [8, 0, 0], sizes = [1, 8, 512], strides = [1, 1, 1]} : vector<9x8x512xf32> to vector<1x8x512xf32>
    %277 = vector.shape_cast %276 : vector<1x8x512xf32> to vector<8x512xf32>
    %278 = arith.truncf %272 : vector<8x128xf32> to vector<8x128xbf16>
    %cst_59 = arith.constant dense<0.000000e+00> : vector<8x512xf32>
    %279 = tpu.matmul %278, %3, %cst_59 {dimension_numbers = #tpu.dot_dimension_numbers<[1], [0], [0], [1], [0, 0, 1, 1], [], []>} : vector<8x128xbf16>, vector<128x512xbf16>, vector<8x512xf32> -> vector<8x512xf32>
    %280 = arith.addf %277, %279 : vector<8x512xf32>
    %281 = vector.extract_strided_slice %280 {offsets = [0, 0], sizes = [8, 128], strides = [1, 1]} : vector<8x512xf32> to vector<8x128xf32>
    %282 = arith.negf %281 : vector<8x128xf32>
    %283 = math.exp %282 : vector<8x128xf32>
    %cst_60 = arith.constant 1.000000e+00 : f32
    %284 = vector.broadcast %cst_60 : f32 to vector<8x128xf32>
    %285 = arith.addf %284, %283 : vector<8x128xf32>
    %286 = arith.divf %284, %285 : vector<8x128xf32>
    %287 = vector.extract_strided_slice %280 {offsets = [0, 128], sizes = [8, 128], strides = [1, 1]} : vector<8x512xf32> to vector<8x128xf32>
    %288 = arith.negf %287 : vector<8x128xf32>
    %289 = math.exp %288 : vector<8x128xf32>
    %cst_61 = arith.constant 1.000000e+00 : f32
    %290 = vector.broadcast %cst_61 : f32 to vector<8x128xf32>
    %291 = arith.addf %290, %289 : vector<8x128xf32>
    %292 = arith.divf %290, %291 : vector<8x128xf32>
    %293 = vector.extract_strided_slice %280 {offsets = [0, 256], sizes = [8, 128], strides = [1, 1]} : vector<8x512xf32> to vector<8x128xf32>
    %294 = math.tanh %293 : vector<8x128xf32>
    %295 = vector.extract_strided_slice %280 {offsets = [0, 384], sizes = [8, 128], strides = [1, 1]} : vector<8x512xf32> to vector<8x128xf32>
    %296 = arith.negf %295 : vector<8x128xf32>
    %297 = math.exp %296 : vector<8x128xf32>
    %cst_62 = arith.constant 1.000000e+00 : f32
    %298 = vector.broadcast %cst_62 : f32 to vector<8x128xf32>
    %299 = arith.addf %298, %297 : vector<8x128xf32>
    %300 = arith.divf %298, %299 : vector<8x128xf32>
    %301 = arith.mulf %292, %270 : vector<8x128xf32>
    %302 = arith.mulf %286, %294 : vector<8x128xf32>
    %303 = arith.addf %301, %302 : vector<8x128xf32>
    %304 = math.tanh %303 : vector<8x128xf32>
    %305 = arith.mulf %300, %304 : vector<8x128xf32>
    %c8 = arith.constant 8 : index
    %c0_63 = arith.constant 0 : index
    %c0_64 = arith.constant 0 : index
    %306 = vector.load %arg10[%c8, %c0_63, %c0_64] : memref<9x8x128xf32, #tpu.memory_space<vmem>>, vector<1x8x128xf32>
    %307 = vector.shape_cast %306 : vector<1x8x128xf32> to vector<8x128xf32>
    %308 = vector.shape_cast %305 : vector<8x128xf32> to vector<1x8x128xf32>
    tpu.vector_store %arg10[%c8, %c0_63, %c0_64], %308 {strides = array<i32>} : memref<9x8x128xf32, #tpu.memory_space<vmem>>, vector<1x8x128xf32>,
    %c0_65 = arith.constant 0 : index
    %c0_66 = arith.constant 0 : index
    %c0_67 = arith.constant 0 : index
    %309 = vector.load %arg10[%c0_65, %c0_66, %c0_67] : memref<9x8x128xf32, #tpu.memory_space<vmem>>, vector<9x8x128xf32>
    %c0_68 = arith.constant 0 : index
    %c0_69 = arith.constant 0 : index
    %310 = vector.load %arg4[%c0_68, %c0_69] : memref<128x512xbf16, #tpu.memory_space<vmem>>, vector<128x512xbf16>
    %c0_70 = arith.constant 0 : index
    %c0_71 = arith.constant 0 : index
    %311 = vector.load %arg5[%c0_70, %c0_71] : memref<1x512xf32, #tpu.memory_space<vmem>>, vector<1x512xf32>
    %c0_72 = arith.constant 0 : index
    %c0_73 = arith.constant 0 : index
    %312 = vector.load %arg6[%c0_72, %c0_73] : memref<128x512xbf16, #tpu.memory_space<vmem>>, vector<128x512xbf16>
    %313 = vector.shape_cast %309 : vector<9x8x128xf32> to vector<72x128xf32>
    %314 = arith.truncf %313 : vector<72x128xf32> to vector<72x128xbf16>
    %cst_74 = arith.constant dense<0.000000e+00> : vector<72x512xf32>
    %315 = tpu.matmul %314, %310, %cst_74 {dimension_numbers = #tpu.dot_dimension_numbers<[1], [0], [0], [1], [0, 0, 1, 1], [], []>} : vector<72x128xbf16>, vector<128x512xbf16>, vector<72x512xf32> -> vector<72x512xf32>
    %316 = vector.broadcast %311 : vector<1x512xf32> to vector<72x512xf32>
    %317 = arith.addf %315, %316 : vector<72x512xf32>
    %318 = vector.shape_cast %317 : vector<72x512xf32> to vector<9x8x512xf32>
    %cst_75 = arith.constant 0.000000e+00 : f32
    %319 = vector.broadcast %cst_75 : f32 to vector<8x128xf32>
    %cst_76 = arith.constant 0.000000e+00 : f32
    %320 = vector.broadcast %cst_76 : f32 to vector<8x128xf32>
    %321 = vector.extract_strided_slice %318 {offsets = [0, 0, 0], sizes = [1, 8, 512], strides = [1, 1, 1]} : vector<9x8x512xf32> to vector<1x8x512xf32>
    %322 = vector.shape_cast %321 : vector<1x8x512xf32> to vector<8x512xf32>
    %323 = arith.truncf %319 : vector<8x128xf32> to vector<8x128xbf16>
    %cst_77 = arith.constant dense<0.000000e+00> : vector<8x512xf32>
    %324 = tpu.matmul %323, %312, %cst_77 {dimension_numbers = #tpu.dot_dimension_numbers<[1], [0], [0], [1], [0, 0, 1, 1], [], []>} : vector<8x128xbf16>, vector<128x512xbf16>, vector<8x512xf32> -> vector<8x512xf32>
    %325 = arith.addf %322, %324 : vector<8x512xf32>
    %326 = vector.extract_strided_slice %325 {offsets = [0, 0], sizes = [8, 128], strides = [1, 1]} : vector<8x512xf32> to vector<8x128xf32>
    %327 = arith.negf %326 : vector<8x128xf32>
    %328 = math.exp %327 : vector<8x128xf32>
    %cst_78 = arith.constant 1.000000e+00 : f32
    %329 = vector.broadcast %cst_78 : f32 to vector<8x128xf32>
    %330 = arith.addf %329, %328 : vector<8x128xf32>
    %331 = arith.divf %329, %330 : vector<8x128xf32>
    %332 = vector.extract_strided_slice %325 {offsets = [0, 128], sizes = [8, 128], strides = [1, 1]} : vector<8x512xf32> to vector<8x128xf32>
    %333 = arith.negf %332 : vector<8x128xf32>
    %334 = math.exp %333 : vector<8x128xf32>
    %cst_79 = arith.constant 1.000000e+00 : f32
    %335 = vector.broadcast %cst_79 : f32 to vector<8x128xf32>
    %336 = arith.addf %335, %334 : vector<8x128xf32>
    %337 = arith.divf %335, %336 : vector<8x128xf32>
    %338 = vector.extract_strided_slice %325 {offsets = [0, 256], sizes = [8, 128], strides = [1, 1]} : vector<8x512xf32> to vector<8x128xf32>
    %339 = math.tanh %338 : vector<8x128xf32>
    %340 = vector.extract_strided_slice %325 {offsets = [0, 384], sizes = [8, 128], strides = [1, 1]} : vector<8x512xf32> to vector<8x128xf32>
    %341 = arith.negf %340 : vector<8x128xf32>
    %342 = math.exp %341 : vector<8x128xf32>
    %cst_80 = arith.constant 1.000000e+00 : f32
    %343 = vector.broadcast %cst_80 : f32 to vector<8x128xf32>
    %344 = arith.addf %343, %342 : vector<8x128xf32>
    %345 = arith.divf %343, %344 : vector<8x128xf32>
    %346 = arith.mulf %337, %320 : vector<8x128xf32>
    %347 = arith.mulf %331, %339 : vector<8x128xf32>
    %348 = arith.addf %346, %347 : vector<8x128xf32>
    %349 = math.tanh %348 : vector<8x128xf32>
    %350 = arith.mulf %345, %349 : vector<8x128xf32>
    %c0_81 = arith.constant 0 : index
    %c0_82 = arith.constant 0 : index
    %c0_83 = arith.constant 0 : index
    %351 = vector.load %arg10[%c0_81, %c0_82, %c0_83] : memref<9x8x128xf32, #tpu.memory_space<vmem>>, vector<1x8x128xf32>
    %352 = vector.shape_cast %351 : vector<1x8x128xf32> to vector<8x128xf32>
    %353 = vector.shape_cast %350 : vector<8x128xf32> to vector<1x8x128xf32>
    tpu.vector_store %arg10[%c0_81, %c0_82, %c0_83], %353 {strides = array<i32>} : memref<9x8x128xf32, #tpu.memory_space<vmem>>, vector<1x8x128xf32>,
    %354 = vector.extract_strided_slice %318 {offsets = [1, 0, 0], sizes = [1, 8, 512], strides = [1, 1, 1]} : vector<9x8x512xf32> to vector<1x8x512xf32>
    %355 = vector.shape_cast %354 : vector<1x8x512xf32> to vector<8x512xf32>
    %356 = arith.truncf %350 : vector<8x128xf32> to vector<8x128xbf16>
    %cst_84 = arith.constant dense<0.000000e+00> : vector<8x512xf32>
    %357 = tpu.matmul %356, %312, %cst_84 {dimension_numbers = #tpu.dot_dimension_numbers<[1], [0], [0], [1], [0, 0, 1, 1], [], []>} : vector<8x128xbf16>, vector<128x512xbf16>, vector<8x512xf32> -> vector<8x512xf32>
    %358 = arith.addf %355, %357 : vector<8x512xf32>
    %359 = vector.extract_strided_slice %358 {offsets = [0, 0], sizes = [8, 128], strides = [1, 1]} : vector<8x512xf32> to vector<8x128xf32>
    %360 = arith.negf %359 : vector<8x128xf32>
    %361 = math.exp %360 : vector<8x128xf32>
    %cst_85 = arith.constant 1.000000e+00 : f32
    %362 = vector.broadcast %cst_85 : f32 to vector<8x128xf32>
    %363 = arith.addf %362, %361 : vector<8x128xf32>
    %364 = arith.divf %362, %363 : vector<8x128xf32>
    %365 = vector.extract_strided_slice %358 {offsets = [0, 128], sizes = [8, 128], strides = [1, 1]} : vector<8x512xf32> to vector<8x128xf32>
    %366 = arith.negf %365 : vector<8x128xf32>
    %367 = math.exp %366 : vector<8x128xf32>
    %cst_86 = arith.constant 1.000000e+00 : f32
    %368 = vector.broadcast %cst_86 : f32 to vector<8x128xf32>
    %369 = arith.addf %368, %367 : vector<8x128xf32>
    %370 = arith.divf %368, %369 : vector<8x128xf32>
    %371 = vector.extract_strided_slice %358 {offsets = [0, 256], sizes = [8, 128], strides = [1, 1]} : vector<8x512xf32> to vector<8x128xf32>
    %372 = math.tanh %371 : vector<8x128xf32>
    %373 = vector.extract_strided_slice %358 {offsets = [0, 384], sizes = [8, 128], strides = [1, 1]} : vector<8x512xf32> to vector<8x128xf32>
    %374 = arith.negf %373 : vector<8x128xf32>
    %375 = math.exp %374 : vector<8x128xf32>
    %cst_87 = arith.constant 1.000000e+00 : f32
    %376 = vector.broadcast %cst_87 : f32 to vector<8x128xf32>
    %377 = arith.addf %376, %375 : vector<8x128xf32>
    %378 = arith.divf %376, %377 : vector<8x128xf32>
    %379 = arith.mulf %370, %348 : vector<8x128xf32>
    %380 = arith.mulf %364, %372 : vector<8x128xf32>
    %381 = arith.addf %379, %380 : vector<8x128xf32>
    %382 = math.tanh %381 : vector<8x128xf32>
    %383 = arith.mulf %378, %382 : vector<8x128xf32>
    %c1_88 = arith.constant 1 : index
    %c0_89 = arith.constant 0 : index
    %c0_90 = arith.constant 0 : index
    %384 = vector.load %arg10[%c1_88, %c0_89, %c0_90] : memref<9x8x128xf32, #tpu.memory_space<vmem>>, vector<1x8x128xf32>
    %385 = vector.shape_cast %384 : vector<1x8x128xf32> to vector<8x128xf32>
    %386 = vector.shape_cast %383 : vector<8x128xf32> to vector<1x8x128xf32>
    tpu.vector_store %arg10[%c1_88, %c0_89, %c0_90], %386 {strides = array<i32>} : memref<9x8x128xf32, #tpu.memory_space<vmem>>, vector<1x8x128xf32>,
    %387 = vector.extract_strided_slice %318 {offsets = [2, 0, 0], sizes = [1, 8, 512], strides = [1, 1, 1]} : vector<9x8x512xf32> to vector<1x8x512xf32>
    %388 = vector.shape_cast %387 : vector<1x8x512xf32> to vector<8x512xf32>
    %389 = arith.truncf %383 : vector<8x128xf32> to vector<8x128xbf16>
    %cst_91 = arith.constant dense<0.000000e+00> : vector<8x512xf32>
    %390 = tpu.matmul %389, %312, %cst_91 {dimension_numbers = #tpu.dot_dimension_numbers<[1], [0], [0], [1], [0, 0, 1, 1], [], []>} : vector<8x128xbf16>, vector<128x512xbf16>, vector<8x512xf32> -> vector<8x512xf32>
    %391 = arith.addf %388, %390 : vector<8x512xf32>
    %392 = vector.extract_strided_slice %391 {offsets = [0, 0], sizes = [8, 128], strides = [1, 1]} : vector<8x512xf32> to vector<8x128xf32>
    %393 = arith.negf %392 : vector<8x128xf32>
    %394 = math.exp %393 : vector<8x128xf32>
    %cst_92 = arith.constant 1.000000e+00 : f32
    %395 = vector.broadcast %cst_92 : f32 to vector<8x128xf32>
    %396 = arith.addf %395, %394 : vector<8x128xf32>
    %397 = arith.divf %395, %396 : vector<8x128xf32>
    %398 = vector.extract_strided_slice %391 {offsets = [0, 128], sizes = [8, 128], strides = [1, 1]} : vector<8x512xf32> to vector<8x128xf32>
    %399 = arith.negf %398 : vector<8x128xf32>
    %400 = math.exp %399 : vector<8x128xf32>
    %cst_93 = arith.constant 1.000000e+00 : f32
    %401 = vector.broadcast %cst_93 : f32 to vector<8x128xf32>
    %402 = arith.addf %401, %400 : vector<8x128xf32>
    %403 = arith.divf %401, %402 : vector<8x128xf32>
    %404 = vector.extract_strided_slice %391 {offsets = [0, 256], sizes = [8, 128], strides = [1, 1]} : vector<8x512xf32> to vector<8x128xf32>
    %405 = math.tanh %404 : vector<8x128xf32>
    %406 = vector.extract_strided_slice %391 {offsets = [0, 384], sizes = [8, 128], strides = [1, 1]} : vector<8x512xf32> to vector<8x128xf32>
    %407 = arith.negf %406 : vector<8x128xf32>
    %408 = math.exp %407 : vector<8x128xf32>
    %cst_94 = arith.constant 1.000000e+00 : f32
    %409 = vector.broadcast %cst_94 : f32 to vector<8x128xf32>
    %410 = arith.addf %409, %408 : vector<8x128xf32>
    %411 = arith.divf %409, %410 : vector<8x128xf32>
    %412 = arith.mulf %403, %381 : vector<8x128xf32>
    %413 = arith.mulf %397, %405 : vector<8x128xf32>
    %414 = arith.addf %412, %413 : vector<8x128xf32>
    %415 = math.tanh %414 : vector<8x128xf32>
    %416 = arith.mulf %411, %415 : vector<8x128xf32>
    %c2_95 = arith.constant 2 : index
    %c0_96 = arith.constant 0 : index
    %c0_97 = arith.constant 0 : index
    %417 = vector.load %arg10[%c2_95, %c0_96, %c0_97] : memref<9x8x128xf32, #tpu.memory_space<vmem>>, vector<1x8x128xf32>
    %418 = vector.shape_cast %417 : vector<1x8x128xf32> to vector<8x128xf32>
    %419 = vector.shape_cast %416 : vector<8x128xf32> to vector<1x8x128xf32>
    tpu.vector_store %arg10[%c2_95, %c0_96, %c0_97], %419 {strides = array<i32>} : memref<9x8x128xf32, #tpu.memory_space<vmem>>, vector<1x8x128xf32>,
    %420 = vector.extract_strided_slice %318 {offsets = [3, 0, 0], sizes = [1, 8, 512], strides = [1, 1, 1]} : vector<9x8x512xf32> to vector<1x8x512xf32>
    %421 = vector.shape_cast %420 : vector<1x8x512xf32> to vector<8x512xf32>
    %422 = arith.truncf %416 : vector<8x128xf32> to vector<8x128xbf16>
    %cst_98 = arith.constant dense<0.000000e+00> : vector<8x512xf32>
    %423 = tpu.matmul %422, %312, %cst_98 {dimension_numbers = #tpu.dot_dimension_numbers<[1], [0], [0], [1], [0, 0, 1, 1], [], []>} : vector<8x128xbf16>, vector<128x512xbf16>, vector<8x512xf32> -> vector<8x512xf32>
    %424 = arith.addf %421, %423 : vector<8x512xf32>
    %425 = vector.extract_strided_slice %424 {offsets = [0, 0], sizes = [8, 128], strides = [1, 1]} : vector<8x512xf32> to vector<8x128xf32>
    %426 = arith.negf %425 : vector<8x128xf32>
    %427 = math.exp %426 : vector<8x128xf32>
    %cst_99 = arith.constant 1.000000e+00 : f32
    %428 = vector.broadcast %cst_99 : f32 to vector<8x128xf32>
    %429 = arith.addf %428, %427 : vector<8x128xf32>
    %430 = arith.divf %428, %429 : vector<8x128xf32>
    %431 = vector.extract_strided_slice %424 {offsets = [0, 128], sizes = [8, 128], strides = [1, 1]} : vector<8x512xf32> to vector<8x128xf32>
    %432 = arith.negf %431 : vector<8x128xf32>
    %433 = math.exp %432 : vector<8x128xf32>
    %cst_100 = arith.constant 1.000000e+00 : f32
    %434 = vector.broadcast %cst_100 : f32 to vector<8x128xf32>
    %435 = arith.addf %434, %433 : vector<8x128xf32>
    %436 = arith.divf %434, %435 : vector<8x128xf32>
    %437 = vector.extract_strided_slice %424 {offsets = [0, 256], sizes = [8, 128], strides = [1, 1]} : vector<8x512xf32> to vector<8x128xf32>
    %438 = math.tanh %437 : vector<8x128xf32>
    %439 = vector.extract_strided_slice %424 {offsets = [0, 384], sizes = [8, 128], strides = [1, 1]} : vector<8x512xf32> to vector<8x128xf32>
    %440 = arith.negf %439 : vector<8x128xf32>
    %441 = math.exp %440 : vector<8x128xf32>
    %cst_101 = arith.constant 1.000000e+00 : f32
    %442 = vector.broadcast %cst_101 : f32 to vector<8x128xf32>
    %443 = arith.addf %442, %441 : vector<8x128xf32>
    %444 = arith.divf %442, %443 : vector<8x128xf32>
    %445 = arith.mulf %436, %414 : vector<8x128xf32>
    %446 = arith.mulf %430, %438 : vector<8x128xf32>
    %447 = arith.addf %445, %446 : vector<8x128xf32>
    %448 = math.tanh %447 : vector<8x128xf32>
    %449 = arith.mulf %444, %448 : vector<8x128xf32>
    %c3_102 = arith.constant 3 : index
    %c0_103 = arith.constant 0 : index
    %c0_104 = arith.constant 0 : index
    %450 = vector.load %arg10[%c3_102, %c0_103, %c0_104] : memref<9x8x128xf32, #tpu.memory_space<vmem>>, vector<1x8x128xf32>
    %451 = vector.shape_cast %450 : vector<1x8x128xf32> to vector<8x128xf32>
    %452 = vector.shape_cast %449 : vector<8x128xf32> to vector<1x8x128xf32>
    tpu.vector_store %arg10[%c3_102, %c0_103, %c0_104], %452 {strides = array<i32>} : memref<9x8x128xf32, #tpu.memory_space<vmem>>, vector<1x8x128xf32>,
    %453 = vector.extract_strided_slice %318 {offsets = [4, 0, 0], sizes = [1, 8, 512], strides = [1, 1, 1]} : vector<9x8x512xf32> to vector<1x8x512xf32>
    %454 = vector.shape_cast %453 : vector<1x8x512xf32> to vector<8x512xf32>
    %455 = arith.truncf %449 : vector<8x128xf32> to vector<8x128xbf16>
    %cst_105 = arith.constant dense<0.000000e+00> : vector<8x512xf32>
    %456 = tpu.matmul %455, %312, %cst_105 {dimension_numbers = #tpu.dot_dimension_numbers<[1], [0], [0], [1], [0, 0, 1, 1], [], []>} : vector<8x128xbf16>, vector<128x512xbf16>, vector<8x512xf32> -> vector<8x512xf32>
    %457 = arith.addf %454, %456 : vector<8x512xf32>
    %458 = vector.extract_strided_slice %457 {offsets = [0, 0], sizes = [8, 128], strides = [1, 1]} : vector<8x512xf32> to vector<8x128xf32>
    %459 = arith.negf %458 : vector<8x128xf32>
    %460 = math.exp %459 : vector<8x128xf32>
    %cst_106 = arith.constant 1.000000e+00 : f32
    %461 = vector.broadcast %cst_106 : f32 to vector<8x128xf32>
    %462 = arith.addf %461, %460 : vector<8x128xf32>
    %463 = arith.divf %461, %462 : vector<8x128xf32>
    %464 = vector.extract_strided_slice %457 {offsets = [0, 128], sizes = [8, 128], strides = [1, 1]} : vector<8x512xf32> to vector<8x128xf32>
    %465 = arith.negf %464 : vector<8x128xf32>
    %466 = math.exp %465 : vector<8x128xf32>
    %cst_107 = arith.constant 1.000000e+00 : f32
    %467 = vector.broadcast %cst_107 : f32 to vector<8x128xf32>
    %468 = arith.addf %467, %466 : vector<8x128xf32>
    %469 = arith.divf %467, %468 : vector<8x128xf32>
    %470 = vector.extract_strided_slice %457 {offsets = [0, 256], sizes = [8, 128], strides = [1, 1]} : vector<8x512xf32> to vector<8x128xf32>
    %471 = math.tanh %470 : vector<8x128xf32>
    %472 = vector.extract_strided_slice %457 {offsets = [0, 384], sizes = [8, 128], strides = [1, 1]} : vector<8x512xf32> to vector<8x128xf32>
    %473 = arith.negf %472 : vector<8x128xf32>
    %474 = math.exp %473 : vector<8x128xf32>
    %cst_108 = arith.constant 1.000000e+00 : f32
    %475 = vector.broadcast %cst_108 : f32 to vector<8x128xf32>
    %476 = arith.addf %475, %474 : vector<8x128xf32>
    %477 = arith.divf %475, %476 : vector<8x128xf32>
    %478 = arith.mulf %469, %447 : vector<8x128xf32>
    %479 = arith.mulf %463, %471 : vector<8x128xf32>
    %480 = arith.addf %478, %479 : vector<8x128xf32>
    %481 = math.tanh %480 : vector<8x128xf32>
    %482 = arith.mulf %477, %481 : vector<8x128xf32>
    %c4_109 = arith.constant 4 : index
    %c0_110 = arith.constant 0 : index
    %c0_111 = arith.constant 0 : index
    %483 = vector.load %arg10[%c4_109, %c0_110, %c0_111] : memref<9x8x128xf32, #tpu.memory_space<vmem>>, vector<1x8x128xf32>
    %484 = vector.shape_cast %483 : vector<1x8x128xf32> to vector<8x128xf32>
    %485 = vector.shape_cast %482 : vector<8x128xf32> to vector<1x8x128xf32>
    tpu.vector_store %arg10[%c4_109, %c0_110, %c0_111], %485 {strides = array<i32>} : memref<9x8x128xf32, #tpu.memory_space<vmem>>, vector<1x8x128xf32>,
    %486 = vector.extract_strided_slice %318 {offsets = [5, 0, 0], sizes = [1, 8, 512], strides = [1, 1, 1]} : vector<9x8x512xf32> to vector<1x8x512xf32>
    %487 = vector.shape_cast %486 : vector<1x8x512xf32> to vector<8x512xf32>
    %488 = arith.truncf %482 : vector<8x128xf32> to vector<8x128xbf16>
    %cst_112 = arith.constant dense<0.000000e+00> : vector<8x512xf32>
    %489 = tpu.matmul %488, %312, %cst_112 {dimension_numbers = #tpu.dot_dimension_numbers<[1], [0], [0], [1], [0, 0, 1, 1], [], []>} : vector<8x128xbf16>, vector<128x512xbf16>, vector<8x512xf32> -> vector<8x512xf32>
    %490 = arith.addf %487, %489 : vector<8x512xf32>
    %491 = vector.extract_strided_slice %490 {offsets = [0, 0], sizes = [8, 128], strides = [1, 1]} : vector<8x512xf32> to vector<8x128xf32>
    %492 = arith.negf %491 : vector<8x128xf32>
    %493 = math.exp %492 : vector<8x128xf32>
    %cst_113 = arith.constant 1.000000e+00 : f32
    %494 = vector.broadcast %cst_113 : f32 to vector<8x128xf32>
    %495 = arith.addf %494, %493 : vector<8x128xf32>
    %496 = arith.divf %494, %495 : vector<8x128xf32>
    %497 = vector.extract_strided_slice %490 {offsets = [0, 128], sizes = [8, 128], strides = [1, 1]} : vector<8x512xf32> to vector<8x128xf32>
    %498 = arith.negf %497 : vector<8x128xf32>
    %499 = math.exp %498 : vector<8x128xf32>
    %cst_114 = arith.constant 1.000000e+00 : f32
    %500 = vector.broadcast %cst_114 : f32 to vector<8x128xf32>
    %501 = arith.addf %500, %499 : vector<8x128xf32>
    %502 = arith.divf %500, %501 : vector<8x128xf32>
    %503 = vector.extract_strided_slice %490 {offsets = [0, 256], sizes = [8, 128], strides = [1, 1]} : vector<8x512xf32> to vector<8x128xf32>
    %504 = math.tanh %503 : vector<8x128xf32>
    %505 = vector.extract_strided_slice %490 {offsets = [0, 384], sizes = [8, 128], strides = [1, 1]} : vector<8x512xf32> to vector<8x128xf32>
    %506 = arith.negf %505 : vector<8x128xf32>
    %507 = math.exp %506 : vector<8x128xf32>
    %cst_115 = arith.constant 1.000000e+00 : f32
    %508 = vector.broadcast %cst_115 : f32 to vector<8x128xf32>
    %509 = arith.addf %508, %507 : vector<8x128xf32>
    %510 = arith.divf %508, %509 : vector<8x128xf32>
    %511 = arith.mulf %502, %480 : vector<8x128xf32>
    %512 = arith.mulf %496, %504 : vector<8x128xf32>
    %513 = arith.addf %511, %512 : vector<8x128xf32>
    %514 = math.tanh %513 : vector<8x128xf32>
    %515 = arith.mulf %510, %514 : vector<8x128xf32>
    %c5_116 = arith.constant 5 : index
    %c0_117 = arith.constant 0 : index
    %c0_118 = arith.constant 0 : index
    %516 = vector.load %arg10[%c5_116, %c0_117, %c0_118] : memref<9x8x128xf32, #tpu.memory_space<vmem>>, vector<1x8x128xf32>
    %517 = vector.shape_cast %516 : vector<1x8x128xf32> to vector<8x128xf32>
    %518 = vector.shape_cast %515 : vector<8x128xf32> to vector<1x8x128xf32>
    tpu.vector_store %arg10[%c5_116, %c0_117, %c0_118], %518 {strides = array<i32>} : memref<9x8x128xf32, #tpu.memory_space<vmem>>, vector<1x8x128xf32>,
    %519 = vector.extract_strided_slice %318 {offsets = [6, 0, 0], sizes = [1, 8, 512], strides = [1, 1, 1]} : vector<9x8x512xf32> to vector<1x8x512xf32>
    %520 = vector.shape_cast %519 : vector<1x8x512xf32> to vector<8x512xf32>
    %521 = arith.truncf %515 : vector<8x128xf32> to vector<8x128xbf16>
    %cst_119 = arith.constant dense<0.000000e+00> : vector<8x512xf32>
    %522 = tpu.matmul %521, %312, %cst_119 {dimension_numbers = #tpu.dot_dimension_numbers<[1], [0], [0], [1], [0, 0, 1, 1], [], []>} : vector<8x128xbf16>, vector<128x512xbf16>, vector<8x512xf32> -> vector<8x512xf32>
    %523 = arith.addf %520, %522 : vector<8x512xf32>
    %524 = vector.extract_strided_slice %523 {offsets = [0, 0], sizes = [8, 128], strides = [1, 1]} : vector<8x512xf32> to vector<8x128xf32>
    %525 = arith.negf %524 : vector<8x128xf32>
    %526 = math.exp %525 : vector<8x128xf32>
    %cst_120 = arith.constant 1.000000e+00 : f32
    %527 = vector.broadcast %cst_120 : f32 to vector<8x128xf32>
    %528 = arith.addf %527, %526 : vector<8x128xf32>
    %529 = arith.divf %527, %528 : vector<8x128xf32>
    %530 = vector.extract_strided_slice %523 {offsets = [0, 128], sizes = [8, 128], strides = [1, 1]} : vector<8x512xf32> to vector<8x128xf32>
    %531 = arith.negf %530 : vector<8x128xf32>
    %532 = math.exp %531 : vector<8x128xf32>
    %cst_121 = arith.constant 1.000000e+00 : f32
    %533 = vector.broadcast %cst_121 : f32 to vector<8x128xf32>
    %534 = arith.addf %533, %532 : vector<8x128xf32>
    %535 = arith.divf %533, %534 : vector<8x128xf32>
    %536 = vector.extract_strided_slice %523 {offsets = [0, 256], sizes = [8, 128], strides = [1, 1]} : vector<8x512xf32> to vector<8x128xf32>
    %537 = math.tanh %536 : vector<8x128xf32>
    %538 = vector.extract_strided_slice %523 {offsets = [0, 384], sizes = [8, 128], strides = [1, 1]} : vector<8x512xf32> to vector<8x128xf32>
    %539 = arith.negf %538 : vector<8x128xf32>
    %540 = math.exp %539 : vector<8x128xf32>
    %cst_122 = arith.constant 1.000000e+00 : f32
    %541 = vector.broadcast %cst_122 : f32 to vector<8x128xf32>
    %542 = arith.addf %541, %540 : vector<8x128xf32>
    %543 = arith.divf %541, %542 : vector<8x128xf32>
    %544 = arith.mulf %535, %513 : vector<8x128xf32>
    %545 = arith.mulf %529, %537 : vector<8x128xf32>
    %546 = arith.addf %544, %545 : vector<8x128xf32>
    %547 = math.tanh %546 : vector<8x128xf32>
    %548 = arith.mulf %543, %547 : vector<8x128xf32>
    %c6_123 = arith.constant 6 : index
    %c0_124 = arith.constant 0 : index
    %c0_125 = arith.constant 0 : index
    %549 = vector.load %arg10[%c6_123, %c0_124, %c0_125] : memref<9x8x128xf32, #tpu.memory_space<vmem>>, vector<1x8x128xf32>
    %550 = vector.shape_cast %549 : vector<1x8x128xf32> to vector<8x128xf32>
    %551 = vector.shape_cast %548 : vector<8x128xf32> to vector<1x8x128xf32>
    tpu.vector_store %arg10[%c6_123, %c0_124, %c0_125], %551 {strides = array<i32>} : memref<9x8x128xf32, #tpu.memory_space<vmem>>, vector<1x8x128xf32>,
    %552 = vector.extract_strided_slice %318 {offsets = [7, 0, 0], sizes = [1, 8, 512], strides = [1, 1, 1]} : vector<9x8x512xf32> to vector<1x8x512xf32>
    %553 = vector.shape_cast %552 : vector<1x8x512xf32> to vector<8x512xf32>
    %554 = arith.truncf %548 : vector<8x128xf32> to vector<8x128xbf16>
    %cst_126 = arith.constant dense<0.000000e+00> : vector<8x512xf32>
    %555 = tpu.matmul %554, %312, %cst_126 {dimension_numbers = #tpu.dot_dimension_numbers<[1], [0], [0], [1], [0, 0, 1, 1], [], []>} : vector<8x128xbf16>, vector<128x512xbf16>, vector<8x512xf32> -> vector<8x512xf32>
    %556 = arith.addf %553, %555 : vector<8x512xf32>
    %557 = vector.extract_strided_slice %556 {offsets = [0, 0], sizes = [8, 128], strides = [1, 1]} : vector<8x512xf32> to vector<8x128xf32>
    %558 = arith.negf %557 : vector<8x128xf32>
    %559 = math.exp %558 : vector<8x128xf32>
    %cst_127 = arith.constant 1.000000e+00 : f32
    %560 = vector.broadcast %cst_127 : f32 to vector<8x128xf32>
    %561 = arith.addf %560, %559 : vector<8x128xf32>
    %562 = arith.divf %560, %561 : vector<8x128xf32>
    %563 = vector.extract_strided_slice %556 {offsets = [0, 128], sizes = [8, 128], strides = [1, 1]} : vector<8x512xf32> to vector<8x128xf32>
    %564 = arith.negf %563 : vector<8x128xf32>
    %565 = math.exp %564 : vector<8x128xf32>
    %cst_128 = arith.constant 1.000000e+00 : f32
    %566 = vector.broadcast %cst_128 : f32 to vector<8x128xf32>
    %567 = arith.addf %566, %565 : vector<8x128xf32>
    %568 = arith.divf %566, %567 : vector<8x128xf32>
    %569 = vector.extract_strided_slice %556 {offsets = [0, 256], sizes = [8, 128], strides = [1, 1]} : vector<8x512xf32> to vector<8x128xf32>
    %570 = math.tanh %569 : vector<8x128xf32>
    %571 = vector.extract_strided_slice %556 {offsets = [0, 384], sizes = [8, 128], strides = [1, 1]} : vector<8x512xf32> to vector<8x128xf32>
    %572 = arith.negf %571 : vector<8x128xf32>
    %573 = math.exp %572 : vector<8x128xf32>
    %cst_129 = arith.constant 1.000000e+00 : f32
    %574 = vector.broadcast %cst_129 : f32 to vector<8x128xf32>
    %575 = arith.addf %574, %573 : vector<8x128xf32>
    %576 = arith.divf %574, %575 : vector<8x128xf32>
    %577 = arith.mulf %568, %546 : vector<8x128xf32>
    %578 = arith.mulf %562, %570 : vector<8x128xf32>
    %579 = arith.addf %577, %578 : vector<8x128xf32>
    %580 = math.tanh %579 : vector<8x128xf32>
    %581 = arith.mulf %576, %580 : vector<8x128xf32>
    %c7_130 = arith.constant 7 : index
    %c0_131 = arith.constant 0 : index
    %c0_132 = arith.constant 0 : index
    %582 = vector.load %arg10[%c7_130, %c0_131, %c0_132] : memref<9x8x128xf32, #tpu.memory_space<vmem>>, vector<1x8x128xf32>
    %583 = vector.shape_cast %582 : vector<1x8x128xf32> to vector<8x128xf32>
    %584 = vector.shape_cast %581 : vector<8x128xf32> to vector<1x8x128xf32>
    tpu.vector_store %arg10[%c7_130, %c0_131, %c0_132], %584 {strides = array<i32>} : memref<9x8x128xf32, #tpu.memory_space<vmem>>, vector<1x8x128xf32>,
    %585 = vector.extract_strided_slice %318 {offsets = [8, 0, 0], sizes = [1, 8, 512], strides = [1, 1, 1]} : vector<9x8x512xf32> to vector<1x8x512xf32>
    %586 = vector.shape_cast %585 : vector<1x8x512xf32> to vector<8x512xf32>
    %587 = arith.truncf %581 : vector<8x128xf32> to vector<8x128xbf16>
    %cst_133 = arith.constant dense<0.000000e+00> : vector<8x512xf32>
    %588 = tpu.matmul %587, %312, %cst_133 {dimension_numbers = #tpu.dot_dimension_numbers<[1], [0], [0], [1], [0, 0, 1, 1], [], []>} : vector<8x128xbf16>, vector<128x512xbf16>, vector<8x512xf32> -> vector<8x512xf32>
    %589 = arith.addf %586, %588 : vector<8x512xf32>
    %590 = vector.extract_strided_slice %589 {offsets = [0, 0], sizes = [8, 128], strides = [1, 1]} : vector<8x512xf32> to vector<8x128xf32>
    %591 = arith.negf %590 : vector<8x128xf32>
    %592 = math.exp %591 : vector<8x128xf32>
    %cst_134 = arith.constant 1.000000e+00 : f32
    %593 = vector.broadcast %cst_134 : f32 to vector<8x128xf32>
    %594 = arith.addf %593, %592 : vector<8x128xf32>
    %595 = arith.divf %593, %594 : vector<8x128xf32>
    %596 = vector.extract_strided_slice %589 {offsets = [0, 128], sizes = [8, 128], strides = [1, 1]} : vector<8x512xf32> to vector<8x128xf32>
    %597 = arith.negf %596 : vector<8x128xf32>
    %598 = math.exp %597 : vector<8x128xf32>
    %cst_135 = arith.constant 1.000000e+00 : f32
    %599 = vector.broadcast %cst_135 : f32 to vector<8x128xf32>
    %600 = arith.addf %599, %598 : vector<8x128xf32>
    %601 = arith.divf %599, %600 : vector<8x128xf32>
    %602 = vector.extract_strided_slice %589 {offsets = [0, 256], sizes = [8, 128], strides = [1, 1]} : vector<8x512xf32> to vector<8x128xf32>
    %603 = math.tanh %602 : vector<8x128xf32>
    %604 = vector.extract_strided_slice %589 {offsets = [0, 384], sizes = [8, 128], strides = [1, 1]} : vector<8x512xf32> to vector<8x128xf32>
    %605 = arith.negf %604 : vector<8x128xf32>
    %606 = math.exp %605 : vector<8x128xf32>
    %cst_136 = arith.constant 1.000000e+00 : f32
    %607 = vector.broadcast %cst_136 : f32 to vector<8x128xf32>
    %608 = arith.addf %607, %606 : vector<8x128xf32>
    %609 = arith.divf %607, %608 : vector<8x128xf32>
    %610 = arith.mulf %601, %579 : vector<8x128xf32>
    %611 = arith.mulf %595, %603 : vector<8x128xf32>
    %612 = arith.addf %610, %611 : vector<8x128xf32>
    %613 = math.tanh %612 : vector<8x128xf32>
    %614 = arith.mulf %609, %613 : vector<8x128xf32>
    %c8_137 = arith.constant 8 : index
    %c0_138 = arith.constant 0 : index
    %c0_139 = arith.constant 0 : index
    %615 = vector.load %arg10[%c8_137, %c0_138, %c0_139] : memref<9x8x128xf32, #tpu.memory_space<vmem>>, vector<1x8x128xf32>
    %616 = vector.shape_cast %615 : vector<1x8x128xf32> to vector<8x128xf32>
    %617 = vector.shape_cast %614 : vector<8x128xf32> to vector<1x8x128xf32>
    tpu.vector_store %arg10[%c8_137, %c0_138, %c0_139], %617 {strides = array<i32>} : memref<9x8x128xf32, #tpu.memory_space<vmem>>, vector<1x8x128xf32>,
    %c0_140 = arith.constant 0 : index
    %c0_141 = arith.constant 0 : index
    %c0_142 = arith.constant 0 : index
    %618 = vector.load %arg10[%c0_140, %c0_141, %c0_142] : memref<9x8x128xf32, #tpu.memory_space<vmem>>, vector<9x8x128xf32>
    %c0_143 = arith.constant 0 : index
    %c0_144 = arith.constant 0 : index
    %619 = vector.load %arg7[%c0_143, %c0_144] : memref<128x128xbf16, #tpu.memory_space<vmem>>, vector<128x128xbf16>
    %620 = vector.shape_cast %618 : vector<9x8x128xf32> to vector<72x128xf32>
    %621 = arith.truncf %620 : vector<72x128xf32> to vector<72x128xbf16>
    %cst_145 = arith.constant dense<0.000000e+00> : vector<72x128xf32>
    %622 = tpu.matmul %621, %619, %cst_145 {dimension_numbers = #tpu.dot_dimension_numbers<[1], [0], [0], [1], [0, 0, 1, 1], [], []>} : vector<72x128xbf16>, vector<128x128xbf16>, vector<72x128xf32> -> vector<72x128xf32>
    %c0_146 = arith.constant 0 : index
    %c0_147 = arith.constant 0 : index
    %623 = vector.load %arg8[%c0_146, %c0_147] : memref<1x128xf32, #tpu.memory_space<vmem>>, vector<1x128xf32>
    %624 = vector.broadcast %623 : vector<1x128xf32> to vector<72x128xf32>
    %625 = arith.addf %622, %624 : vector<72x128xf32>
    %626 = vector.shape_cast %625 : vector<72x128xf32> to vector<9x8x128xf32>
    %c0_148 = arith.constant 0 : index
    %c0_149 = arith.constant 0 : index
    %c0_150 = arith.constant 0 : index
    %627 = vector.load %arg9[%c0_148, %c0_149, %c0_150] : memref<9x8x128xf32, #tpu.memory_space<vmem>>, vector<9x8x128xf32>
    tpu.vector_store %arg9[%c0_148, %c0_149, %c0_150], %626 {strides = array<i32>} : memref<9x8x128xf32, #tpu.memory_space<vmem>>, vector<9x8x128xf32>,
    return
  }
}

</mosaic_0001>

<llo_original>
// kernel: cnn_to_rnn_forward.4
$region0: #{cnn_to_rnn_forward.4}
  #allocation0 [shape = 'u32[]', space=smem, size = 0x4, offset = 0x4, fixed_abs, tag = 'smem constant byte address 0x4 - core index']
  #allocation1 [shape = 'u32[72,128]{1,0:T(1,128)}', space=vmem, size = 0x9000, scoped, tag = 'internal scratch']
  %s0 = inlined_call_operand.vmem [shape: f32[8,256], index: 0, kind: input, shape index: {}]
  %s1 = inlined_call_operand.vmem [shape: bf16[256,128], index: 1, kind: input, shape index: {}]
  %s2 = inlined_call_operand.vmem [shape: f32[1,128], index: 2, kind: input, shape index: {}]
  %s3 = inlined_call_operand.vmem [shape: bf16[128,128], index: 3, kind: input, shape index: {}]
  %s4 = inlined_call_operand.vmem [shape: f32[1,128], index: 4, kind: input, shape index: {}]
  %s5 = inlined_call_operand.vmem [shape: bf16[128,128], index: 5, kind: input, shape index: {}]
  %s6 = inlined_call_operand.vmem [shape: f32[1,128], index: 6, kind: input, shape index: {}]
  %s7 = inlined_call_operand.vmem [shape: f32[8,128], index: 7, kind: output, shape index: {}]
  %s8 = sld [smem:[#allocation0]]
  $region38: #{cnn_to_rnn_forward.4} parent=0
    _
  %s10 = ssub.s32 1, %s8
  %s11 = scalar_select 0, %s10, %s8
  // Predicated region
  $region2: #{cnn_to_rnn_forward.4} parent=0 // pred_check
    _
  $region3: #{cnn_to_rnn_forward.4} parent=0 // pred_check_branch
    %13 = sbr.rel (0) target = $region5
  $region4: #{cnn_to_rnn_forward.4} parent=0 // pred_region
    _
  $region5: #{cnn_to_rnn_forward.4} parent=0 // pred_fallthru
    _
  // Predicated region
  $region6: #{cnn_to_rnn_forward.4} parent=0 // pred_check
    _
  $region7: #{cnn_to_rnn_forward.4} parent=0 // pred_check_branch
    %15 = sbr.rel (0) target = $region9
  $region8: #{cnn_to_rnn_forward.4} parent=0 // pred_region
    _
  $region9: #{cnn_to_rnn_forward.4} parent=0 // pred_fallthru
    _
  // Predicated region
  $region10: #{cnn_to_rnn_forward.4} parent=0 // pred_check
    _
  $region11: #{cnn_to_rnn_forward.4} parent=0 // pred_check_branch
    %17 = sbr.rel (0) target = $region13
  $region12: #{cnn_to_rnn_forward.4} parent=0 // pred_region
    _
  $region13: #{cnn_to_rnn_forward.4} parent=0 // pred_fallthru
    _
  // Predicated region
  $region14: #{cnn_to_rnn_forward.4} parent=0 // pred_check
    _
  $region15: #{cnn_to_rnn_forward.4} parent=0 // pred_check_branch
    %19 = sbr.rel (0) target = $region17
  $region16: #{cnn_to_rnn_forward.4} parent=0 // pred_region
    _
  $region17: #{cnn_to_rnn_forward.4} parent=0 // pred_fallthru
    _
  // Predicated region
  $region18: #{cnn_to_rnn_forward.4} parent=0 // pred_check
    _
  $region19: #{cnn_to_rnn_forward.4} parent=0 // pred_check_branch
    %21 = sbr.rel (0) target = $region21
  $region20: #{cnn_to_rnn_forward.4} parent=0 // pred_region
    _
  $region21: #{cnn_to_rnn_forward.4} parent=0 // pred_fallthru
    _
  // Predicated region
  $region22: #{cnn_to_rnn_forward.4} parent=0 // pred_check
    _
  $region23: #{cnn_to_rnn_forward.4} parent=0 // pred_check_branch
    %23 = sbr.rel (0) target = $region25
  $region24: #{cnn_to_rnn_forward.4} parent=0 // pred_region
    _
  $region25: #{cnn_to_rnn_forward.4} parent=0 // pred_fallthru
    _
  // Predicated region
  $region26: #{cnn_to_rnn_forward.4} parent=0 // pred_check
    _
  $region27: #{cnn_to_rnn_forward.4} parent=0 // pred_check_branch
    %25 = sbr.rel (0) target = $region29
  $region28: #{cnn_to_rnn_forward.4} parent=0 // pred_region
    _
  $region29: #{cnn_to_rnn_forward.4} parent=0 // pred_fallthru
    _
  %v26 = vld [vmem:[%s0] sm:$0xff]
  %v27 = vld [vmem:[%s0 + $0x8] sm:$0xff]
  %v28 = vld [vmem:[%s1] sm:$0xf]
  %v29 = vld [vmem:[%s1 + $0x4] sm:$0xf]
  %v30 = vld [vmem:[%s1 + $0x8] sm:$0xf]
  %v31 = vld [vmem:[%s1 + $0xc] sm:$0xf]
  %v32 = vld [vmem:[%s1 + $0x10] sm:$0xf]
  %v33 = vld [vmem:[%s1 + $0x14] sm:$0xf]
  %v34 = vld [vmem:[%s1 + $0x18] sm:$0xf]
  %v35 = vld [vmem:[%s1 + $0x1c] sm:$0xf]
  %v36 = vld [vmem:[%s1 + $0x20] sm:$0xf]
  %v37 = vld [vmem:[%s1 + $0x24] sm:$0xf]
  %v38 = vld [vmem:[%s1 + $0x28] sm:$0xf]
  %v39 = vld [vmem:[%s1 + $0x2c] sm:$0xf]
  %v40 = vld [vmem:[%s1 + $0x30] sm:$0xf]
  %v41 = vld [vmem:[%s1 + $0x34] sm:$0xf]
  %v42 = vld [vmem:[%s1 + $0x38] sm:$0xf]
  %v43 = vld [vmem:[%s1 + $0x3c] sm:$0xf]
  %v44 = vld [vmem:[%s1 + $0x40] sm:$0xf]
  %v45 = vld [vmem:[%s1 + $0x44] sm:$0xf]
  %v46 = vld [vmem:[%s1 + $0x48] sm:$0xf]
  %v47 = vld [vmem:[%s1 + $0x4c] sm:$0xf]
  %v48 = vld [vmem:[%s1 + $0x50] sm:$0xf]
  %v49 = vld [vmem:[%s1 + $0x54] sm:$0xf]
  %v50 = vld [vmem:[%s1 + $0x58] sm:$0xf]
  %v51 = vld [vmem:[%s1 + $0x5c] sm:$0xf]
  %v52 = vld [vmem:[%s1 + $0x60] sm:$0xf]
  %v53 = vld [vmem:[%s1 + $0x64] sm:$0xf]
  %v54 = vld [vmem:[%s1 + $0x68] sm:$0xf]
  %v55 = vld [vmem:[%s1 + $0x6c] sm:$0xf]
  %v56 = vld [vmem:[%s1 + $0x70] sm:$0xf]
  %v57 = vld [vmem:[%s1 + $0x74] sm:$0xf]
  %v58 = vld [vmem:[%s1 + $0x78] sm:$0xf]
  %v59 = vld [vmem:[%s1 + $0x7c] sm:$0xf]
  %v60 = vpack.c.bf16 %v26, %v26
  %v61 = vpack.c.bf16 %v27, %v27
  %v62 = vld [vmem:[%s2] sm:$0x1]
  %v64 = vperm.slane %v62, 0
  %v98 = vunpack.c.l.b16 %v28
  %v99 = vunpack.c.l.b16 %v29
  %v100 = vunpack.c.l.b16 %v30
  %v101 = vunpack.c.l.b16 %v31
  %v102 = vunpack.c.l.b16 %v32
  %v103 = vunpack.c.l.b16 %v33
  %v104 = vunpack.c.l.b16 %v34
  %v105 = vunpack.c.l.b16 %v35
  %v106 = vunpack.c.l.b16 %v36
  %v107 = vunpack.c.l.b16 %v37
  %v108 = vunpack.c.l.b16 %v38
  %v109 = vunpack.c.l.b16 %v39
  %v110 = vunpack.c.l.b16 %v40
  %v111 = vunpack.c.l.b16 %v41
  %v112 = vunpack.c.l.b16 %v42
  %v113 = vunpack.c.l.b16 %v43
  %v114 = vunpack.c.l.b16 %v44
  %v115 = vunpack.c.l.b16 %v45
  %v116 = vunpack.c.l.b16 %v46
  %v117 = vunpack.c.l.b16 %v47
  %v118 = vunpack.c.l.b16 %v48
  %v119 = vunpack.c.l.b16 %v49
  %v120 = vunpack.c.l.b16 %v50
  %v121 = vunpack.c.l.b16 %v51
  %v122 = vunpack.c.l.b16 %v52
  %v123 = vunpack.c.l.b16 %v53
  %v124 = vunpack.c.l.b16 %v54
  %v125 = vunpack.c.l.b16 %v55
  %v126 = vunpack.c.l.b16 %v56
  %v127 = vunpack.c.l.b16 %v57
  %v128 = vunpack.c.l.b16 %v58
  %v129 = vunpack.c.l.b16 %v59
  %v130 = vpack.c.b16 %v99, %v98
  %v131 = vpack.c.b16 %v101, %v100
  %v132 = vpack.c.b16 %v103, %v102
  %v133 = vpack.c.b16 %v105, %v104
  %v134 = vpack.c.b16 %v107, %v106
  %v135 = vpack.c.b16 %v109, %v108
  %v136 = vpack.c.b16 %v111, %v110
  %v137 = vpack.c.b16 %v113, %v112
  %v138 = vpack.c.b16 %v115, %v114
  %v139 = vpack.c.b16 %v117, %v116
  %v140 = vpack.c.b16 %v119, %v118
  %v141 = vpack.c.b16 %v121, %v120
  %v142 = vpack.c.b16 %v123, %v122
  %v143 = vpack.c.b16 %v125, %v124
  %v144 = vpack.c.b16 %v127, %v126
  %v145 = vpack.c.b16 %v129, %v128
  %162 = vmatpush.bf16.msra.mxu0 %v137
  %163 = vmatpush.bf16.msra.mxu0 %v136
  %164 = vmatpush.bf16.msra.mxu0 %v135
  %165 = vmatpush.bf16.msra.mxu0 %v134
  %166 = vmatpush.bf16.msra.mxu0 %v133
  %167 = vmatpush.bf16.msra.mxu0 %v132
  %168 = vmatpush.bf16.msra.mxu0 %v131
  %169 = vmatpush.bf16.msra.mxu0 %v130
  %170 = vmatmul.bf16.gmra.mxu0 %v60
  %v171 = vpop.f32.mrf.mxu0
  %v172 = vadd.f32 %v64, %v171
  %v173 = vpop.f32.mrf.mxu0
  %174 = vdwg.mxu0
  %175 = vmatpush.bf16.msra.mxu0 %v145
  %176 = vmatpush.bf16.msra.mxu0 %v144
  %177 = vmatpush.bf16.msra.mxu0 %v143
  %178 = vmatpush.bf16.msra.mxu0 %v142
  %179 = vmatpush.bf16.msra.mxu0 %v141
  %180 = vmatpush.bf16.msra.mxu0 %v140
  %181 = vmatpush.bf16.msra.mxu0 %v139
  %182 = vmatpush.bf16.msra.mxu0 %v138
  %183 = vmatmul.bf16.gmra.mxu0 %v61
  %v184 = vpop.f32.mrf.mxu0
  %v185 = vadd.f32 %v172, %v184
  %v186 = vpop.f32.mrf.mxu0
  %187 = vdwg.mxu0
  %v188 = vmax.f32 %v185, 0.0
  %v189 = vld [vmem:[%s3] sm:$0xf]
  %v190 = vld [vmem:[%s3 + $0x4] sm:$0xf]
  %v191 = vld [vmem:[%s3 + $0x8] sm:$0xf]
  %v192 = vld [vmem:[%s3 + $0xc] sm:$0xf]
  %v193 = vld [vmem:[%s3 + $0x10] sm:$0xf]
  %v194 = vld [vmem:[%s3 + $0x14] sm:$0xf]
  %v195 = vld [vmem:[%s3 + $0x18] sm:$0xf]
  %v196 = vld [vmem:[%s3 + $0x1c] sm:$0xf]
  %v197 = vld [vmem:[%s3 + $0x20] sm:$0xf]
  %v198 = vld [vmem:[%s3 + $0x24] sm:$0xf]
  %v199 = vld [vmem:[%s3 + $0x28] sm:$0xf]
  %v200 = vld [vmem:[%s3 + $0x2c] sm:$0xf]
  %v201 = vld [vmem:[%s3 + $0x30] sm:$0xf]
  %v202 = vld [vmem:[%s3 + $0x34] sm:$0xf]
  %v203 = vld [vmem:[%s3 + $0x38] sm:$0xf]
  %v204 = vld [vmem:[%s3 + $0x3c] sm:$0xf]
  %v205 = vpack.c.bf16 %v188, %v188
  %v206 = vld [vmem:[%s4] sm:$0x1]
  %v208 = vperm.slane %v206, 0
  %v226 = vunpack.c.l.b16 %v189
  %v227 = vunpack.c.l.b16 %v190
  %v228 = vunpack.c.l.b16 %v191
  %v229 = vunpack.c.l.b16 %v192
  %v230 = vunpack.c.l.b16 %v193
  %v231 = vunpack.c.l.b16 %v194
  %v232 = vunpack.c.l.b16 %v195
  %v233 = vunpack.c.l.b16 %v196
  %v234 = vunpack.c.l.b16 %v197
  %v235 = vunpack.c.l.b16 %v198
  %v236 = vunpack.c.l.b16 %v199
  %v237 = vunpack.c.l.b16 %v200
  %v238 = vunpack.c.l.b16 %v201
  %v239 = vunpack.c.l.b16 %v202
  %v240 = vunpack.c.l.b16 %v203
  %v241 = vunpack.c.l.b16 %v204
  %v242 = vpack.c.b16 %v227, %v226
  %v243 = vpack.c.b16 %v229, %v228
  %v244 = vpack.c.b16 %v231, %v230
  %v245 = vpack.c.b16 %v233, %v232
  %v246 = vpack.c.b16 %v235, %v234
  %v247 = vpack.c.b16 %v237, %v236
  %v248 = vpack.c.b16 %v239, %v238
  %v249 = vpack.c.b16 %v241, %v240
  %258 = vmatpush.bf16.msra.mxu0 %v249
  %259 = vmatpush.bf16.msra.mxu0 %v248
  %260 = vmatpush.bf16.msra.mxu0 %v247
  %261 = vmatpush.bf16.msra.mxu0 %v246
  %262 = vmatpush.bf16.msra.mxu0 %v245
  %263 = vmatpush.bf16.msra.mxu0 %v244
  %264 = vmatpush.bf16.msra.mxu0 %v243
  %265 = vmatpush.bf16.msra.mxu0 %v242
  %266 = vmatmul.bf16.gmra.mxu0 %v205
  %v267 = vpop.f32.mrf.mxu0
  %v268 = vadd.f32 %v208, %v267
  %v269 = vpop.f32.mrf.mxu0
  %270 = vdwg.mxu0
  %v271 = vmax.f32 %v268, 0.0
  %v272 = vld [vmem:[%s5] sm:$0xf]
  %v273 = vld [vmem:[%s5 + $0x4] sm:$0xf]
  %v274 = vld [vmem:[%s5 + $0x8] sm:$0xf]
  %v275 = vld [vmem:[%s5 + $0xc] sm:$0xf]
  %v276 = vld [vmem:[%s5 + $0x10] sm:$0xf]
  %v277 = vld [vmem:[%s5 + $0x14] sm:$0xf]
  %v278 = vld [vmem:[%s5 + $0x18] sm:$0xf]
  %v279 = vld [vmem:[%s5 + $0x1c] sm:$0xf]
  %v280 = vld [vmem:[%s5 + $0x20] sm:$0xf]
  %v281 = vld [vmem:[%s5 + $0x24] sm:$0xf]
  %v282 = vld [vmem:[%s5 + $0x28] sm:$0xf]
  %v283 = vld [vmem:[%s5 + $0x2c] sm:$0xf]
  %v284 = vld [vmem:[%s5 + $0x30] sm:$0xf]
  %v285 = vld [vmem:[%s5 + $0x34] sm:$0xf]
  %v286 = vld [vmem:[%s5 + $0x38] sm:$0xf]
  %v287 = vld [vmem:[%s5 + $0x3c] sm:$0xf]
  %v288 = vpack.c.bf16 %v271, %v271
  %v289 = vld [vmem:[%s6] sm:$0x1]
  %v291 = vperm.slane %v289, 0
  %v309 = vunpack.c.l.b16 %v272
  %v310 = vunpack.c.l.b16 %v273
  %v311 = vunpack.c.l.b16 %v274
  %v312 = vunpack.c.l.b16 %v275
  %v313 = vunpack.c.l.b16 %v276
  %v314 = vunpack.c.l.b16 %v277
  %v315 = vunpack.c.l.b16 %v278
  %v316 = vunpack.c.l.b16 %v279
  %v317 = vunpack.c.l.b16 %v280
  %v318 = vunpack.c.l.b16 %v281
  %v319 = vunpack.c.l.b16 %v282
  %v320 = vunpack.c.l.b16 %v283
  %v321 = vunpack.c.l.b16 %v284
  %v322 = vunpack.c.l.b16 %v285
  %v323 = vunpack.c.l.b16 %v286
  %v324 = vunpack.c.l.b16 %v287
  %v325 = vpack.c.b16 %v310, %v309
  %v326 = vpack.c.b16 %v312, %v311
  %v327 = vpack.c.b16 %v314, %v313
  %v328 = vpack.c.b16 %v316, %v315
  %v329 = vpack.c.b16 %v318, %v317
  %v330 = vpack.c.b16 %v320, %v319
  %v331 = vpack.c.b16 %v322, %v321
  %v332 = vpack.c.b16 %v324, %v323
  %341 = vmatpush.bf16.msra.mxu0 %v332
  %342 = vmatpush.bf16.msra.mxu0 %v331
  %343 = vmatpush.bf16.msra.mxu0 %v330
  %344 = vmatpush.bf16.msra.mxu0 %v329
  %345 = vmatpush.bf16.msra.mxu0 %v328
  %346 = vmatpush.bf16.msra.mxu0 %v327
  %347 = vmatpush.bf16.msra.mxu0 %v326
  %348 = vmatpush.bf16.msra.mxu0 %v325
  %349 = vmatmul.bf16.gmra.mxu0 %v288
  %v350 = vpop.f32.mrf.mxu0
  %v351 = vadd.f32 %v291, %v350
  %v352 = vpop.f32.mrf.mxu0
  %353 = vdwg.mxu0
  %v354 = vmax.f32 %v351, 0.0
  %355 = vst [vmem:[%s7] sm:$0xff] %v354
  // Predicated region
  $region30: #{cnn_to_rnn_forward.4} parent=0 // pred_check
    _
  $region31: #{cnn_to_rnn_forward.4} parent=0 // pred_check_branch
    %357 = sbr.rel (0) target = $region33
  $region32: #{cnn_to_rnn_forward.4} parent=0 // pred_region
    _
  $region33: #{cnn_to_rnn_forward.4} parent=0 // pred_fallthru
    _
  // Predicated region
  $region34: #{cnn_to_rnn_forward.4} parent=0 // pred_check
    _
  $region35: #{cnn_to_rnn_forward.4} parent=0 // pred_check_branch
    %359 = sbr.rel (0) target = $region37
  $region36: #{cnn_to_rnn_forward.4} parent=0 // pred_region
    _
  $region37: #{cnn_to_rnn_forward.4} parent=0 // pred_fallthru
    _

// kernel: cnn_to_rnn_forward.3
$region0: #{cnn_to_rnn_forward.3}
  #allocation0 [shape = 'u32[]', space=smem, size = 0x4, offset = 0x4, fixed_abs, tag = 'smem constant byte address 0x4 - core index']
  #allocation1 [shape = 'u32[72,128]{1,0:T(1,128)}', space=vmem, size = 0x9000, scoped, tag = 'internal scratch']
  #allocation2 [shape = 'f32[128,8]{1,0:T(8,128)}', space=vmem, size = 0x10000, scoped, tag = 'scratch operand']
  #allocation3 [shape = 'f32[32,16]{1,0:T(8,128)}', space=vmem, size = 0x4000, scoped, tag = 'scratch operand']
  #allocation4 [shape = 'f32[10,10,8]{2,1,0:T(8,128)}', space=vmem, size = 0x14000, scoped, tag = 'scratch operand']
  %s0 = inlined_call_operand.vmem [shape: f32[2,18,18,3], index: 0, kind: input, shape index: {}]
  %s1 = inlined_call_operand.vmem [shape: f32[9,3,8], index: 1, kind: input, shape index: {}]
  %s2 = inlined_call_operand.vmem [shape: f32[1,8], index: 2, kind: input, shape index: {}]
  %s3 = inlined_call_operand.vmem [shape: f32[9,8,16], index: 3, kind: input, shape index: {}]
  %s4 = inlined_call_operand.vmem [shape: f32[1,16], index: 4, kind: input, shape index: {}]
  %s5 = inlined_call_operand.vmem [shape: f32[2,16,16], index: 5, kind: output, shape index: {}]
  %s6 = sld [smem:[#allocation0]]
  $region53: #{cnn_to_rnn_forward.3} parent=0
    _
  %s8 = ssub.s32 1, %s6
  %s9 = scalar_select 0, %s8, %s6
  loop: start=0, step=1, limit=4
  $region2: #{cnn_to_rnn_forward.3} parent=0 // loop_pre_header
    _
  $region3: #{cnn_to_rnn_forward.3} parent=0 // loop_header
    %s11 = sphi 0, %s15
    %p12 = scmp.ge.s32.totalorder %s11, 4
    %s21 = sphi 0, %s23
    %s24 = sphi 0, %s21
    %s25 = sphi 0, %s24
    %s41 = sphi 0, %s25
    %s45 = sphi 0, %s45
    %s47 = sphi 0, %s45
    %s48 = sphi 0, %s47
    %s62 = sphi 0, %s48
    %s66 = sphi 0, %s66
    %s68 = sphi 0, %s66
    %s69 = sphi 0, %s68
    %s83 = sphi 0, %s69
    %s87 = sphi 0, %s87
    %s89 = sphi 0, %s87
    %s90 = sphi 0, %s89
    %s104 = sphi 0, %s90
    %s108 = sphi 0, %s108
    %s110 = sphi 0, %s108
    %s111 = sphi 0, %s110
    %s125 = sphi 0, %s111
    %s131 = sphi 0, %s133
    %s134 = sphi 0, %s131
    %s135 = sphi 0, %s134
    %s151 = sphi 0, %s135
  $region4: #{cnn_to_rnn_forward.3} parent=0 // loop_header_branch
    %14 = sbr.rel (%p12) target = $region8
  $region5: #{cnn_to_rnn_forward.3} parent=0 // loop_body
    %s16 = ssub.s32 %s11, 1
    %s17 = ssub.s32 %s11, 2
    %s18 = sadd.s32 %s11, 1
    %s19 = ssub.s32 %s11, %s18
    %p20 = scmp.eq.s32.totalorder %s19, 0
    %s22 = sadd.s32 %s21, 1
    %s23 = scalar_select %p20, %s21, %s22
    %p26 = pneg %p20
    %p27 = scmp.eq.s32.totalorder %s11, 1
    %p28 = por %p26, %p27
    %p29 = scmp.ne.s32.totalorder %s21, %s24
    %p30 = scmp.eq.s32.totalorder %s11, 0
    %p31 = por %p29, %p30
    %p32 = scmp.ne.s32.totalorder %s21, %s24
    %p33 = scmp.eq.s32.totalorder %s16, 1
    %p34 = por %p32, %p33
    %p35 = scmp.ne.s32.totalorder %s24, %s25
    %p36 = scmp.eq.s32.totalorder %s16, 0
    %p37 = por %p35, %p36
    %p38 = scmp.ne.s32.totalorder %s24, %s25
    %p39 = scmp.eq.s32.totalorder %s17, 1
    %p40 = por %p38, %p39
    %p42 = scmp.ne.s32.totalorder %s25, %s41
    %p43 = scmp.eq.s32.totalorder %s17, 0
    %p44 = por %p42, %p43
    %s46 = sadd.s32 %s45, 1
    %p49 = scmp.eq.s32.totalorder %s11, 1
    %p50 = scmp.ne.s32.totalorder %s45, %s47
    %p51 = scmp.eq.s32.totalorder %s11, 0
    %p52 = por %p50, %p51
    %p53 = scmp.ne.s32.totalorder %s45, %s47
    %p54 = scmp.eq.s32.totalorder %s16, 1
    %p55 = por %p53, %p54
    %p56 = scmp.ne.s32.totalorder %s47, %s48
    %p57 = scmp.eq.s32.totalorder %s16, 0
    %p58 = por %p56, %p57
    %p59 = scmp.ne.s32.totalorder %s47, %s48
    %p60 = scmp.eq.s32.totalorder %s17, 1
    %p61 = por %p59, %p60
    %p63 = scmp.ne.s32.totalorder %s48, %s62
    %p64 = scmp.eq.s32.totalorder %s17, 0
    %p65 = por %p63, %p64
    %s67 = sadd.s32 %s66, 1
    %p70 = scmp.eq.s32.totalorder %s11, 1
    %p71 = scmp.ne.s32.totalorder %s66, %s68
    %p72 = scmp.eq.s32.totalorder %s11, 0
    %p73 = por %p71, %p72
    %p74 = scmp.ne.s32.totalorder %s66, %s68
    %p75 = scmp.eq.s32.totalorder %s16, 1
    %p76 = por %p74, %p75
    %p77 = scmp.ne.s32.totalorder %s68, %s69
    %p78 = scmp.eq.s32.totalorder %s16, 0
    %p79 = por %p77, %p78
    %p80 = scmp.ne.s32.totalorder %s68, %s69
    %p81 = scmp.eq.s32.totalorder %s17, 1
    %p82 = por %p80, %p81
    %p84 = scmp.ne.s32.totalorder %s69, %s83
    %p85 = scmp.eq.s32.totalorder %s17, 0
    %p86 = por %p84, %p85
    %s88 = sadd.s32 %s87, 1
    %p91 = scmp.eq.s32.totalorder %s11, 1
    %p92 = scmp.ne.s32.totalorder %s87, %s89
    %p93 = scmp.eq.s32.totalorder %s11, 0
    %p94 = por %p92, %p93
    %p95 = scmp.ne.s32.totalorder %s87, %s89
    %p96 = scmp.eq.s32.totalorder %s16, 1
    %p97 = por %p95, %p96
    %p98 = scmp.ne.s32.totalorder %s89, %s90
    %p99 = scmp.eq.s32.totalorder %s16, 0
    %p100 = por %p98, %p99
    %p101 = scmp.ne.s32.totalorder %s89, %s90
    %p102 = scmp.eq.s32.totalorder %s17, 1
    %p103 = por %p101, %p102
    %p105 = scmp.ne.s32.totalorder %s90, %s104
    %p106 = scmp.eq.s32.totalorder %s17, 0
    %p107 = por %p105, %p106
    %s109 = sadd.s32 %s108, 1
    %p112 = scmp.eq.s32.totalorder %s11, 1
    %p113 = scmp.ne.s32.totalorder %s108, %s110
    %p114 = scmp.eq.s32.totalorder %s11, 0
    %p115 = por %p113, %p114
    %p116 = scmp.ne.s32.totalorder %s108, %s110
    %p117 = scmp.eq.s32.totalorder %s16, 1
    %p118 = por %p116, %p117
    %p119 = scmp.ne.s32.totalorder %s110, %s111
    %p120 = scmp.eq.s32.totalorder %s16, 0
    %p121 = por %p119, %p120
    %p122 = scmp.ne.s32.totalorder %s110, %s111
    %p123 = scmp.eq.s32.totalorder %s17, 1
    %p124 = por %p122, %p123
    %p126 = scmp.ne.s32.totalorder %s111, %s125
    %p127 = scmp.eq.s32.totalorder %s17, 0
    %p128 = por %p126, %p127
    %s129 = ssub.s32 %s11, %s18
    %p130 = scmp.eq.s32.totalorder %s129, 0
    %s132 = sadd.s32 %s131, 1
    %s133 = scalar_select %p130, %s131, %s132
    %p136 = pneg %p130
    %p137 = scmp.eq.s32.totalorder %s11, 1
    %p138 = por %p136, %p137
    %p139 = scmp.ne.s32.totalorder %s131, %s134
    %p140 = scmp.eq.s32.totalorder %s11, 0
    %p141 = por %p139, %p140
    %p142 = scmp.ne.s32.totalorder %s131, %s134
    %p143 = scmp.eq.s32.totalorder %s16, 1
    %p144 = por %p142, %p143
    %p145 = scmp.ne.s32.totalorder %s134, %s135
    %p146 = scmp.eq.s32.totalorder %s16, 0
    %p147 = por %p145, %p146
    %p148 = scmp.ne.s32.totalorder %s134, %s135
    %p149 = scmp.eq.s32.totalorder %s17, 1
    %p150 = por %p148, %p149
    %p152 = scmp.ne.s32.totalorder %s135, %s151
    %p153 = scmp.eq.s32.totalorder %s17, 0
    %p154 = por %p152, %p153
    %p155 = scmp.le.s32.totalorder 1, %s11
    %p156 = scmp.lt.s32.totalorder %s11, 3
    %p157 = pnand %p155, %p156
    %p158 = pneg %p157
    // Predicated region
    $region9: #{cnn_to_rnn_forward.3} parent=5 // pred_check
      _
    $region10: #{cnn_to_rnn_forward.3} parent=5 // pred_check_branch
      %160 = sbr.rel (%p157) target = $region12
    $region11: #{cnn_to_rnn_forward.3} parent=5 // pred_region
      %s161 = ssub.s32 %s11, 1
      // Predicated region
      $region13: #{cnn_to_rnn_forward.3} parent=11 // pred_check
        %p162 = pneg %p58
      $region14: #{cnn_to_rnn_forward.3} parent=11 // pred_check_branch
        %164 = sbr.rel (%p162) target = $region16
      $region15: #{cnn_to_rnn_forward.3} parent=11 // pred_region
        _
      $region16: #{cnn_to_rnn_forward.3} parent=11 // pred_fallthru
        _
      // Predicated region
      $region17: #{cnn_to_rnn_forward.3} parent=11 // pred_check
        %p165 = pneg %p79
      $region18: #{cnn_to_rnn_forward.3} parent=11 // pred_check_branch
        %167 = sbr.rel (%p165) target = $region20
      $region19: #{cnn_to_rnn_forward.3} parent=11 // pred_region
        _
      $region20: #{cnn_to_rnn_forward.3} parent=11 // pred_fallthru
        _
      // Predicated region
      $region21: #{cnn_to_rnn_forward.3} parent=11 // pred_check
        %p168 = pneg %p100
      $region22: #{cnn_to_rnn_forward.3} parent=11 // pred_check_branch
        %170 = sbr.rel (%p168) target = $region24
      $region23: #{cnn_to_rnn_forward.3} parent=11 // pred_region
        _
      $region24: #{cnn_to_rnn_forward.3} parent=11 // pred_fallthru
        _
      // Predicated region
      $region25: #{cnn_to_rnn_forward.3} parent=11 // pred_check
        %p171 = pneg %p121
      $region26: #{cnn_to_rnn_forward.3} parent=11 // pred_check_branch
        %173 = sbr.rel (%p171) target = $region28
      $region27: #{cnn_to_rnn_forward.3} parent=11 // pred_region
        _
      $region28: #{cnn_to_rnn_forward.3} parent=11 // pred_fallthru
        _
    $region12: #{cnn_to_rnn_forward.3} parent=5 // pred_fallthru
      _
    %p174 = scmp.lt.s32.totalorder %s11, 2
    // Predicated region
    $region29: #{cnn_to_rnn_forward.3} parent=5 // pred_check
      %p175 = pneg %p174
    $region30: #{cnn_to_rnn_forward.3} parent=5 // pred_check_branch
      %177 = sbr.rel (%p175) target = $region32
    $region31: #{cnn_to_rnn_forward.3} parent=5 // pred_region
      // Predicated region
      $region33: #{cnn_to_rnn_forward.3} parent=31 // pred_check
        %p178 = pneg %p31
      $region34: #{cnn_to_rnn_forward.3} parent=31 // pred_check_branch
        %180 = sbr.rel (%p178) target = $region36
      $region35: #{cnn_to_rnn_forward.3} parent=31 // pred_region
        %p181 = scmp.lt.s32.totalorder %s11, 1
        %s182 = scalar_select %p181, %s11, 1
        %s183 = smul.addr %s182, 54
        %s184 = smul.addr %s183, 8
        %s185 = scalar_lea.vmem %s0, %s184
      $region36: #{cnn_to_rnn_forward.3} parent=31 // pred_fallthru
        _
    $region32: #{cnn_to_rnn_forward.3} parent=5 // pred_fallthru
      _
    %p186 = scmp.le.s32.totalorder 1, %s11
    %p187 = scmp.lt.s32.totalorder %s11, 3
    %p188 = pnand %p186, %p187
    %p189 = pneg %p188
    // Predicated region
    $region37: #{cnn_to_rnn_forward.3} parent=5 // pred_check
      _
    $region38: #{cnn_to_rnn_forward.3} parent=5 // pred_check_branch
      %191 = sbr.rel (%p188) target = $region40
    $region39: #{cnn_to_rnn_forward.3} parent=5 // pred_region
      %s192 = ssub.s32 %s11, 1
      %p193 = scmp.lt.s32.totalorder %s16, 1
      %s194 = scalar_select %p193, %s16, 1
      %s195 = smul.addr %s194, 54
      %s196 = smul.addr %s195, 8
      %s197 = scalar_lea.vmem %s0, %s196
      %p198 = pneg %p37
      %p199 = pneg %p34
      %p200 = pneg %p58
      %p201 = pneg %p55
      %p202 = pneg %p79
      %p203 = pneg %p76
      %p204 = pneg %p100
      %p205 = pneg %p97
      %p206 = pneg %p121
      %p207 = pneg %p118
      %p208 = pneg %p147
      %p209 = pneg %p144
      %p210 = scmp.lt.s32.totalorder %s16, 1
      %s211 = scalar_select %p210, %s16, 1
      %s212 = smul.addr %s211, 2
      %s213 = smul.addr %s212, 8
      %s214 = scalar_lea.vmem %s5, %s213
      %p215 = scmp.lt.s32.totalorder %s16, 1
      %s216 = scalar_select %p215, %s16, 1
      %s217 = smul.addr %s216, 54
      %s218 = smul.addr %s217, 8
      %s219 = scalar_lea.vmem %s0, %s218
      %p220 = scmp.lt.s32.totalorder %s16, 1
      %s221 = scalar_select %p220, %s16, 1
      %s222 = smul.addr %s221, 2
      %s223 = smul.addr %s222, 8
      %s224 = scalar_lea.vmem %s5, %s223
      %v225 = vld [vmem:[%s219] sm:$0xff]
      %v226 = vld [vmem:[%s219 + $0x8] sm:$0xff]
      %v227 = vld [vmem:[%s219 + $0x10] sm:$0x3]
      %v228 = vld [vmem:[%s219 + $0x18] sm:$0xff]
      %v229 = vld [vmem:[%s219 + $0x20] sm:$0xff]
      %v230 = vld [vmem:[%s219 + $0x28] sm:$0x3]
      %v231 = vld [vmem:[%s219 + $0x30] sm:$0xff]
      %v232 = vld [vmem:[%s219 + $0x38] sm:$0xff]
      %v233 = vld [vmem:[%s219 + $0x40] sm:$0x3]
      %v234 = vld [vmem:[%s219 + $0x48] sm:$0xff]
      %v235 = vld [vmem:[%s219 + $0x50] sm:$0xff]
      %v236 = vld [vmem:[%s219 + $0x58] sm:$0x3]
      %v237 = vld [vmem:[%s219 + $0x60] sm:$0xff]
      %v238 = vld [vmem:[%s219 + $0x68] sm:$0xff]
      %v239 = vld [vmem:[%s219 + $0x70] sm:$0x3]
      %v240 = vld [vmem:[%s219 + $0x78] sm:$0xff]
      %v241 = vld [vmem:[%s219 + $0x80] sm:$0xff]
      %v242 = vld [vmem:[%s219 + $0x88] sm:$0x3]
      %v243 = vld [vmem:[%s219 + $0x90] sm:$0xff]
      %v244 = vld [vmem:[%s219 + $0x98] sm:$0xff]
      %v245 = vld [vmem:[%s219 + $0xa0] sm:$0x3]
      %v246 = vld [vmem:[%s219 + $0xa8] sm:$0xff]
      %v247 = vld [vmem:[%s219 + $0xb0] sm:$0xff]
      %v248 = vld [vmem:[%s219 + $0xb8] sm:$0x3]
      %v249 = vld [vmem:[%s219 + $0xc0] sm:$0xff]
      %v250 = vld [vmem:[%s219 + $0xc8] sm:$0xff]
      %v251 = vld [vmem:[%s219 + $0xd0] sm:$0x3]
      %v252 = vld [vmem:[%s219 + $0xd8] sm:$0xff]
      %v253 = vld [vmem:[%s219 + $0xe0] sm:$0xff]
      %v254 = vld [vmem:[%s219 + $0xe8] sm:$0x3]
      %v255 = vld [vmem:[%s219 + $0xf0] sm:$0xff]
      %v256 = vld [vmem:[%s219 + $0xf8] sm:$0xff]
      %v257 = vld [vmem:[%s219 + $0x100] sm:$0x3]
      %v258 = vld [vmem:[%s219 + $0x108] sm:$0xff]
      %v259 = vld [vmem:[%s219 + $0x110] sm:$0xff]
      %v260 = vld [vmem:[%s219 + $0x118] sm:$0x3]
      %v261 = vld [vmem:[%s219 + $0x120] sm:$0xff]
      %v262 = vld [vmem:[%s219 + $0x128] sm:$0xff]
      %v263 = vld [vmem:[%s219 + $0x130] sm:$0x3]
      %v264 = vld [vmem:[%s219 + $0x138] sm:$0xff]
      %v265 = vld [vmem:[%s219 + $0x140] sm:$0xff]
      %v266 = vld [vmem:[%s219 + $0x148] sm:$0x3]
      %v267 = vld [vmem:[%s219 + $0x150] sm:$0xff]
      %v268 = vld [vmem:[%s219 + $0x158] sm:$0xff]
      %v269 = vld [vmem:[%s219 + $0x160] sm:$0x3]
      %v270 = vld [vmem:[%s219 + $0x168] sm:$0xff]
      %v271 = vld [vmem:[%s219 + $0x170] sm:$0xff]
      %v272 = vld [vmem:[%s219 + $0x178] sm:$0x3]
      %v273 = vld [vmem:[%s219 + $0x180] sm:$0xff]
      %v274 = vld [vmem:[%s219 + $0x188] sm:$0xff]
      %v275 = vld [vmem:[%s219 + $0x190] sm:$0x3]
      %v276 = vld [vmem:[%s219 + $0x198] sm:$0xff]
      %v277 = vld [vmem:[%s219 + $0x1a0] sm:$0xff]
      %v278 = vld [vmem:[%s219 + $0x1a8] sm:$0x3]
      %v279 = vld [vmem:[%s1] sm:$0x7]
      %vm328 = vcmask 1046528
      %v329 = vrot.slane %v225, 1
      %v330 = vrot.slane %v226, 1
      %v331 = vsel %vm328, %v329, %v330
      %v332 = vrot.slane %v227, 1
      %v333 = vsel %vm328, %v330, %v332
      %v334 = vrot.slane %v228, 1
      %v335 = vrot.slane %v229, 1
      %v336 = vsel %vm328, %v334, %v335
      %v337 = vrot.slane %v230, 1
      %v338 = vsel %vm328, %v335, %v337
      %v339 = vrot.slane %v231, 1
      %v340 = vrot.slane %v232, 1
      %v341 = vsel %vm328, %v339, %v340
      %v342 = vrot.slane %v233, 1
      %v343 = vsel %vm328, %v340, %v342
      %v344 = vrot.slane %v234, 1
      %v345 = vrot.slane %v235, 1
      %v346 = vsel %vm328, %v344, %v345
      %v347 = vrot.slane %v236, 1
      %v348 = vsel %vm328, %v345, %v347
      %v349 = vrot.slane %v237, 1
      %v350 = vrot.slane %v238, 1
      %v351 = vsel %vm328, %v349, %v350
      %v352 = vrot.slane %v239, 1
      %v353 = vsel %vm328, %v350, %v352
      %v354 = vrot.slane %v240, 1
      %v355 = vrot.slane %v241, 1
      %v356 = vsel %vm328, %v354, %v355
      %v357 = vrot.slane %v242, 1
      %v358 = vsel %vm328, %v355, %v357
      %v359 = vrot.slane %v243, 1
      %v360 = vrot.slane %v244, 1
      %v361 = vsel %vm328, %v359, %v360
      %v362 = vrot.slane %v245, 1
      %v363 = vsel %vm328, %v360, %v362
      %v364 = vrot.slane %v246, 1
      %v365 = vrot.slane %v247, 1
      %v366 = vsel %vm328, %v364, %v365
      %v367 = vrot.slane %v248, 1
      %v368 = vsel %vm328, %v365, %v367
      %v369 = vrot.slane %v249, 1
      %v370 = vrot.slane %v250, 1
      %v371 = vsel %vm328, %v369, %v370
      %v372 = vrot.slane %v251, 1
      %v373 = vsel %vm328, %v370, %v372
      %v374 = vrot.slane %v252, 1
      %v375 = vrot.slane %v253, 1
      %v376 = vsel %vm328, %v374, %v375
      %v377 = vrot.slane %v254, 1
      %v378 = vsel %vm328, %v375, %v377
      %v379 = vrot.slane %v255, 1
      %v380 = vrot.slane %v256, 1
      %v381 = vsel %vm328, %v379, %v380
      %v382 = vrot.slane %v257, 1
      %v383 = vsel %vm328, %v380, %v382
      %v384 = vrot.slane %v258, 1
      %v385 = vrot.slane %v259, 1
      %v386 = vsel %vm328, %v384, %v385
      %v387 = vrot.slane %v260, 1
      %v388 = vsel %vm328, %v385, %v387
      %v389 = vrot.slane %v261, 1
      %v390 = vrot.slane %v262, 1
      %v391 = vsel %vm328, %v389, %v390
      %v392 = vrot.slane %v263, 1
      %v393 = vsel %vm328, %v390, %v392
      %v394 = vrot.slane %v264, 1
      %v395 = vrot.slane %v265, 1
      %v396 = vsel %vm328, %v394, %v395
      %v397 = vrot.slane %v266, 1
      %v398 = vsel %vm328, %v395, %v397
      %v399 = vrot.slane %v267, 1
      %v400 = vrot.slane %v268, 1
      %v401 = vsel %vm328, %v399, %v400
      %v402 = vrot.slane %v269, 1
      %v403 = vsel %vm328, %v400, %v402
      %v404 = vrot.slane %v270, 1
      %v405 = vrot.slane %v271, 1
      %v406 = vsel %vm328, %v404, %v405
      %v407 = vrot.slane %v272, 1
      %v408 = vsel %vm328, %v405, %v407
      %s409 = scalar_lea.vmem %s1, 4
      %v410 = vld [vmem:[%s409] sm:$0x7]
      %vm411 = vcmask 23552
      %v412 = vsel %vm411, %v331, 0
      %v414 = vsel %vm411, %v333, 0
      %v416 = vsel %vm411, %v336, 0
      %v418 = vsel %vm411, %v338, 0
      %v420 = vsel %vm411, %v341, 0
      %v422 = vsel %vm411, %v343, 0
      %v424 = vsel %vm411, %v346, 0
      %v426 = vsel %vm411, %v348, 0
      %v428 = vsel %vm411, %v351, 0
      %v430 = vsel %vm411, %v353, 0
      %v432 = vsel %vm411, %v356, 0
      %v434 = vsel %vm411, %v358, 0
      %v436 = vsel %vm411, %v361, 0
      %v438 = vsel %vm411, %v363, 0
      %v440 = vsel %vm411, %v366, 0
      %v442 = vsel %vm411, %v368, 0
      %v444 = vsel %vm411, %v371, 0
      %v446 = vsel %vm411, %v373, 0
      %v448 = vsel %vm411, %v376, 0
      %v450 = vsel %vm411, %v378, 0
      %v452 = vsel %vm411, %v381, 0
      %v454 = vsel %vm411, %v383, 0
      %v456 = vsel %vm411, %v386, 0
      %v458 = vsel %vm411, %v388, 0
      %v460 = vsel %vm411, %v391, 0
      %v462 = vsel %vm411, %v393, 0
      %v464 = vsel %vm411, %v396, 0
      %v466 = vsel %vm411, %v398, 0
      %v468 = vsel %vm411, %v401, 0
      %v470 = vsel %vm411, %v403, 0
      %v472 = vsel %vm411, %v406, 0
      %v474 = vsel %vm411, %v408, 0
      %vm476 = vcmask 1042432
      %v478 = vsel %vm476, %v410, 0
      %480 = vmatpush.msra.mxu0 0.0
      %481 = vmatpush.msra.mxu0 0.0
      %482 = vmatpush.msra.mxu0 0.0
      %483 = vmatpush.msra.mxu0 0.0
      %484 = vmatpush.msra.mxu0 0.0
      %485 = vmatpush.msra.mxu0 0.0
      %486 = vmatpush.msra.mxu0 0.0
      %487 = vmatpush.msra.mxu0 0.0
      %488 = vmatpush.msra.mxu0 0.0
      %489 = vmatpush.msra.mxu0 0.0
      %490 = vmatpush.msra.mxu0 0.0
      %491 = vmatpush.msra.mxu0 0.0
      %492 = vmatpush.msra.mxu0 0.0
      %493 = vmatpush.msra.mxu0 0.0
      %494 = vmatpush.msra.mxu0 0.0
      %495 = vmatpush.msra.mxu0 %v478
      %496 = vmatmul.f32.gmra.mxu0 %v412
      %v497 = vpop.f32.mrf.mxu0
      %v498 = vadd.f32 0.0, %v497
      %499 = vmatmul.f32.gmra.mxu0 %v414
      %v500 = vpop.f32.mrf.mxu0
      %v501 = vadd.f32 0.0, %v500
      %502 = vmatmul.f32.gmra.mxu0 %v416
      %v503 = vpop.f32.mrf.mxu0
      %v504 = vadd.f32 0.0, %v503
      %505 = vmatmul.f32.gmra.mxu0 %v418
      %v506 = vpop.f32.mrf.mxu0
      %v507 = vadd.f32 0.0, %v506
      %508 = vmatmul.f32.gmra.mxu0 %v420
      %v509 = vpop.f32.mrf.mxu0
      %v510 = vadd.f32 0.0, %v509
      %511 = vmatmul.f32.gmra.mxu0 %v422
      %v512 = vpop.f32.mrf.mxu0
      %v513 = vadd.f32 0.0, %v512
      %514 = vmatmul.f32.gmra.mxu0 %v424
      %v515 = vpop.f32.mrf.mxu0
      %v516 = vadd.f32 0.0, %v515
      %517 = vmatmul.f32.gmra.mxu0 %v426
      %v518 = vpop.f32.mrf.mxu0
      %v519 = vadd.f32 0.0, %v518
      %520 = vmatmul.f32.gmra.mxu0 %v428
      %v521 = vpop.f32.mrf.mxu0
      %v522 = vadd.f32 0.0, %v521
      %523 = vmatmul.f32.gmra.mxu0 %v430
      %v524 = vpop.f32.mrf.mxu0
      %v525 = vadd.f32 0.0, %v524
      %526 = vmatmul.f32.gmra.mxu0 %v432
      %v527 = vpop.f32.mrf.mxu0
      %v528 = vadd.f32 0.0, %v527
      %529 = vmatmul.f32.gmra.mxu0 %v434
      %v530 = vpop.f32.mrf.mxu0
      %v531 = vadd.f32 0.0, %v530
      %532 = vmatmul.f32.gmra.mxu0 %v436
      %v533 = vpop.f32.mrf.mxu0
      %v534 = vadd.f32 0.0, %v533
      %535 = vmatmul.f32.gmra.mxu0 %v438
      %v536 = vpop.f32.mrf.mxu0
      %v537 = vadd.f32 0.0, %v536
      %538 = vmatmul.f32.gmra.mxu0 %v440
      %v539 = vpop.f32.mrf.mxu0
      %v540 = vadd.f32 0.0, %v539
      %541 = vmatmul.f32.gmra.mxu0 %v442
      %v542 = vpop.f32.mrf.mxu0
      %v543 = vadd.f32 0.0, %v542
      %544 = vmatmul.f32.gmra.mxu0 %v444
      %v545 = vpop.f32.mrf.mxu0
      %v546 = vadd.f32 0.0, %v545
      %547 = vmatmul.f32.gmra.mxu0 %v446
      %v548 = vpop.f32.mrf.mxu0
      %v549 = vadd.f32 0.0, %v548
      %550 = vmatmul.f32.gmra.mxu0 %v448
      %v551 = vpop.f32.mrf.mxu0
      %v552 = vadd.f32 0.0, %v551
      %553 = vmatmul.f32.gmra.mxu0 %v450
      %v554 = vpop.f32.mrf.mxu0
      %v555 = vadd.f32 0.0, %v554
      %556 = vmatmul.f32.gmra.mxu0 %v452
      %v557 = vpop.f32.mrf.mxu0
      %v558 = vadd.f32 0.0, %v557
      %559 = vmatmul.f32.gmra.mxu0 %v454
      %v560 = vpop.f32.mrf.mxu0
      %v561 = vadd.f32 0.0, %v560
      %562 = vmatmul.f32.gmra.mxu0 %v456
      %v563 = vpop.f32.mrf.mxu0
      %v564 = vadd.f32 0.0, %v563
      %565 = vmatmul.f32.gmra.mxu0 %v458
      %v566 = vpop.f32.mrf.mxu0
      %v567 = vadd.f32 0.0, %v566
      %568 = vmatmul.f32.gmra.mxu0 %v460
      %v569 = vpop.f32.mrf.mxu0
      %v570 = vadd.f32 0.0, %v569
      %571 = vmatmul.f32.gmra.mxu0 %v462
      %v572 = vpop.f32.mrf.mxu0
      %v573 = vadd.f32 0.0, %v572
      %574 = vmatmul.f32.gmra.mxu0 %v464
      %v575 = vpop.f32.mrf.mxu0
      %v576 = vadd.f32 0.0, %v575
      %577 = vmatmul.f32.gmra.mxu0 %v466
      %v578 = vpop.f32.mrf.mxu0
      %v579 = vadd.f32 0.0, %v578
      %580 = vmatmul.f32.gmra.mxu0 %v468
      %v581 = vpop.f32.mrf.mxu0
      %v582 = vadd.f32 0.0, %v581
      %583 = vmatmul.f32.gmra.mxu0 %v470
      %v584 = vpop.f32.mrf.mxu0
      %v585 = vadd.f32 0.0, %v584
      %586 = vmatmul.f32.gmra.mxu0 %v472
      %v587 = vpop.f32.mrf.mxu0
      %v588 = vadd.f32 0.0, %v587
      %589 = vmatmul.f32.gmra.mxu0 %v474
      %v590 = vpop.f32.mrf.mxu0
      %v591 = vadd.f32 0.0, %v590
      %592 = vdwg.mxu0
      %v593 = vsel %vm411, %v225, 0
      %v595 = vsel %vm411, %v226, 0
      %v597 = vsel %vm411, %v228, 0
      %v599 = vsel %vm411, %v229, 0
      %v601 = vsel %vm411, %v231, 0
      %v603 = vsel %vm411, %v232, 0
      %v605 = vsel %vm411, %v234, 0
      %v607 = vsel %vm411, %v235, 0
      %v609 = vsel %vm411, %v237, 0
      %v611 = vsel %vm411, %v238, 0
      %v613 = vsel %vm411, %v240, 0
      %v615 = vsel %vm411, %v241, 0
      %v617 = vsel %vm411, %v243, 0
      %v619 = vsel %vm411, %v244, 0
      %v621 = vsel %vm411, %v246, 0
      %v623 = vsel %vm411, %v247, 0
      %v625 = vsel %vm411, %v249, 0
      %v627 = vsel %vm411, %v250, 0
      %v629 = vsel %vm411, %v252, 0
      %v631 = vsel %vm411, %v253, 0
      %v633 = vsel %vm411, %v255, 0
      %v635 = vsel %vm411, %v256, 0
      %v637 = vsel %vm411, %v258, 0
      %v639 = vsel %vm411, %v259, 0
      %v641 = vsel %vm411, %v261, 0
      %v643 = vsel %vm411, %v262, 0
      %v645 = vsel %vm411, %v264, 0
      %v647 = vsel %vm411, %v265, 0
      %v649 = vsel %vm411, %v267, 0
      %v651 = vsel %vm411, %v268, 0
      %v653 = vsel %vm411, %v270, 0
      %v655 = vsel %vm411, %v271, 0
      %v658 = vsel %vm476, %v279, 0
      %660 = vmatpush.msra.mxu0 0.0
      %661 = vmatpush.msra.mxu0 0.0
      %662 = vmatpush.msra.mxu0 0.0
      %663 = vmatpush.msra.mxu0 0.0
      %664 = vmatpush.msra.mxu0 0.0
      %665 = vmatpush.msra.mxu0 0.0
      %666 = vmatpush.msra.mxu0 0.0
      %667 = vmatpush.msra.mxu0 0.0
      %668 = vmatpush.msra.mxu0 0.0
      %669 = vmatpush.msra.mxu0 0.0
      %670 = vmatpush.msra.mxu0 0.0
      %671 = vmatpush.msra.mxu0 0.0
      %672 = vmatpush.msra.mxu0 0.0
      %673 = vmatpush.msra.mxu0 0.0
      %674 = vmatpush.msra.mxu0 0.0
      %675 = vmatpush.msra.mxu0 %v658
      %676 = vmatmul.f32.gmra.mxu0 %v593
      %v677 = vpop.f32.mrf.mxu0
      %v678 = vadd.f32 %v498, %v677
      %679 = vmatmul.f32.gmra.mxu0 %v595
      %v680 = vpop.f32.mrf.mxu0
      %v681 = vadd.f32 %v501, %v680
      %682 = vmatmul.f32.gmra.mxu0 %v597
      %v683 = vpop.f32.mrf.mxu0
      %v684 = vadd.f32 %v504, %v683
      %685 = vmatmul.f32.gmra.mxu0 %v599
      %v686 = vpop.f32.mrf.mxu0
      %v687 = vadd.f32 %v507, %v686
      %688 = vmatmul.f32.gmra.mxu0 %v601
      %v689 = vpop.f32.mrf.mxu0
      %v690 = vadd.f32 %v510, %v689
      %691 = vmatmul.f32.gmra.mxu0 %v603
      %v692 = vpop.f32.mrf.mxu0
      %v693 = vadd.f32 %v513, %v692
      %694 = vmatmul.f32.gmra.mxu0 %v605
      %v695 = vpop.f32.mrf.mxu0
      %v696 = vadd.f32 %v516, %v695
      %697 = vmatmul.f32.gmra.mxu0 %v607
      %v698 = vpop.f32.mrf.mxu0
      %v699 = vadd.f32 %v519, %v698
      %700 = vmatmul.f32.gmra.mxu0 %v609
      %v701 = vpop.f32.mrf.mxu0
      %v702 = vadd.f32 %v522, %v701
      %703 = vmatmul.f32.gmra.mxu0 %v611
      %v704 = vpop.f32.mrf.mxu0
      %v705 = vadd.f32 %v525, %v704
      %706 = vmatmul.f32.gmra.mxu0 %v613
      %v707 = vpop.f32.mrf.mxu0
      %v708 = vadd.f32 %v528, %v707
      %709 = vmatmul.f32.gmra.mxu0 %v615
      %v710 = vpop.f32.mrf.mxu0
      %v711 = vadd.f32 %v531, %v710
      %712 = vmatmul.f32.gmra.mxu0 %v617
      %v713 = vpop.f32.mrf.mxu0
      %v714 = vadd.f32 %v534, %v713
      %715 = vmatmul.f32.gmra.mxu0 %v619
      %v716 = vpop.f32.mrf.mxu0
      %v717 = vadd.f32 %v537, %v716
      %718 = vmatmul.f32.gmra.mxu0 %v621
      %v719 = vpop.f32.mrf.mxu0
      %v720 = vadd.f32 %v540, %v719
      %721 = vmatmul.f32.gmra.mxu0 %v623
      %v722 = vpop.f32.mrf.mxu0
      %v723 = vadd.f32 %v543, %v722
      %724 = vmatmul.f32.gmra.mxu0 %v625
      %v725 = vpop.f32.mrf.mxu0
      %v726 = vadd.f32 %v546, %v725
      %727 = vmatmul.f32.gmra.mxu0 %v627
      %v728 = vpop.f32.mrf.mxu0
      %v729 = vadd.f32 %v549, %v728
      %730 = vmatmul.f32.gmra.mxu0 %v629
      %v731 = vpop.f32.mrf.mxu0
      %v732 = vadd.f32 %v552, %v731
      %733 = vmatmul.f32.gmra.mxu0 %v631
      %v734 = vpop.f32.mrf.mxu0
      %v735 = vadd.f32 %v555, %v734
      %736 = vmatmul.f32.gmra.mxu0 %v633
      %v737 = vpop.f32.mrf.mxu0
      %v738 = vadd.f32 %v558, %v737
      %739 = vmatmul.f32.gmra.mxu0 %v635
      %v740 = vpop.f32.mrf.mxu0
      %v741 = vadd.f32 %v561, %v740
      %742 = vmatmul.f32.gmra.mxu0 %v637
      %v743 = vpop.f32.mrf.mxu0
      %v744 = vadd.f32 %v564, %v743
      %745 = vmatmul.f32.gmra.mxu0 %v639
      %v746 = vpop.f32.mrf.mxu0
      %v747 = vadd.f32 %v567, %v746
      %748 = vmatmul.f32.gmra.mxu0 %v641
      %v749 = vpop.f32.mrf.mxu0
      %v750 = vadd.f32 %v570, %v749
      %751 = vmatmul.f32.gmra.mxu0 %v643
      %v752 = vpop.f32.mrf.mxu0
      %v753 = vadd.f32 %v573, %v752
      %754 = vmatmul.f32.gmra.mxu0 %v645
      %v755 = vpop.f32.mrf.mxu0
      %v756 = vadd.f32 %v576, %v755
      %757 = vmatmul.f32.gmra.mxu0 %v647
      %v758 = vpop.f32.mrf.mxu0
      %v759 = vadd.f32 %v579, %v758
      %760 = vmatmul.f32.gmra.mxu0 %v649
      %v761 = vpop.f32.mrf.mxu0
      %v762 = vadd.f32 %v582, %v761
      %763 = vmatmul.f32.gmra.mxu0 %v651
      %v764 = vpop.f32.mrf.mxu0
      %v765 = vadd.f32 %v585, %v764
      %766 = vmatmul.f32.gmra.mxu0 %v653
      %v767 = vpop.f32.mrf.mxu0
      %v768 = vadd.f32 %v588, %v767
      %769 = vmatmul.f32.gmra.mxu0 %v655
      %v770 = vpop.f32.mrf.mxu0
      %v771 = vadd.f32 %v591, %v770
      %772 = vdwg.mxu0
      %vm773 = vcmask 1045504
      %v774 = vrot.slane %v225, 2
      %v775 = vrot.slane %v226, 2
      %v776 = vsel %vm773, %v774, %v775
      %v777 = vrot.slane %v227, 2
      %v778 = vsel %vm773, %v775, %v777
      %v779 = vrot.slane %v228, 2
      %v780 = vrot.slane %v229, 2
      %v781 = vsel %vm773, %v779, %v780
      %v782 = vrot.slane %v230, 2
      %v783 = vsel %vm773, %v780, %v782
      %v784 = vrot.slane %v231, 2
      %v785 = vrot.slane %v232, 2
      %v786 = vsel %vm773, %v784, %v785
      %v787 = vrot.slane %v233, 2
      %v788 = vsel %vm773, %v785, %v787
      %v789 = vrot.slane %v234, 2
      %v790 = vrot.slane %v235, 2
      %v791 = vsel %vm773, %v789, %v790
      %v792 = vrot.slane %v236, 2
      %v793 = vsel %vm773, %v790, %v792
      %v794 = vrot.slane %v237, 2
      %v795 = vrot.slane %v238, 2
      %v796 = vsel %vm773, %v794, %v795
      %v797 = vrot.slane %v239, 2
      %v798 = vsel %vm773, %v795, %v797
      %v799 = vrot.slane %v240, 2
      %v800 = vrot.slane %v241, 2
      %v801 = vsel %vm773, %v799, %v800
      %v802 = vrot.slane %v242, 2
      %v803 = vsel %vm773, %v800, %v802
      %v804 = vrot.slane %v243, 2
      %v805 = vrot.slane %v244, 2
      %v806 = vsel %vm773, %v804, %v805
      %v807 = vrot.slane %v245, 2
      %v808 = vsel %vm773, %v805, %v807
      %v809 = vrot.slane %v246, 2
      %v810 = vrot.slane %v247, 2
      %v811 = vsel %vm773, %v809, %v810
      %v812 = vrot.slane %v248, 2
      %v813 = vsel %vm773, %v810, %v812
      %v814 = vrot.slane %v249, 2
      %v815 = vrot.slane %v250, 2
      %v816 = vsel %vm773, %v814, %v815
      %v817 = vrot.slane %v251, 2
      %v818 = vsel %vm773, %v815, %v817
      %v819 = vrot.slane %v252, 2
      %v820 = vrot.slane %v253, 2
      %v821 = vsel %vm773, %v819, %v820
      %v822 = vrot.slane %v254, 2
      %v823 = vsel %vm773, %v820, %v822
      %v824 = vrot.slane %v255, 2
      %v825 = vrot.slane %v256, 2
      %v826 = vsel %vm773, %v824, %v825
      %v827 = vrot.slane %v257, 2
      %v828 = vsel %vm773, %v825, %v827
      %v829 = vrot.slane %v258, 2
      %v830 = vrot.slane %v259, 2
      %v831 = vsel %vm773, %v829, %v830
      %v832 = vrot.slane %v260, 2
      %v833 = vsel %vm773, %v830, %v832
      %v834 = vrot.slane %v261, 2
      %v835 = vrot.slane %v262, 2
      %v836 = vsel %vm773, %v834, %v835
      %v837 = vrot.slane %v263, 2
      %v838 = vsel %vm773, %v835, %v837
      %v839 = vrot.slane %v264, 2
      %v840 = vrot.slane %v265, 2
      %v841 = vsel %vm773, %v839, %v840
      %v842 = vrot.slane %v266, 2
      %v843 = vsel %vm773, %v840, %v842
      %v844 = vrot.slane %v267, 2
      %v845 = vrot.slane %v268, 2
      %v846 = vsel %vm773, %v844, %v845
      %v847 = vrot.slane %v269, 2
      %v848 = vsel %vm773, %v845, %v847
      %v849 = vrot.slane %v270, 2
      %v850 = vrot.slane %v271, 2
      %v851 = vsel %vm773, %v849, %v850
      %v852 = vrot.slane %v272, 2
      %v853 = vsel %vm773, %v850, %v852
      %s854 = scalar_lea.vmem %s1, 8
      %v855 = vld [vmem:[%s854] sm:$0x7]
      %v856 = vsel %vm411, %v776, 0
      %v858 = vsel %vm411, %v778, 0
      %v860 = vsel %vm411, %v781, 0
      %v862 = vsel %vm411, %v783, 0
      %v864 = vsel %vm411, %v786, 0
      %v866 = vsel %vm411, %v788, 0
      %v868 = vsel %vm411, %v791, 0
      %v870 = vsel %vm411, %v793, 0
      %v872 = vsel %vm411, %v796, 0
      %v874 = vsel %vm411, %v798, 0
      %v876 = vsel %vm411, %v801, 0
      %v878 = vsel %vm411, %v803, 0
      %v880 = vsel %vm411, %v806, 0
      %v882 = vsel %vm411, %v808, 0
      %v884 = vsel %vm411, %v811, 0
      %v886 = vsel %vm411, %v813, 0
      %v888 = vsel %vm411, %v816, 0
      %v890 = vsel %vm411, %v818, 0
      %v892 = vsel %vm411, %v821, 0
      %v894 = vsel %vm411, %v823, 0
      %v896 = vsel %vm411, %v826, 0
      %v898 = vsel %vm411, %v828, 0
      %v900 = vsel %vm411, %v831, 0
      %v902 = vsel %vm411, %v833, 0
      %v904 = vsel %vm411, %v836, 0
      %v906 = vsel %vm411, %v838, 0
      %v908 = vsel %vm411, %v841, 0
      %v910 = vsel %vm411, %v843, 0
      %v912 = vsel %vm411, %v846, 0
      %v914 = vsel %vm411, %v848, 0
      %v916 = vsel %vm411, %v851, 0
      %v918 = vsel %vm411, %v853, 0
      %v921 = vsel %vm476, %v855, 0
      %923 = vmatpush.msra.mxu0 0.0
      %924 = vmatpush.msra.mxu0 0.0
      %925 = vmatpush.msra.mxu0 0.0
      %926 = vmatpush.msra.mxu0 0.0
      %927 = vmatpush.msra.mxu0 0.0
      %928 = vmatpush.msra.mxu0 0.0
      %929 = vmatpush.msra.mxu0 0.0
      %930 = vmatpush.msra.mxu0 0.0
      %931 = vmatpush.msra.mxu0 0.0
      %932 = vmatpush.msra.mxu0 0.0
      %933 = vmatpush.msra.mxu0 0.0
      %934 = vmatpush.msra.mxu0 0.0
      %935 = vmatpush.msra.mxu0 0.0
      %936 = vmatpush.msra.mxu0 0.0
      %937 = vmatpush.msra.mxu0 0.0
      %938 = vmatpush.msra.mxu0 %v921
      %939 = vmatmul.f32.gmra.mxu0 %v856
      %v940 = vpop.f32.mrf.mxu0
      %v941 = vadd.f32 0.0, %v940
      %942 = vmatmul.f32.gmra.mxu0 %v858
      %v943 = vpop.f32.mrf.mxu0
      %v944 = vadd.f32 0.0, %v943
      %945 = vmatmul.f32.gmra.mxu0 %v860
      %v946 = vpop.f32.mrf.mxu0
      %v947 = vadd.f32 0.0, %v946
      %948 = vmatmul.f32.gmra.mxu0 %v862
      %v949 = vpop.f32.mrf.mxu0
      %v950 = vadd.f32 0.0, %v949
      %951 = vmatmul.f32.gmra.mxu0 %v864
      %v952 = vpop.f32.mrf.mxu0
      %v953 = vadd.f32 0.0, %v952
      %954 = vmatmul.f32.gmra.mxu0 %v866
      %v955 = vpop.f32.mrf.mxu0
      %v956 = vadd.f32 0.0, %v955
      %957 = vmatmul.f32.gmra.mxu0 %v868
      %v958 = vpop.f32.mrf.mxu0
      %v959 = vadd.f32 0.0, %v958
      %960 = vmatmul.f32.gmra.mxu0 %v870
      %v961 = vpop.f32.mrf.mxu0
      %v962 = vadd.f32 0.0, %v961
      %963 = vmatmul.f32.gmra.mxu0 %v872
      %v964 = vpop.f32.mrf.mxu0
      %v965 = vadd.f32 0.0, %v964
      %966 = vmatmul.f32.gmra.mxu0 %v874
      %v967 = vpop.f32.mrf.mxu0
      %v968 = vadd.f32 0.0, %v967
      %969 = vmatmul.f32.gmra.mxu0 %v876
      %v970 = vpop.f32.mrf.mxu0
      %v971 = vadd.f32 0.0, %v970
      %972 = vmatmul.f32.gmra.mxu0 %v878
      %v973 = vpop.f32.mrf.mxu0
      %v974 = vadd.f32 0.0, %v973
      %975 = vmatmul.f32.gmra.mxu0 %v880
      %v976 = vpop.f32.mrf.mxu0
      %v977 = vadd.f32 0.0, %v976
      %978 = vmatmul.f32.gmra.mxu0 %v882
      %v979 = vpop.f32.mrf.mxu0
      %v980 = vadd.f32 0.0, %v979
      %981 = vmatmul.f32.gmra.mxu0 %v884
      %v982 = vpop.f32.mrf.mxu0
      %v983 = vadd.f32 0.0, %v982
      %984 = vmatmul.f32.gmra.mxu0 %v886
      %v985 = vpop.f32.mrf.mxu0
      %v986 = vadd.f32 0.0, %v985
      %987 = vmatmul.f32.gmra.mxu0 %v888
      %v988 = vpop.f32.mrf.mxu0
      %v989 = vadd.f32 0.0, %v988
      %990 = vmatmul.f32.gmra.mxu0 %v890
      %v991 = vpop.f32.mrf.mxu0
      %v992 = vadd.f32 0.0, %v991
      %993 = vmatmul.f32.gmra.mxu0 %v892
      %v994 = vpop.f32.mrf.mxu0
      %v995 = vadd.f32 0.0, %v994
      %996 = vmatmul.f32.gmra.mxu0 %v894
      %v997 = vpop.f32.mrf.mxu0
      %v998 = vadd.f32 0.0, %v997
      %999 = vmatmul.f32.gmra.mxu0 %v896
      %v1000 = vpop.f32.mrf.mxu0
      %v1001 = vadd.f32 0.0, %v1000
      %1002 = vmatmul.f32.gmra.mxu0 %v898
      %v1003 = vpop.f32.mrf.mxu0
      %v1004 = vadd.f32 0.0, %v1003
      %1005 = vmatmul.f32.gmra.mxu0 %v900
      %v1006 = vpop.f32.mrf.mxu0
      %v1007 = vadd.f32 0.0, %v1006
      %1008 = vmatmul.f32.gmra.mxu0 %v902
      %v1009 = vpop.f32.mrf.mxu0
      %v1010 = vadd.f32 0.0, %v1009
      %1011 = vmatmul.f32.gmra.mxu0 %v904
      %v1012 = vpop.f32.mrf.mxu0
      %v1013 = vadd.f32 0.0, %v1012
      %1014 = vmatmul.f32.gmra.mxu0 %v906
      %v1015 = vpop.f32.mrf.mxu0
      %v1016 = vadd.f32 0.0, %v1015
      %1017 = vmatmul.f32.gmra.mxu0 %v908
      %v1018 = vpop.f32.mrf.mxu0
      %v1019 = vadd.f32 0.0, %v1018
      %1020 = vmatmul.f32.gmra.mxu0 %v910
      %v1021 = vpop.f32.mrf.mxu0
      %v1022 = vadd.f32 0.0, %v1021
      %1023 = vmatmul.f32.gmra.mxu0 %v912
      %v1024 = vpop.f32.mrf.mxu0
      %v1025 = vadd.f32 0.0, %v1024
      %1026 = vmatmul.f32.gmra.mxu0 %v914
      %v1027 = vpop.f32.mrf.mxu0
      %v1028 = vadd.f32 0.0, %v1027
      %1029 = vmatmul.f32.gmra.mxu0 %v916
      %v1030 = vpop.f32.mrf.mxu0
      %v1031 = vadd.f32 0.0, %v1030
      %1032 = vmatmul.f32.gmra.mxu0 %v918
      %v1033 = vpop.f32.mrf.mxu0
      %v1034 = vadd.f32 0.0, %v1033
      %1035 = vdwg.mxu0
      %v1036 = vadd.f32 %v678, %v941
      %v1037 = vadd.f32 %v681, %v944
      %v1038 = vadd.f32 %v684, %v947
      %v1039 = vadd.f32 %v687, %v950
      %v1040 = vadd.f32 %v690, %v953
      %v1041 = vadd.f32 %v693, %v956
      %v1042 = vadd.f32 %v696, %v959
      %v1043 = vadd.f32 %v699, %v962
      %v1044 = vadd.f32 %v702, %v965
      %v1045 = vadd.f32 %v705, %v968
      %v1046 = vadd.f32 %v708, %v971
      %v1047 = vadd.f32 %v711, %v974
      %v1048 = vadd.f32 %v714, %v977
      %v1049 = vadd.f32 %v717, %v980
      %v1050 = vadd.f32 %v720, %v983
      %v1051 = vadd.f32 %v723, %v986
      %v1052 = vadd.f32 %v726, %v989
      %v1053 = vadd.f32 %v729, %v992
      %v1054 = vadd.f32 %v732, %v995
      %v1055 = vadd.f32 %v735, %v998
      %v1056 = vadd.f32 %v738, %v1001
      %v1057 = vadd.f32 %v741, %v1004
      %v1058 = vadd.f32 %v744, %v1007
      %v1059 = vadd.f32 %v747, %v1010
      %v1060 = vadd.f32 %v750, %v1013
      %v1061 = vadd.f32 %v753, %v1016
      %v1062 = vadd.f32 %v756, %v1019
      %v1063 = vadd.f32 %v759, %v1022
      %v1064 = vadd.f32 %v762, %v1025
      %v1065 = vadd.f32 %v765, %v1028
      %v1066 = vadd.f32 %v768, %v1031
      %v1067 = vadd.f32 %v771, %v1034
      %s1068 = scalar_lea.vmem %s1, 12
      %v1069 = vld [vmem:[%s1068] sm:$0x7]
      %v1071 = vsel %vm411, %v273, 0
      %v1074 = vsel %vm411, %v274, 0
      %v1077 = vsel %vm476, %v1069, 0
      %1079 = vmatpush.msra.mxu0 0.0
      %1080 = vmatpush.msra.mxu0 0.0
      %1081 = vmatpush.msra.mxu0 0.0
      %1082 = vmatpush.msra.mxu0 0.0
      %1083 = vmatpush.msra.mxu0 0.0
      %1084 = vmatpush.msra.mxu0 0.0
      %1085 = vmatpush.msra.mxu0 0.0
      %1086 = vmatpush.msra.mxu0 0.0
      %1087 = vmatpush.msra.mxu0 0.0
      %1088 = vmatpush.msra.mxu0 0.0
      %1089 = vmatpush.msra.mxu0 0.0
      %1090 = vmatpush.msra.mxu0 0.0
      %1091 = vmatpush.msra.mxu0 0.0
      %1092 = vmatpush.msra.mxu0 0.0
      %1093 = vmatpush.msra.mxu0 0.0
      %1094 = vmatpush.msra.mxu0 %v1077
      %1095 = vmatmul.f32.gmra.mxu0 %v597
      %v1096 = vpop.f32.mrf.mxu0
      %v1097 = vadd.f32 0.0, %v1096
      %1098 = vmatmul.f32.gmra.mxu0 %v599
      %v1099 = vpop.f32.mrf.mxu0
      %v1100 = vadd.f32 0.0, %v1099
      %1101 = vmatmul.f32.gmra.mxu0 %v601
      %v1102 = vpop.f32.mrf.mxu0
      %v1103 = vadd.f32 0.0, %v1102
      %1104 = vmatmul.f32.gmra.mxu0 %v603
      %v1105 = vpop.f32.mrf.mxu0
      %v1106 = vadd.f32 0.0, %v1105
      %1107 = vmatmul.f32.gmra.mxu0 %v605
      %v1108 = vpop.f32.mrf.mxu0
      %v1109 = vadd.f32 0.0, %v1108
      %1110 = vmatmul.f32.gmra.mxu0 %v607
      %v1111 = vpop.f32.mrf.mxu0
      %v1112 = vadd.f32 0.0, %v1111
      %1113 = vmatmul.f32.gmra.mxu0 %v609
      %v1114 = vpop.f32.mrf.mxu0
      %v1115 = vadd.f32 0.0, %v1114
      %1116 = vmatmul.f32.gmra.mxu0 %v611
      %v1117 = vpop.f32.mrf.mxu0
      %v1118 = vadd.f32 0.0, %v1117
      %1119 = vmatmul.f32.gmra.mxu0 %v613
      %v1120 = vpop.f32.mrf.mxu0
      %v1121 = vadd.f32 0.0, %v1120
      %1122 = vmatmul.f32.gmra.mxu0 %v615
      %v1123 = vpop.f32.mrf.mxu0
      %v1124 = vadd.f32 0.0, %v1123
      %1125 = vmatmul.f32.gmra.mxu0 %v617
      %v1126 = vpop.f32.mrf.mxu0
      %v1127 = vadd.f32 0.0, %v1126
      %1128 = vmatmul.f32.gmra.mxu0 %v619
      %v1129 = vpop.f32.mrf.mxu0
      %v1130 = vadd.f32 0.0, %v1129
      %1131 = vmatmul.f32.gmra.mxu0 %v621
      %v1132 = vpop.f32.mrf.mxu0
      %v1133 = vadd.f32 0.0, %v1132
      %1134 = vmatmul.f32.gmra.mxu0 %v623
      %v1135 = vpop.f32.mrf.mxu0
      %v1136 = vadd.f32 0.0, %v1135
      %1137 = vmatmul.f32.gmra.mxu0 %v625
      %v1138 = vpop.f32.mrf.mxu0
      %v1139 = vadd.f32 0.0, %v1138
      %1140 = vmatmul.f32.gmra.mxu0 %v627
      %v1141 = vpop.f32.mrf.mxu0
      %v1142 = vadd.f32 0.0, %v1141
      %1143 = vmatmul.f32.gmra.mxu0 %v629
      %v1144 = vpop.f32.mrf.mxu0
      %v1145 = vadd.f32 0.0, %v1144
      %1146 = vmatmul.f32.gmra.mxu0 %v631
      %v1147 = vpop.f32.mrf.mxu0
      %v1148 = vadd.f32 0.0, %v1147
      %1149 = vmatmul.f32.gmra.mxu0 %v633
      %v1150 = vpop.f32.mrf.mxu0
      %v1151 = vadd.f32 0.0, %v1150
      %1152 = vmatmul.f32.gmra.mxu0 %v635
      %v1153 = vpop.f32.mrf.mxu0
      %v1154 = vadd.f32 0.0, %v1153
      %1155 = vmatmul.f32.gmra.mxu0 %v637
      %v1156 = vpop.f32.mrf.mxu0
      %v1157 = vadd.f32 0.0, %v1156
      %1158 = vmatmul.f32.gmra.mxu0 %v639
      %v1159 = vpop.f32.mrf.mxu0
      %v1160 = vadd.f32 0.0, %v1159
      %1161 = vmatmul.f32.gmra.mxu0 %v641
      %v1162 = vpop.f32.mrf.mxu0
      %v1163 = vadd.f32 0.0, %v1162
      %1164 = vmatmul.f32.gmra.mxu0 %v643
      %v1165 = vpop.f32.mrf.mxu0
      %v1166 = vadd.f32 0.0, %v1165
      %1167 = vmatmul.f32.gmra.mxu0 %v645
      %v1168 = vpop.f32.mrf.mxu0
      %v1169 = vadd.f32 0.0, %v1168
      %1170 = vmatmul.f32.gmra.mxu0 %v647
      %v1171 = vpop.f32.mrf.mxu0
      %v1172 = vadd.f32 0.0, %v1171
      %1173 = vmatmul.f32.gmra.mxu0 %v649
      %v1174 = vpop.f32.mrf.mxu0
      %v1175 = vadd.f32 0.0, %v1174
      %1176 = vmatmul.f32.gmra.mxu0 %v651
      %v1177 = vpop.f32.mrf.mxu0
      %v1178 = vadd.f32 0.0, %v1177
      %1179 = vmatmul.f32.gmra.mxu0 %v653
      %v1180 = vpop.f32.mrf.mxu0
      %v1181 = vadd.f32 0.0, %v1180
      %1182 = vmatmul.f32.gmra.mxu0 %v655
      %v1183 = vpop.f32.mrf.mxu0
      %v1184 = vadd.f32 0.0, %v1183
      %1185 = vmatmul.f32.gmra.mxu0 %v1071
      %v1186 = vpop.f32.mrf.mxu0
      %v1187 = vadd.f32 0.0, %v1186
      %1188 = vmatmul.f32.gmra.mxu0 %v1074
      %v1189 = vpop.f32.mrf.mxu0
      %v1190 = vadd.f32 0.0, %v1189
      %1191 = vdwg.mxu0
      %v1192 = vadd.f32 %v1036, %v1097
      %v1193 = vadd.f32 %v1037, %v1100
      %v1194 = vadd.f32 %v1038, %v1103
      %v1195 = vadd.f32 %v1039, %v1106
      %v1196 = vadd.f32 %v1040, %v1109
      %v1197 = vadd.f32 %v1041, %v1112
      %v1198 = vadd.f32 %v1042, %v1115
      %v1199 = vadd.f32 %v1043, %v1118
      %v1200 = vadd.f32 %v1044, %v1121
      %v1201 = vadd.f32 %v1045, %v1124
      %v1202 = vadd.f32 %v1046, %v1127
      %v1203 = vadd.f32 %v1047, %v1130
      %v1204 = vadd.f32 %v1048, %v1133
      %v1205 = vadd.f32 %v1049, %v1136
      %v1206 = vadd.f32 %v1050, %v1139
      %v1207 = vadd.f32 %v1051, %v1142
      %v1208 = vadd.f32 %v1052, %v1145
      %v1209 = vadd.f32 %v1053, %v1148
      %v1210 = vadd.f32 %v1054, %v1151
      %v1211 = vadd.f32 %v1055, %v1154
      %v1212 = vadd.f32 %v1056, %v1157
      %v1213 = vadd.f32 %v1057, %v1160
      %v1214 = vadd.f32 %v1058, %v1163
      %v1215 = vadd.f32 %v1059, %v1166
      %v1216 = vadd.f32 %v1060, %v1169
      %v1217 = vadd.f32 %v1061, %v1172
      %v1218 = vadd.f32 %v1062, %v1175
      %v1219 = vadd.f32 %v1063, %v1178
      %v1220 = vadd.f32 %v1064, %v1181
      %v1221 = vadd.f32 %v1065, %v1184
      %v1222 = vadd.f32 %v1066, %v1187
      %v1223 = vadd.f32 %v1067, %v1190
      %v1225 = vrot.slane %v273, 1
      %v1226 = vrot.slane %v274, 1
      %v1227 = vsel %vm328, %v1225, %v1226
      %v1228 = vrot.slane %v275, 1
      %v1229 = vsel %vm328, %v1226, %v1228
      %s1230 = scalar_lea.vmem %s1, 16
      %v1231 = vld [vmem:[%s1230] sm:$0x7]
      %v1232 = vsel %vm411, %v1227, 0
      %v1234 = vsel %vm411, %v1229, 0
      %v1237 = vsel %vm476, %v1231, 0
      %1239 = vmatpush.msra.mxu0 0.0
      %1240 = vmatpush.msra.mxu0 0.0
      %1241 = vmatpush.msra.mxu0 0.0
      %1242 = vmatpush.msra.mxu0 0.0
      %1243 = vmatpush.msra.mxu0 0.0
      %1244 = vmatpush.msra.mxu0 0.0
      %1245 = vmatpush.msra.mxu0 0.0
      %1246 = vmatpush.msra.mxu0 0.0
      %1247 = vmatpush.msra.mxu0 0.0
      %1248 = vmatpush.msra.mxu0 0.0
      %1249 = vmatpush.msra.mxu0 0.0
      %1250 = vmatpush.msra.mxu0 0.0
      %1251 = vmatpush.msra.mxu0 0.0
      %1252 = vmatpush.msra.mxu0 0.0
      %1253 = vmatpush.msra.mxu0 0.0
      %1254 = vmatpush.msra.mxu0 %v1237
      %1255 = vmatmul.f32.gmra.mxu0 %v416
      %v1256 = vpop.f32.mrf.mxu0
      %v1257 = vadd.f32 0.0, %v1256
      %1258 = vmatmul.f32.gmra.mxu0 %v418
      %v1259 = vpop.f32.mrf.mxu0
      %v1260 = vadd.f32 0.0, %v1259
      %1261 = vmatmul.f32.gmra.mxu0 %v420
      %v1262 = vpop.f32.mrf.mxu0
      %v1263 = vadd.f32 0.0, %v1262
      %1264 = vmatmul.f32.gmra.mxu0 %v422
      %v1265 = vpop.f32.mrf.mxu0
      %v1266 = vadd.f32 0.0, %v1265
      %1267 = vmatmul.f32.gmra.mxu0 %v424
      %v1268 = vpop.f32.mrf.mxu0
      %v1269 = vadd.f32 0.0, %v1268
      %1270 = vmatmul.f32.gmra.mxu0 %v426
      %v1271 = vpop.f32.mrf.mxu0
      %v1272 = vadd.f32 0.0, %v1271
      %1273 = vmatmul.f32.gmra.mxu0 %v428
      %v1274 = vpop.f32.mrf.mxu0
      %v1275 = vadd.f32 0.0, %v1274
      %1276 = vmatmul.f32.gmra.mxu0 %v430
      %v1277 = vpop.f32.mrf.mxu0
      %v1278 = vadd.f32 0.0, %v1277
      %1279 = vmatmul.f32.gmra.mxu0 %v432
      %v1280 = vpop.f32.mrf.mxu0
      %v1281 = vadd.f32 0.0, %v1280
      %1282 = vmatmul.f32.gmra.mxu0 %v434
      %v1283 = vpop.f32.mrf.mxu0
      %v1284 = vadd.f32 0.0, %v1283
      %1285 = vmatmul.f32.gmra.mxu0 %v436
      %v1286 = vpop.f32.mrf.mxu0
      %v1287 = vadd.f32 0.0, %v1286
      %1288 = vmatmul.f32.gmra.mxu0 %v438
      %v1289 = vpop.f32.mrf.mxu0
      %v1290 = vadd.f32 0.0, %v1289
      %1291 = vmatmul.f32.gmra.mxu0 %v440
      %v1292 = vpop.f32.mrf.mxu0
      %v1293 = vadd.f32 0.0, %v1292
      %1294 = vmatmul.f32.gmra.mxu0 %v442
      %v1295 = vpop.f32.mrf.mxu0
      %v1296 = vadd.f32 0.0, %v1295
      %1297 = vmatmul.f32.gmra.mxu0 %v444
      %v1298 = vpop.f32.mrf.mxu0
      %v1299 = vadd.f32 0.0, %v1298
      %1300 = vmatmul.f32.gmra.mxu0 %v446
      %v1301 = vpop.f32.mrf.mxu0
      %v1302 = vadd.f32 0.0, %v1301
      %1303 = vmatmul.f32.gmra.mxu0 %v448
      %v1304 = vpop.f32.mrf.mxu0
      %v1305 = vadd.f32 0.0, %v1304
      %1306 = vmatmul.f32.gmra.mxu0 %v450
      %v1307 = vpop.f32.mrf.mxu0
      %v1308 = vadd.f32 0.0, %v1307
      %1309 = vmatmul.f32.gmra.mxu0 %v452
      %v1310 = vpop.f32.mrf.mxu0
      %v1311 = vadd.f32 0.0, %v1310
      %1312 = vmatmul.f32.gmra.mxu0 %v454
      %v1313 = vpop.f32.mrf.mxu0
      %v1314 = vadd.f32 0.0, %v1313
      %1315 = vmatmul.f32.gmra.mxu0 %v456
      %v1316 = vpop.f32.mrf.mxu0
      %v1317 = vadd.f32 0.0, %v1316
      %1318 = vmatmul.f32.gmra.mxu0 %v458
      %v1319 = vpop.f32.mrf.mxu0
      %v1320 = vadd.f32 0.0, %v1319
      %1321 = vmatmul.f32.gmra.mxu0 %v460
      %v1322 = vpop.f32.mrf.mxu0
      %v1323 = vadd.f32 0.0, %v1322
      %1324 = vmatmul.f32.gmra.mxu0 %v462
      %v1325 = vpop.f32.mrf.mxu0
      %v1326 = vadd.f32 0.0, %v1325
      %1327 = vmatmul.f32.gmra.mxu0 %v464
      %v1328 = vpop.f32.mrf.mxu0
      %v1329 = vadd.f32 0.0, %v1328
      %1330 = vmatmul.f32.gmra.mxu0 %v466
      %v1331 = vpop.f32.mrf.mxu0
      %v1332 = vadd.f32 0.0, %v1331
      %1333 = vmatmul.f32.gmra.mxu0 %v468
      %v1334 = vpop.f32.mrf.mxu0
      %v1335 = vadd.f32 0.0, %v1334
      %1336 = vmatmul.f32.gmra.mxu0 %v470
      %v1337 = vpop.f32.mrf.mxu0
      %v1338 = vadd.f32 0.0, %v1337
      %1339 = vmatmul.f32.gmra.mxu0 %v472
      %v1340 = vpop.f32.mrf.mxu0
      %v1341 = vadd.f32 0.0, %v1340
      %1342 = vmatmul.f32.gmra.mxu0 %v474
      %v1343 = vpop.f32.mrf.mxu0
      %v1344 = vadd.f32 0.0, %v1343
      %1345 = vmatmul.f32.gmra.mxu0 %v1232
      %v1346 = vpop.f32.mrf.mxu0
      %v1347 = vadd.f32 0.0, %v1346
      %1348 = vmatmul.f32.gmra.mxu0 %v1234
      %v1349 = vpop.f32.mrf.mxu0
      %v1350 = vadd.f32 0.0, %v1349
      %1351 = vdwg.mxu0
      %v1352 = vadd.f32 %v1192, %v1257
      %v1353 = vadd.f32 %v1193, %v1260
      %v1354 = vadd.f32 %v1194, %v1263
      %v1355 = vadd.f32 %v1195, %v1266
      %v1356 = vadd.f32 %v1196, %v1269
      %v1357 = vadd.f32 %v1197, %v1272
      %v1358 = vadd.f32 %v1198, %v1275
      %v1359 = vadd.f32 %v1199, %v1278
      %v1360 = vadd.f32 %v1200, %v1281
      %v1361 = vadd.f32 %v1201, %v1284
      %v1362 = vadd.f32 %v1202, %v1287
      %v1363 = vadd.f32 %v1203, %v1290
      %v1364 = vadd.f32 %v1204, %v1293
      %v1365 = vadd.f32 %v1205, %v1296
      %v1366 = vadd.f32 %v1206, %v1299
      %v1367 = vadd.f32 %v1207, %v1302
      %v1368 = vadd.f32 %v1208, %v1305
      %v1369 = vadd.f32 %v1209, %v1308
      %v1370 = vadd.f32 %v1210, %v1311
      %v1371 = vadd.f32 %v1211, %v1314
      %v1372 = vadd.f32 %v1212, %v1317
      %v1373 = vadd.f32 %v1213, %v1320
      %v1374 = vadd.f32 %v1214, %v1323
      %v1375 = vadd.f32 %v1215, %v1326
      %v1376 = vadd.f32 %v1216, %v1329
      %v1377 = vadd.f32 %v1217, %v1332
      %v1378 = vadd.f32 %v1218, %v1335
      %v1379 = vadd.f32 %v1219, %v1338
      %v1380 = vadd.f32 %v1220, %v1341
      %v1381 = vadd.f32 %v1221, %v1344
      %v1382 = vadd.f32 %v1222, %v1347
      %v1383 = vadd.f32 %v1223, %v1350
      %v1384 = vrot.slane %v273, 2
      %v1385 = vrot.slane %v274, 2
      %v1386 = vsel %vm773, %v1384, %v1385
      %v1387 = vrot.slane %v275, 2
      %v1388 = vsel %vm773, %v1385, %v1387
      %s1389 = scalar_lea.vmem %s1, 20
      %v1390 = vld [vmem:[%s1389] sm:$0x7]
      %v1391 = vsel %vm411, %v1386, 0
      %v1393 = vsel %vm411, %v1388, 0
      %v1396 = vsel %vm476, %v1390, 0
      %1398 = vmatpush.msra.mxu0 0.0
      %1399 = vmatpush.msra.mxu0 0.0
      %1400 = vmatpush.msra.mxu0 0.0
      %1401 = vmatpush.msra.mxu0 0.0
      %1402 = vmatpush.msra.mxu0 0.0
      %1403 = vmatpush.msra.mxu0 0.0
      %1404 = vmatpush.msra.mxu0 0.0
      %1405 = vmatpush.msra.mxu0 0.0
      %1406 = vmatpush.msra.mxu0 0.0
      %1407 = vmatpush.msra.mxu0 0.0
      %1408 = vmatpush.msra.mxu0 0.0
      %1409 = vmatpush.msra.mxu0 0.0
      %1410 = vmatpush.msra.mxu0 0.0
      %1411 = vmatpush.msra.mxu0 0.0
      %1412 = vmatpush.msra.mxu0 0.0
      %1413 = vmatpush.msra.mxu0 %v1396
      %1414 = vmatmul.f32.gmra.mxu0 %v860
      %v1415 = vpop.f32.mrf.mxu0
      %v1416 = vadd.f32 0.0, %v1415
      %1417 = vmatmul.f32.gmra.mxu0 %v862
      %v1418 = vpop.f32.mrf.mxu0
      %v1419 = vadd.f32 0.0, %v1418
      %1420 = vmatmul.f32.gmra.mxu0 %v864
      %v1421 = vpop.f32.mrf.mxu0
      %v1422 = vadd.f32 0.0, %v1421
      %1423 = vmatmul.f32.gmra.mxu0 %v866
      %v1424 = vpop.f32.mrf.mxu0
      %v1425 = vadd.f32 0.0, %v1424
      %1426 = vmatmul.f32.gmra.mxu0 %v868
      %v1427 = vpop.f32.mrf.mxu0
      %v1428 = vadd.f32 0.0, %v1427
      %1429 = vmatmul.f32.gmra.mxu0 %v870
      %v1430 = vpop.f32.mrf.mxu0
      %v1431 = vadd.f32 0.0, %v1430
      %1432 = vmatmul.f32.gmra.mxu0 %v872
      %v1433 = vpop.f32.mrf.mxu0
      %v1434 = vadd.f32 0.0, %v1433
      %1435 = vmatmul.f32.gmra.mxu0 %v874
      %v1436 = vpop.f32.mrf.mxu0
      %v1437 = vadd.f32 0.0, %v1436
      %1438 = vmatmul.f32.gmra.mxu0 %v876
      %v1439 = vpop.f32.mrf.mxu0
      %v1440 = vadd.f32 0.0, %v1439
      %1441 = vmatmul.f32.gmra.mxu0 %v878
      %v1442 = vpop.f32.mrf.mxu0
      %v1443 = vadd.f32 0.0, %v1442
      %1444 = vmatmul.f32.gmra.mxu0 %v880
      %v1445 = vpop.f32.mrf.mxu0
      %v1446 = vadd.f32 0.0, %v1445
      %1447 = vmatmul.f32.gmra.mxu0 %v882
      %v1448 = vpop.f32.mrf.mxu0
      %v1449 = vadd.f32 0.0, %v1448
      %1450 = vmatmul.f32.gmra.mxu0 %v884
      %v1451 = vpop.f32.mrf.mxu0
      %v1452 = vadd.f32 0.0, %v1451
      %1453 = vmatmul.f32.gmra.mxu0 %v886
      %v1454 = vpop.f32.mrf.mxu0
      %v1455 = vadd.f32 0.0, %v1454
      %1456 = vmatmul.f32.gmra.mxu0 %v888
      %v1457 = vpop.f32.mrf.mxu0
      %v1458 = vadd.f32 0.0, %v1457
      %1459 = vmatmul.f32.gmra.mxu0 %v890
      %v1460 = vpop.f32.mrf.mxu0
      %v1461 = vadd.f32 0.0, %v1460
      %1462 = vmatmul.f32.gmra.mxu0 %v892
      %v1463 = vpop.f32.mrf.mxu0
      %v1464 = vadd.f32 0.0, %v1463
      %1465 = vmatmul.f32.gmra.mxu0 %v894
      %v1466 = vpop.f32.mrf.mxu0
      %v1467 = vadd.f32 0.0, %v1466
      %1468 = vmatmul.f32.gmra.mxu0 %v896
      %v1469 = vpop.f32.mrf.mxu0
      %v1470 = vadd.f32 0.0, %v1469
      %1471 = vmatmul.f32.gmra.mxu0 %v898
      %v1472 = vpop.f32.mrf.mxu0
      %v1473 = vadd.f32 0.0, %v1472
      %1474 = vmatmul.f32.gmra.mxu0 %v900
      %v1475 = vpop.f32.mrf.mxu0
      %v1476 = vadd.f32 0.0, %v1475
      %1477 = vmatmul.f32.gmra.mxu0 %v902
      %v1478 = vpop.f32.mrf.mxu0
      %v1479 = vadd.f32 0.0, %v1478
      %1480 = vmatmul.f32.gmra.mxu0 %v904
      %v1481 = vpop.f32.mrf.mxu0
      %v1482 = vadd.f32 0.0, %v1481
      %1483 = vmatmul.f32.gmra.mxu0 %v906
      %v1484 = vpop.f32.mrf.mxu0
      %v1485 = vadd.f32 0.0, %v1484
      %1486 = vmatmul.f32.gmra.mxu0 %v908
      %v1487 = vpop.f32.mrf.mxu0
      %v1488 = vadd.f32 0.0, %v1487
      %1489 = vmatmul.f32.gmra.mxu0 %v910
      %v1490 = vpop.f32.mrf.mxu0
      %v1491 = vadd.f32 0.0, %v1490
      %1492 = vmatmul.f32.gmra.mxu0 %v912
      %v1493 = vpop.f32.mrf.mxu0
      %v1494 = vadd.f32 0.0, %v1493
      %1495 = vmatmul.f32.gmra.mxu0 %v914
      %v1496 = vpop.f32.mrf.mxu0
      %v1497 = vadd.f32 0.0, %v1496
      %1498 = vmatmul.f32.gmra.mxu0 %v916
      %v1499 = vpop.f32.mrf.mxu0
      %v1500 = vadd.f32 0.0, %v1499
      %1501 = vmatmul.f32.gmra.mxu0 %v918
      %v1502 = vpop.f32.mrf.mxu0
      %v1503 = vadd.f32 0.0, %v1502
      %1504 = vmatmul.f32.gmra.mxu0 %v1391
      %v1505 = vpop.f32.mrf.mxu0
      %v1506 = vadd.f32 0.0, %v1505
      %1507 = vmatmul.f32.gmra.mxu0 %v1393
      %v1508 = vpop.f32.mrf.mxu0
      %v1509 = vadd.f32 0.0, %v1508
      %1510 = vdwg.mxu0
      %v1511 = vadd.f32 %v1352, %v1416
      %v1512 = vadd.f32 %v1353, %v1419
      %v1513 = vadd.f32 %v1354, %v1422
      %v1514 = vadd.f32 %v1355, %v1425
      %v1515 = vadd.f32 %v1356, %v1428
      %v1516 = vadd.f32 %v1357, %v1431
      %v1517 = vadd.f32 %v1358, %v1434
      %v1518 = vadd.f32 %v1359, %v1437
      %v1519 = vadd.f32 %v1360, %v1440
      %v1520 = vadd.f32 %v1361, %v1443
      %v1521 = vadd.f32 %v1362, %v1446
      %v1522 = vadd.f32 %v1363, %v1449
      %v1523 = vadd.f32 %v1364, %v1452
      %v1524 = vadd.f32 %v1365, %v1455
      %v1525 = vadd.f32 %v1366, %v1458
      %v1526 = vadd.f32 %v1367, %v1461
      %v1527 = vadd.f32 %v1368, %v1464
      %v1528 = vadd.f32 %v1369, %v1467
      %v1529 = vadd.f32 %v1370, %v1470
      %v1530 = vadd.f32 %v1371, %v1473
      %v1531 = vadd.f32 %v1372, %v1476
      %v1532 = vadd.f32 %v1373, %v1479
      %v1533 = vadd.f32 %v1374, %v1482
      %v1534 = vadd.f32 %v1375, %v1485
      %v1535 = vadd.f32 %v1376, %v1488
      %v1536 = vadd.f32 %v1377, %v1491
      %v1537 = vadd.f32 %v1378, %v1494
      %v1538 = vadd.f32 %v1379, %v1497
      %v1539 = vadd.f32 %v1380, %v1500
      %v1540 = vadd.f32 %v1381, %v1503
      %v1541 = vadd.f32 %v1382, %v1506
      %v1542 = vadd.f32 %v1383, %v1509
      %s1543 = scalar_lea.vmem %s1, 24
      %v1544 = vld [vmem:[%s1543] sm:$0x7]
      %v1546 = vsel %vm411, %v276, 0
      %v1549 = vsel %vm411, %v277, 0
      %v1552 = vsel %vm476, %v1544, 0
      %1554 = vmatpush.msra.mxu0 0.0
      %1555 = vmatpush.msra.mxu0 0.0
      %1556 = vmatpush.msra.mxu0 0.0
      %1557 = vmatpush.msra.mxu0 0.0
      %1558 = vmatpush.msra.mxu0 0.0
      %1559 = vmatpush.msra.mxu0 0.0
      %1560 = vmatpush.msra.mxu0 0.0
      %1561 = vmatpush.msra.mxu0 0.0
      %1562 = vmatpush.msra.mxu0 0.0
      %1563 = vmatpush.msra.mxu0 0.0
      %1564 = vmatpush.msra.mxu0 0.0
      %1565 = vmatpush.msra.mxu0 0.0
      %1566 = vmatpush.msra.mxu0 0.0
      %1567 = vmatpush.msra.mxu0 0.0
      %1568 = vmatpush.msra.mxu0 0.0
      %1569 = vmatpush.msra.mxu0 %v1552
      %1570 = vmatmul.f32.gmra.mxu0 %v601
      %v1571 = vpop.f32.mrf.mxu0
      %v1572 = vadd.f32 0.0, %v1571
      %1573 = vmatmul.f32.gmra.mxu0 %v603
      %v1574 = vpop.f32.mrf.mxu0
      %v1575 = vadd.f32 0.0, %v1574
      %1576 = vmatmul.f32.gmra.mxu0 %v605
      %v1577 = vpop.f32.mrf.mxu0
      %v1578 = vadd.f32 0.0, %v1577
      %1579 = vmatmul.f32.gmra.mxu0 %v607
      %v1580 = vpop.f32.mrf.mxu0
      %v1581 = vadd.f32 0.0, %v1580
      %1582 = vmatmul.f32.gmra.mxu0 %v609
      %v1583 = vpop.f32.mrf.mxu0
      %v1584 = vadd.f32 0.0, %v1583
      %1585 = vmatmul.f32.gmra.mxu0 %v611
      %v1586 = vpop.f32.mrf.mxu0
      %v1587 = vadd.f32 0.0, %v1586
      %1588 = vmatmul.f32.gmra.mxu0 %v613
      %v1589 = vpop.f32.mrf.mxu0
      %v1590 = vadd.f32 0.0, %v1589
      %1591 = vmatmul.f32.gmra.mxu0 %v615
      %v1592 = vpop.f32.mrf.mxu0
      %v1593 = vadd.f32 0.0, %v1592
      %1594 = vmatmul.f32.gmra.mxu0 %v617
      %v1595 = vpop.f32.mrf.mxu0
      %v1596 = vadd.f32 0.0, %v1595
      %1597 = vmatmul.f32.gmra.mxu0 %v619
      %v1598 = vpop.f32.mrf.mxu0
      %v1599 = vadd.f32 0.0, %v1598
      %1600 = vmatmul.f32.gmra.mxu0 %v621
      %v1601 = vpop.f32.mrf.mxu0
      %v1602 = vadd.f32 0.0, %v1601
      %1603 = vmatmul.f32.gmra.mxu0 %v623
      %v1604 = vpop.f32.mrf.mxu0
      %v1605 = vadd.f32 0.0, %v1604
      %1606 = vmatmul.f32.gmra.mxu0 %v625
      %v1607 = vpop.f32.mrf.mxu0
      %v1608 = vadd.f32 0.0, %v1607
      %1609 = vmatmul.f32.gmra.mxu0 %v627
      %v1610 = vpop.f32.mrf.mxu0
      %v1611 = vadd.f32 0.0, %v1610
      %1612 = vmatmul.f32.gmra.mxu0 %v629
      %v1613 = vpop.f32.mrf.mxu0
      %v1614 = vadd.f32 0.0, %v1613
      %1615 = vmatmul.f32.gmra.mxu0 %v631
      %v1616 = vpop.f32.mrf.mxu0
      %v1617 = vadd.f32 0.0, %v1616
      %1618 = vmatmul.f32.gmra.mxu0 %v633
      %v1619 = vpop.f32.mrf.mxu0
      %v1620 = vadd.f32 0.0, %v1619
      %1621 = vmatmul.f32.gmra.mxu0 %v635
      %v1622 = vpop.f32.mrf.mxu0
      %v1623 = vadd.f32 0.0, %v1622
      %1624 = vmatmul.f32.gmra.mxu0 %v637
      %v1625 = vpop.f32.mrf.mxu0
      %v1626 = vadd.f32 0.0, %v1625
      %1627 = vmatmul.f32.gmra.mxu0 %v639
      %v1628 = vpop.f32.mrf.mxu0
      %v1629 = vadd.f32 0.0, %v1628
      %1630 = vmatmul.f32.gmra.mxu0 %v641
      %v1631 = vpop.f32.mrf.mxu0
      %v1632 = vadd.f32 0.0, %v1631
      %1633 = vmatmul.f32.gmra.mxu0 %v643
      %v1634 = vpop.f32.mrf.mxu0
      %v1635 = vadd.f32 0.0, %v1634
      %1636 = vmatmul.f32.gmra.mxu0 %v645
      %v1637 = vpop.f32.mrf.mxu0
      %v1638 = vadd.f32 0.0, %v1637
      %1639 = vmatmul.f32.gmra.mxu0 %v647
      %v1640 = vpop.f32.mrf.mxu0
      %v1641 = vadd.f32 0.0, %v1640
      %1642 = vmatmul.f32.gmra.mxu0 %v649
      %v1643 = vpop.f32.mrf.mxu0
      %v1644 = vadd.f32 0.0, %v1643
      %1645 = vmatmul.f32.gmra.mxu0 %v651
      %v1646 = vpop.f32.mrf.mxu0
      %v1647 = vadd.f32 0.0, %v1646
      %1648 = vmatmul.f32.gmra.mxu0 %v653
      %v1649 = vpop.f32.mrf.mxu0
      %v1650 = vadd.f32 0.0, %v1649
      %1651 = vmatmul.f32.gmra.mxu0 %v655
      %v1652 = vpop.f32.mrf.mxu0
      %v1653 = vadd.f32 0.0, %v1652
      %1654 = vmatmul.f32.gmra.mxu0 %v1071
      %v1655 = vpop.f32.mrf.mxu0
      %v1656 = vadd.f32 0.0, %v1655
      %1657 = vmatmul.f32.gmra.mxu0 %v1074
      %v1658 = vpop.f32.mrf.mxu0
      %v1659 = vadd.f32 0.0, %v1658
      %1660 = vmatmul.f32.gmra.mxu0 %v1546
      %v1661 = vpop.f32.mrf.mxu0
      %v1662 = vadd.f32 0.0, %v1661
      %1663 = vmatmul.f32.gmra.mxu0 %v1549
      %v1664 = vpop.f32.mrf.mxu0
      %v1665 = vadd.f32 0.0, %v1664
      %1666 = vdwg.mxu0
      %v1667 = vadd.f32 %v1511, %v1572
      %v1668 = vadd.f32 %v1512, %v1575
      %v1669 = vadd.f32 %v1513, %v1578
      %v1670 = vadd.f32 %v1514, %v1581
      %v1671 = vadd.f32 %v1515, %v1584
      %v1672 = vadd.f32 %v1516, %v1587
      %v1673 = vadd.f32 %v1517, %v1590
      %v1674 = vadd.f32 %v1518, %v1593
      %v1675 = vadd.f32 %v1519, %v1596
      %v1676 = vadd.f32 %v1520, %v1599
      %v1677 = vadd.f32 %v1521, %v1602
      %v1678 = vadd.f32 %v1522, %v1605
      %v1679 = vadd.f32 %v1523, %v1608
      %v1680 = vadd.f32 %v1524, %v1611
      %v1681 = vadd.f32 %v1525, %v1614
      %v1682 = vadd.f32 %v1526, %v1617
      %v1683 = vadd.f32 %v1527, %v1620
      %v1684 = vadd.f32 %v1528, %v1623
      %v1685 = vadd.f32 %v1529, %v1626
      %v1686 = vadd.f32 %v1530, %v1629
      %v1687 = vadd.f32 %v1531, %v1632
      %v1688 = vadd.f32 %v1532, %v1635
      %v1689 = vadd.f32 %v1533, %v1638
      %v1690 = vadd.f32 %v1534, %v1641
      %v1691 = vadd.f32 %v1535, %v1644
      %v1692 = vadd.f32 %v1536, %v1647
      %v1693 = vadd.f32 %v1537, %v1650
      %v1694 = vadd.f32 %v1538, %v1653
      %v1695 = vadd.f32 %v1539, %v1656
      %v1696 = vadd.f32 %v1540, %v1659
      %v1697 = vadd.f32 %v1541, %v1662
      %v1698 = vadd.f32 %v1542, %v1665
      %v1700 = vrot.slane %v276, 1
      %v1701 = vrot.slane %v277, 1
      %v1702 = vsel %vm328, %v1700, %v1701
      %v1703 = vrot.slane %v278, 1
      %v1704 = vsel %vm328, %v1701, %v1703
      %s1705 = scalar_lea.vmem %s1, 28
      %v1706 = vld [vmem:[%s1705] sm:$0x7]
      %v1707 = vsel %vm411, %v1702, 0
      %v1709 = vsel %vm411, %v1704, 0
      %v1712 = vsel %vm476, %v1706, 0
      %1714 = vmatpush.msra.mxu0 0.0
      %1715 = vmatpush.msra.mxu0 0.0
      %1716 = vmatpush.msra.mxu0 0.0
      %1717 = vmatpush.msra.mxu0 0.0
      %1718 = vmatpush.msra.mxu0 0.0
      %1719 = vmatpush.msra.mxu0 0.0
      %1720 = vmatpush.msra.mxu0 0.0
      %1721 = vmatpush.msra.mxu0 0.0
      %1722 = vmatpush.msra.mxu0 0.0
      %1723 = vmatpush.msra.mxu0 0.0
      %1724 = vmatpush.msra.mxu0 0.0
      %1725 = vmatpush.msra.mxu0 0.0
      %1726 = vmatpush.msra.mxu0 0.0
      %1727 = vmatpush.msra.mxu0 0.0
      %1728 = vmatpush.msra.mxu0 0.0
      %1729 = vmatpush.msra.mxu0 %v1712
      %1730 = vmatmul.f32.gmra.mxu0 %v420
      %v1731 = vpop.f32.mrf.mxu0
      %v1732 = vadd.f32 0.0, %v1731
      %1733 = vmatmul.f32.gmra.mxu0 %v422
      %v1734 = vpop.f32.mrf.mxu0
      %v1735 = vadd.f32 0.0, %v1734
      %1736 = vmatmul.f32.gmra.mxu0 %v424
      %v1737 = vpop.f32.mrf.mxu0
      %v1738 = vadd.f32 0.0, %v1737
      %1739 = vmatmul.f32.gmra.mxu0 %v426
      %v1740 = vpop.f32.mrf.mxu0
      %v1741 = vadd.f32 0.0, %v1740
      %1742 = vmatmul.f32.gmra.mxu0 %v428
      %v1743 = vpop.f32.mrf.mxu0
      %v1744 = vadd.f32 0.0, %v1743
      %1745 = vmatmul.f32.gmra.mxu0 %v430
      %v1746 = vpop.f32.mrf.mxu0
      %v1747 = vadd.f32 0.0, %v1746
      %1748 = vmatmul.f32.gmra.mxu0 %v432
      %v1749 = vpop.f32.mrf.mxu0
      %v1750 = vadd.f32 0.0, %v1749
      %1751 = vmatmul.f32.gmra.mxu0 %v434
      %v1752 = vpop.f32.mrf.mxu0
      %v1753 = vadd.f32 0.0, %v1752
      %1754 = vmatmul.f32.gmra.mxu0 %v436
      %v1755 = vpop.f32.mrf.mxu0
      %v1756 = vadd.f32 0.0, %v1755
      %1757 = vmatmul.f32.gmra.mxu0 %v438
      %v1758 = vpop.f32.mrf.mxu0
      %v1759 = vadd.f32 0.0, %v1758
      %1760 = vmatmul.f32.gmra.mxu0 %v440
      %v1761 = vpop.f32.mrf.mxu0
      %v1762 = vadd.f32 0.0, %v1761
      %1763 = vmatmul.f32.gmra.mxu0 %v442
      %v1764 = vpop.f32.mrf.mxu0
      %v1765 = vadd.f32 0.0, %v1764
      %1766 = vmatmul.f32.gmra.mxu0 %v444
      %v1767 = vpop.f32.mrf.mxu0
      %v1768 = vadd.f32 0.0, %v1767
      %1769 = vmatmul.f32.gmra.mxu0 %v446
      %v1770 = vpop.f32.mrf.mxu0
      %v1771 = vadd.f32 0.0, %v1770
      %1772 = vmatmul.f32.gmra.mxu0 %v448
      %v1773 = vpop.f32.mrf.mxu0
      %v1774 = vadd.f32 0.0, %v1773
      %1775 = vmatmul.f32.gmra.mxu0 %v450
      %v1776 = vpop.f32.mrf.mxu0
      %v1777 = vadd.f32 0.0, %v1776
      %1778 = vmatmul.f32.gmra.mxu0 %v452
      %v1779 = vpop.f32.mrf.mxu0
      %v1780 = vadd.f32 0.0, %v1779
      %1781 = vmatmul.f32.gmra.mxu0 %v454
      %v1782 = vpop.f32.mrf.mxu0
      %v1783 = vadd.f32 0.0, %v1782
      %1784 = vmatmul.f32.gmra.mxu0 %v456
      %v1785 = vpop.f32.mrf.mxu0
      %v1786 = vadd.f32 0.0, %v1785
      %1787 = vmatmul.f32.gmra.mxu0 %v458
      %v1788 = vpop.f32.mrf.mxu0
      %v1789 = vadd.f32 0.0, %v1788
      %1790 = vmatmul.f32.gmra.mxu0 %v460
      %v1791 = vpop.f32.mrf.mxu0
      %v1792 = vadd.f32 0.0, %v1791
      %1793 = vmatmul.f32.gmra.mxu0 %v462
      %v1794 = vpop.f32.mrf.mxu0
      %v1795 = vadd.f32 0.0, %v1794
      %1796 = vmatmul.f32.gmra.mxu0 %v464
      %v1797 = vpop.f32.mrf.mxu0
      %v1798 = vadd.f32 0.0, %v1797
      %1799 = vmatmul.f32.gmra.mxu0 %v466
      %v1800 = vpop.f32.mrf.mxu0
      %v1801 = vadd.f32 0.0, %v1800
      %1802 = vmatmul.f32.gmra.mxu0 %v468
      %v1803 = vpop.f32.mrf.mxu0
      %v1804 = vadd.f32 0.0, %v1803
      %1805 = vmatmul.f32.gmra.mxu0 %v470
      %v1806 = vpop.f32.mrf.mxu0
      %v1807 = vadd.f32 0.0, %v1806
      %1808 = vmatmul.f32.gmra.mxu0 %v472
      %v1809 = vpop.f32.mrf.mxu0
      %v1810 = vadd.f32 0.0, %v1809
      %1811 = vmatmul.f32.gmra.mxu0 %v474
      %v1812 = vpop.f32.mrf.mxu0
      %v1813 = vadd.f32 0.0, %v1812
      %1814 = vmatmul.f32.gmra.mxu0 %v1232
      %v1815 = vpop.f32.mrf.mxu0
      %v1816 = vadd.f32 0.0, %v1815
      %1817 = vmatmul.f32.gmra.mxu0 %v1234
      %v1818 = vpop.f32.mrf.mxu0
      %v1819 = vadd.f32 0.0, %v1818
      %1820 = vmatmul.f32.gmra.mxu0 %v1707
      %v1821 = vpop.f32.mrf.mxu0
      %v1822 = vadd.f32 0.0, %v1821
      %1823 = vmatmul.f32.gmra.mxu0 %v1709
      %v1824 = vpop.f32.mrf.mxu0
      %v1825 = vadd.f32 0.0, %v1824
      %1826 = vdwg.mxu0
      %v1827 = vadd.f32 %v1667, %v1732
      %v1828 = vadd.f32 %v1668, %v1735
      %v1829 = vadd.f32 %v1669, %v1738
      %v1830 = vadd.f32 %v1670, %v1741
      %v1831 = vadd.f32 %v1671, %v1744
      %v1832 = vadd.f32 %v1672, %v1747
      %v1833 = vadd.f32 %v1673, %v1750
      %v1834 = vadd.f32 %v1674, %v1753
      %v1835 = vadd.f32 %v1675, %v1756
      %v1836 = vadd.f32 %v1676, %v1759
      %v1837 = vadd.f32 %v1677, %v1762
      %v1838 = vadd.f32 %v1678, %v1765
      %v1839 = vadd.f32 %v1679, %v1768
      %v1840 = vadd.f32 %v1680, %v1771
      %v1841 = vadd.f32 %v1681, %v1774
      %v1842 = vadd.f32 %v1682, %v1777
      %v1843 = vadd.f32 %v1683, %v1780
      %v1844 = vadd.f32 %v1684, %v1783
      %v1845 = vadd.f32 %v1685, %v1786
      %v1846 = vadd.f32 %v1686, %v1789
      %v1847 = vadd.f32 %v1687, %v1792
      %v1848 = vadd.f32 %v1688, %v1795
      %v1849 = vadd.f32 %v1689, %v1798
      %v1850 = vadd.f32 %v1690, %v1801
      %v1851 = vadd.f32 %v1691, %v1804
      %v1852 = vadd.f32 %v1692, %v1807
      %v1853 = vadd.f32 %v1693, %v1810
      %v1854 = vadd.f32 %v1694, %v1813
      %v1855 = vadd.f32 %v1695, %v1816
      %v1856 = vadd.f32 %v1696, %v1819
      %v1857 = vadd.f32 %v1697, %v1822
      %v1858 = vadd.f32 %v1698, %v1825
      %v1859 = vrot.slane %v276, 2
      %v1860 = vrot.slane %v277, 2
      %v1861 = vsel %vm773, %v1859, %v1860
      %v1862 = vrot.slane %v278, 2
      %v1863 = vsel %vm773, %v1860, %v1862
      %s1864 = scalar_lea.vmem %s1, 32
      %v1865 = vld [vmem:[%s1864] sm:$0x7]
      %v1866 = vsel %vm411, %v1861, 0
      %v1868 = vsel %vm411, %v1863, 0
      %v1871 = vsel %vm476, %v1865, 0
      %1873 = vmatpush.msra.mxu0 0.0
      %1874 = vmatpush.msra.mxu0 0.0
      %1875 = vmatpush.msra.mxu0 0.0
      %1876 = vmatpush.msra.mxu0 0.0
      %1877 = vmatpush.msra.mxu0 0.0
      %1878 = vmatpush.msra.mxu0 0.0
      %1879 = vmatpush.msra.mxu0 0.0
      %1880 = vmatpush.msra.mxu0 0.0
      %1881 = vmatpush.msra.mxu0 0.0
      %1882 = vmatpush.msra.mxu0 0.0
      %1883 = vmatpush.msra.mxu0 0.0
      %1884 = vmatpush.msra.mxu0 0.0
      %1885 = vmatpush.msra.mxu0 0.0
      %1886 = vmatpush.msra.mxu0 0.0
      %1887 = vmatpush.msra.mxu0 0.0
      %1888 = vmatpush.msra.mxu0 %v1871
      %1889 = vmatmul.f32.gmra.mxu0 %v864
      %v1890 = vpop.f32.mrf.mxu0
      %v1891 = vadd.f32 0.0, %v1890
      %1892 = vmatmul.f32.gmra.mxu0 %v866
      %v1893 = vpop.f32.mrf.mxu0
      %v1894 = vadd.f32 0.0, %v1893
      %1895 = vmatmul.f32.gmra.mxu0 %v868
      %v1896 = vpop.f32.mrf.mxu0
      %v1897 = vadd.f32 0.0, %v1896
      %1898 = vmatmul.f32.gmra.mxu0 %v870
      %v1899 = vpop.f32.mrf.mxu0
      %v1900 = vadd.f32 0.0, %v1899
      %1901 = vmatmul.f32.gmra.mxu0 %v872
      %v1902 = vpop.f32.mrf.mxu0
      %v1903 = vadd.f32 0.0, %v1902
      %1904 = vmatmul.f32.gmra.mxu0 %v874
      %v1905 = vpop.f32.mrf.mxu0
      %v1906 = vadd.f32 0.0, %v1905
      %1907 = vmatmul.f32.gmra.mxu0 %v876
      %v1908 = vpop.f32.mrf.mxu0
      %v1909 = vadd.f32 0.0, %v1908
      %1910 = vmatmul.f32.gmra.mxu0 %v878
      %v1911 = vpop.f32.mrf.mxu0
      %v1912 = vadd.f32 0.0, %v1911
      %1913 = vmatmul.f32.gmra.mxu0 %v880
      %v1914 = vpop.f32.mrf.mxu0
      %v1915 = vadd.f32 0.0, %v1914
      %1916 = vmatmul.f32.gmra.mxu0 %v882
      %v1917 = vpop.f32.mrf.mxu0
      %v1918 = vadd.f32 0.0, %v1917
      %1919 = vmatmul.f32.gmra.mxu0 %v884
      %v1920 = vpop.f32.mrf.mxu0
      %v1921 = vadd.f32 0.0, %v1920
      %1922 = vmatmul.f32.gmra.mxu0 %v886
      %v1923 = vpop.f32.mrf.mxu0
      %v1924 = vadd.f32 0.0, %v1923
      %1925 = vmatmul.f32.gmra.mxu0 %v888
      %v1926 = vpop.f32.mrf.mxu0
      %v1927 = vadd.f32 0.0, %v1926
      %1928 = vmatmul.f32.gmra.mxu0 %v890
      %v1929 = vpop.f32.mrf.mxu0
      %v1930 = vadd.f32 0.0, %v1929
      %1931 = vmatmul.f32.gmra.mxu0 %v892
      %v1932 = vpop.f32.mrf.mxu0
      %v1933 = vadd.f32 0.0, %v1932
      %1934 = vmatmul.f32.gmra.mxu0 %v894
      %v1935 = vpop.f32.mrf.mxu0
      %v1936 = vadd.f32 0.0, %v1935
      %1937 = vmatmul.f32.gmra.mxu0 %v896
      %v1938 = vpop.f32.mrf.mxu0
      %v1939 = vadd.f32 0.0, %v1938
      %1940 = vmatmul.f32.gmra.mxu0 %v898
      %v1941 = vpop.f32.mrf.mxu0
      %v1942 = vadd.f32 0.0, %v1941
      %1943 = vmatmul.f32.gmra.mxu0 %v900
      %v1944 = vpop.f32.mrf.mxu0
      %v1945 = vadd.f32 0.0, %v1944
      %1946 = vmatmul.f32.gmra.mxu0 %v902
      %v1947 = vpop.f32.mrf.mxu0
      %v1948 = vadd.f32 0.0, %v1947
      %1949 = vmatmul.f32.gmra.mxu0 %v904
      %v1950 = vpop.f32.mrf.mxu0
      %v1951 = vadd.f32 0.0, %v1950
      %1952 = vmatmul.f32.gmra.mxu0 %v906
      %v1953 = vpop.f32.mrf.mxu0
      %v1954 = vadd.f32 0.0, %v1953
      %1955 = vmatmul.f32.gmra.mxu0 %v908
      %v1956 = vpop.f32.mrf.mxu0
      %v1957 = vadd.f32 0.0, %v1956
      %1958 = vmatmul.f32.gmra.mxu0 %v910
      %v1959 = vpop.f32.mrf.mxu0
      %v1960 = vadd.f32 0.0, %v1959
      %1961 = vmatmul.f32.gmra.mxu0 %v912
      %v1962 = vpop.f32.mrf.mxu0
      %v1963 = vadd.f32 0.0, %v1962
      %1964 = vmatmul.f32.gmra.mxu0 %v914
      %v1965 = vpop.f32.mrf.mxu0
      %v1966 = vadd.f32 0.0, %v1965
      %1967 = vmatmul.f32.gmra.mxu0 %v916
      %v1968 = vpop.f32.mrf.mxu0
      %v1969 = vadd.f32 0.0, %v1968
      %1970 = vmatmul.f32.gmra.mxu0 %v918
      %v1971 = vpop.f32.mrf.mxu0
      %v1972 = vadd.f32 0.0, %v1971
      %1973 = vmatmul.f32.gmra.mxu0 %v1391
      %v1974 = vpop.f32.mrf.mxu0
      %v1975 = vadd.f32 0.0, %v1974
      %1976 = vmatmul.f32.gmra.mxu0 %v1393
      %v1977 = vpop.f32.mrf.mxu0
      %v1978 = vadd.f32 0.0, %v1977
      %1979 = vmatmul.f32.gmra.mxu0 %v1866
      %v1980 = vpop.f32.mrf.mxu0
      %v1981 = vadd.f32 0.0, %v1980
      %1982 = vmatmul.f32.gmra.mxu0 %v1868
      %v1983 = vpop.f32.mrf.mxu0
      %v1984 = vadd.f32 0.0, %v1983
      %1985 = vdwg.mxu0
      %v1986 = vadd.f32 %v1827, %v1891
      %v1987 = vadd.f32 %v1828, %v1894
      %v1988 = vadd.f32 %v1829, %v1897
      %v1989 = vadd.f32 %v1830, %v1900
      %v1990 = vadd.f32 %v1831, %v1903
      %v1991 = vadd.f32 %v1832, %v1906
      %v1992 = vadd.f32 %v1833, %v1909
      %v1993 = vadd.f32 %v1834, %v1912
      %v1994 = vadd.f32 %v1835, %v1915
      %v1995 = vadd.f32 %v1836, %v1918
      %v1996 = vadd.f32 %v1837, %v1921
      %v1997 = vadd.f32 %v1838, %v1924
      %v1998 = vadd.f32 %v1839, %v1927
      %v1999 = vadd.f32 %v1840, %v1930
      %v2000 = vadd.f32 %v1841, %v1933
      %v2001 = vadd.f32 %v1842, %v1936
      %v2002 = vadd.f32 %v1843, %v1939
      %v2003 = vadd.f32 %v1844, %v1942
      %v2004 = vadd.f32 %v1845, %v1945
      %v2005 = vadd.f32 %v1846, %v1948
      %v2006 = vadd.f32 %v1847, %v1951
      %v2007 = vadd.f32 %v1848, %v1954
      %v2008 = vadd.f32 %v1849, %v1957
      %v2009 = vadd.f32 %v1850, %v1960
      %v2010 = vadd.f32 %v1851, %v1963
      %v2011 = vadd.f32 %v1852, %v1966
      %v2012 = vadd.f32 %v1853, %v1969
      %v2013 = vadd.f32 %v1854, %v1972
      %v2014 = vadd.f32 %v1855, %v1975
      %v2015 = vadd.f32 %v1856, %v1978
      %v2016 = vadd.f32 %v1857, %v1981
      %v2017 = vadd.f32 %v1858, %v1984
      %v2018 = vld [vmem:[%s2] sm:$0x1]
      %v2020 = vperm.slane %v2018, 0
      %v2022 = vadd.f32 %v1986, %v2020
      %v2023 = vadd.f32 %v1987, %v2020
      %v2024 = vadd.f32 %v1988, %v2020
      %v2025 = vadd.f32 %v1989, %v2020
      %v2026 = vadd.f32 %v1990, %v2020
      %v2027 = vadd.f32 %v1991, %v2020
      %v2028 = vadd.f32 %v1992, %v2020
      %v2029 = vadd.f32 %v1993, %v2020
      %v2030 = vadd.f32 %v1994, %v2020
      %v2031 = vadd.f32 %v1995, %v2020
      %v2032 = vadd.f32 %v1996, %v2020
      %v2033 = vadd.f32 %v1997, %v2020
      %v2034 = vadd.f32 %v1998, %v2020
      %v2035 = vadd.f32 %v1999, %v2020
      %v2036 = vadd.f32 %v2000, %v2020
      %v2037 = vadd.f32 %v2001, %v2020
      %v2038 = vadd.f32 %v2002, %v2020
      %v2039 = vadd.f32 %v2003, %v2020
      %v2040 = vadd.f32 %v2004, %v2020
      %v2041 = vadd.f32 %v2005, %v2020
      %v2042 = vadd.f32 %v2006, %v2020
      %v2043 = vadd.f32 %v2007, %v2020
      %v2044 = vadd.f32 %v2008, %v2020
      %v2045 = vadd.f32 %v2009, %v2020
      %v2046 = vadd.f32 %v2010, %v2020
      %v2047 = vadd.f32 %v2011, %v2020
      %v2048 = vadd.f32 %v2012, %v2020
      %v2049 = vadd.f32 %v2013, %v2020
      %v2050 = vadd.f32 %v2014, %v2020
      %v2051 = vadd.f32 %v2015, %v2020
      %v2052 = vadd.f32 %v2016, %v2020
      %v2053 = vadd.f32 %v2017, %v2020
      %v2054 = vmax.f32 %v2022, 0.0
      %v2055 = vmax.f32 %v2023, 0.0
      %v2056 = vmax.f32 %v2024, 0.0
      %v2057 = vmax.f32 %v2025, 0.0
      %v2058 = vmax.f32 %v2026, 0.0
      %v2059 = vmax.f32 %v2027, 0.0
      %v2060 = vmax.f32 %v2028, 0.0
      %v2061 = vmax.f32 %v2029, 0.0
      %v2062 = vmax.f32 %v2030, 0.0
      %v2063 = vmax.f32 %v2031, 0.0
      %v2064 = vmax.f32 %v2032, 0.0
      %v2065 = vmax.f32 %v2033, 0.0
      %v2066 = vmax.f32 %v2034, 0.0
      %v2067 = vmax.f32 %v2035, 0.0
      %v2068 = vmax.f32 %v2036, 0.0
      %v2069 = vmax.f32 %v2037, 0.0
      %v2070 = vmax.f32 %v2038, 0.0
      %v2071 = vmax.f32 %v2039, 0.0
      %v2072 = vmax.f32 %v2040, 0.0
      %v2073 = vmax.f32 %v2041, 0.0
      %v2074 = vmax.f32 %v2042, 0.0
      %v2075 = vmax.f32 %v2043, 0.0
      %v2076 = vmax.f32 %v2044, 0.0
      %v2077 = vmax.f32 %v2045, 0.0
      %v2078 = vmax.f32 %v2046, 0.0
      %v2079 = vmax.f32 %v2047, 0.0
      %v2080 = vmax.f32 %v2048, 0.0
      %v2081 = vmax.f32 %v2049, 0.0
      %v2082 = vmax.f32 %v2050, 0.0
      %v2083 = vmax.f32 %v2051, 0.0
      %v2084 = vmax.f32 %v2052, 0.0
      %v2085 = vmax.f32 %v2053, 0.0
      %vm2086 = vcmask 64512
      %v2087 = vsel %vm2086, %v2054, -inf
      %v2088 = vsel %vm2086, %v2056, -inf
      %v2089 = vmax.f32 %v2087, %v2088
      %v2090 = vsel %vm2086, %v2055, -inf
      %v2091 = vsel %vm2086, %v2057, -inf
      %v2092 = vmax.f32 %v2090, %v2091
      %v2093 = vsel %vm2086, %v2058, -inf
      %v2094 = vsel %vm2086, %v2060, -inf
      %v2095 = vmax.f32 %v2093, %v2094
      %v2096 = vsel %vm2086, %v2059, -inf
      %v2097 = vsel %vm2086, %v2061, -inf
      %v2098 = vmax.f32 %v2096, %v2097
      %v2099 = vsel %vm2086, %v2062, -inf
      %v2100 = vsel %vm2086, %v2064, -inf
      %v2101 = vmax.f32 %v2099, %v2100
      %v2102 = vsel %vm2086, %v2063, -inf
      %v2103 = vsel %vm2086, %v2065, -inf
      %v2104 = vmax.f32 %v2102, %v2103
      %v2105 = vsel %vm2086, %v2066, -inf
      %v2106 = vsel %vm2086, %v2068, -inf
      %v2107 = vmax.f32 %v2105, %v2106
      %v2108 = vsel %vm2086, %v2067, -inf
      %v2109 = vsel %vm2086, %v2069, -inf
      %v2110 = vmax.f32 %v2108, %v2109
      %v2111 = vsel %vm2086, %v2070, -inf
      %v2112 = vsel %vm2086, %v2072, -inf
      %v2113 = vmax.f32 %v2111, %v2112
      %v2114 = vsel %vm2086, %v2071, -inf
      %v2115 = vsel %vm2086, %v2073, -inf
      %v2116 = vmax.f32 %v2114, %v2115
      %v2117 = vsel %vm2086, %v2074, -inf
      %v2118 = vsel %vm2086, %v2076, -inf
      %v2119 = vmax.f32 %v2117, %v2118
      %v2120 = vsel %vm2086, %v2075, -inf
      %v2121 = vsel %vm2086, %v2077, -inf
      %v2122 = vmax.f32 %v2120, %v2121
      %v2123 = vsel %vm2086, %v2078, -inf
      %v2124 = vsel %vm2086, %v2080, -inf
      %v2125 = vmax.f32 %v2123, %v2124
      %v2126 = vsel %vm2086, %v2079, -inf
      %v2127 = vsel %vm2086, %v2081, -inf
      %v2128 = vmax.f32 %v2126, %v2127
      %v2129 = vsel %vm2086, %v2082, -inf
      %v2130 = vsel %vm2086, %v2084, -inf
      %v2131 = vmax.f32 %v2129, %v2130
      %v2132 = vsel %vm2086, %v2083, -inf
      %v2133 = vsel %vm2086, %v2085, -inf
      %v2134 = vmax.f32 %v2132, %v2133
      %2135 = vst.msk [vmem:[#allocation2] sm:$0xff] %vm2086, %v2089
      %2136 = vst.msk [vmem:[#allocation2 + $0x8] sm:$0xff] %vm2086, %v2092
      %2137 = vst.msk [vmem:[#allocation2 + $0x10] sm:$0xff] %vm2086, %v2095
      %2138 = vst.msk [vmem:[#allocation2 + $0x18] sm:$0xff] %vm2086, %v2098
      %2139 = vst.msk [vmem:[#allocation2 + $0x20] sm:$0xff] %vm2086, %v2101
      %2140 = vst.msk [vmem:[#allocation2 + $0x28] sm:$0xff] %vm2086, %v2104
      %2141 = vst.msk [vmem:[#allocation2 + $0x30] sm:$0xff] %vm2086, %v2107
      %2142 = vst.msk [vmem:[#allocation2 + $0x38] sm:$0xff] %vm2086, %v2110
      %2143 = vst.msk [vmem:[#allocation2 + $0x40] sm:$0xff] %vm2086, %v2113
      %2144 = vst.msk [vmem:[#allocation2 + $0x48] sm:$0xff] %vm2086, %v2116
      %2145 = vst.msk [vmem:[#allocation2 + $0x50] sm:$0xff] %vm2086, %v2119
      %2146 = vst.msk [vmem:[#allocation2 + $0x58] sm:$0xff] %vm2086, %v2122
      %2147 = vst.msk [vmem:[#allocation2 + $0x60] sm:$0xff] %vm2086, %v2125
      %2148 = vst.msk [vmem:[#allocation2 + $0x68] sm:$0xff] %vm2086, %v2128
      %2149 = vst.msk [vmem:[#allocation2 + $0x70] sm:$0xff] %vm2086, %v2131
      %2150 = vst.msk [vmem:[#allocation2 + $0x78] sm:$0xff] %vm2086, %v2134
      %v2151 = vld [vmem:[#allocation2] ss:$2 sm:$0xff]
      %s2152 = scalar_lea.vmem [#allocation2], 16
      %v2153 = vld [vmem:[%s2152] ss:$2 sm:$0xff]
      %s2154 = scalar_lea.vmem [#allocation2], 32
      %v2155 = vld [vmem:[%s2154] ss:$2 sm:$0xff]
      %s2156 = scalar_lea.vmem [#allocation2], 48
      %v2157 = vld [vmem:[%s2156] ss:$2 sm:$0xff]
      %s2158 = scalar_lea.vmem [#allocation2], 64
      %v2159 = vld [vmem:[%s2158] ss:$2 sm:$0xff]
      %s2160 = scalar_lea.vmem [#allocation2], 80
      %v2161 = vld [vmem:[%s2160] ss:$2 sm:$0xff]
      %s2162 = scalar_lea.vmem [#allocation2], 96
      %v2163 = vld [vmem:[%s2162] ss:$2 sm:$0xff]
      %s2164 = scalar_lea.vmem [#allocation2], 112
      %v2165 = vld [vmem:[%s2164] ss:$2 sm:$0xff]
      %s2166 = scalar_lea.vmem [#allocation2], 1
      %v2167 = vld [vmem:[%s2166] ss:$2 sm:$0xff]
      %s2168 = scalar_lea.vmem [#allocation2], 17
      %v2169 = vld [vmem:[%s2168] ss:$2 sm:$0xff]
      %s2170 = scalar_lea.vmem [#allocation2], 33
      %v2171 = vld [vmem:[%s2170] ss:$2 sm:$0xff]
      %s2172 = scalar_lea.vmem [#allocation2], 49
      %v2173 = vld [vmem:[%s2172] ss:$2 sm:$0xff]
      %s2174 = scalar_lea.vmem [#allocation2], 65
      %v2175 = vld [vmem:[%s2174] ss:$2 sm:$0xff]
      %s2176 = scalar_lea.vmem [#allocation2], 81
      %v2177 = vld [vmem:[%s2176] ss:$2 sm:$0xff]
      %s2178 = scalar_lea.vmem [#allocation2], 97
      %v2179 = vld [vmem:[%s2178] ss:$2 sm:$0xff]
      %s2180 = scalar_lea.vmem [#allocation2], 113
      %v2181 = vld [vmem:[%s2180] ss:$2 sm:$0xff]
      %v2182 = vmax.f32 %v2151, %v2167
      %v2183 = vmax.f32 %v2153, %v2169
      %v2184 = vmax.f32 %v2155, %v2171
      %v2185 = vmax.f32 %v2157, %v2173
      %v2186 = vmax.f32 %v2159, %v2175
      %v2187 = vmax.f32 %v2161, %v2177
      %v2188 = vmax.f32 %v2163, %v2179
      %v2189 = vmax.f32 %v2165, %v2181
      %2190 = vst.msk [vmem:[#allocation4] sm:$0xff] %vm2086, 0.0
      %vm2191 = vcmask 58368
      %2192 = vst.msk [vmem:[#allocation4 + $0x8] sm:$0x3] %vm2191, 0.0
      %2193 = vst.msk [vmem:[#allocation4 + $0x10] sm:$0xff] %vm2086, 0.0
      %2194 = vst.msk [vmem:[#allocation4 + $0x18] sm:$0x3] %vm2191, 0.0
      %2195 = vst.msk [vmem:[#allocation4 + $0x20] sm:$0xff] %vm2086, 0.0
      %2196 = vst.msk [vmem:[#allocation4 + $0x28] sm:$0x3] %vm2191, 0.0
      %2197 = vst.msk [vmem:[#allocation4 + $0x30] sm:$0xff] %vm2086, 0.0
      %2198 = vst.msk [vmem:[#allocation4 + $0x38] sm:$0x3] %vm2191, 0.0
      %2199 = vst.msk [vmem:[#allocation4 + $0x40] sm:$0xff] %vm2086, 0.0
      %2200 = vst.msk [vmem:[#allocation4 + $0x48] sm:$0x3] %vm2191, 0.0
      %2201 = vst.msk [vmem:[#allocation4 + $0x50] sm:$0xff] %vm2086, 0.0
      %2202 = vst.msk [vmem:[#allocation4 + $0x58] sm:$0x3] %vm2191, 0.0
      %2203 = vst.msk [vmem:[#allocation4 + $0x60] sm:$0xff] %vm2086, 0.0
      %2204 = vst.msk [vmem:[#allocation4 + $0x68] sm:$0x3] %vm2191, 0.0
      %2205 = vst.msk [vmem:[#allocation4 + $0x70] sm:$0xff] %vm2086, 0.0
      %2206 = vst.msk [vmem:[#allocation4 + $0x78] sm:$0x3] %vm2191, 0.0
      %2207 = vst.msk [vmem:[#allocation4 + $0x80] sm:$0xff] %vm2086, 0.0
      %2208 = vst.msk [vmem:[#allocation4 + $0x88] sm:$0x3] %vm2191, 0.0
      %2209 = vst.msk [vmem:[#allocation4 + $0x90] sm:$0xff] %vm2086, 0.0
      %2210 = vst.msk [vmem:[#allocation4 + $0x98] sm:$0x3] %vm2191, 0.0
      %s2211 = scalar_lea.vmem [#allocation4], 16
      %2212 = vst.msk [vmem:[%s2211 + $0x1] sm:$0xff] %vm2086, %v2182
      %2213 = vst.msk [vmem:[%s2211 + $0x11] sm:$0xff] %vm2086, %v2183
      %2214 = vst.msk [vmem:[%s2211 + $0x21] sm:$0xff] %vm2086, %v2184
      %2215 = vst.msk [vmem:[%s2211 + $0x31] sm:$0xff] %vm2086, %v2185
      %2216 = vst.msk [vmem:[%s2211 + $0x41] sm:$0xff] %vm2086, %v2186
      %2217 = vst.msk [vmem:[%s2211 + $0x51] sm:$0xff] %vm2086, %v2187
      %2218 = vst.msk [vmem:[%s2211 + $0x61] sm:$0xff] %vm2086, %v2188
      %2219 = vst.msk [vmem:[%s2211 + $0x71] sm:$0xff] %vm2086, %v2189
      %v2220 = vld [vmem:[#allocation4] sm:$0xff]
      %v2221 = vld [vmem:[#allocation4 + $0x8] sm:$0x3]
      %v2222 = vld [vmem:[#allocation4 + $0x10] sm:$0xff]
      %v2223 = vld [vmem:[#allocation4 + $0x18] sm:$0x3]
      %v2224 = vld [vmem:[#allocation4 + $0x20] sm:$0xff]
      %v2225 = vld [vmem:[#allocation4 + $0x28] sm:$0x3]
      %v2226 = vld [vmem:[#allocation4 + $0x30] sm:$0xff]
      %v2227 = vld [vmem:[#allocation4 + $0x38] sm:$0x3]
      %v2228 = vld [vmem:[#allocation4 + $0x40] sm:$0xff]
      %v2229 = vld [vmem:[#allocation4 + $0x48] sm:$0x3]
      %v2230 = vld [vmem:[#allocation4 + $0x50] sm:$0xff]
      %v2231 = vld [vmem:[#allocation4 + $0x58] sm:$0x3]
      %v2232 = vld [vmem:[#allocation4 + $0x60] sm:$0xff]
      %v2233 = vld [vmem:[#allocation4 + $0x68] sm:$0x3]
      %v2234 = vld [vmem:[#allocation4 + $0x70] sm:$0xff]
      %v2235 = vld [vmem:[#allocation4 + $0x78] sm:$0x3]
      %v2236 = vld [vmem:[#allocation4 + $0x80] sm:$0xff]
      %v2237 = vld [vmem:[#allocation4 + $0x88] sm:$0x3]
      %v2238 = vld [vmem:[#allocation4 + $0x90] sm:$0xff]
      %v2239 = vld [vmem:[#allocation4 + $0x98] sm:$0x3]
      %v2240 = vld [vmem:[%s3] sm:$0xff]
      %v2257 = vrot.slane %v2220, 1
      %v2258 = vrot.slane %v2221, 1
      %v2259 = vsel %vm328, %v2257, %v2258
      %v2260 = vrot.slane %v2222, 1
      %v2261 = vrot.slane %v2223, 1
      %v2262 = vsel %vm328, %v2260, %v2261
      %v2263 = vrot.slane %v2224, 1
      %v2264 = vrot.slane %v2225, 1
      %v2265 = vsel %vm328, %v2263, %v2264
      %v2266 = vrot.slane %v2226, 1
      %v2267 = vrot.slane %v2227, 1
      %v2268 = vsel %vm328, %v2266, %v2267
      %v2269 = vrot.slane %v2228, 1
      %v2270 = vrot.slane %v2229, 1
      %v2271 = vsel %vm328, %v2269, %v2270
      %v2272 = vrot.slane %v2230, 1
      %v2273 = vrot.slane %v2231, 1
      %v2274 = vsel %vm328, %v2272, %v2273
      %v2275 = vrot.slane %v2232, 1
      %v2276 = vrot.slane %v2233, 1
      %v2277 = vsel %vm328, %v2275, %v2276
      %v2278 = vrot.slane %v2234, 1
      %v2279 = vrot.slane %v2235, 1
      %v2280 = vsel %vm328, %v2278, %v2279
      %s2281 = scalar_lea.vmem %s3, 8
      %v2282 = vld [vmem:[%s2281] sm:$0xff]
      %v2283 = vsel %vm2086, %v2259, 0
      %v2285 = vsel %vm2086, %v2262, 0
      %v2287 = vsel %vm2086, %v2265, 0
      %v2289 = vsel %vm2086, %v2268, 0
      %v2291 = vsel %vm2086, %v2271, 0
      %v2293 = vsel %vm2086, %v2274, 0
      %v2295 = vsel %vm2086, %v2277, 0
      %v2297 = vsel %vm2086, %v2280, 0
      %2299 = vmatpush.msra.mxu0 0.0
      %2300 = vmatpush.msra.mxu0 0.0
      %2301 = vmatpush.msra.mxu0 0.0
      %2302 = vmatpush.msra.mxu0 0.0
      %2303 = vmatpush.msra.mxu0 0.0
      %2304 = vmatpush.msra.mxu0 0.0
      %2305 = vmatpush.msra.mxu0 0.0
      %2306 = vmatpush.msra.mxu0 0.0
      %2307 = vmatpush.msra.mxu0 0.0
      %2308 = vmatpush.msra.mxu0 0.0
      %2309 = vmatpush.msra.mxu0 0.0
      %2310 = vmatpush.msra.mxu0 0.0
      %2311 = vmatpush.msra.mxu0 0.0
      %2312 = vmatpush.msra.mxu0 0.0
      %2313 = vmatpush.msra.mxu0 0.0
      %2314 = vmatpush.msra.mxu0 %v2282
      %2315 = vmatmul.f32.gmra.mxu0 %v2283
      %v2316 = vpop.f32.mrf.mxu0
      %v2317 = vadd.f32 0.0, %v2316
      %2318 = vmatmul.f32.gmra.mxu0 %v2285
      %v2319 = vpop.f32.mrf.mxu0
      %v2320 = vadd.f32 0.0, %v2319
      %2321 = vmatmul.f32.gmra.mxu0 %v2287
      %v2322 = vpop.f32.mrf.mxu0
      %v2323 = vadd.f32 0.0, %v2322
      %2324 = vmatmul.f32.gmra.mxu0 %v2289
      %v2325 = vpop.f32.mrf.mxu0
      %v2326 = vadd.f32 0.0, %v2325
      %2327 = vmatmul.f32.gmra.mxu0 %v2291
      %v2328 = vpop.f32.mrf.mxu0
      %v2329 = vadd.f32 0.0, %v2328
      %2330 = vmatmul.f32.gmra.mxu0 %v2293
      %v2331 = vpop.f32.mrf.mxu0
      %v2332 = vadd.f32 0.0, %v2331
      %2333 = vmatmul.f32.gmra.mxu0 %v2295
      %v2334 = vpop.f32.mrf.mxu0
      %v2335 = vadd.f32 0.0, %v2334
      %2336 = vmatmul.f32.gmra.mxu0 %v2297
      %v2337 = vpop.f32.mrf.mxu0
      %v2338 = vadd.f32 0.0, %v2337
      %2339 = vdwg.mxu0
      %v2340 = vsel %vm2086, %v2220, 0
      %v2342 = vsel %vm2086, %v2222, 0
      %v2344 = vsel %vm2086, %v2224, 0
      %v2346 = vsel %vm2086, %v2226, 0
      %v2348 = vsel %vm2086, %v2228, 0
      %v2350 = vsel %vm2086, %v2230, 0
      %v2352 = vsel %vm2086, %v2232, 0
      %v2354 = vsel %vm2086, %v2234, 0
      %2356 = vmatpush.msra.mxu0 0.0
      %2357 = vmatpush.msra.mxu0 0.0
      %2358 = vmatpush.msra.mxu0 0.0
      %2359 = vmatpush.msra.mxu0 0.0
      %2360 = vmatpush.msra.mxu0 0.0
      %2361 = vmatpush.msra.mxu0 0.0
      %2362 = vmatpush.msra.mxu0 0.0
      %2363 = vmatpush.msra.mxu0 0.0
      %2364 = vmatpush.msra.mxu0 0.0
      %2365 = vmatpush.msra.mxu0 0.0
      %2366 = vmatpush.msra.mxu0 0.0
      %2367 = vmatpush.msra.mxu0 0.0
      %2368 = vmatpush.msra.mxu0 0.0
      %2369 = vmatpush.msra.mxu0 0.0
      %2370 = vmatpush.msra.mxu0 0.0
      %2371 = vmatpush.msra.mxu0 %v2240
      %2372 = vmatmul.f32.gmra.mxu0 %v2340
      %v2373 = vpop.f32.mrf.mxu0
      %v2374 = vadd.f32 %v2317, %v2373
      %2375 = vmatmul.f32.gmra.mxu0 %v2342
      %v2376 = vpop.f32.mrf.mxu0
      %v2377 = vadd.f32 %v2320, %v2376
      %2378 = vmatmul.f32.gmra.mxu0 %v2344
      %v2379 = vpop.f32.mrf.mxu0
      %v2380 = vadd.f32 %v2323, %v2379
      %2381 = vmatmul.f32.gmra.mxu0 %v2346
      %v2382 = vpop.f32.mrf.mxu0
      %v2383 = vadd.f32 %v2326, %v2382
      %2384 = vmatmul.f32.gmra.mxu0 %v2348
      %v2385 = vpop.f32.mrf.mxu0
      %v2386 = vadd.f32 %v2329, %v2385
      %2387 = vmatmul.f32.gmra.mxu0 %v2350
      %v2388 = vpop.f32.mrf.mxu0
      %v2389 = vadd.f32 %v2332, %v2388
      %2390 = vmatmul.f32.gmra.mxu0 %v2352
      %v2391 = vpop.f32.mrf.mxu0
      %v2392 = vadd.f32 %v2335, %v2391
      %2393 = vmatmul.f32.gmra.mxu0 %v2354
      %v2394 = vpop.f32.mrf.mxu0
      %v2395 = vadd.f32 %v2338, %v2394
      %2396 = vdwg.mxu0
      %v2397 = vrot.slane %v2220, 2
      %v2398 = vrot.slane %v2221, 2
      %v2399 = vsel %vm773, %v2397, %v2398
      %v2400 = vrot.slane %v2222, 2
      %v2401 = vrot.slane %v2223, 2
      %v2402 = vsel %vm773, %v2400, %v2401
      %v2403 = vrot.slane %v2224, 2
      %v2404 = vrot.slane %v2225, 2
      %v2405 = vsel %vm773, %v2403, %v2404
      %v2406 = vrot.slane %v2226, 2
      %v2407 = vrot.slane %v2227, 2
      %v2408 = vsel %vm773, %v2406, %v2407
      %v2409 = vrot.slane %v2228, 2
      %v2410 = vrot.slane %v2229, 2
      %v2411 = vsel %vm773, %v2409, %v2410
      %v2412 = vrot.slane %v2230, 2
      %v2413 = vrot.slane %v2231, 2
      %v2414 = vsel %vm773, %v2412, %v2413
      %v2415 = vrot.slane %v2232, 2
      %v2416 = vrot.slane %v2233, 2
      %v2417 = vsel %vm773, %v2415, %v2416
      %v2418 = vrot.slane %v2234, 2
      %v2419 = vrot.slane %v2235, 2
      %v2420 = vsel %vm773, %v2418, %v2419
      %s2421 = scalar_lea.vmem %s3, 16
      %v2422 = vld [vmem:[%s2421] sm:$0xff]
      %v2423 = vsel %vm2086, %v2399, 0
      %v2425 = vsel %vm2086, %v2402, 0
      %v2427 = vsel %vm2086, %v2405, 0
      %v2429 = vsel %vm2086, %v2408, 0
      %v2431 = vsel %vm2086, %v2411, 0
      %v2433 = vsel %vm2086, %v2414, 0
      %v2435 = vsel %vm2086, %v2417, 0
      %v2437 = vsel %vm2086, %v2420, 0
      %2439 = vmatpush.msra.mxu0 0.0
      %2440 = vmatpush.msra.mxu0 0.0
      %2441 = vmatpush.msra.mxu0 0.0
      %2442 = vmatpush.msra.mxu0 0.0
      %2443 = vmatpush.msra.mxu0 0.0
      %2444 = vmatpush.msra.mxu0 0.0
      %2445 = vmatpush.msra.mxu0 0.0
      %2446 = vmatpush.msra.mxu0 0.0
      %2447 = vmatpush.msra.mxu0 0.0
      %2448 = vmatpush.msra.mxu0 0.0
      %2449 = vmatpush.msra.mxu0 0.0
      %2450 = vmatpush.msra.mxu0 0.0
      %2451 = vmatpush.msra.mxu0 0.0
      %2452 = vmatpush.msra.mxu0 0.0
      %2453 = vmatpush.msra.mxu0 0.0
      %2454 = vmatpush.msra.mxu0 %v2422
      %2455 = vmatmul.f32.gmra.mxu0 %v2423
      %v2456 = vpop.f32.mrf.mxu0
      %v2457 = vadd.f32 0.0, %v2456
      %2458 = vmatmul.f32.gmra.mxu0 %v2425
      %v2459 = vpop.f32.mrf.mxu0
      %v2460 = vadd.f32 0.0, %v2459
      %2461 = vmatmul.f32.gmra.mxu0 %v2427
      %v2462 = vpop.f32.mrf.mxu0
      %v2463 = vadd.f32 0.0, %v2462
      %2464 = vmatmul.f32.gmra.mxu0 %v2429
      %v2465 = vpop.f32.mrf.mxu0
      %v2466 = vadd.f32 0.0, %v2465
      %2467 = vmatmul.f32.gmra.mxu0 %v2431
      %v2468 = vpop.f32.mrf.mxu0
      %v2469 = vadd.f32 0.0, %v2468
      %2470 = vmatmul.f32.gmra.mxu0 %v2433
      %v2471 = vpop.f32.mrf.mxu0
      %v2472 = vadd.f32 0.0, %v2471
      %2473 = vmatmul.f32.gmra.mxu0 %v2435
      %v2474 = vpop.f32.mrf.mxu0
      %v2475 = vadd.f32 0.0, %v2474
      %2476 = vmatmul.f32.gmra.mxu0 %v2437
      %v2477 = vpop.f32.mrf.mxu0
      %v2478 = vadd.f32 0.0, %v2477
      %2479 = vdwg.mxu0
      %v2480 = vadd.f32 %v2374, %v2457
      %v2481 = vadd.f32 %v2377, %v2460
      %v2482 = vadd.f32 %v2380, %v2463
      %v2483 = vadd.f32 %v2383, %v2466
      %v2484 = vadd.f32 %v2386, %v2469
      %v2485 = vadd.f32 %v2389, %v2472
      %v2486 = vadd.f32 %v2392, %v2475
      %v2487 = vadd.f32 %v2395, %v2478
      %s2488 = scalar_lea.vmem %s3, 24
      %v2489 = vld [vmem:[%s2488] sm:$0xff]
      %v2491 = vsel %vm2086, %v2236, 0
      %2493 = vmatpush.msra.mxu0 0.0
      %2494 = vmatpush.msra.mxu0 0.0
      %2495 = vmatpush.msra.mxu0 0.0
      %2496 = vmatpush.msra.mxu0 0.0
      %2497 = vmatpush.msra.mxu0 0.0
      %2498 = vmatpush.msra.mxu0 0.0
      %2499 = vmatpush.msra.mxu0 0.0
      %2500 = vmatpush.msra.mxu0 0.0
      %2501 = vmatpush.msra.mxu0 0.0
      %2502 = vmatpush.msra.mxu0 0.0
      %2503 = vmatpush.msra.mxu0 0.0
      %2504 = vmatpush.msra.mxu0 0.0
      %2505 = vmatpush.msra.mxu0 0.0
      %2506 = vmatpush.msra.mxu0 0.0
      %2507 = vmatpush.msra.mxu0 0.0
      %2508 = vmatpush.msra.mxu0 %v2489
      %2509 = vmatmul.f32.gmra.mxu0 %v2342
      %v2510 = vpop.f32.mrf.mxu0
      %v2511 = vadd.f32 0.0, %v2510
      %2512 = vmatmul.f32.gmra.mxu0 %v2344
      %v2513 = vpop.f32.mrf.mxu0
      %v2514 = vadd.f32 0.0, %v2513
      %2515 = vmatmul.f32.gmra.mxu0 %v2346
      %v2516 = vpop.f32.mrf.mxu0
      %v2517 = vadd.f32 0.0, %v2516
      %2518 = vmatmul.f32.gmra.mxu0 %v2348
      %v2519 = vpop.f32.mrf.mxu0
      %v2520 = vadd.f32 0.0, %v2519
      %2521 = vmatmul.f32.gmra.mxu0 %v2350
      %v2522 = vpop.f32.mrf.mxu0
      %v2523 = vadd.f32 0.0, %v2522
      %2524 = vmatmul.f32.gmra.mxu0 %v2352
      %v2525 = vpop.f32.mrf.mxu0
      %v2526 = vadd.f32 0.0, %v2525
      %2527 = vmatmul.f32.gmra.mxu0 %v2354
      %v2528 = vpop.f32.mrf.mxu0
      %v2529 = vadd.f32 0.0, %v2528
      %2530 = vmatmul.f32.gmra.mxu0 %v2491
      %v2531 = vpop.f32.mrf.mxu0
      %v2532 = vadd.f32 0.0, %v2531
      %2533 = vdwg.mxu0
      %v2534 = vadd.f32 %v2480, %v2511
      %v2535 = vadd.f32 %v2481, %v2514
      %v2536 = vadd.f32 %v2482, %v2517
      %v2537 = vadd.f32 %v2483, %v2520
      %v2538 = vadd.f32 %v2484, %v2523
      %v2539 = vadd.f32 %v2485, %v2526
      %v2540 = vadd.f32 %v2486, %v2529
      %v2541 = vadd.f32 %v2487, %v2532
      %v2543 = vrot.slane %v2236, 1
      %v2544 = vrot.slane %v2237, 1
      %v2545 = vsel %vm328, %v2543, %v2544
      %s2546 = scalar_lea.vmem %s3, 32
      %v2547 = vld [vmem:[%s2546] sm:$0xff]
      %v2548 = vsel %vm2086, %v2545, 0
      %2550 = vmatpush.msra.mxu0 0.0
      %2551 = vmatpush.msra.mxu0 0.0
      %2552 = vmatpush.msra.mxu0 0.0
      %2553 = vmatpush.msra.mxu0 0.0
      %2554 = vmatpush.msra.mxu0 0.0
      %2555 = vmatpush.msra.mxu0 0.0
      %2556 = vmatpush.msra.mxu0 0.0
      %2557 = vmatpush.msra.mxu0 0.0
      %2558 = vmatpush.msra.mxu0 0.0
      %2559 = vmatpush.msra.mxu0 0.0
      %2560 = vmatpush.msra.mxu0 0.0
      %2561 = vmatpush.msra.mxu0 0.0
      %2562 = vmatpush.msra.mxu0 0.0
      %2563 = vmatpush.msra.mxu0 0.0
      %2564 = vmatpush.msra.mxu0 0.0
      %2565 = vmatpush.msra.mxu0 %v2547
      %2566 = vmatmul.f32.gmra.mxu0 %v2285
      %v2567 = vpop.f32.mrf.mxu0
      %v2568 = vadd.f32 0.0, %v2567
      %2569 = vmatmul.f32.gmra.mxu0 %v2287
      %v2570 = vpop.f32.mrf.mxu0
      %v2571 = vadd.f32 0.0, %v2570
      %2572 = vmatmul.f32.gmra.mxu0 %v2289
      %v2573 = vpop.f32.mrf.mxu0
      %v2574 = vadd.f32 0.0, %v2573
      %2575 = vmatmul.f32.gmra.mxu0 %v2291
      %v2576 = vpop.f32.mrf.mxu0
      %v2577 = vadd.f32 0.0, %v2576
      %2578 = vmatmul.f32.gmra.mxu0 %v2293
      %v2579 = vpop.f32.mrf.mxu0
      %v2580 = vadd.f32 0.0, %v2579
      %2581 = vmatmul.f32.gmra.mxu0 %v2295
      %v2582 = vpop.f32.mrf.mxu0
      %v2583 = vadd.f32 0.0, %v2582
      %2584 = vmatmul.f32.gmra.mxu0 %v2297
      %v2585 = vpop.f32.mrf.mxu0
      %v2586 = vadd.f32 0.0, %v2585
      %2587 = vmatmul.f32.gmra.mxu0 %v2548
      %v2588 = vpop.f32.mrf.mxu0
      %v2589 = vadd.f32 0.0, %v2588
      %2590 = vdwg.mxu0
      %v2591 = vadd.f32 %v2534, %v2568
      %v2592 = vadd.f32 %v2535, %v2571
      %v2593 = vadd.f32 %v2536, %v2574
      %v2594 = vadd.f32 %v2537, %v2577
      %v2595 = vadd.f32 %v2538, %v2580
      %v2596 = vadd.f32 %v2539, %v2583
      %v2597 = vadd.f32 %v2540, %v2586
      %v2598 = vadd.f32 %v2541, %v2589
      %v2599 = vrot.slane %v2236, 2
      %v2600 = vrot.slane %v2237, 2
      %v2601 = vsel %vm773, %v2599, %v2600
      %s2602 = scalar_lea.vmem %s3, 40
      %v2603 = vld [vmem:[%s2602] sm:$0xff]
      %v2604 = vsel %vm2086, %v2601, 0
      %2606 = vmatpush.msra.mxu0 0.0
      %2607 = vmatpush.msra.mxu0 0.0
      %2608 = vmatpush.msra.mxu0 0.0
      %2609 = vmatpush.msra.mxu0 0.0
      %2610 = vmatpush.msra.mxu0 0.0
      %2611 = vmatpush.msra.mxu0 0.0
      %2612 = vmatpush.msra.mxu0 0.0
      %2613 = vmatpush.msra.mxu0 0.0
      %2614 = vmatpush.msra.mxu0 0.0
      %2615 = vmatpush.msra.mxu0 0.0
      %2616 = vmatpush.msra.mxu0 0.0
      %2617 = vmatpush.msra.mxu0 0.0
      %2618 = vmatpush.msra.mxu0 0.0
      %2619 = vmatpush.msra.mxu0 0.0
      %2620 = vmatpush.msra.mxu0 0.0
      %2621 = vmatpush.msra.mxu0 %v2603
      %2622 = vmatmul.f32.gmra.mxu0 %v2425
      %v2623 = vpop.f32.mrf.mxu0
      %v2624 = vadd.f32 0.0, %v2623
      %2625 = vmatmul.f32.gmra.mxu0 %v2427
      %v2626 = vpop.f32.mrf.mxu0
      %v2627 = vadd.f32 0.0, %v2626
      %2628 = vmatmul.f32.gmra.mxu0 %v2429
      %v2629 = vpop.f32.mrf.mxu0
      %v2630 = vadd.f32 0.0, %v2629
      %2631 = vmatmul.f32.gmra.mxu0 %v2431
      %v2632 = vpop.f32.mrf.mxu0
      %v2633 = vadd.f32 0.0, %v2632
      %2634 = vmatmul.f32.gmra.mxu0 %v2433
      %v2635 = vpop.f32.mrf.mxu0
      %v2636 = vadd.f32 0.0, %v2635
      %2637 = vmatmul.f32.gmra.mxu0 %v2435
      %v2638 = vpop.f32.mrf.mxu0
      %v2639 = vadd.f32 0.0, %v2638
      %2640 = vmatmul.f32.gmra.mxu0 %v2437
      %v2641 = vpop.f32.mrf.mxu0
      %v2642 = vadd.f32 0.0, %v2641
      %2643 = vmatmul.f32.gmra.mxu0 %v2604
      %v2644 = vpop.f32.mrf.mxu0
      %v2645 = vadd.f32 0.0, %v2644
      %2646 = vdwg.mxu0
      %v2647 = vadd.f32 %v2591, %v2624
      %v2648 = vadd.f32 %v2592, %v2627
      %v2649 = vadd.f32 %v2593, %v2630
      %v2650 = vadd.f32 %v2594, %v2633
      %v2651 = vadd.f32 %v2595, %v2636
      %v2652 = vadd.f32 %v2596, %v2639
      %v2653 = vadd.f32 %v2597, %v2642
      %v2654 = vadd.f32 %v2598, %v2645
      %s2655 = scalar_lea.vmem %s3, 48
      %v2656 = vld [vmem:[%s2655] sm:$0xff]
      %v2658 = vsel %vm2086, %v2238, 0
      %2660 = vmatpush.msra.mxu0 0.0
      %2661 = vmatpush.msra.mxu0 0.0
      %2662 = vmatpush.msra.mxu0 0.0
      %2663 = vmatpush.msra.mxu0 0.0
      %2664 = vmatpush.msra.mxu0 0.0
      %2665 = vmatpush.msra.mxu0 0.0
      %2666 = vmatpush.msra.mxu0 0.0
      %2667 = vmatpush.msra.mxu0 0.0
      %2668 = vmatpush.msra.mxu0 0.0
      %2669 = vmatpush.msra.mxu0 0.0
      %2670 = vmatpush.msra.mxu0 0.0
      %2671 = vmatpush.msra.mxu0 0.0
      %2672 = vmatpush.msra.mxu0 0.0
      %2673 = vmatpush.msra.mxu0 0.0
      %2674 = vmatpush.msra.mxu0 0.0
      %2675 = vmatpush.msra.mxu0 %v2656
      %2676 = vmatmul.f32.gmra.mxu0 %v2344
      %v2677 = vpop.f32.mrf.mxu0
      %v2678 = vadd.f32 0.0, %v2677
      %2679 = vmatmul.f32.gmra.mxu0 %v2346
      %v2680 = vpop.f32.mrf.mxu0
      %v2681 = vadd.f32 0.0, %v2680
      %2682 = vmatmul.f32.gmra.mxu0 %v2348
      %v2683 = vpop.f32.mrf.mxu0
      %v2684 = vadd.f32 0.0, %v2683
      %2685 = vmatmul.f32.gmra.mxu0 %v2350
      %v2686 = vpop.f32.mrf.mxu0
      %v2687 = vadd.f32 0.0, %v2686
      %2688 = vmatmul.f32.gmra.mxu0 %v2352
      %v2689 = vpop.f32.mrf.mxu0
      %v2690 = vadd.f32 0.0, %v2689
      %2691 = vmatmul.f32.gmra.mxu0 %v2354
      %v2692 = vpop.f32.mrf.mxu0
      %v2693 = vadd.f32 0.0, %v2692
      %2694 = vmatmul.f32.gmra.mxu0 %v2491
      %v2695 = vpop.f32.mrf.mxu0
      %v2696 = vadd.f32 0.0, %v2695
      %2697 = vmatmul.f32.gmra.mxu0 %v2658
      %v2698 = vpop.f32.mrf.mxu0
      %v2699 = vadd.f32 0.0, %v2698
      %2700 = vdwg.mxu0
      %v2701 = vadd.f32 %v2647, %v2678
      %v2702 = vadd.f32 %v2648, %v2681
      %v2703 = vadd.f32 %v2649, %v2684
      %v2704 = vadd.f32 %v2650, %v2687
      %v2705 = vadd.f32 %v2651, %v2690
      %v2706 = vadd.f32 %v2652, %v2693
      %v2707 = vadd.f32 %v2653, %v2696
      %v2708 = vadd.f32 %v2654, %v2699
      %v2710 = vrot.slane %v2238, 1
      %v2711 = vrot.slane %v2239, 1
      %v2712 = vsel %vm328, %v2710, %v2711
      %s2713 = scalar_lea.vmem %s3, 56
      %v2714 = vld [vmem:[%s2713] sm:$0xff]
      %v2715 = vsel %vm2086, %v2712, 0
      %2717 = vmatpush.msra.mxu0 0.0
      %2718 = vmatpush.msra.mxu0 0.0
      %2719 = vmatpush.msra.mxu0 0.0
      %2720 = vmatpush.msra.mxu0 0.0
      %2721 = vmatpush.msra.mxu0 0.0
      %2722 = vmatpush.msra.mxu0 0.0
      %2723 = vmatpush.msra.mxu0 0.0
      %2724 = vmatpush.msra.mxu0 0.0
      %2725 = vmatpush.msra.mxu0 0.0
      %2726 = vmatpush.msra.mxu0 0.0
      %2727 = vmatpush.msra.mxu0 0.0
      %2728 = vmatpush.msra.mxu0 0.0
      %2729 = vmatpush.msra.mxu0 0.0
      %2730 = vmatpush.msra.mxu0 0.0
      %2731 = vmatpush.msra.mxu0 0.0
      %2732 = vmatpush.msra.mxu0 %v2714
      %2733 = vmatmul.f32.gmra.mxu0 %v2287
      %v2734 = vpop.f32.mrf.mxu0
      %v2735 = vadd.f32 0.0, %v2734
      %2736 = vmatmul.f32.gmra.mxu0 %v2289
      %v2737 = vpop.f32.mrf.mxu0
      %v2738 = vadd.f32 0.0, %v2737
      %2739 = vmatmul.f32.gmra.mxu0 %v2291
      %v2740 = vpop.f32.mrf.mxu0
      %v2741 = vadd.f32 0.0, %v2740
      %2742 = vmatmul.f32.gmra.mxu0 %v2293
      %v2743 = vpop.f32.mrf.mxu0
      %v2744 = vadd.f32 0.0, %v2743
      %2745 = vmatmul.f32.gmra.mxu0 %v2295
      %v2746 = vpop.f32.mrf.mxu0
      %v2747 = vadd.f32 0.0, %v2746
      %2748 = vmatmul.f32.gmra.mxu0 %v2297
      %v2749 = vpop.f32.mrf.mxu0
      %v2750 = vadd.f32 0.0, %v2749
      %2751 = vmatmul.f32.gmra.mxu0 %v2548
      %v2752 = vpop.f32.mrf.mxu0
      %v2753 = vadd.f32 0.0, %v2752
      %2754 = vmatmul.f32.gmra.mxu0 %v2715
      %v2755 = vpop.f32.mrf.mxu0
      %v2756 = vadd.f32 0.0, %v2755
      %2757 = vdwg.mxu0
      %v2758 = vadd.f32 %v2701, %v2735
      %v2759 = vadd.f32 %v2702, %v2738
      %v2760 = vadd.f32 %v2703, %v2741
      %v2761 = vadd.f32 %v2704, %v2744
      %v2762 = vadd.f32 %v2705, %v2747
      %v2763 = vadd.f32 %v2706, %v2750
      %v2764 = vadd.f32 %v2707, %v2753
      %v2765 = vadd.f32 %v2708, %v2756
      %v2766 = vrot.slane %v2238, 2
      %v2767 = vrot.slane %v2239, 2
      %v2768 = vsel %vm773, %v2766, %v2767
      %s2769 = scalar_lea.vmem %s3, 64
      %v2770 = vld [vmem:[%s2769] sm:$0xff]
      %v2771 = vsel %vm2086, %v2768, 0
      %2773 = vmatpush.msra.mxu0 0.0
      %2774 = vmatpush.msra.mxu0 0.0
      %2775 = vmatpush.msra.mxu0 0.0
      %2776 = vmatpush.msra.mxu0 0.0
      %2777 = vmatpush.msra.mxu0 0.0
      %2778 = vmatpush.msra.mxu0 0.0
      %2779 = vmatpush.msra.mxu0 0.0
      %2780 = vmatpush.msra.mxu0 0.0
      %2781 = vmatpush.msra.mxu0 0.0
      %2782 = vmatpush.msra.mxu0 0.0
      %2783 = vmatpush.msra.mxu0 0.0
      %2784 = vmatpush.msra.mxu0 0.0
      %2785 = vmatpush.msra.mxu0 0.0
      %2786 = vmatpush.msra.mxu0 0.0
      %2787 = vmatpush.msra.mxu0 0.0
      %2788 = vmatpush.msra.mxu0 %v2770
      %2789 = vmatmul.f32.gmra.mxu0 %v2427
      %v2790 = vpop.f32.mrf.mxu0
      %v2791 = vadd.f32 0.0, %v2790
      %2792 = vmatmul.f32.gmra.mxu0 %v2429
      %v2793 = vpop.f32.mrf.mxu0
      %v2794 = vadd.f32 0.0, %v2793
      %2795 = vmatmul.f32.gmra.mxu0 %v2431
      %v2796 = vpop.f32.mrf.mxu0
      %v2797 = vadd.f32 0.0, %v2796
      %2798 = vmatmul.f32.gmra.mxu0 %v2433
      %v2799 = vpop.f32.mrf.mxu0
      %v2800 = vadd.f32 0.0, %v2799
      %2801 = vmatmul.f32.gmra.mxu0 %v2435
      %v2802 = vpop.f32.mrf.mxu0
      %v2803 = vadd.f32 0.0, %v2802
      %2804 = vmatmul.f32.gmra.mxu0 %v2437
      %v2805 = vpop.f32.mrf.mxu0
      %v2806 = vadd.f32 0.0, %v2805
      %2807 = vmatmul.f32.gmra.mxu0 %v2604
      %v2808 = vpop.f32.mrf.mxu0
      %v2809 = vadd.f32 0.0, %v2808
      %2810 = vmatmul.f32.gmra.mxu0 %v2771
      %v2811 = vpop.f32.mrf.mxu0
      %v2812 = vadd.f32 0.0, %v2811
      %2813 = vdwg.mxu0
      %v2814 = vadd.f32 %v2758, %v2791
      %v2815 = vadd.f32 %v2759, %v2794
      %v2816 = vadd.f32 %v2760, %v2797
      %v2817 = vadd.f32 %v2761, %v2800
      %v2818 = vadd.f32 %v2762, %v2803
      %v2819 = vadd.f32 %v2763, %v2806
      %v2820 = vadd.f32 %v2764, %v2809
      %v2821 = vadd.f32 %v2765, %v2812
      %v2822 = vld [vmem:[%s4] sm:$0x1]
      %v2824 = vperm.slane %v2822, 0
      %v2826 = vadd.f32 %v2814, %v2824
      %v2827 = vadd.f32 %v2815, %v2824
      %v2828 = vadd.f32 %v2816, %v2824
      %v2829 = vadd.f32 %v2817, %v2824
      %v2830 = vadd.f32 %v2818, %v2824
      %v2831 = vadd.f32 %v2819, %v2824
      %v2832 = vadd.f32 %v2820, %v2824
      %v2833 = vadd.f32 %v2821, %v2824
      %v2834 = vmax.f32 %v2826, 0.0
      %v2835 = vmax.f32 %v2827, 0.0
      %v2836 = vmax.f32 %v2828, 0.0
      %v2837 = vmax.f32 %v2829, 0.0
      %v2838 = vmax.f32 %v2830, 0.0
      %v2839 = vmax.f32 %v2831, 0.0
      %v2840 = vmax.f32 %v2832, 0.0
      %v2841 = vmax.f32 %v2833, 0.0
      %vm2842 = vcmask 130048
      %v2843 = vsel %vm2842, %v2834, -inf
      %v2844 = vsel %vm2842, %v2835, -inf
      %v2845 = vmax.f32 %v2843, %v2844
      %v2846 = vsel %vm2842, %v2836, -inf
      %v2847 = vsel %vm2842, %v2837, -inf
      %v2848 = vmax.f32 %v2846, %v2847
      %v2849 = vsel %vm2842, %v2838, -inf
      %v2850 = vsel %vm2842, %v2839, -inf
      %v2851 = vmax.f32 %v2849, %v2850
      %v2852 = vsel %vm2842, %v2840, -inf
      %v2853 = vsel %vm2842, %v2841, -inf
      %v2854 = vmax.f32 %v2852, %v2853
      %2855 = vst.msk [vmem:[#allocation3] sm:$0xff] %vm2842, %v2845
      %2856 = vst.msk [vmem:[#allocation3 + $0x8] sm:$0xff] %vm2842, %v2848
      %2857 = vst.msk [vmem:[#allocation3 + $0x10] sm:$0xff] %vm2842, %v2851
      %2858 = vst.msk [vmem:[#allocation3 + $0x18] sm:$0xff] %vm2842, %v2854
      %v2859 = vld [vmem:[#allocation3] ss:$2 sm:$0xff]
      %s2860 = scalar_lea.vmem [#allocation3], 16
      %v2861 = vld [vmem:[%s2860] ss:$2 sm:$0xff]
      %s2862 = scalar_lea.vmem [#allocation3], 1
      %v2863 = vld [vmem:[%s2862] ss:$2 sm:$0xff]
      %s2864 = scalar_lea.vmem [#allocation3], 17
      %v2865 = vld [vmem:[%s2864] ss:$2 sm:$0xff]
      %v2866 = vmax.f32 %v2859, %v2863
      %v2867 = vmax.f32 %v2861, %v2865
      %2868 = vst.msk [vmem:[%s224] sm:$0xff] %vm2842, %v2866
      %2869 = vst.msk [vmem:[%s224 + $0x8] sm:$0xff] %vm2842, %v2867
      %p2870 = scmp.lt.s32.totalorder %s16, 1
      %s2871 = scalar_select %p2870, %s16, 1
      %s2872 = smul.addr %s2871, 2
      %s2873 = smul.addr %s2872, 8
      %s2874 = scalar_lea.vmem %s5, %s2873
      // Predicated region
      $region41: #{cnn_to_rnn_forward.3} parent=39 // pred_check
        %p2875 = pneg %p144
      $region42: #{cnn_to_rnn_forward.3} parent=39 // pred_check_branch
        %2877 = sbr.rel (%p2875) target = $region44
      $region43: #{cnn_to_rnn_forward.3} parent=39 // pred_region
        _
      $region44: #{cnn_to_rnn_forward.3} parent=39 // pred_fallthru
        _
    $region40: #{cnn_to_rnn_forward.3} parent=5 // pred_fallthru
      _
    %p2878 = scmp.le.s32.totalorder 2, %s11
    // Predicated region
    $region45: #{cnn_to_rnn_forward.3} parent=5 // pred_check
      %p2879 = pneg %p2878
    $region46: #{cnn_to_rnn_forward.3} parent=5 // pred_check_branch
      %2881 = sbr.rel (%p2879) target = $region48
    $region47: #{cnn_to_rnn_forward.3} parent=5 // pred_region
      %s2882 = ssub.s32 %s11, 2
      // Predicated region
      $region49: #{cnn_to_rnn_forward.3} parent=47 // pred_check
        %p2883 = pneg %p150
      $region50: #{cnn_to_rnn_forward.3} parent=47 // pred_check_branch
        %2885 = sbr.rel (%p2883) target = $region52
      $region51: #{cnn_to_rnn_forward.3} parent=47 // pred_region
        %p2886 = scmp.lt.s32.totalorder %s17, 1
        %s2887 = scalar_select %p2886, %s17, 1
        %s2888 = smul.addr %s2887, 2
        %s2889 = smul.addr %s2888, 8
        %s2890 = scalar_lea.vmem %s5, %s2889
      $region52: #{cnn_to_rnn_forward.3} parent=47 // pred_fallthru
        _
    $region48: #{cnn_to_rnn_forward.3} parent=5 // pred_fallthru
      _
  $region6: #{cnn_to_rnn_forward.3} parent=0 // loop_footer
    %s15 = sadd.s32 1, %s11
  $region7: #{cnn_to_rnn_forward.3} parent=0 // loop_footer_branch
    %10 = sbr.rel target = $region3
  $region8: #{cnn_to_rnn_forward.3} parent=0 // loop_exit
    _

// kernel: cnn_to_rnn_forward.5
$region0: #{cnn_to_rnn_forward.5}
  #allocation0 [shape = 'u32[]', space=smem, size = 0x4, offset = 0x4, fixed_abs, tag = 'smem constant byte address 0x4 - core index']
  #allocation1 [shape = 'u32[72,128]{1,0:T(1,128)}', space=vmem, size = 0x9000, scoped, tag = 'internal scratch']
  #allocation2 [shape = 'f32[9,8,128]{2,1,0:T(8,128)}', space=vmem, size = 0x9000, scoped, tag = 'scratch operand']
  %s0 = inlined_call_operand.vmem [shape: f32[9,8,32], index: 0, kind: input, shape index: {}]
  %s1 = inlined_call_operand.vmem [shape: bf16[32,512], index: 1, kind: input, shape index: {}]
  %s2 = inlined_call_operand.vmem [shape: f32[1,512], index: 2, kind: input, shape index: {}]
  %s3 = inlined_call_operand.vmem [shape: bf16[128,512], index: 3, kind: input, shape index: {}]
  %s4 = inlined_call_operand.vmem [shape: bf16[128,512], index: 4, kind: input, shape index: {}]
  %s5 = inlined_call_operand.vmem [shape: f32[1,512], index: 5, kind: input, shape index: {}]
  %s6 = inlined_call_operand.vmem [shape: bf16[128,512], index: 6, kind: input, shape index: {}]
  %s7 = inlined_call_operand.vmem [shape: bf16[128,128], index: 7, kind: input, shape index: {}]
  %s8 = inlined_call_operand.vmem [shape: f32[1,128], index: 8, kind: input, shape index: {}]
  %s9 = inlined_call_operand.vmem [shape: f32[9,8,128], index: 9, kind: output, shape index: {}]
  %s10 = sld [smem:[#allocation0]]
  $region46: #{cnn_to_rnn_forward.5} parent=0
    _
  %s12 = ssub.s32 1, %s10
  %s13 = scalar_select 0, %s12, %s10
  // Predicated region
  $region2: #{cnn_to_rnn_forward.5} parent=0 // pred_check
    _
  $region3: #{cnn_to_rnn_forward.5} parent=0 // pred_check_branch
    %15 = sbr.rel (0) target = $region5
  $region4: #{cnn_to_rnn_forward.5} parent=0 // pred_region
    _
  $region5: #{cnn_to_rnn_forward.5} parent=0 // pred_fallthru
    _
  // Predicated region
  $region6: #{cnn_to_rnn_forward.5} parent=0 // pred_check
    _
  $region7: #{cnn_to_rnn_forward.5} parent=0 // pred_check_branch
    %17 = sbr.rel (0) target = $region9
  $region8: #{cnn_to_rnn_forward.5} parent=0 // pred_region
    _
  $region9: #{cnn_to_rnn_forward.5} parent=0 // pred_fallthru
    _
  // Predicated region
  $region10: #{cnn_to_rnn_forward.5} parent=0 // pred_check
    _
  $region11: #{cnn_to_rnn_forward.5} parent=0 // pred_check_branch
    %19 = sbr.rel (0) target = $region13
  $region12: #{cnn_to_rnn_forward.5} parent=0 // pred_region
    _
  $region13: #{cnn_to_rnn_forward.5} parent=0 // pred_fallthru
    _
  // Predicated region
  $region14: #{cnn_to_rnn_forward.5} parent=0 // pred_check
    _
  $region15: #{cnn_to_rnn_forward.5} parent=0 // pred_check_branch
    %21 = sbr.rel (0) target = $region17
  $region16: #{cnn_to_rnn_forward.5} parent=0 // pred_region
    _
  $region17: #{cnn_to_rnn_forward.5} parent=0 // pred_fallthru
    _
  // Predicated region
  $region18: #{cnn_to_rnn_forward.5} parent=0 // pred_check
    _
  $region19: #{cnn_to_rnn_forward.5} parent=0 // pred_check_branch
    %23 = sbr.rel (0) target = $region21
  $region20: #{cnn_to_rnn_forward.5} parent=0 // pred_region
    _
  $region21: #{cnn_to_rnn_forward.5} parent=0 // pred_fallthru
    _
  // Predicated region
  $region22: #{cnn_to_rnn_forward.5} parent=0 // pred_check
    _
  $region23: #{cnn_to_rnn_forward.5} parent=0 // pred_check_branch
    %25 = sbr.rel (0) target = $region25
  $region24: #{cnn_to_rnn_forward.5} parent=0 // pred_region
    _
  $region25: #{cnn_to_rnn_forward.5} parent=0 // pred_fallthru
    _
  // Predicated region
  $region26: #{cnn_to_rnn_forward.5} parent=0 // pred_check
    _
  $region27: #{cnn_to_rnn_forward.5} parent=0 // pred_check_branch
    %27 = sbr.rel (0) target = $region29
  $region28: #{cnn_to_rnn_forward.5} parent=0 // pred_region
    _
  $region29: #{cnn_to_rnn_forward.5} parent=0 // pred_fallthru
    _
  // Predicated region
  $region30: #{cnn_to_rnn_forward.5} parent=0 // pred_check
    _
  $region31: #{cnn_to_rnn_forward.5} parent=0 // pred_check_branch
    %29 = sbr.rel (0) target = $region33
  $region32: #{cnn_to_rnn_forward.5} parent=0 // pred_region
    _
  $region33: #{cnn_to_rnn_forward.5} parent=0 // pred_fallthru
    _
  // Predicated region
  $region34: #{cnn_to_rnn_forward.5} parent=0 // pred_check
    _
  $region35: #{cnn_to_rnn_forward.5} parent=0 // pred_check_branch
    %31 = sbr.rel (0) target = $region37
  $region36: #{cnn_to_rnn_forward.5} parent=0 // pred_region
    _
  $region37: #{cnn_to_rnn_forward.5} parent=0 // pred_fallthru
    _
  %v33 = vld [vmem:[%s0] sm:$0xff]
  %v34 = vld [vmem:[%s0 + $0x8] sm:$0xff]
  %v35 = vld [vmem:[%s0 + $0x10] sm:$0xff]
  %v36 = vld [vmem:[%s0 + $0x18] sm:$0xff]
  %v37 = vld [vmem:[%s0 + $0x20] sm:$0xff]
  %v38 = vld [vmem:[%s0 + $0x28] sm:$0xff]
  %v39 = vld [vmem:[%s0 + $0x30] sm:$0xff]
  %v40 = vld [vmem:[%s0 + $0x38] sm:$0xff]
  %v41 = vld [vmem:[%s0 + $0x40] sm:$0xff]
  %v42 = vld [vmem:[%s1] sm:$0xff]
  %v43 = vld [vmem:[%s1 + $0x8] sm:$0xff]
  %v44 = vld [vmem:[%s1 + $0x10] sm:$0xff]
  %v45 = vld [vmem:[%s1 + $0x18] sm:$0xff]
  %v46 = vld [vmem:[%s1 + $0x20] sm:$0xff]
  %v47 = vld [vmem:[%s1 + $0x28] sm:$0xff]
  %v48 = vld [vmem:[%s1 + $0x30] sm:$0xff]
  %v49 = vld [vmem:[%s1 + $0x38] sm:$0xff]
  %v50 = vld [vmem:[%s2] sm:$0xf]
  %v51 = vld [vmem:[%s3] sm:$0xff]
  %v52 = vld [vmem:[%s3 + $0x8] sm:$0xff]
  %v53 = vld [vmem:[%s3 + $0x10] sm:$0xff]
  %v54 = vld [vmem:[%s3 + $0x18] sm:$0xff]
  %v55 = vld [vmem:[%s3 + $0x20] sm:$0xff]
  %v56 = vld [vmem:[%s3 + $0x28] sm:$0xff]
  %v57 = vld [vmem:[%s3 + $0x30] sm:$0xff]
  %v58 = vld [vmem:[%s3 + $0x38] sm:$0xff]
  %v59 = vld [vmem:[%s3 + $0x40] sm:$0xff]
  %v60 = vld [vmem:[%s3 + $0x48] sm:$0xff]
  %v61 = vld [vmem:[%s3 + $0x50] sm:$0xff]
  %v62 = vld [vmem:[%s3 + $0x58] sm:$0xff]
  %v63 = vld [vmem:[%s3 + $0x60] sm:$0xff]
  %v64 = vld [vmem:[%s3 + $0x68] sm:$0xff]
  %v65 = vld [vmem:[%s3 + $0x70] sm:$0xff]
  %v66 = vld [vmem:[%s3 + $0x78] sm:$0xff]
  %v67 = vld [vmem:[%s3 + $0x80] sm:$0xff]
  %v68 = vld [vmem:[%s3 + $0x88] sm:$0xff]
  %v69 = vld [vmem:[%s3 + $0x90] sm:$0xff]
  %v70 = vld [vmem:[%s3 + $0x98] sm:$0xff]
  %v71 = vld [vmem:[%s3 + $0xa0] sm:$0xff]
  %v72 = vld [vmem:[%s3 + $0xa8] sm:$0xff]
  %v73 = vld [vmem:[%s3 + $0xb0] sm:$0xff]
  %v74 = vld [vmem:[%s3 + $0xb8] sm:$0xff]
  %v75 = vld [vmem:[%s3 + $0xc0] sm:$0xff]
  %v76 = vld [vmem:[%s3 + $0xc8] sm:$0xff]
  %v77 = vld [vmem:[%s3 + $0xd0] sm:$0xff]
  %v78 = vld [vmem:[%s3 + $0xd8] sm:$0xff]
  %v79 = vld [vmem:[%s3 + $0xe0] sm:$0xff]
  %v80 = vld [vmem:[%s3 + $0xe8] sm:$0xff]
  %v81 = vld [vmem:[%s3 + $0xf0] sm:$0xff]
  %v82 = vld [vmem:[%s3 + $0xf8] sm:$0xff]
  %v83 = vpack.c.bf16 %v34, %v33
  %v84 = vpack.c.bf16 %v36, %v35
  %v85 = vpack.c.bf16 %v38, %v37
  %v86 = vpack.c.bf16 %v40, %v39
  %v87 = vpack.c.bf16 %v41, %v41
  %v89 = vperm.slane %v50, 0
  %v90 = vperm.slane %v50, 1
  %v91 = vperm.slane %v50, 2
  %v92 = vperm.slane %v50, 3
  %v105 = vunpack.c.l.b16 %v42
  %v106 = vunpack.c.h.b16 %v42
  %v107 = vunpack.c.l.b16 %v43
  %v108 = vunpack.c.h.b16 %v43
  %v109 = vunpack.c.l.b16 %v44
  %v110 = vunpack.c.h.b16 %v44
  %v111 = vunpack.c.l.b16 %v45
  %v112 = vunpack.c.h.b16 %v45
  %v113 = vunpack.c.l.b16 %v46
  %v114 = vunpack.c.h.b16 %v46
  %v115 = vunpack.c.l.b16 %v47
  %v116 = vunpack.c.h.b16 %v47
  %v117 = vunpack.c.l.b16 %v48
  %v118 = vunpack.c.h.b16 %v48
  %v119 = vunpack.c.l.b16 %v49
  %v120 = vunpack.c.h.b16 %v49
  %v121 = vpack.c.b16 %v109, %v105
  %v122 = vpack.c.b16 %v110, %v106
  %v123 = vpack.c.b16 %v111, %v107
  %v124 = vpack.c.b16 %v112, %v108
  %v125 = vpack.c.b16 %v117, %v113
  %v126 = vpack.c.b16 %v118, %v114
  %v127 = vpack.c.b16 %v119, %v115
  %v128 = vpack.c.b16 %v120, %v116
  %vm137 = vcmask 261120
  %v139 = vsel %vm137, %v83, 0
  %v142 = vsel %vm137, %v84, 0
  %v145 = vsel %vm137, %v85, 0
  %v148 = vsel %vm137, %v86, 0
  %v151 = vsel %vm137, %v87, 0
  %153 = vmatpush.bf16.msra.mxu0 0
  %154 = vmatpush.bf16.msra.mxu0 0
  %155 = vmatpush.bf16.msra.mxu0 0
  %156 = vmatpush.bf16.msra.mxu0 0
  %157 = vmatpush.bf16.msra.mxu0 0
  %158 = vmatpush.bf16.msra.mxu0 0
  %159 = vmatpush.bf16.msra.mxu0 %v125
  %160 = vmatpush.bf16.msra.mxu0 %v121
  %161 = vmatmul.bf16.gmra.mxu0 %v139
  %v162 = vpop.f32.mrf.mxu0
  %v163 = vadd.f32 %v89, %v162
  %v164 = vpop.f32.mrf.mxu0
  %v165 = vadd.f32 %v89, %v164
  %166 = vmatmul.bf16.gmra.mxu0 %v142
  %v167 = vpop.f32.mrf.mxu0
  %v168 = vadd.f32 %v89, %v167
  %v169 = vpop.f32.mrf.mxu0
  %v170 = vadd.f32 %v89, %v169
  %171 = vmatmul.bf16.gmra.mxu0 %v145
  %v172 = vpop.f32.mrf.mxu0
  %v173 = vadd.f32 %v89, %v172
  %v174 = vpop.f32.mrf.mxu0
  %v175 = vadd.f32 %v89, %v174
  %176 = vmatmul.bf16.gmra.mxu0 %v148
  %v177 = vpop.f32.mrf.mxu0
  %v178 = vadd.f32 %v89, %v177
  %v179 = vpop.f32.mrf.mxu0
  %v180 = vadd.f32 %v89, %v179
  %181 = vmatmul.bf16.gmra.mxu0 %v151
  %v182 = vpop.f32.mrf.mxu0
  %v183 = vadd.f32 %v89, %v182
  %v184 = vpop.f32.mrf.mxu0
  %185 = vdwg.mxu0
  %186 = vmatpush.bf16.msra.mxu0 0
  %187 = vmatpush.bf16.msra.mxu0 0
  %188 = vmatpush.bf16.msra.mxu0 0
  %189 = vmatpush.bf16.msra.mxu0 0
  %190 = vmatpush.bf16.msra.mxu0 0
  %191 = vmatpush.bf16.msra.mxu0 0
  %192 = vmatpush.bf16.msra.mxu0 %v126
  %193 = vmatpush.bf16.msra.mxu0 %v122
  %194 = vmatmul.bf16.gmra.mxu0 %v139
  %v195 = vpop.f32.mrf.mxu0
  %v196 = vadd.f32 %v90, %v195
  %v197 = vpop.f32.mrf.mxu0
  %v198 = vadd.f32 %v90, %v197
  %199 = vmatmul.bf16.gmra.mxu0 %v142
  %v200 = vpop.f32.mrf.mxu0
  %v201 = vadd.f32 %v90, %v200
  %v202 = vpop.f32.mrf.mxu0
  %v203 = vadd.f32 %v90, %v202
  %204 = vmatmul.bf16.gmra.mxu0 %v145
  %v205 = vpop.f32.mrf.mxu0
  %v206 = vadd.f32 %v90, %v205
  %v207 = vpop.f32.mrf.mxu0
  %v208 = vadd.f32 %v90, %v207
  %209 = vmatmul.bf16.gmra.mxu0 %v148
  %v210 = vpop.f32.mrf.mxu0
  %v211 = vadd.f32 %v90, %v210
  %v212 = vpop.f32.mrf.mxu0
  %v213 = vadd.f32 %v90, %v212
  %214 = vmatmul.bf16.gmra.mxu0 %v151
  %v215 = vpop.f32.mrf.mxu0
  %v216 = vadd.f32 %v90, %v215
  %v217 = vpop.f32.mrf.mxu0
  %218 = vdwg.mxu0
  %219 = vmatpush.bf16.msra.mxu0 0
  %220 = vmatpush.bf16.msra.mxu0 0
  %221 = vmatpush.bf16.msra.mxu0 0
  %222 = vmatpush.bf16.msra.mxu0 0
  %223 = vmatpush.bf16.msra.mxu0 0
  %224 = vmatpush.bf16.msra.mxu0 0
  %225 = vmatpush.bf16.msra.mxu0 %v127
  %226 = vmatpush.bf16.msra.mxu0 %v123
  %227 = vmatmul.bf16.gmra.mxu0 %v139
  %v228 = vpop.f32.mrf.mxu0
  %v229 = vadd.f32 %v91, %v228
  %v230 = vpop.f32.mrf.mxu0
  %v231 = vadd.f32 %v91, %v230
  %232 = vmatmul.bf16.gmra.mxu0 %v142
  %v233 = vpop.f32.mrf.mxu0
  %v234 = vadd.f32 %v91, %v233
  %v235 = vpop.f32.mrf.mxu0
  %v236 = vadd.f32 %v91, %v235
  %237 = vmatmul.bf16.gmra.mxu0 %v145
  %v238 = vpop.f32.mrf.mxu0
  %v239 = vadd.f32 %v91, %v238
  %v240 = vpop.f32.mrf.mxu0
  %v241 = vadd.f32 %v91, %v240
  %242 = vmatmul.bf16.gmra.mxu0 %v148
  %v243 = vpop.f32.mrf.mxu0
  %v244 = vadd.f32 %v91, %v243
  %v245 = vpop.f32.mrf.mxu0
  %v246 = vadd.f32 %v91, %v245
  %247 = vmatmul.bf16.gmra.mxu0 %v151
  %v248 = vpop.f32.mrf.mxu0
  %v249 = vadd.f32 %v91, %v248
  %v250 = vpop.f32.mrf.mxu0
  %251 = vdwg.mxu0
  %252 = vmatpush.bf16.msra.mxu0 0
  %253 = vmatpush.bf16.msra.mxu0 0
  %254 = vmatpush.bf16.msra.mxu0 0
  %255 = vmatpush.bf16.msra.mxu0 0
  %256 = vmatpush.bf16.msra.mxu0 0
  %257 = vmatpush.bf16.msra.mxu0 0
  %258 = vmatpush.bf16.msra.mxu0 %v128
  %259 = vmatpush.bf16.msra.mxu0 %v124
  %260 = vmatmul.bf16.gmra.mxu0 %v139
  %v261 = vpop.f32.mrf.mxu0
  %v262 = vadd.f32 %v92, %v261
  %v263 = vpop.f32.mrf.mxu0
  %v264 = vadd.f32 %v92, %v263
  %265 = vmatmul.bf16.gmra.mxu0 %v142
  %v266 = vpop.f32.mrf.mxu0
  %v267 = vadd.f32 %v92, %v266
  %v268 = vpop.f32.mrf.mxu0
  %v269 = vadd.f32 %v92, %v268
  %270 = vmatmul.bf16.gmra.mxu0 %v145
  %v271 = vpop.f32.mrf.mxu0
  %v272 = vadd.f32 %v92, %v271
  %v273 = vpop.f32.mrf.mxu0
  %v274 = vadd.f32 %v92, %v273
  %275 = vmatmul.bf16.gmra.mxu0 %v148
  %v276 = vpop.f32.mrf.mxu0
  %v277 = vadd.f32 %v92, %v276
  %v278 = vpop.f32.mrf.mxu0
  %v279 = vadd.f32 %v92, %v278
  %280 = vmatmul.bf16.gmra.mxu0 %v151
  %v281 = vpop.f32.mrf.mxu0
  %v282 = vadd.f32 %v92, %v281
  %v283 = vpop.f32.mrf.mxu0
  %284 = vdwg.mxu0
  %v317 = vunpack.c.l.b16 %v51
  %v318 = vunpack.c.h.b16 %v51
  %v319 = vunpack.c.l.b16 %v52
  %v320 = vunpack.c.h.b16 %v52
  %v321 = vunpack.c.l.b16 %v53
  %v322 = vunpack.c.h.b16 %v53
  %v323 = vunpack.c.l.b16 %v54
  %v324 = vunpack.c.h.b16 %v54
  %v325 = vunpack.c.l.b16 %v55
  %v326 = vunpack.c.h.b16 %v55
  %v327 = vunpack.c.l.b16 %v56
  %v328 = vunpack.c.h.b16 %v56
  %v329 = vunpack.c.l.b16 %v57
  %v330 = vunpack.c.h.b16 %v57
  %v331 = vunpack.c.l.b16 %v58
  %v332 = vunpack.c.h.b16 %v58
  %v333 = vunpack.c.l.b16 %v59
  %v334 = vunpack.c.h.b16 %v59
  %v335 = vunpack.c.l.b16 %v60
  %v336 = vunpack.c.h.b16 %v60
  %v337 = vunpack.c.l.b16 %v61
  %v338 = vunpack.c.h.b16 %v61
  %v339 = vunpack.c.l.b16 %v62
  %v340 = vunpack.c.h.b16 %v62
  %v341 = vunpack.c.l.b16 %v63
  %v342 = vunpack.c.h.b16 %v63
  %v343 = vunpack.c.l.b16 %v64
  %v344 = vunpack.c.h.b16 %v64
  %v345 = vunpack.c.l.b16 %v65
  %v346 = vunpack.c.h.b16 %v65
  %v347 = vunpack.c.l.b16 %v66
  %v348 = vunpack.c.h.b16 %v66
  %v349 = vunpack.c.l.b16 %v67
  %v350 = vunpack.c.h.b16 %v67
  %v351 = vunpack.c.l.b16 %v68
  %v352 = vunpack.c.h.b16 %v68
  %v353 = vunpack.c.l.b16 %v69
  %v354 = vunpack.c.h.b16 %v69
  %v355 = vunpack.c.l.b16 %v70
  %v356 = vunpack.c.h.b16 %v70
  %v357 = vunpack.c.l.b16 %v71
  %v358 = vunpack.c.h.b16 %v71
  %v359 = vunpack.c.l.b16 %v72
  %v360 = vunpack.c.h.b16 %v72
  %v361 = vunpack.c.l.b16 %v73
  %v362 = vunpack.c.h.b16 %v73
  %v363 = vunpack.c.l.b16 %v74
  %v364 = vunpack.c.h.b16 %v74
  %v365 = vunpack.c.l.b16 %v75
  %v366 = vunpack.c.h.b16 %v75
  %v367 = vunpack.c.l.b16 %v76
  %v368 = vunpack.c.h.b16 %v76
  %v369 = vunpack.c.l.b16 %v77
  %v370 = vunpack.c.h.b16 %v77
  %v371 = vunpack.c.l.b16 %v78
  %v372 = vunpack.c.h.b16 %v78
  %v373 = vunpack.c.l.b16 %v79
  %v374 = vunpack.c.h.b16 %v79
  %v375 = vunpack.c.l.b16 %v80
  %v376 = vunpack.c.h.b16 %v80
  %v377 = vunpack.c.l.b16 %v81
  %v378 = vunpack.c.h.b16 %v81
  %v379 = vunpack.c.l.b16 %v82
  %v380 = vunpack.c.h.b16 %v82
  %v381 = vpack.c.b16 %v321, %v317
  %v382 = vpack.c.b16 %v322, %v318
  %v383 = vpack.c.b16 %v323, %v319
  %v384 = vpack.c.b16 %v324, %v320
  %v385 = vpack.c.b16 %v329, %v325
  %v386 = vpack.c.b16 %v330, %v326
  %v387 = vpack.c.b16 %v331, %v327
  %v388 = vpack.c.b16 %v332, %v328
  %v389 = vpack.c.b16 %v337, %v333
  %v390 = vpack.c.b16 %v338, %v334
  %v391 = vpack.c.b16 %v339, %v335
  %v392 = vpack.c.b16 %v340, %v336
  %v393 = vpack.c.b16 %v345, %v341
  %v394 = vpack.c.b16 %v346, %v342
  %v395 = vpack.c.b16 %v347, %v343
  %v396 = vpack.c.b16 %v348, %v344
  %v397 = vpack.c.b16 %v353, %v349
  %v398 = vpack.c.b16 %v354, %v350
  %v399 = vpack.c.b16 %v355, %v351
  %v400 = vpack.c.b16 %v356, %v352
  %v401 = vpack.c.b16 %v361, %v357
  %v402 = vpack.c.b16 %v362, %v358
  %v403 = vpack.c.b16 %v363, %v359
  %v404 = vpack.c.b16 %v364, %v360
  %v405 = vpack.c.b16 %v369, %v365
  %v406 = vpack.c.b16 %v370, %v366
  %v407 = vpack.c.b16 %v371, %v367
  %v408 = vpack.c.b16 %v372, %v368
  %v409 = vpack.c.b16 %v377, %v373
  %v410 = vpack.c.b16 %v378, %v374
  %v411 = vpack.c.b16 %v379, %v375
  %v412 = vpack.c.b16 %v380, %v376
  %445 = vmatpush.bf16.msra.mxu0 %v409
  %446 = vmatpush.bf16.msra.mxu0 %v405
  %447 = vmatpush.bf16.msra.mxu0 %v401
  %448 = vmatpush.bf16.msra.mxu0 %v397
  %449 = vmatpush.bf16.msra.mxu0 %v393
  %450 = vmatpush.bf16.msra.mxu0 %v389
  %451 = vmatpush.bf16.msra.mxu0 %v385
  %452 = vmatpush.bf16.msra.mxu0 %v381
  %453 = vmatmul.bf16.gmra.mxu0 0
  %v454 = vpop.f32.mrf.mxu0
  %v455 = vadd.f32 0.0, %v454
  %v456 = vpop.f32.mrf.mxu0
  %457 = vdwg.mxu0
  %458 = vmatpush.bf16.msra.mxu0 %v410
  %459 = vmatpush.bf16.msra.mxu0 %v406
  %460 = vmatpush.bf16.msra.mxu0 %v402
  %461 = vmatpush.bf16.msra.mxu0 %v398
  %462 = vmatpush.bf16.msra.mxu0 %v394
  %463 = vmatpush.bf16.msra.mxu0 %v390
  %464 = vmatpush.bf16.msra.mxu0 %v386
  %465 = vmatpush.bf16.msra.mxu0 %v382
  %466 = vmatmul.bf16.gmra.mxu0 0
  %v467 = vpop.f32.mrf.mxu0
  %v468 = vadd.f32 0.0, %v467
  %v469 = vpop.f32.mrf.mxu0
  %470 = vdwg.mxu0
  %471 = vmatpush.bf16.msra.mxu0 %v411
  %472 = vmatpush.bf16.msra.mxu0 %v407
  %473 = vmatpush.bf16.msra.mxu0 %v403
  %474 = vmatpush.bf16.msra.mxu0 %v399
  %475 = vmatpush.bf16.msra.mxu0 %v395
  %476 = vmatpush.bf16.msra.mxu0 %v391
  %477 = vmatpush.bf16.msra.mxu0 %v387
  %478 = vmatpush.bf16.msra.mxu0 %v383
  %479 = vmatmul.bf16.gmra.mxu0 0
  %v480 = vpop.f32.mrf.mxu0
  %v481 = vadd.f32 0.0, %v480
  %v482 = vpop.f32.mrf.mxu0
  %483 = vdwg.mxu0
  %484 = vmatpush.bf16.msra.mxu0 %v412
  %485 = vmatpush.bf16.msra.mxu0 %v408
  %486 = vmatpush.bf16.msra.mxu0 %v404
  %487 = vmatpush.bf16.msra.mxu0 %v400
  %488 = vmatpush.bf16.msra.mxu0 %v396
  %489 = vmatpush.bf16.msra.mxu0 %v392
  %490 = vmatpush.bf16.msra.mxu0 %v388
  %491 = vmatpush.bf16.msra.mxu0 %v384
  %492 = vmatmul.bf16.gmra.mxu0 0
  %v493 = vpop.f32.mrf.mxu0
  %v494 = vadd.f32 0.0, %v493
  %v495 = vpop.f32.mrf.mxu0
  %496 = vdwg.mxu0
  %v497 = vadd.f32 %v163, %v455
  %v498 = vadd.f32 %v196, %v468
  %v499 = vadd.f32 %v229, %v481
  %v500 = vadd.f32 %v262, %v494
  %v501 = vxor.u32 %v497, 2147483648
  %v502 = vmul.f32 %v501, 1.442695
  %v503 = vpow.pop %v502
  %v504 = vadd.f32 %v503, 1.0
  %v505 = vrcp.pop %v504
  %v506 = vmul.f32 %v504, %v505
  %v507 = vsub.f32 1.0, %v506
  %v508 = vmul.f32 %v505, %v507
  %v509 = vadd.f32 %v505, %v508
  %vm510 = vweird.f32 %v504
  %vm511 = vweird.f32 %v505
  %vm512 = vmor %vm510, %vm511
  %v513 = vsel %vm512, %v505, %v509
  %v514 = vand.u32 2147483647, %v504
  %vm515 = vcmp.eq.f32.partialorder %v514, 8.507059e+37
  %v516 = vand.u32 %v504, 2147483648
  %v517 = vor.u32 1.1754944e-38, %v516
  %v518 = vsel %vm515, %v517, %v513
  %v519 = vmul.f32 1.0, %v518
  %v520 = vxor.u32 %v498, 2147483648
  %v521 = vmul.f32 %v520, 1.442695
  %v522 = vpow.pop %v521
  %v523 = vadd.f32 %v522, 1.0
  %v524 = vrcp.pop %v523
  %v525 = vmul.f32 %v523, %v524
  %v526 = vsub.f32 1.0, %v525
  %v527 = vmul.f32 %v524, %v526
  %v528 = vadd.f32 %v524, %v527
  %vm529 = vweird.f32 %v523
  %vm530 = vweird.f32 %v524
  %vm531 = vmor %vm529, %vm530
  %v532 = vsel %vm531, %v524, %v528
  %v533 = vand.u32 2147483647, %v523
  %vm534 = vcmp.eq.f32.partialorder %v533, 8.507059e+37
  %v535 = vand.u32 %v523, 2147483648
  %v536 = vor.u32 1.1754944e-38, %v535
  %v537 = vsel %vm534, %v536, %v532
  %v538 = vmul.f32 1.0, %v537
  %v539 = vtanh.pop %v499
  %v540 = vxor.u32 %v500, 2147483648
  %v541 = vmul.f32 %v540, 1.442695
  %v542 = vpow.pop %v541
  %v543 = vadd.f32 %v542, 1.0
  %v544 = vrcp.pop %v543
  %v545 = vmul.f32 %v543, %v544
  %v546 = vsub.f32 1.0, %v545
  %v547 = vmul.f32 %v544, %v546
  %v548 = vadd.f32 %v544, %v547
  %vm549 = vweird.f32 %v543
  %vm550 = vweird.f32 %v544
  %vm551 = vmor %vm549, %vm550
  %v552 = vsel %vm551, %v544, %v548
  %v553 = vand.u32 2147483647, %v543
  %vm554 = vcmp.eq.f32.partialorder %v553, 8.507059e+37
  %v555 = vand.u32 %v543, 2147483648
  %v556 = vor.u32 1.1754944e-38, %v555
  %v557 = vsel %vm554, %v556, %v552
  %v558 = vmul.f32 1.0, %v557
  %v559 = vmul.f32 %v538, 0.0
  %v560 = vmul.f32 %v519, %v539
  %v561 = vadd.f32 %v559, %v560
  %v562 = vtanh.pop %v561
  %v563 = vmul.f32 %v558, %v562
  %564 = vst [vmem:[#allocation2] sm:$0xff] %v563
  %v565 = vpack.c.bf16 %v563, %v563
  %566 = vmatpush.bf16.msra.mxu0 %v409
  %567 = vmatpush.bf16.msra.mxu0 %v405
  %568 = vmatpush.bf16.msra.mxu0 %v401
  %569 = vmatpush.bf16.msra.mxu0 %v397
  %570 = vmatpush.bf16.msra.mxu0 %v393
  %571 = vmatpush.bf16.msra.mxu0 %v389
  %572 = vmatpush.bf16.msra.mxu0 %v385
  %573 = vmatpush.bf16.msra.mxu0 %v381
  %574 = vmatmul.bf16.gmra.mxu0 %v565
  %v575 = vpop.f32.mrf.mxu0
  %v576 = vadd.f32 0.0, %v575
  %v577 = vpop.f32.mrf.mxu0
  %578 = vdwg.mxu0
  %579 = vmatpush.bf16.msra.mxu0 %v410
  %580 = vmatpush.bf16.msra.mxu0 %v406
  %581 = vmatpush.bf16.msra.mxu0 %v402
  %582 = vmatpush.bf16.msra.mxu0 %v398
  %583 = vmatpush.bf16.msra.mxu0 %v394
  %584 = vmatpush.bf16.msra.mxu0 %v390
  %585 = vmatpush.bf16.msra.mxu0 %v386
  %586 = vmatpush.bf16.msra.mxu0 %v382
  %587 = vmatmul.bf16.gmra.mxu0 %v565
  %v588 = vpop.f32.mrf.mxu0
  %v589 = vadd.f32 0.0, %v588
  %v590 = vpop.f32.mrf.mxu0
  %591 = vdwg.mxu0
  %592 = vmatpush.bf16.msra.mxu0 %v411
  %593 = vmatpush.bf16.msra.mxu0 %v407
  %594 = vmatpush.bf16.msra.mxu0 %v403
  %595 = vmatpush.bf16.msra.mxu0 %v399
  %596 = vmatpush.bf16.msra.mxu0 %v395
  %597 = vmatpush.bf16.msra.mxu0 %v391
  %598 = vmatpush.bf16.msra.mxu0 %v387
  %599 = vmatpush.bf16.msra.mxu0 %v383
  %600 = vmatmul.bf16.gmra.mxu0 %v565
  %v601 = vpop.f32.mrf.mxu0
  %v602 = vadd.f32 0.0, %v601
  %v603 = vpop.f32.mrf.mxu0
  %604 = vdwg.mxu0
  %605 = vmatpush.bf16.msra.mxu0 %v412
  %606 = vmatpush.bf16.msra.mxu0 %v408
  %607 = vmatpush.bf16.msra.mxu0 %v404
  %608 = vmatpush.bf16.msra.mxu0 %v400
  %609 = vmatpush.bf16.msra.mxu0 %v396
  %610 = vmatpush.bf16.msra.mxu0 %v392
  %611 = vmatpush.bf16.msra.mxu0 %v388
  %612 = vmatpush.bf16.msra.mxu0 %v384
  %613 = vmatmul.bf16.gmra.mxu0 %v565
  %v614 = vpop.f32.mrf.mxu0
  %v615 = vadd.f32 0.0, %v614
  %v616 = vpop.f32.mrf.mxu0
  %617 = vdwg.mxu0
  %v618 = vadd.f32 %v165, %v576
  %v619 = vadd.f32 %v198, %v589
  %v620 = vadd.f32 %v231, %v602
  %v621 = vadd.f32 %v264, %v615
  %v622 = vxor.u32 %v618, 2147483648
  %v623 = vmul.f32 %v622, 1.442695
  %v624 = vpow.pop %v623
  %v625 = vadd.f32 %v624, 1.0
  %v626 = vrcp.pop %v625
  %v627 = vmul.f32 %v625, %v626
  %v628 = vsub.f32 1.0, %v627
  %v629 = vmul.f32 %v626, %v628
  %v630 = vadd.f32 %v626, %v629
  %vm631 = vweird.f32 %v625
  %vm632 = vweird.f32 %v626
  %vm633 = vmor %vm631, %vm632
  %v634 = vsel %vm633, %v626, %v630
  %v635 = vand.u32 2147483647, %v625
  %vm636 = vcmp.eq.f32.partialorder %v635, 8.507059e+37
  %v637 = vand.u32 %v625, 2147483648
  %v638 = vor.u32 1.1754944e-38, %v637
  %v639 = vsel %vm636, %v638, %v634
  %v640 = vmul.f32 1.0, %v639
  %v641 = vxor.u32 %v619, 2147483648
  %v642 = vmul.f32 %v641, 1.442695
  %v643 = vpow.pop %v642
  %v644 = vadd.f32 %v643, 1.0
  %v645 = vrcp.pop %v644
  %v646 = vmul.f32 %v644, %v645
  %v647 = vsub.f32 1.0, %v646
  %v648 = vmul.f32 %v645, %v647
  %v649 = vadd.f32 %v645, %v648
  %vm650 = vweird.f32 %v644
  %vm651 = vweird.f32 %v645
  %vm652 = vmor %vm650, %vm651
  %v653 = vsel %vm652, %v645, %v649
  %v654 = vand.u32 2147483647, %v644
  %vm655 = vcmp.eq.f32.partialorder %v654, 8.507059e+37
  %v656 = vand.u32 %v644, 2147483648
  %v657 = vor.u32 1.1754944e-38, %v656
  %v658 = vsel %vm655, %v657, %v653
  %v659 = vmul.f32 1.0, %v658
  %v660 = vtanh.pop %v620
  %v661 = vxor.u32 %v621, 2147483648
  %v662 = vmul.f32 %v661, 1.442695
  %v663 = vpow.pop %v662
  %v664 = vadd.f32 %v663, 1.0
  %v665 = vrcp.pop %v664
  %v666 = vmul.f32 %v664, %v665
  %v667 = vsub.f32 1.0, %v666
  %v668 = vmul.f32 %v665, %v667
  %v669 = vadd.f32 %v665, %v668
  %vm670 = vweird.f32 %v664
  %vm671 = vweird.f32 %v665
  %vm672 = vmor %vm670, %vm671
  %v673 = vsel %vm672, %v665, %v669
  %v674 = vand.u32 2147483647, %v664
  %vm675 = vcmp.eq.f32.partialorder %v674, 8.507059e+37
  %v676 = vand.u32 %v664, 2147483648
  %v677 = vor.u32 1.1754944e-38, %v676
  %v678 = vsel %vm675, %v677, %v673
  %v679 = vmul.f32 1.0, %v678
  %v680 = vmul.f32 %v659, %v561
  %v681 = vmul.f32 %v640, %v660
  %v682 = vadd.f32 %v680, %v681
  %v683 = vtanh.pop %v682
  %v684 = vmul.f32 %v679, %v683
  %s685 = scalar_lea.vmem [#allocation2], 8
  %686 = vst [vmem:[%s685] sm:$0xff] %v684
  %v687 = vpack.c.bf16 %v684, %v684
  %688 = vmatpush.bf16.msra.mxu0 %v409
  %689 = vmatpush.bf16.msra.mxu0 %v405
  %690 = vmatpush.bf16.msra.mxu0 %v401
  %691 = vmatpush.bf16.msra.mxu0 %v397
  %692 = vmatpush.bf16.msra.mxu0 %v393
  %693 = vmatpush.bf16.msra.mxu0 %v389
  %694 = vmatpush.bf16.msra.mxu0 %v385
  %695 = vmatpush.bf16.msra.mxu0 %v381
  %696 = vmatmul.bf16.gmra.mxu0 %v687
  %v697 = vpop.f32.mrf.mxu0
  %v698 = vadd.f32 0.0, %v697
  %v699 = vpop.f32.mrf.mxu0
  %700 = vdwg.mxu0
  %701 = vmatpush.bf16.msra.mxu0 %v410
  %702 = vmatpush.bf16.msra.mxu0 %v406
  %703 = vmatpush.bf16.msra.mxu0 %v402
  %704 = vmatpush.bf16.msra.mxu0 %v398
  %705 = vmatpush.bf16.msra.mxu0 %v394
  %706 = vmatpush.bf16.msra.mxu0 %v390
  %707 = vmatpush.bf16.msra.mxu0 %v386
  %708 = vmatpush.bf16.msra.mxu0 %v382
  %709 = vmatmul.bf16.gmra.mxu0 %v687
  %v710 = vpop.f32.mrf.mxu0
  %v711 = vadd.f32 0.0, %v710
  %v712 = vpop.f32.mrf.mxu0
  %713 = vdwg.mxu0
  %714 = vmatpush.bf16.msra.mxu0 %v411
  %715 = vmatpush.bf16.msra.mxu0 %v407
  %716 = vmatpush.bf16.msra.mxu0 %v403
  %717 = vmatpush.bf16.msra.mxu0 %v399
  %718 = vmatpush.bf16.msra.mxu0 %v395
  %719 = vmatpush.bf16.msra.mxu0 %v391
  %720 = vmatpush.bf16.msra.mxu0 %v387
  %721 = vmatpush.bf16.msra.mxu0 %v383
  %722 = vmatmul.bf16.gmra.mxu0 %v687
  %v723 = vpop.f32.mrf.mxu0
  %v724 = vadd.f32 0.0, %v723
  %v725 = vpop.f32.mrf.mxu0
  %726 = vdwg.mxu0
  %727 = vmatpush.bf16.msra.mxu0 %v412
  %728 = vmatpush.bf16.msra.mxu0 %v408
  %729 = vmatpush.bf16.msra.mxu0 %v404
  %730 = vmatpush.bf16.msra.mxu0 %v400
  %731 = vmatpush.bf16.msra.mxu0 %v396
  %732 = vmatpush.bf16.msra.mxu0 %v392
  %733 = vmatpush.bf16.msra.mxu0 %v388
  %734 = vmatpush.bf16.msra.mxu0 %v384
  %735 = vmatmul.bf16.gmra.mxu0 %v687
  %v736 = vpop.f32.mrf.mxu0
  %v737 = vadd.f32 0.0, %v736
  %v738 = vpop.f32.mrf.mxu0
  %739 = vdwg.mxu0
  %v740 = vadd.f32 %v168, %v698
  %v741 = vadd.f32 %v201, %v711
  %v742 = vadd.f32 %v234, %v724
  %v743 = vadd.f32 %v267, %v737
  %v744 = vxor.u32 %v740, 2147483648
  %v745 = vmul.f32 %v744, 1.442695
  %v746 = vpow.pop %v745
  %v747 = vadd.f32 %v746, 1.0
  %v748 = vrcp.pop %v747
  %v749 = vmul.f32 %v747, %v748
  %v750 = vsub.f32 1.0, %v749
  %v751 = vmul.f32 %v748, %v750
  %v752 = vadd.f32 %v748, %v751
  %vm753 = vweird.f32 %v747
  %vm754 = vweird.f32 %v748
  %vm755 = vmor %vm753, %vm754
  %v756 = vsel %vm755, %v748, %v752
  %v757 = vand.u32 2147483647, %v747
  %vm758 = vcmp.eq.f32.partialorder %v757, 8.507059e+37
  %v759 = vand.u32 %v747, 2147483648
  %v760 = vor.u32 1.1754944e-38, %v759
  %v761 = vsel %vm758, %v760, %v756
  %v762 = vmul.f32 1.0, %v761
  %v763 = vxor.u32 %v741, 2147483648
  %v764 = vmul.f32 %v763, 1.442695
  %v765 = vpow.pop %v764
  %v766 = vadd.f32 %v765, 1.0
  %v767 = vrcp.pop %v766
  %v768 = vmul.f32 %v766, %v767
  %v769 = vsub.f32 1.0, %v768
  %v770 = vmul.f32 %v767, %v769
  %v771 = vadd.f32 %v767, %v770
  %vm772 = vweird.f32 %v766
  %vm773 = vweird.f32 %v767
  %vm774 = vmor %vm772, %vm773
  %v775 = vsel %vm774, %v767, %v771
  %v776 = vand.u32 2147483647, %v766
  %vm777 = vcmp.eq.f32.partialorder %v776, 8.507059e+37
  %v778 = vand.u32 %v766, 2147483648
  %v779 = vor.u32 1.1754944e-38, %v778
  %v780 = vsel %vm777, %v779, %v775
  %v781 = vmul.f32 1.0, %v780
  %v782 = vtanh.pop %v742
  %v783 = vxor.u32 %v743, 2147483648
  %v784 = vmul.f32 %v783, 1.442695
  %v785 = vpow.pop %v784
  %v786 = vadd.f32 %v785, 1.0
  %v787 = vrcp.pop %v786
  %v788 = vmul.f32 %v786, %v787
  %v789 = vsub.f32 1.0, %v788
  %v790 = vmul.f32 %v787, %v789
  %v791 = vadd.f32 %v787, %v790
  %vm792 = vweird.f32 %v786
  %vm793 = vweird.f32 %v787
  %vm794 = vmor %vm792, %vm793
  %v795 = vsel %vm794, %v787, %v791
  %v796 = vand.u32 2147483647, %v786
  %vm797 = vcmp.eq.f32.partialorder %v796, 8.507059e+37
  %v798 = vand.u32 %v786, 2147483648
  %v799 = vor.u32 1.1754944e-38, %v798
  %v800 = vsel %vm797, %v799, %v795
  %v801 = vmul.f32 1.0, %v800
  %v802 = vmul.f32 %v781, %v682
  %v803 = vmul.f32 %v762, %v782
  %v804 = vadd.f32 %v802, %v803
  %v805 = vtanh.pop %v804
  %v806 = vmul.f32 %v801, %v805
  %s807 = scalar_lea.vmem [#allocation2], 16
  %808 = vst [vmem:[%s807] sm:$0xff] %v806
  %v809 = vpack.c.bf16 %v806, %v806
  %810 = vmatpush.bf16.msra.mxu0 %v409
  %811 = vmatpush.bf16.msra.mxu0 %v405
  %812 = vmatpush.bf16.msra.mxu0 %v401
  %813 = vmatpush.bf16.msra.mxu0 %v397
  %814 = vmatpush.bf16.msra.mxu0 %v393
  %815 = vmatpush.bf16.msra.mxu0 %v389
  %816 = vmatpush.bf16.msra.mxu0 %v385
  %817 = vmatpush.bf16.msra.mxu0 %v381
  %818 = vmatmul.bf16.gmra.mxu0 %v809
  %v819 = vpop.f32.mrf.mxu0
  %v820 = vadd.f32 0.0, %v819
  %v821 = vpop.f32.mrf.mxu0
  %822 = vdwg.mxu0
  %823 = vmatpush.bf16.msra.mxu0 %v410
  %824 = vmatpush.bf16.msra.mxu0 %v406
  %825 = vmatpush.bf16.msra.mxu0 %v402
  %826 = vmatpush.bf16.msra.mxu0 %v398
  %827 = vmatpush.bf16.msra.mxu0 %v394
  %828 = vmatpush.bf16.msra.mxu0 %v390
  %829 = vmatpush.bf16.msra.mxu0 %v386
  %830 = vmatpush.bf16.msra.mxu0 %v382
  %831 = vmatmul.bf16.gmra.mxu0 %v809
  %v832 = vpop.f32.mrf.mxu0
  %v833 = vadd.f32 0.0, %v832
  %v834 = vpop.f32.mrf.mxu0
  %835 = vdwg.mxu0
  %836 = vmatpush.bf16.msra.mxu0 %v411
  %837 = vmatpush.bf16.msra.mxu0 %v407
  %838 = vmatpush.bf16.msra.mxu0 %v403
  %839 = vmatpush.bf16.msra.mxu0 %v399
  %840 = vmatpush.bf16.msra.mxu0 %v395
  %841 = vmatpush.bf16.msra.mxu0 %v391
  %842 = vmatpush.bf16.msra.mxu0 %v387
  %843 = vmatpush.bf16.msra.mxu0 %v383
  %844 = vmatmul.bf16.gmra.mxu0 %v809
  %v845 = vpop.f32.mrf.mxu0
  %v846 = vadd.f32 0.0, %v845
  %v847 = vpop.f32.mrf.mxu0
  %848 = vdwg.mxu0
  %849 = vmatpush.bf16.msra.mxu0 %v412
  %850 = vmatpush.bf16.msra.mxu0 %v408
  %851 = vmatpush.bf16.msra.mxu0 %v404
  %852 = vmatpush.bf16.msra.mxu0 %v400
  %853 = vmatpush.bf16.msra.mxu0 %v396
  %854 = vmatpush.bf16.msra.mxu0 %v392
  %855 = vmatpush.bf16.msra.mxu0 %v388
  %856 = vmatpush.bf16.msra.mxu0 %v384
  %857 = vmatmul.bf16.gmra.mxu0 %v809
  %v858 = vpop.f32.mrf.mxu0
  %v859 = vadd.f32 0.0, %v858
  %v860 = vpop.f32.mrf.mxu0
  %861 = vdwg.mxu0
  %v862 = vadd.f32 %v170, %v820
  %v863 = vadd.f32 %v203, %v833
  %v864 = vadd.f32 %v236, %v846
  %v865 = vadd.f32 %v269, %v859
  %v866 = vxor.u32 %v862, 2147483648
  %v867 = vmul.f32 %v866, 1.442695
  %v868 = vpow.pop %v867
  %v869 = vadd.f32 %v868, 1.0
  %v870 = vrcp.pop %v869
  %v871 = vmul.f32 %v869, %v870
  %v872 = vsub.f32 1.0, %v871
  %v873 = vmul.f32 %v870, %v872
  %v874 = vadd.f32 %v870, %v873
  %vm875 = vweird.f32 %v869
  %vm876 = vweird.f32 %v870
  %vm877 = vmor %vm875, %vm876
  %v878 = vsel %vm877, %v870, %v874
  %v879 = vand.u32 2147483647, %v869
  %vm880 = vcmp.eq.f32.partialorder %v879, 8.507059e+37
  %v881 = vand.u32 %v869, 2147483648
  %v882 = vor.u32 1.1754944e-38, %v881
  %v883 = vsel %vm880, %v882, %v878
  %v884 = vmul.f32 1.0, %v883
  %v885 = vxor.u32 %v863, 2147483648
  %v886 = vmul.f32 %v885, 1.442695
  %v887 = vpow.pop %v886
  %v888 = vadd.f32 %v887, 1.0
  %v889 = vrcp.pop %v888
  %v890 = vmul.f32 %v888, %v889
  %v891 = vsub.f32 1.0, %v890
  %v892 = vmul.f32 %v889, %v891
  %v893 = vadd.f32 %v889, %v892
  %vm894 = vweird.f32 %v888
  %vm895 = vweird.f32 %v889
  %vm896 = vmor %vm894, %vm895
  %v897 = vsel %vm896, %v889, %v893
  %v898 = vand.u32 2147483647, %v888
  %vm899 = vcmp.eq.f32.partialorder %v898, 8.507059e+37
  %v900 = vand.u32 %v888, 2147483648
  %v901 = vor.u32 1.1754944e-38, %v900
  %v902 = vsel %vm899, %v901, %v897
  %v903 = vmul.f32 1.0, %v902
  %v904 = vtanh.pop %v864
  %v905 = vxor.u32 %v865, 2147483648
  %v906 = vmul.f32 %v905, 1.442695
  %v907 = vpow.pop %v906
  %v908 = vadd.f32 %v907, 1.0
  %v909 = vrcp.pop %v908
  %v910 = vmul.f32 %v908, %v909
  %v911 = vsub.f32 1.0, %v910
  %v912 = vmul.f32 %v909, %v911
  %v913 = vadd.f32 %v909, %v912
  %vm914 = vweird.f32 %v908
  %vm915 = vweird.f32 %v909
  %vm916 = vmor %vm914, %vm915
  %v917 = vsel %vm916, %v909, %v913
  %v918 = vand.u32 2147483647, %v908
  %vm919 = vcmp.eq.f32.partialorder %v918, 8.507059e+37
  %v920 = vand.u32 %v908, 2147483648
  %v921 = vor.u32 1.1754944e-38, %v920
  %v922 = vsel %vm919, %v921, %v917
  %v923 = vmul.f32 1.0, %v922
  %v924 = vmul.f32 %v903, %v804
  %v925 = vmul.f32 %v884, %v904
  %v926 = vadd.f32 %v924, %v925
  %v927 = vtanh.pop %v926
  %v928 = vmul.f32 %v923, %v927
  %s929 = scalar_lea.vmem [#allocation2], 24
  %930 = vst [vmem:[%s929] sm:$0xff] %v928
  %v931 = vpack.c.bf16 %v928, %v928
  %932 = vmatpush.bf16.msra.mxu0 %v409
  %933 = vmatpush.bf16.msra.mxu0 %v405
  %934 = vmatpush.bf16.msra.mxu0 %v401
  %935 = vmatpush.bf16.msra.mxu0 %v397
  %936 = vmatpush.bf16.msra.mxu0 %v393
  %937 = vmatpush.bf16.msra.mxu0 %v389
  %938 = vmatpush.bf16.msra.mxu0 %v385
  %939 = vmatpush.bf16.msra.mxu0 %v381
  %940 = vmatmul.bf16.gmra.mxu0 %v931
  %v941 = vpop.f32.mrf.mxu0
  %v942 = vadd.f32 0.0, %v941
  %v943 = vpop.f32.mrf.mxu0
  %944 = vdwg.mxu0
  %945 = vmatpush.bf16.msra.mxu0 %v410
  %946 = vmatpush.bf16.msra.mxu0 %v406
  %947 = vmatpush.bf16.msra.mxu0 %v402
  %948 = vmatpush.bf16.msra.mxu0 %v398
  %949 = vmatpush.bf16.msra.mxu0 %v394
  %950 = vmatpush.bf16.msra.mxu0 %v390
  %951 = vmatpush.bf16.msra.mxu0 %v386
  %952 = vmatpush.bf16.msra.mxu0 %v382
  %953 = vmatmul.bf16.gmra.mxu0 %v931
  %v954 = vpop.f32.mrf.mxu0
  %v955 = vadd.f32 0.0, %v954
  %v956 = vpop.f32.mrf.mxu0
  %957 = vdwg.mxu0
  %958 = vmatpush.bf16.msra.mxu0 %v411
  %959 = vmatpush.bf16.msra.mxu0 %v407
  %960 = vmatpush.bf16.msra.mxu0 %v403
  %961 = vmatpush.bf16.msra.mxu0 %v399
  %962 = vmatpush.bf16.msra.mxu0 %v395
  %963 = vmatpush.bf16.msra.mxu0 %v391
  %964 = vmatpush.bf16.msra.mxu0 %v387
  %965 = vmatpush.bf16.msra.mxu0 %v383
  %966 = vmatmul.bf16.gmra.mxu0 %v931
  %v967 = vpop.f32.mrf.mxu0
  %v968 = vadd.f32 0.0, %v967
  %v969 = vpop.f32.mrf.mxu0
  %970 = vdwg.mxu0
  %971 = vmatpush.bf16.msra.mxu0 %v412
  %972 = vmatpush.bf16.msra.mxu0 %v408
  %973 = vmatpush.bf16.msra.mxu0 %v404
  %974 = vmatpush.bf16.msra.mxu0 %v400
  %975 = vmatpush.bf16.msra.mxu0 %v396
  %976 = vmatpush.bf16.msra.mxu0 %v392
  %977 = vmatpush.bf16.msra.mxu0 %v388
  %978 = vmatpush.bf16.msra.mxu0 %v384
  %979 = vmatmul.bf16.gmra.mxu0 %v931
  %v980 = vpop.f32.mrf.mxu0
  %v981 = vadd.f32 0.0, %v980
  %v982 = vpop.f32.mrf.mxu0
  %983 = vdwg.mxu0
  %v984 = vadd.f32 %v173, %v942
  %v985 = vadd.f32 %v206, %v955
  %v986 = vadd.f32 %v239, %v968
  %v987 = vadd.f32 %v272, %v981
  %v988 = vxor.u32 %v984, 2147483648
  %v989 = vmul.f32 %v988, 1.442695
  %v990 = vpow.pop %v989
  %v991 = vadd.f32 %v990, 1.0
  %v992 = vrcp.pop %v991
  %v993 = vmul.f32 %v991, %v992
  %v994 = vsub.f32 1.0, %v993
  %v995 = vmul.f32 %v992, %v994
  %v996 = vadd.f32 %v992, %v995
  %vm997 = vweird.f32 %v991
  %vm998 = vweird.f32 %v992
  %vm999 = vmor %vm997, %vm998
  %v1000 = vsel %vm999, %v992, %v996
  %v1001 = vand.u32 2147483647, %v991
  %vm1002 = vcmp.eq.f32.partialorder %v1001, 8.507059e+37
  %v1003 = vand.u32 %v991, 2147483648
  %v1004 = vor.u32 1.1754944e-38, %v1003
  %v1005 = vsel %vm1002, %v1004, %v1000
  %v1006 = vmul.f32 1.0, %v1005
  %v1007 = vxor.u32 %v985, 2147483648
  %v1008 = vmul.f32 %v1007, 1.442695
  %v1009 = vpow.pop %v1008
  %v1010 = vadd.f32 %v1009, 1.0
  %v1011 = vrcp.pop %v1010
  %v1012 = vmul.f32 %v1010, %v1011
  %v1013 = vsub.f32 1.0, %v1012
  %v1014 = vmul.f32 %v1011, %v1013
  %v1015 = vadd.f32 %v1011, %v1014
  %vm1016 = vweird.f32 %v1010
  %vm1017 = vweird.f32 %v1011
  %vm1018 = vmor %vm1016, %vm1017
  %v1019 = vsel %vm1018, %v1011, %v1015
  %v1020 = vand.u32 2147483647, %v1010
  %vm1021 = vcmp.eq.f32.partialorder %v1020, 8.507059e+37
  %v1022 = vand.u32 %v1010, 2147483648
  %v1023 = vor.u32 1.1754944e-38, %v1022
  %v1024 = vsel %vm1021, %v1023, %v1019
  %v1025 = vmul.f32 1.0, %v1024
  %v1026 = vtanh.pop %v986
  %v1027 = vxor.u32 %v987, 2147483648
  %v1028 = vmul.f32 %v1027, 1.442695
  %v1029 = vpow.pop %v1028
  %v1030 = vadd.f32 %v1029, 1.0
  %v1031 = vrcp.pop %v1030
  %v1032 = vmul.f32 %v1030, %v1031
  %v1033 = vsub.f32 1.0, %v1032
  %v1034 = vmul.f32 %v1031, %v1033
  %v1035 = vadd.f32 %v1031, %v1034
  %vm1036 = vweird.f32 %v1030
  %vm1037 = vweird.f32 %v1031
  %vm1038 = vmor %vm1036, %vm1037
  %v1039 = vsel %vm1038, %v1031, %v1035
  %v1040 = vand.u32 2147483647, %v1030
  %vm1041 = vcmp.eq.f32.partialorder %v1040, 8.507059e+37
  %v1042 = vand.u32 %v1030, 2147483648
  %v1043 = vor.u32 1.1754944e-38, %v1042
  %v1044 = vsel %vm1041, %v1043, %v1039
  %v1045 = vmul.f32 1.0, %v1044
  %v1046 = vmul.f32 %v1025, %v926
  %v1047 = vmul.f32 %v1006, %v1026
  %v1048 = vadd.f32 %v1046, %v1047
  %v1049 = vtanh.pop %v1048
  %v1050 = vmul.f32 %v1045, %v1049
  %s1051 = scalar_lea.vmem [#allocation2], 32
  %1052 = vst [vmem:[%s1051] sm:$0xff] %v1050
  %v1053 = vpack.c.bf16 %v1050, %v1050
  %1054 = vmatpush.bf16.msra.mxu0 %v409
  %1055 = vmatpush.bf16.msra.mxu0 %v405
  %1056 = vmatpush.bf16.msra.mxu0 %v401
  %1057 = vmatpush.bf16.msra.mxu0 %v397
  %1058 = vmatpush.bf16.msra.mxu0 %v393
  %1059 = vmatpush.bf16.msra.mxu0 %v389
  %1060 = vmatpush.bf16.msra.mxu0 %v385
  %1061 = vmatpush.bf16.msra.mxu0 %v381
  %1062 = vmatmul.bf16.gmra.mxu0 %v1053
  %v1063 = vpop.f32.mrf.mxu0
  %v1064 = vadd.f32 0.0, %v1063
  %v1065 = vpop.f32.mrf.mxu0
  %1066 = vdwg.mxu0
  %1067 = vmatpush.bf16.msra.mxu0 %v410
  %1068 = vmatpush.bf16.msra.mxu0 %v406
  %1069 = vmatpush.bf16.msra.mxu0 %v402
  %1070 = vmatpush.bf16.msra.mxu0 %v398
  %1071 = vmatpush.bf16.msra.mxu0 %v394
  %1072 = vmatpush.bf16.msra.mxu0 %v390
  %1073 = vmatpush.bf16.msra.mxu0 %v386
  %1074 = vmatpush.bf16.msra.mxu0 %v382
  %1075 = vmatmul.bf16.gmra.mxu0 %v1053
  %v1076 = vpop.f32.mrf.mxu0
  %v1077 = vadd.f32 0.0, %v1076
  %v1078 = vpop.f32.mrf.mxu0
  %1079 = vdwg.mxu0
  %1080 = vmatpush.bf16.msra.mxu0 %v411
  %1081 = vmatpush.bf16.msra.mxu0 %v407
  %1082 = vmatpush.bf16.msra.mxu0 %v403
  %1083 = vmatpush.bf16.msra.mxu0 %v399
  %1084 = vmatpush.bf16.msra.mxu0 %v395
  %1085 = vmatpush.bf16.msra.mxu0 %v391
  %1086 = vmatpush.bf16.msra.mxu0 %v387
  %1087 = vmatpush.bf16.msra.mxu0 %v383
  %1088 = vmatmul.bf16.gmra.mxu0 %v1053
  %v1089 = vpop.f32.mrf.mxu0
  %v1090 = vadd.f32 0.0, %v1089
  %v1091 = vpop.f32.mrf.mxu0
  %1092 = vdwg.mxu0
  %1093 = vmatpush.bf16.msra.mxu0 %v412
  %1094 = vmatpush.bf16.msra.mxu0 %v408
  %1095 = vmatpush.bf16.msra.mxu0 %v404
  %1096 = vmatpush.bf16.msra.mxu0 %v400
  %1097 = vmatpush.bf16.msra.mxu0 %v396
  %1098 = vmatpush.bf16.msra.mxu0 %v392
  %1099 = vmatpush.bf16.msra.mxu0 %v388
  %1100 = vmatpush.bf16.msra.mxu0 %v384
  %1101 = vmatmul.bf16.gmra.mxu0 %v1053
  %v1102 = vpop.f32.mrf.mxu0
  %v1103 = vadd.f32 0.0, %v1102
  %v1104 = vpop.f32.mrf.mxu0
  %1105 = vdwg.mxu0
  %v1106 = vadd.f32 %v175, %v1064
  %v1107 = vadd.f32 %v208, %v1077
  %v1108 = vadd.f32 %v241, %v1090
  %v1109 = vadd.f32 %v274, %v1103
  %v1110 = vxor.u32 %v1106, 2147483648
  %v1111 = vmul.f32 %v1110, 1.442695
  %v1112 = vpow.pop %v1111
  %v1113 = vadd.f32 %v1112, 1.0
  %v1114 = vrcp.pop %v1113
  %v1115 = vmul.f32 %v1113, %v1114
  %v1116 = vsub.f32 1.0, %v1115
  %v1117 = vmul.f32 %v1114, %v1116
  %v1118 = vadd.f32 %v1114, %v1117
  %vm1119 = vweird.f32 %v1113
  %vm1120 = vweird.f32 %v1114
  %vm1121 = vmor %vm1119, %vm1120
  %v1122 = vsel %vm1121, %v1114, %v1118
  %v1123 = vand.u32 2147483647, %v1113
  %vm1124 = vcmp.eq.f32.partialorder %v1123, 8.507059e+37
  %v1125 = vand.u32 %v1113, 2147483648
  %v1126 = vor.u32 1.1754944e-38, %v1125
  %v1127 = vsel %vm1124, %v1126, %v1122
  %v1128 = vmul.f32 1.0, %v1127
  %v1129 = vxor.u32 %v1107, 2147483648
  %v1130 = vmul.f32 %v1129, 1.442695
  %v1131 = vpow.pop %v1130
  %v1132 = vadd.f32 %v1131, 1.0
  %v1133 = vrcp.pop %v1132
  %v1134 = vmul.f32 %v1132, %v1133
  %v1135 = vsub.f32 1.0, %v1134
  %v1136 = vmul.f32 %v1133, %v1135
  %v1137 = vadd.f32 %v1133, %v1136
  %vm1138 = vweird.f32 %v1132
  %vm1139 = vweird.f32 %v1133
  %vm1140 = vmor %vm1138, %vm1139
  %v1141 = vsel %vm1140, %v1133, %v1137
  %v1142 = vand.u32 2147483647, %v1132
  %vm1143 = vcmp.eq.f32.partialorder %v1142, 8.507059e+37
  %v1144 = vand.u32 %v1132, 2147483648
  %v1145 = vor.u32 1.1754944e-38, %v1144
  %v1146 = vsel %vm1143, %v1145, %v1141
  %v1147 = vmul.f32 1.0, %v1146
  %v1148 = vtanh.pop %v1108
  %v1149 = vxor.u32 %v1109, 2147483648
  %v1150 = vmul.f32 %v1149, 1.442695
  %v1151 = vpow.pop %v1150
  %v1152 = vadd.f32 %v1151, 1.0
  %v1153 = vrcp.pop %v1152
  %v1154 = vmul.f32 %v1152, %v1153
  %v1155 = vsub.f32 1.0, %v1154
  %v1156 = vmul.f32 %v1153, %v1155
  %v1157 = vadd.f32 %v1153, %v1156
  %vm1158 = vweird.f32 %v1152
  %vm1159 = vweird.f32 %v1153
  %vm1160 = vmor %vm1158, %vm1159
  %v1161 = vsel %vm1160, %v1153, %v1157
  %v1162 = vand.u32 2147483647, %v1152
  %vm1163 = vcmp.eq.f32.partialorder %v1162, 8.507059e+37
  %v1164 = vand.u32 %v1152, 2147483648
  %v1165 = vor.u32 1.1754944e-38, %v1164
  %v1166 = vsel %vm1163, %v1165, %v1161
  %v1167 = vmul.f32 1.0, %v1166
  %v1168 = vmul.f32 %v1147, %v1048
  %v1169 = vmul.f32 %v1128, %v1148
  %v1170 = vadd.f32 %v1168, %v1169
  %v1171 = vtanh.pop %v1170
  %v1172 = vmul.f32 %v1167, %v1171
  %s1173 = scalar_lea.vmem [#allocation2], 40
  %1174 = vst [vmem:[%s1173] sm:$0xff] %v1172
  %v1175 = vpack.c.bf16 %v1172, %v1172
  %1176 = vmatpush.bf16.msra.mxu0 %v409
  %1177 = vmatpush.bf16.msra.mxu0 %v405
  %1178 = vmatpush.bf16.msra.mxu0 %v401
  %1179 = vmatpush.bf16.msra.mxu0 %v397
  %1180 = vmatpush.bf16.msra.mxu0 %v393
  %1181 = vmatpush.bf16.msra.mxu0 %v389
  %1182 = vmatpush.bf16.msra.mxu0 %v385
  %1183 = vmatpush.bf16.msra.mxu0 %v381
  %1184 = vmatmul.bf16.gmra.mxu0 %v1175
  %v1185 = vpop.f32.mrf.mxu0
  %v1186 = vadd.f32 0.0, %v1185
  %v1187 = vpop.f32.mrf.mxu0
  %1188 = vdwg.mxu0
  %1189 = vmatpush.bf16.msra.mxu0 %v410
  %1190 = vmatpush.bf16.msra.mxu0 %v406
  %1191 = vmatpush.bf16.msra.mxu0 %v402
  %1192 = vmatpush.bf16.msra.mxu0 %v398
  %1193 = vmatpush.bf16.msra.mxu0 %v394
  %1194 = vmatpush.bf16.msra.mxu0 %v390
  %1195 = vmatpush.bf16.msra.mxu0 %v386
  %1196 = vmatpush.bf16.msra.mxu0 %v382
  %1197 = vmatmul.bf16.gmra.mxu0 %v1175
  %v1198 = vpop.f32.mrf.mxu0
  %v1199 = vadd.f32 0.0, %v1198
  %v1200 = vpop.f32.mrf.mxu0
  %1201 = vdwg.mxu0
  %1202 = vmatpush.bf16.msra.mxu0 %v411
  %1203 = vmatpush.bf16.msra.mxu0 %v407
  %1204 = vmatpush.bf16.msra.mxu0 %v403
  %1205 = vmatpush.bf16.msra.mxu0 %v399
  %1206 = vmatpush.bf16.msra.mxu0 %v395
  %1207 = vmatpush.bf16.msra.mxu0 %v391
  %1208 = vmatpush.bf16.msra.mxu0 %v387
  %1209 = vmatpush.bf16.msra.mxu0 %v383
  %1210 = vmatmul.bf16.gmra.mxu0 %v1175
  %v1211 = vpop.f32.mrf.mxu0
  %v1212 = vadd.f32 0.0, %v1211
  %v1213 = vpop.f32.mrf.mxu0
  %1214 = vdwg.mxu0
  %1215 = vmatpush.bf16.msra.mxu0 %v412
  %1216 = vmatpush.bf16.msra.mxu0 %v408
  %1217 = vmatpush.bf16.msra.mxu0 %v404
  %1218 = vmatpush.bf16.msra.mxu0 %v400
  %1219 = vmatpush.bf16.msra.mxu0 %v396
  %1220 = vmatpush.bf16.msra.mxu0 %v392
  %1221 = vmatpush.bf16.msra.mxu0 %v388
  %1222 = vmatpush.bf16.msra.mxu0 %v384
  %1223 = vmatmul.bf16.gmra.mxu0 %v1175
  %v1224 = vpop.f32.mrf.mxu0
  %v1225 = vadd.f32 0.0, %v1224
  %v1226 = vpop.f32.mrf.mxu0
  %1227 = vdwg.mxu0
  %v1228 = vadd.f32 %v178, %v1186
  %v1229 = vadd.f32 %v211, %v1199
  %v1230 = vadd.f32 %v244, %v1212
  %v1231 = vadd.f32 %v277, %v1225
  %v1232 = vxor.u32 %v1228, 2147483648
  %v1233 = vmul.f32 %v1232, 1.442695
  %v1234 = vpow.pop %v1233
  %v1235 = vadd.f32 %v1234, 1.0
  %v1236 = vrcp.pop %v1235
  %v1237 = vmul.f32 %v1235, %v1236
  %v1238 = vsub.f32 1.0, %v1237
  %v1239 = vmul.f32 %v1236, %v1238
  %v1240 = vadd.f32 %v1236, %v1239
  %vm1241 = vweird.f32 %v1235
  %vm1242 = vweird.f32 %v1236
  %vm1243 = vmor %vm1241, %vm1242
  %v1244 = vsel %vm1243, %v1236, %v1240
  %v1245 = vand.u32 2147483647, %v1235
  %vm1246 = vcmp.eq.f32.partialorder %v1245, 8.507059e+37
  %v1247 = vand.u32 %v1235, 2147483648
  %v1248 = vor.u32 1.1754944e-38, %v1247
  %v1249 = vsel %vm1246, %v1248, %v1244
  %v1250 = vmul.f32 1.0, %v1249
  %v1251 = vxor.u32 %v1229, 2147483648
  %v1252 = vmul.f32 %v1251, 1.442695
  %v1253 = vpow.pop %v1252
  %v1254 = vadd.f32 %v1253, 1.0
  %v1255 = vrcp.pop %v1254
  %v1256 = vmul.f32 %v1254, %v1255
  %v1257 = vsub.f32 1.0, %v1256
  %v1258 = vmul.f32 %v1255, %v1257
  %v1259 = vadd.f32 %v1255, %v1258
  %vm1260 = vweird.f32 %v1254
  %vm1261 = vweird.f32 %v1255
  %vm1262 = vmor %vm1260, %vm1261
  %v1263 = vsel %vm1262, %v1255, %v1259
  %v1264 = vand.u32 2147483647, %v1254
  %vm1265 = vcmp.eq.f32.partialorder %v1264, 8.507059e+37
  %v1266 = vand.u32 %v1254, 2147483648
  %v1267 = vor.u32 1.1754944e-38, %v1266
  %v1268 = vsel %vm1265, %v1267, %v1263
  %v1269 = vmul.f32 1.0, %v1268
  %v1270 = vtanh.pop %v1230
  %v1271 = vxor.u32 %v1231, 2147483648
  %v1272 = vmul.f32 %v1271, 1.442695
  %v1273 = vpow.pop %v1272
  %v1274 = vadd.f32 %v1273, 1.0
  %v1275 = vrcp.pop %v1274
  %v1276 = vmul.f32 %v1274, %v1275
  %v1277 = vsub.f32 1.0, %v1276
  %v1278 = vmul.f32 %v1275, %v1277
  %v1279 = vadd.f32 %v1275, %v1278
  %vm1280 = vweird.f32 %v1274
  %vm1281 = vweird.f32 %v1275
  %vm1282 = vmor %vm1280, %vm1281
  %v1283 = vsel %vm1282, %v1275, %v1279
  %v1284 = vand.u32 2147483647, %v1274
  %vm1285 = vcmp.eq.f32.partialorder %v1284, 8.507059e+37
  %v1286 = vand.u32 %v1274, 2147483648
  %v1287 = vor.u32 1.1754944e-38, %v1286
  %v1288 = vsel %vm1285, %v1287, %v1283
  %v1289 = vmul.f32 1.0, %v1288
  %v1290 = vmul.f32 %v1269, %v1170
  %v1291 = vmul.f32 %v1250, %v1270
  %v1292 = vadd.f32 %v1290, %v1291
  %v1293 = vtanh.pop %v1292
  %v1294 = vmul.f32 %v1289, %v1293
  %s1295 = scalar_lea.vmem [#allocation2], 48
  %1296 = vst [vmem:[%s1295] sm:$0xff] %v1294
  %v1297 = vpack.c.bf16 %v1294, %v1294
  %1298 = vmatpush.bf16.msra.mxu0 %v409
  %1299 = vmatpush.bf16.msra.mxu0 %v405
  %1300 = vmatpush.bf16.msra.mxu0 %v401
  %1301 = vmatpush.bf16.msra.mxu0 %v397
  %1302 = vmatpush.bf16.msra.mxu0 %v393
  %1303 = vmatpush.bf16.msra.mxu0 %v389
  %1304 = vmatpush.bf16.msra.mxu0 %v385
  %1305 = vmatpush.bf16.msra.mxu0 %v381
  %1306 = vmatmul.bf16.gmra.mxu0 %v1297
  %v1307 = vpop.f32.mrf.mxu0
  %v1308 = vadd.f32 0.0, %v1307
  %v1309 = vpop.f32.mrf.mxu0
  %1310 = vdwg.mxu0
  %1311 = vmatpush.bf16.msra.mxu0 %v410
  %1312 = vmatpush.bf16.msra.mxu0 %v406
  %1313 = vmatpush.bf16.msra.mxu0 %v402
  %1314 = vmatpush.bf16.msra.mxu0 %v398
  %1315 = vmatpush.bf16.msra.mxu0 %v394
  %1316 = vmatpush.bf16.msra.mxu0 %v390
  %1317 = vmatpush.bf16.msra.mxu0 %v386
  %1318 = vmatpush.bf16.msra.mxu0 %v382
  %1319 = vmatmul.bf16.gmra.mxu0 %v1297
  %v1320 = vpop.f32.mrf.mxu0
  %v1321 = vadd.f32 0.0, %v1320
  %v1322 = vpop.f32.mrf.mxu0
  %1323 = vdwg.mxu0
  %1324 = vmatpush.bf16.msra.mxu0 %v411
  %1325 = vmatpush.bf16.msra.mxu0 %v407
  %1326 = vmatpush.bf16.msra.mxu0 %v403
  %1327 = vmatpush.bf16.msra.mxu0 %v399
  %1328 = vmatpush.bf16.msra.mxu0 %v395
  %1329 = vmatpush.bf16.msra.mxu0 %v391
  %1330 = vmatpush.bf16.msra.mxu0 %v387
  %1331 = vmatpush.bf16.msra.mxu0 %v383
  %1332 = vmatmul.bf16.gmra.mxu0 %v1297
  %v1333 = vpop.f32.mrf.mxu0
  %v1334 = vadd.f32 0.0, %v1333
  %v1335 = vpop.f32.mrf.mxu0
  %1336 = vdwg.mxu0
  %1337 = vmatpush.bf16.msra.mxu0 %v412
  %1338 = vmatpush.bf16.msra.mxu0 %v408
  %1339 = vmatpush.bf16.msra.mxu0 %v404
  %1340 = vmatpush.bf16.msra.mxu0 %v400
  %1341 = vmatpush.bf16.msra.mxu0 %v396
  %1342 = vmatpush.bf16.msra.mxu0 %v392
  %1343 = vmatpush.bf16.msra.mxu0 %v388
  %1344 = vmatpush.bf16.msra.mxu0 %v384
  %1345 = vmatmul.bf16.gmra.mxu0 %v1297
  %v1346 = vpop.f32.mrf.mxu0
  %v1347 = vadd.f32 0.0, %v1346
  %v1348 = vpop.f32.mrf.mxu0
  %1349 = vdwg.mxu0
  %v1350 = vadd.f32 %v180, %v1308
  %v1351 = vadd.f32 %v213, %v1321
  %v1352 = vadd.f32 %v246, %v1334
  %v1353 = vadd.f32 %v279, %v1347
  %v1354 = vxor.u32 %v1350, 2147483648
  %v1355 = vmul.f32 %v1354, 1.442695
  %v1356 = vpow.pop %v1355
  %v1357 = vadd.f32 %v1356, 1.0
  %v1358 = vrcp.pop %v1357
  %v1359 = vmul.f32 %v1357, %v1358
  %v1360 = vsub.f32 1.0, %v1359
  %v1361 = vmul.f32 %v1358, %v1360
  %v1362 = vadd.f32 %v1358, %v1361
  %vm1363 = vweird.f32 %v1357
  %vm1364 = vweird.f32 %v1358
  %vm1365 = vmor %vm1363, %vm1364
  %v1366 = vsel %vm1365, %v1358, %v1362
  %v1367 = vand.u32 2147483647, %v1357
  %vm1368 = vcmp.eq.f32.partialorder %v1367, 8.507059e+37
  %v1369 = vand.u32 %v1357, 2147483648
  %v1370 = vor.u32 1.1754944e-38, %v1369
  %v1371 = vsel %vm1368, %v1370, %v1366
  %v1372 = vmul.f32 1.0, %v1371
  %v1373 = vxor.u32 %v1351, 2147483648
  %v1374 = vmul.f32 %v1373, 1.442695
  %v1375 = vpow.pop %v1374
  %v1376 = vadd.f32 %v1375, 1.0
  %v1377 = vrcp.pop %v1376
  %v1378 = vmul.f32 %v1376, %v1377
  %v1379 = vsub.f32 1.0, %v1378
  %v1380 = vmul.f32 %v1377, %v1379
  %v1381 = vadd.f32 %v1377, %v1380
  %vm1382 = vweird.f32 %v1376
  %vm1383 = vweird.f32 %v1377
  %vm1384 = vmor %vm1382, %vm1383
  %v1385 = vsel %vm1384, %v1377, %v1381
  %v1386 = vand.u32 2147483647, %v1376
  %vm1387 = vcmp.eq.f32.partialorder %v1386, 8.507059e+37
  %v1388 = vand.u32 %v1376, 2147483648
  %v1389 = vor.u32 1.1754944e-38, %v1388
  %v1390 = vsel %vm1387, %v1389, %v1385
  %v1391 = vmul.f32 1.0, %v1390
  %v1392 = vtanh.pop %v1352
  %v1393 = vxor.u32 %v1353, 2147483648
  %v1394 = vmul.f32 %v1393, 1.442695
  %v1395 = vpow.pop %v1394
  %v1396 = vadd.f32 %v1395, 1.0
  %v1397 = vrcp.pop %v1396
  %v1398 = vmul.f32 %v1396, %v1397
  %v1399 = vsub.f32 1.0, %v1398
  %v1400 = vmul.f32 %v1397, %v1399
  %v1401 = vadd.f32 %v1397, %v1400
  %vm1402 = vweird.f32 %v1396
  %vm1403 = vweird.f32 %v1397
  %vm1404 = vmor %vm1402, %vm1403
  %v1405 = vsel %vm1404, %v1397, %v1401
  %v1406 = vand.u32 2147483647, %v1396
  %vm1407 = vcmp.eq.f32.partialorder %v1406, 8.507059e+37
  %v1408 = vand.u32 %v1396, 2147483648
  %v1409 = vor.u32 1.1754944e-38, %v1408
  %v1410 = vsel %vm1407, %v1409, %v1405
  %v1411 = vmul.f32 1.0, %v1410
  %v1412 = vmul.f32 %v1391, %v1292
  %v1413 = vmul.f32 %v1372, %v1392
  %v1414 = vadd.f32 %v1412, %v1413
  %v1415 = vtanh.pop %v1414
  %v1416 = vmul.f32 %v1411, %v1415
  %s1417 = scalar_lea.vmem [#allocation2], 56
  %1418 = vst [vmem:[%s1417] sm:$0xff] %v1416
  %v1419 = vpack.c.bf16 %v1416, %v1416
  %1420 = vmatpush.bf16.msra.mxu0 %v409
  %1421 = vmatpush.bf16.msra.mxu0 %v405
  %1422 = vmatpush.bf16.msra.mxu0 %v401
  %1423 = vmatpush.bf16.msra.mxu0 %v397
  %1424 = vmatpush.bf16.msra.mxu0 %v393
  %1425 = vmatpush.bf16.msra.mxu0 %v389
  %1426 = vmatpush.bf16.msra.mxu0 %v385
  %1427 = vmatpush.bf16.msra.mxu0 %v381
  %1428 = vmatmul.bf16.gmra.mxu0 %v1419
  %v1429 = vpop.f32.mrf.mxu0
  %v1430 = vadd.f32 0.0, %v1429
  %v1431 = vpop.f32.mrf.mxu0
  %1432 = vdwg.mxu0
  %1433 = vmatpush.bf16.msra.mxu0 %v410
  %1434 = vmatpush.bf16.msra.mxu0 %v406
  %1435 = vmatpush.bf16.msra.mxu0 %v402
  %1436 = vmatpush.bf16.msra.mxu0 %v398
  %1437 = vmatpush.bf16.msra.mxu0 %v394
  %1438 = vmatpush.bf16.msra.mxu0 %v390
  %1439 = vmatpush.bf16.msra.mxu0 %v386
  %1440 = vmatpush.bf16.msra.mxu0 %v382
  %1441 = vmatmul.bf16.gmra.mxu0 %v1419
  %v1442 = vpop.f32.mrf.mxu0
  %v1443 = vadd.f32 0.0, %v1442
  %v1444 = vpop.f32.mrf.mxu0
  %1445 = vdwg.mxu0
  %1446 = vmatpush.bf16.msra.mxu0 %v411
  %1447 = vmatpush.bf16.msra.mxu0 %v407
  %1448 = vmatpush.bf16.msra.mxu0 %v403
  %1449 = vmatpush.bf16.msra.mxu0 %v399
  %1450 = vmatpush.bf16.msra.mxu0 %v395
  %1451 = vmatpush.bf16.msra.mxu0 %v391
  %1452 = vmatpush.bf16.msra.mxu0 %v387
  %1453 = vmatpush.bf16.msra.mxu0 %v383
  %1454 = vmatmul.bf16.gmra.mxu0 %v1419
  %v1455 = vpop.f32.mrf.mxu0
  %v1456 = vadd.f32 0.0, %v1455
  %v1457 = vpop.f32.mrf.mxu0
  %1458 = vdwg.mxu0
  %1459 = vmatpush.bf16.msra.mxu0 %v412
  %1460 = vmatpush.bf16.msra.mxu0 %v408
  %1461 = vmatpush.bf16.msra.mxu0 %v404
  %1462 = vmatpush.bf16.msra.mxu0 %v400
  %1463 = vmatpush.bf16.msra.mxu0 %v396
  %1464 = vmatpush.bf16.msra.mxu0 %v392
  %1465 = vmatpush.bf16.msra.mxu0 %v388
  %1466 = vmatpush.bf16.msra.mxu0 %v384
  %1467 = vmatmul.bf16.gmra.mxu0 %v1419
  %v1468 = vpop.f32.mrf.mxu0
  %v1469 = vadd.f32 0.0, %v1468
  %v1470 = vpop.f32.mrf.mxu0
  %1471 = vdwg.mxu0
  %v1472 = vadd.f32 %v183, %v1430
  %v1473 = vadd.f32 %v216, %v1443
  %v1474 = vadd.f32 %v249, %v1456
  %v1475 = vadd.f32 %v282, %v1469
  %v1476 = vxor.u32 %v1472, 2147483648
  %v1477 = vmul.f32 %v1476, 1.442695
  %v1478 = vpow.pop %v1477
  %v1479 = vadd.f32 %v1478, 1.0
  %v1480 = vrcp.pop %v1479
  %v1481 = vmul.f32 %v1479, %v1480
  %v1482 = vsub.f32 1.0, %v1481
  %v1483 = vmul.f32 %v1480, %v1482
  %v1484 = vadd.f32 %v1480, %v1483
  %vm1485 = vweird.f32 %v1479
  %vm1486 = vweird.f32 %v1480
  %vm1487 = vmor %vm1485, %vm1486
  %v1488 = vsel %vm1487, %v1480, %v1484
  %v1489 = vand.u32 2147483647, %v1479
  %vm1490 = vcmp.eq.f32.partialorder %v1489, 8.507059e+37
  %v1491 = vand.u32 %v1479, 2147483648
  %v1492 = vor.u32 1.1754944e-38, %v1491
  %v1493 = vsel %vm1490, %v1492, %v1488
  %v1494 = vmul.f32 1.0, %v1493
  %v1495 = vxor.u32 %v1473, 2147483648
  %v1496 = vmul.f32 %v1495, 1.442695
  %v1497 = vpow.pop %v1496
  %v1498 = vadd.f32 %v1497, 1.0
  %v1499 = vrcp.pop %v1498
  %v1500 = vmul.f32 %v1498, %v1499
  %v1501 = vsub.f32 1.0, %v1500
  %v1502 = vmul.f32 %v1499, %v1501
  %v1503 = vadd.f32 %v1499, %v1502
  %vm1504 = vweird.f32 %v1498
  %vm1505 = vweird.f32 %v1499
  %vm1506 = vmor %vm1504, %vm1505
  %v1507 = vsel %vm1506, %v1499, %v1503
  %v1508 = vand.u32 2147483647, %v1498
  %vm1509 = vcmp.eq.f32.partialorder %v1508, 8.507059e+37
  %v1510 = vand.u32 %v1498, 2147483648
  %v1511 = vor.u32 1.1754944e-38, %v1510
  %v1512 = vsel %vm1509, %v1511, %v1507
  %v1513 = vmul.f32 1.0, %v1512
  %v1514 = vtanh.pop %v1474
  %v1515 = vxor.u32 %v1475, 2147483648
  %v1516 = vmul.f32 %v1515, 1.442695
  %v1517 = vpow.pop %v1516
  %v1518 = vadd.f32 %v1517, 1.0
  %v1519 = vrcp.pop %v1518
  %v1520 = vmul.f32 %v1518, %v1519
  %v1521 = vsub.f32 1.0, %v1520
  %v1522 = vmul.f32 %v1519, %v1521
  %v1523 = vadd.f32 %v1519, %v1522
  %vm1524 = vweird.f32 %v1518
  %vm1525 = vweird.f32 %v1519
  %vm1526 = vmor %vm1524, %vm1525
  %v1527 = vsel %vm1526, %v1519, %v1523
  %v1528 = vand.u32 2147483647, %v1518
  %vm1529 = vcmp.eq.f32.partialorder %v1528, 8.507059e+37
  %v1530 = vand.u32 %v1518, 2147483648
  %v1531 = vor.u32 1.1754944e-38, %v1530
  %v1532 = vsel %vm1529, %v1531, %v1527
  %v1533 = vmul.f32 1.0, %v1532
  %v1534 = vmul.f32 %v1513, %v1414
  %v1535 = vmul.f32 %v1494, %v1514
  %v1536 = vadd.f32 %v1534, %v1535
  %v1537 = vtanh.pop %v1536
  %v1538 = vmul.f32 %v1533, %v1537
  %s1539 = scalar_lea.vmem [#allocation2], 64
  %1540 = vst [vmem:[%s1539] sm:$0xff] %v1538
  %v1541 = vld [vmem:[#allocation2] sm:$0xff]
  %v1542 = vld [vmem:[#allocation2 + $0x8] sm:$0xff]
  %v1543 = vld [vmem:[#allocation2 + $0x10] sm:$0xff]
  %v1544 = vld [vmem:[#allocation2 + $0x18] sm:$0xff]
  %v1545 = vld [vmem:[#allocation2 + $0x20] sm:$0xff]
  %v1546 = vld [vmem:[#allocation2 + $0x28] sm:$0xff]
  %v1547 = vld [vmem:[#allocation2 + $0x30] sm:$0xff]
  %v1548 = vld [vmem:[#allocation2 + $0x38] sm:$0xff]
  %v1549 = vld [vmem:[#allocation2 + $0x40] sm:$0xff]
  %v1550 = vld [vmem:[%s4] sm:$0xff]
  %v1551 = vld [vmem:[%s4 + $0x8] sm:$0xff]
  %v1552 = vld [vmem:[%s4 + $0x10] sm:$0xff]
  %v1553 = vld [vmem:[%s4 + $0x18] sm:$0xff]
  %v1554 = vld [vmem:[%s4 + $0x20] sm:$0xff]
  %v1555 = vld [vmem:[%s4 + $0x28] sm:$0xff]
  %v1556 = vld [vmem:[%s4 + $0x30] sm:$0xff]
  %v1557 = vld [vmem:[%s4 + $0x38] sm:$0xff]
  %v1558 = vld [vmem:[%s4 + $0x40] sm:$0xff]
  %v1559 = vld [vmem:[%s4 + $0x48] sm:$0xff]
  %v1560 = vld [vmem:[%s4 + $0x50] sm:$0xff]
  %v1561 = vld [vmem:[%s4 + $0x58] sm:$0xff]
  %v1562 = vld [vmem:[%s4 + $0x60] sm:$0xff]
  %v1563 = vld [vmem:[%s4 + $0x68] sm:$0xff]
  %v1564 = vld [vmem:[%s4 + $0x70] sm:$0xff]
  %v1565 = vld [vmem:[%s4 + $0x78] sm:$0xff]
  %v1566 = vld [vmem:[%s4 + $0x80] sm:$0xff]
  %v1567 = vld [vmem:[%s4 + $0x88] sm:$0xff]
  %v1568 = vld [vmem:[%s4 + $0x90] sm:$0xff]
  %v1569 = vld [vmem:[%s4 + $0x98] sm:$0xff]
  %v1570 = vld [vmem:[%s4 + $0xa0] sm:$0xff]
  %v1571 = vld [vmem:[%s4 + $0xa8] sm:$0xff]
  %v1572 = vld [vmem:[%s4 + $0xb0] sm:$0xff]
  %v1573 = vld [vmem:[%s4 + $0xb8] sm:$0xff]
  %v1574 = vld [vmem:[%s4 + $0xc0] sm:$0xff]
  %v1575 = vld [vmem:[%s4 + $0xc8] sm:$0xff]
  %v1576 = vld [vmem:[%s4 + $0xd0] sm:$0xff]
  %v1577 = vld [vmem:[%s4 + $0xd8] sm:$0xff]
  %v1578 = vld [vmem:[%s4 + $0xe0] sm:$0xff]
  %v1579 = vld [vmem:[%s4 + $0xe8] sm:$0xff]
  %v1580 = vld [vmem:[%s4 + $0xf0] sm:$0xff]
  %v1581 = vld [vmem:[%s4 + $0xf8] sm:$0xff]
  %v1582 = vld [vmem:[%s5] sm:$0xf]
  %v1583 = vld [vmem:[%s6] sm:$0xff]
  %v1584 = vld [vmem:[%s6 + $0x8] sm:$0xff]
  %v1585 = vld [vmem:[%s6 + $0x10] sm:$0xff]
  %v1586 = vld [vmem:[%s6 + $0x18] sm:$0xff]
  %v1587 = vld [vmem:[%s6 + $0x20] sm:$0xff]
  %v1588 = vld [vmem:[%s6 + $0x28] sm:$0xff]
  %v1589 = vld [vmem:[%s6 + $0x30] sm:$0xff]
  %v1590 = vld [vmem:[%s6 + $0x38] sm:$0xff]
  %v1591 = vld [vmem:[%s6 + $0x40] sm:$0xff]
  %v1592 = vld [vmem:[%s6 + $0x48] sm:$0xff]
  %v1593 = vld [vmem:[%s6 + $0x50] sm:$0xff]
  %v1594 = vld [vmem:[%s6 + $0x58] sm:$0xff]
  %v1595 = vld [vmem:[%s6 + $0x60] sm:$0xff]
  %v1596 = vld [vmem:[%s6 + $0x68] sm:$0xff]
  %v1597 = vld [vmem:[%s6 + $0x70] sm:$0xff]
  %v1598 = vld [vmem:[%s6 + $0x78] sm:$0xff]
  %v1599 = vld [vmem:[%s6 + $0x80] sm:$0xff]
  %v1600 = vld [vmem:[%s6 + $0x88] sm:$0xff]
  %v1601 = vld [vmem:[%s6 + $0x90] sm:$0xff]
  %v1602 = vld [vmem:[%s6 + $0x98] sm:$0xff]
  %v1603 = vld [vmem:[%s6 + $0xa0] sm:$0xff]
  %v1604 = vld [vmem:[%s6 + $0xa8] sm:$0xff]
  %v1605 = vld [vmem:[%s6 + $0xb0] sm:$0xff]
  %v1606 = vld [vmem:[%s6 + $0xb8] sm:$0xff]
  %v1607 = vld [vmem:[%s6 + $0xc0] sm:$0xff]
  %v1608 = vld [vmem:[%s6 + $0xc8] sm:$0xff]
  %v1609 = vld [vmem:[%s6 + $0xd0] sm:$0xff]
  %v1610 = vld [vmem:[%s6 + $0xd8] sm:$0xff]
  %v1611 = vld [vmem:[%s6 + $0xe0] sm:$0xff]
  %v1612 = vld [vmem:[%s6 + $0xe8] sm:$0xff]
  %v1613 = vld [vmem:[%s6 + $0xf0] sm:$0xff]
  %v1614 = vld [vmem:[%s6 + $0xf8] sm:$0xff]
  %v1615 = vpack.c.bf16 %v1542, %v1541
  %v1616 = vpack.c.bf16 %v1544, %v1543
  %v1617 = vpack.c.bf16 %v1546, %v1545
  %v1618 = vpack.c.bf16 %v1548, %v1547
  %v1619 = vpack.c.bf16 %v1549, %v1549
  %v1621 = vperm.slane %v1582, 0
  %v1622 = vperm.slane %v1582, 1
  %v1623 = vperm.slane %v1582, 2
  %v1624 = vperm.slane %v1582, 3
  %v1661 = vunpack.c.l.b16 %v1550
  %v1662 = vunpack.c.h.b16 %v1550
  %v1663 = vunpack.c.l.b16 %v1551
  %v1664 = vunpack.c.h.b16 %v1551
  %v1665 = vunpack.c.l.b16 %v1552
  %v1666 = vunpack.c.h.b16 %v1552
  %v1667 = vunpack.c.l.b16 %v1553
  %v1668 = vunpack.c.h.b16 %v1553
  %v1669 = vunpack.c.l.b16 %v1554
  %v1670 = vunpack.c.h.b16 %v1554
  %v1671 = vunpack.c.l.b16 %v1555
  %v1672 = vunpack.c.h.b16 %v1555
  %v1673 = vunpack.c.l.b16 %v1556
  %v1674 = vunpack.c.h.b16 %v1556
  %v1675 = vunpack.c.l.b16 %v1557
  %v1676 = vunpack.c.h.b16 %v1557
  %v1677 = vunpack.c.l.b16 %v1558
  %v1678 = vunpack.c.h.b16 %v1558
  %v1679 = vunpack.c.l.b16 %v1559
  %v1680 = vunpack.c.h.b16 %v1559
  %v1681 = vunpack.c.l.b16 %v1560
  %v1682 = vunpack.c.h.b16 %v1560
  %v1683 = vunpack.c.l.b16 %v1561
  %v1684 = vunpack.c.h.b16 %v1561
  %v1685 = vunpack.c.l.b16 %v1562
  %v1686 = vunpack.c.h.b16 %v1562
  %v1687 = vunpack.c.l.b16 %v1563
  %v1688 = vunpack.c.h.b16 %v1563
  %v1689 = vunpack.c.l.b16 %v1564
  %v1690 = vunpack.c.h.b16 %v1564
  %v1691 = vunpack.c.l.b16 %v1565
  %v1692 = vunpack.c.h.b16 %v1565
  %v1693 = vunpack.c.l.b16 %v1566
  %v1694 = vunpack.c.h.b16 %v1566
  %v1695 = vunpack.c.l.b16 %v1567
  %v1696 = vunpack.c.h.b16 %v1567
  %v1697 = vunpack.c.l.b16 %v1568
  %v1698 = vunpack.c.h.b16 %v1568
  %v1699 = vunpack.c.l.b16 %v1569
  %v1700 = vunpack.c.h.b16 %v1569
  %v1701 = vunpack.c.l.b16 %v1570
  %v1702 = vunpack.c.h.b16 %v1570
  %v1703 = vunpack.c.l.b16 %v1571
  %v1704 = vunpack.c.h.b16 %v1571
  %v1705 = vunpack.c.l.b16 %v1572
  %v1706 = vunpack.c.h.b16 %v1572
  %v1707 = vunpack.c.l.b16 %v1573
  %v1708 = vunpack.c.h.b16 %v1573
  %v1709 = vunpack.c.l.b16 %v1574
  %v1710 = vunpack.c.h.b16 %v1574
  %v1711 = vunpack.c.l.b16 %v1575
  %v1712 = vunpack.c.h.b16 %v1575
  %v1713 = vunpack.c.l.b16 %v1576
  %v1714 = vunpack.c.h.b16 %v1576
  %v1715 = vunpack.c.l.b16 %v1577
  %v1716 = vunpack.c.h.b16 %v1577
  %v1717 = vunpack.c.l.b16 %v1578
  %v1718 = vunpack.c.h.b16 %v1578
  %v1719 = vunpack.c.l.b16 %v1579
  %v1720 = vunpack.c.h.b16 %v1579
  %v1721 = vunpack.c.l.b16 %v1580
  %v1722 = vunpack.c.h.b16 %v1580
  %v1723 = vunpack.c.l.b16 %v1581
  %v1724 = vunpack.c.h.b16 %v1581
  %v1725 = vpack.c.b16 %v1665, %v1661
  %v1726 = vpack.c.b16 %v1666, %v1662
  %v1727 = vpack.c.b16 %v1667, %v1663
  %v1728 = vpack.c.b16 %v1668, %v1664
  %v1729 = vpack.c.b16 %v1673, %v1669
  %v1730 = vpack.c.b16 %v1674, %v1670
  %v1731 = vpack.c.b16 %v1675, %v1671
  %v1732 = vpack.c.b16 %v1676, %v1672
  %v1733 = vpack.c.b16 %v1681, %v1677
  %v1734 = vpack.c.b16 %v1682, %v1678
  %v1735 = vpack.c.b16 %v1683, %v1679
  %v1736 = vpack.c.b16 %v1684, %v1680
  %v1737 = vpack.c.b16 %v1689, %v1685
  %v1738 = vpack.c.b16 %v1690, %v1686
  %v1739 = vpack.c.b16 %v1691, %v1687
  %v1740 = vpack.c.b16 %v1692, %v1688
  %v1741 = vpack.c.b16 %v1697, %v1693
  %v1742 = vpack.c.b16 %v1698, %v1694
  %v1743 = vpack.c.b16 %v1699, %v1695
  %v1744 = vpack.c.b16 %v1700, %v1696
  %v1745 = vpack.c.b16 %v1705, %v1701
  %v1746 = vpack.c.b16 %v1706, %v1702
  %v1747 = vpack.c.b16 %v1707, %v1703
  %v1748 = vpack.c.b16 %v1708, %v1704
  %v1749 = vpack.c.b16 %v1713, %v1709
  %v1750 = vpack.c.b16 %v1714, %v1710
  %v1751 = vpack.c.b16 %v1715, %v1711
  %v1752 = vpack.c.b16 %v1716, %v1712
  %v1753 = vpack.c.b16 %v1721, %v1717
  %v1754 = vpack.c.b16 %v1722, %v1718
  %v1755 = vpack.c.b16 %v1723, %v1719
  %v1756 = vpack.c.b16 %v1724, %v1720
  %1789 = vmatpush.bf16.msra.mxu0 %v1753
  %1790 = vmatpush.bf16.msra.mxu0 %v1749
  %1791 = vmatpush.bf16.msra.mxu0 %v1745
  %1792 = vmatpush.bf16.msra.mxu0 %v1741
  %1793 = vmatpush.bf16.msra.mxu0 %v1737
  %1794 = vmatpush.bf16.msra.mxu0 %v1733
  %1795 = vmatpush.bf16.msra.mxu0 %v1729
  %1796 = vmatpush.bf16.msra.mxu0 %v1725
  %1797 = vmatmul.bf16.gmra.mxu0 %v1615
  %v1798 = vpop.f32.mrf.mxu0
  %v1799 = vadd.f32 %v1621, %v1798
  %v1800 = vpop.f32.mrf.mxu0
  %v1801 = vadd.f32 %v1621, %v1800
  %1802 = vmatmul.bf16.gmra.mxu0 %v1616
  %v1803 = vpop.f32.mrf.mxu0
  %v1804 = vadd.f32 %v1621, %v1803
  %v1805 = vpop.f32.mrf.mxu0
  %v1806 = vadd.f32 %v1621, %v1805
  %1807 = vmatmul.bf16.gmra.mxu0 %v1617
  %v1808 = vpop.f32.mrf.mxu0
  %v1809 = vadd.f32 %v1621, %v1808
  %v1810 = vpop.f32.mrf.mxu0
  %v1811 = vadd.f32 %v1621, %v1810
  %1812 = vmatmul.bf16.gmra.mxu0 %v1618
  %v1813 = vpop.f32.mrf.mxu0
  %v1814 = vadd.f32 %v1621, %v1813
  %v1815 = vpop.f32.mrf.mxu0
  %v1816 = vadd.f32 %v1621, %v1815
  %1817 = vmatmul.bf16.gmra.mxu0 %v1619
  %v1818 = vpop.f32.mrf.mxu0
  %v1819 = vadd.f32 %v1621, %v1818
  %v1820 = vpop.f32.mrf.mxu0
  %1821 = vdwg.mxu0
  %1822 = vmatpush.bf16.msra.mxu0 %v1754
  %1823 = vmatpush.bf16.msra.mxu0 %v1750
  %1824 = vmatpush.bf16.msra.mxu0 %v1746
  %1825 = vmatpush.bf16.msra.mxu0 %v1742
  %1826 = vmatpush.bf16.msra.mxu0 %v1738
  %1827 = vmatpush.bf16.msra.mxu0 %v1734
  %1828 = vmatpush.bf16.msra.mxu0 %v1730
  %1829 = vmatpush.bf16.msra.mxu0 %v1726
  %1830 = vmatmul.bf16.gmra.mxu0 %v1615
  %v1831 = vpop.f32.mrf.mxu0
  %v1832 = vadd.f32 %v1622, %v1831
  %v1833 = vpop.f32.mrf.mxu0
  %v1834 = vadd.f32 %v1622, %v1833
  %1835 = vmatmul.bf16.gmra.mxu0 %v1616
  %v1836 = vpop.f32.mrf.mxu0
  %v1837 = vadd.f32 %v1622, %v1836
  %v1838 = vpop.f32.mrf.mxu0
  %v1839 = vadd.f32 %v1622, %v1838
  %1840 = vmatmul.bf16.gmra.mxu0 %v1617
  %v1841 = vpop.f32.mrf.mxu0
  %v1842 = vadd.f32 %v1622, %v1841
  %v1843 = vpop.f32.mrf.mxu0
  %v1844 = vadd.f32 %v1622, %v1843
  %1845 = vmatmul.bf16.gmra.mxu0 %v1618
  %v1846 = vpop.f32.mrf.mxu0
  %v1847 = vadd.f32 %v1622, %v1846
  %v1848 = vpop.f32.mrf.mxu0
  %v1849 = vadd.f32 %v1622, %v1848
  %1850 = vmatmul.bf16.gmra.mxu0 %v1619
  %v1851 = vpop.f32.mrf.mxu0
  %v1852 = vadd.f32 %v1622, %v1851
  %v1853 = vpop.f32.mrf.mxu0
  %1854 = vdwg.mxu0
  %1855 = vmatpush.bf16.msra.mxu0 %v1755
  %1856 = vmatpush.bf16.msra.mxu0 %v1751
  %1857 = vmatpush.bf16.msra.mxu0 %v1747
  %1858 = vmatpush.bf16.msra.mxu0 %v1743
  %1859 = vmatpush.bf16.msra.mxu0 %v1739
  %1860 = vmatpush.bf16.msra.mxu0 %v1735
  %1861 = vmatpush.bf16.msra.mxu0 %v1731
  %1862 = vmatpush.bf16.msra.mxu0 %v1727
  %1863 = vmatmul.bf16.gmra.mxu0 %v1615
  %v1864 = vpop.f32.mrf.mxu0
  %v1865 = vadd.f32 %v1623, %v1864
  %v1866 = vpop.f32.mrf.mxu0
  %v1867 = vadd.f32 %v1623, %v1866
  %1868 = vmatmul.bf16.gmra.mxu0 %v1616
  %v1869 = vpop.f32.mrf.mxu0
  %v1870 = vadd.f32 %v1623, %v1869
  %v1871 = vpop.f32.mrf.mxu0
  %v1872 = vadd.f32 %v1623, %v1871
  %1873 = vmatmul.bf16.gmra.mxu0 %v1617
  %v1874 = vpop.f32.mrf.mxu0
  %v1875 = vadd.f32 %v1623, %v1874
  %v1876 = vpop.f32.mrf.mxu0
  %v1877 = vadd.f32 %v1623, %v1876
  %1878 = vmatmul.bf16.gmra.mxu0 %v1618
  %v1879 = vpop.f32.mrf.mxu0
  %v1880 = vadd.f32 %v1623, %v1879
  %v1881 = vpop.f32.mrf.mxu0
  %v1882 = vadd.f32 %v1623, %v1881
  %1883 = vmatmul.bf16.gmra.mxu0 %v1619
  %v1884 = vpop.f32.mrf.mxu0
  %v1885 = vadd.f32 %v1623, %v1884
  %v1886 = vpop.f32.mrf.mxu0
  %1887 = vdwg.mxu0
  %1888 = vmatpush.bf16.msra.mxu0 %v1756
  %1889 = vmatpush.bf16.msra.mxu0 %v1752
  %1890 = vmatpush.bf16.msra.mxu0 %v1748
  %1891 = vmatpush.bf16.msra.mxu0 %v1744
  %1892 = vmatpush.bf16.msra.mxu0 %v1740
  %1893 = vmatpush.bf16.msra.mxu0 %v1736
  %1894 = vmatpush.bf16.msra.mxu0 %v1732
  %1895 = vmatpush.bf16.msra.mxu0 %v1728
  %1896 = vmatmul.bf16.gmra.mxu0 %v1615
  %v1897 = vpop.f32.mrf.mxu0
  %v1898 = vadd.f32 %v1624, %v1897
  %v1899 = vpop.f32.mrf.mxu0
  %v1900 = vadd.f32 %v1624, %v1899
  %1901 = vmatmul.bf16.gmra.mxu0 %v1616
  %v1902 = vpop.f32.mrf.mxu0
  %v1903 = vadd.f32 %v1624, %v1902
  %v1904 = vpop.f32.mrf.mxu0
  %v1905 = vadd.f32 %v1624, %v1904
  %1906 = vmatmul.bf16.gmra.mxu0 %v1617
  %v1907 = vpop.f32.mrf.mxu0
  %v1908 = vadd.f32 %v1624, %v1907
  %v1909 = vpop.f32.mrf.mxu0
  %v1910 = vadd.f32 %v1624, %v1909
  %1911 = vmatmul.bf16.gmra.mxu0 %v1618
  %v1912 = vpop.f32.mrf.mxu0
  %v1913 = vadd.f32 %v1624, %v1912
  %v1914 = vpop.f32.mrf.mxu0
  %v1915 = vadd.f32 %v1624, %v1914
  %1916 = vmatmul.bf16.gmra.mxu0 %v1619
  %v1917 = vpop.f32.mrf.mxu0
  %v1918 = vadd.f32 %v1624, %v1917
  %v1919 = vpop.f32.mrf.mxu0
  %1920 = vdwg.mxu0
  %v1953 = vunpack.c.l.b16 %v1583
  %v1954 = vunpack.c.h.b16 %v1583
  %v1955 = vunpack.c.l.b16 %v1584
  %v1956 = vunpack.c.h.b16 %v1584
  %v1957 = vunpack.c.l.b16 %v1585
  %v1958 = vunpack.c.h.b16 %v1585
  %v1959 = vunpack.c.l.b16 %v1586
  %v1960 = vunpack.c.h.b16 %v1586
  %v1961 = vunpack.c.l.b16 %v1587
  %v1962 = vunpack.c.h.b16 %v1587
  %v1963 = vunpack.c.l.b16 %v1588
  %v1964 = vunpack.c.h.b16 %v1588
  %v1965 = vunpack.c.l.b16 %v1589
  %v1966 = vunpack.c.h.b16 %v1589
  %v1967 = vunpack.c.l.b16 %v1590
  %v1968 = vunpack.c.h.b16 %v1590
  %v1969 = vunpack.c.l.b16 %v1591
  %v1970 = vunpack.c.h.b16 %v1591
  %v1971 = vunpack.c.l.b16 %v1592
  %v1972 = vunpack.c.h.b16 %v1592
  %v1973 = vunpack.c.l.b16 %v1593
  %v1974 = vunpack.c.h.b16 %v1593
  %v1975 = vunpack.c.l.b16 %v1594
  %v1976 = vunpack.c.h.b16 %v1594
  %v1977 = vunpack.c.l.b16 %v1595
  %v1978 = vunpack.c.h.b16 %v1595
  %v1979 = vunpack.c.l.b16 %v1596
  %v1980 = vunpack.c.h.b16 %v1596
  %v1981 = vunpack.c.l.b16 %v1597
  %v1982 = vunpack.c.h.b16 %v1597
  %v1983 = vunpack.c.l.b16 %v1598
  %v1984 = vunpack.c.h.b16 %v1598
  %v1985 = vunpack.c.l.b16 %v1599
  %v1986 = vunpack.c.h.b16 %v1599
  %v1987 = vunpack.c.l.b16 %v1600
  %v1988 = vunpack.c.h.b16 %v1600
  %v1989 = vunpack.c.l.b16 %v1601
  %v1990 = vunpack.c.h.b16 %v1601
  %v1991 = vunpack.c.l.b16 %v1602
  %v1992 = vunpack.c.h.b16 %v1602
  %v1993 = vunpack.c.l.b16 %v1603
  %v1994 = vunpack.c.h.b16 %v1603
  %v1995 = vunpack.c.l.b16 %v1604
  %v1996 = vunpack.c.h.b16 %v1604
  %v1997 = vunpack.c.l.b16 %v1605
  %v1998 = vunpack.c.h.b16 %v1605
  %v1999 = vunpack.c.l.b16 %v1606
  %v2000 = vunpack.c.h.b16 %v1606
  %v2001 = vunpack.c.l.b16 %v1607
  %v2002 = vunpack.c.h.b16 %v1607
  %v2003 = vunpack.c.l.b16 %v1608
  %v2004 = vunpack.c.h.b16 %v1608
  %v2005 = vunpack.c.l.b16 %v1609
  %v2006 = vunpack.c.h.b16 %v1609
  %v2007 = vunpack.c.l.b16 %v1610
  %v2008 = vunpack.c.h.b16 %v1610
  %v2009 = vunpack.c.l.b16 %v1611
  %v2010 = vunpack.c.h.b16 %v1611
  %v2011 = vunpack.c.l.b16 %v1612
  %v2012 = vunpack.c.h.b16 %v1612
  %v2013 = vunpack.c.l.b16 %v1613
  %v2014 = vunpack.c.h.b16 %v1613
  %v2015 = vunpack.c.l.b16 %v1614
  %v2016 = vunpack.c.h.b16 %v1614
  %v2017 = vpack.c.b16 %v1957, %v1953
  %v2018 = vpack.c.b16 %v1958, %v1954
  %v2019 = vpack.c.b16 %v1959, %v1955
  %v2020 = vpack.c.b16 %v1960, %v1956
  %v2021 = vpack.c.b16 %v1965, %v1961
  %v2022 = vpack.c.b16 %v1966, %v1962
  %v2023 = vpack.c.b16 %v1967, %v1963
  %v2024 = vpack.c.b16 %v1968, %v1964
  %v2025 = vpack.c.b16 %v1973, %v1969
  %v2026 = vpack.c.b16 %v1974, %v1970
  %v2027 = vpack.c.b16 %v1975, %v1971
  %v2028 = vpack.c.b16 %v1976, %v1972
  %v2029 = vpack.c.b16 %v1981, %v1977
  %v2030 = vpack.c.b16 %v1982, %v1978
  %v2031 = vpack.c.b16 %v1983, %v1979
  %v2032 = vpack.c.b16 %v1984, %v1980
  %v2033 = vpack.c.b16 %v1989, %v1985
  %v2034 = vpack.c.b16 %v1990, %v1986
  %v2035 = vpack.c.b16 %v1991, %v1987
  %v2036 = vpack.c.b16 %v1992, %v1988
  %v2037 = vpack.c.b16 %v1997, %v1993
  %v2038 = vpack.c.b16 %v1998, %v1994
  %v2039 = vpack.c.b16 %v1999, %v1995
  %v2040 = vpack.c.b16 %v2000, %v1996
  %v2041 = vpack.c.b16 %v2005, %v2001
  %v2042 = vpack.c.b16 %v2006, %v2002
  %v2043 = vpack.c.b16 %v2007, %v2003
  %v2044 = vpack.c.b16 %v2008, %v2004
  %v2045 = vpack.c.b16 %v2013, %v2009
  %v2046 = vpack.c.b16 %v2014, %v2010
  %v2047 = vpack.c.b16 %v2015, %v2011
  %v2048 = vpack.c.b16 %v2016, %v2012
  %2081 = vmatpush.bf16.msra.mxu0 %v2045
  %2082 = vmatpush.bf16.msra.mxu0 %v2041
  %2083 = vmatpush.bf16.msra.mxu0 %v2037
  %2084 = vmatpush.bf16.msra.mxu0 %v2033
  %2085 = vmatpush.bf16.msra.mxu0 %v2029
  %2086 = vmatpush.bf16.msra.mxu0 %v2025
  %2087 = vmatpush.bf16.msra.mxu0 %v2021
  %2088 = vmatpush.bf16.msra.mxu0 %v2017
  %2089 = vmatmul.bf16.gmra.mxu0 0
  %v2090 = vpop.f32.mrf.mxu0
  %v2091 = vadd.f32 0.0, %v2090
  %v2092 = vpop.f32.mrf.mxu0
  %2093 = vdwg.mxu0
  %2094 = vmatpush.bf16.msra.mxu0 %v2046
  %2095 = vmatpush.bf16.msra.mxu0 %v2042
  %2096 = vmatpush.bf16.msra.mxu0 %v2038
  %2097 = vmatpush.bf16.msra.mxu0 %v2034
  %2098 = vmatpush.bf16.msra.mxu0 %v2030
  %2099 = vmatpush.bf16.msra.mxu0 %v2026
  %2100 = vmatpush.bf16.msra.mxu0 %v2022
  %2101 = vmatpush.bf16.msra.mxu0 %v2018
  %2102 = vmatmul.bf16.gmra.mxu0 0
  %v2103 = vpop.f32.mrf.mxu0
  %v2104 = vadd.f32 0.0, %v2103
  %v2105 = vpop.f32.mrf.mxu0
  %2106 = vdwg.mxu0
  %2107 = vmatpush.bf16.msra.mxu0 %v2047
  %2108 = vmatpush.bf16.msra.mxu0 %v2043
  %2109 = vmatpush.bf16.msra.mxu0 %v2039
  %2110 = vmatpush.bf16.msra.mxu0 %v2035
  %2111 = vmatpush.bf16.msra.mxu0 %v2031
  %2112 = vmatpush.bf16.msra.mxu0 %v2027
  %2113 = vmatpush.bf16.msra.mxu0 %v2023
  %2114 = vmatpush.bf16.msra.mxu0 %v2019
  %2115 = vmatmul.bf16.gmra.mxu0 0
  %v2116 = vpop.f32.mrf.mxu0
  %v2117 = vadd.f32 0.0, %v2116
  %v2118 = vpop.f32.mrf.mxu0
  %2119 = vdwg.mxu0
  %2120 = vmatpush.bf16.msra.mxu0 %v2048
  %2121 = vmatpush.bf16.msra.mxu0 %v2044
  %2122 = vmatpush.bf16.msra.mxu0 %v2040
  %2123 = vmatpush.bf16.msra.mxu0 %v2036
  %2124 = vmatpush.bf16.msra.mxu0 %v2032
  %2125 = vmatpush.bf16.msra.mxu0 %v2028
  %2126 = vmatpush.bf16.msra.mxu0 %v2024
  %2127 = vmatpush.bf16.msra.mxu0 %v2020
  %2128 = vmatmul.bf16.gmra.mxu0 0
  %v2129 = vpop.f32.mrf.mxu0
  %v2130 = vadd.f32 0.0, %v2129
  %v2131 = vpop.f32.mrf.mxu0
  %2132 = vdwg.mxu0
  %v2133 = vadd.f32 %v1799, %v2091
  %v2134 = vadd.f32 %v1832, %v2104
  %v2135 = vadd.f32 %v1865, %v2117
  %v2136 = vadd.f32 %v1898, %v2130
  %v2137 = vxor.u32 %v2133, 2147483648
  %v2138 = vmul.f32 %v2137, 1.442695
  %v2139 = vpow.pop %v2138
  %v2140 = vadd.f32 %v2139, 1.0
  %v2141 = vrcp.pop %v2140
  %v2142 = vmul.f32 %v2140, %v2141
  %v2143 = vsub.f32 1.0, %v2142
  %v2144 = vmul.f32 %v2141, %v2143
  %v2145 = vadd.f32 %v2141, %v2144
  %vm2146 = vweird.f32 %v2140
  %vm2147 = vweird.f32 %v2141
  %vm2148 = vmor %vm2146, %vm2147
  %v2149 = vsel %vm2148, %v2141, %v2145
  %v2150 = vand.u32 2147483647, %v2140
  %vm2151 = vcmp.eq.f32.partialorder %v2150, 8.507059e+37
  %v2152 = vand.u32 %v2140, 2147483648
  %v2153 = vor.u32 1.1754944e-38, %v2152
  %v2154 = vsel %vm2151, %v2153, %v2149
  %v2155 = vmul.f32 1.0, %v2154
  %v2156 = vxor.u32 %v2134, 2147483648
  %v2157 = vmul.f32 %v2156, 1.442695
  %v2158 = vpow.pop %v2157
  %v2159 = vadd.f32 %v2158, 1.0
  %v2160 = vrcp.pop %v2159
  %v2161 = vmul.f32 %v2159, %v2160
  %v2162 = vsub.f32 1.0, %v2161
  %v2163 = vmul.f32 %v2160, %v2162
  %v2164 = vadd.f32 %v2160, %v2163
  %vm2165 = vweird.f32 %v2159
  %vm2166 = vweird.f32 %v2160
  %vm2167 = vmor %vm2165, %vm2166
  %v2168 = vsel %vm2167, %v2160, %v2164
  %v2169 = vand.u32 2147483647, %v2159
  %vm2170 = vcmp.eq.f32.partialorder %v2169, 8.507059e+37
  %v2171 = vand.u32 %v2159, 2147483648
  %v2172 = vor.u32 1.1754944e-38, %v2171
  %v2173 = vsel %vm2170, %v2172, %v2168
  %v2174 = vmul.f32 1.0, %v2173
  %v2175 = vtanh.pop %v2135
  %v2176 = vxor.u32 %v2136, 2147483648
  %v2177 = vmul.f32 %v2176, 1.442695
  %v2178 = vpow.pop %v2177
  %v2179 = vadd.f32 %v2178, 1.0
  %v2180 = vrcp.pop %v2179
  %v2181 = vmul.f32 %v2179, %v2180
  %v2182 = vsub.f32 1.0, %v2181
  %v2183 = vmul.f32 %v2180, %v2182
  %v2184 = vadd.f32 %v2180, %v2183
  %vm2185 = vweird.f32 %v2179
  %vm2186 = vweird.f32 %v2180
  %vm2187 = vmor %vm2185, %vm2186
  %v2188 = vsel %vm2187, %v2180, %v2184
  %v2189 = vand.u32 2147483647, %v2179
  %vm2190 = vcmp.eq.f32.partialorder %v2189, 8.507059e+37
  %v2191 = vand.u32 %v2179, 2147483648
  %v2192 = vor.u32 1.1754944e-38, %v2191
  %v2193 = vsel %vm2190, %v2192, %v2188
  %v2194 = vmul.f32 1.0, %v2193
  %v2195 = vmul.f32 %v2174, 0.0
  %v2196 = vmul.f32 %v2155, %v2175
  %v2197 = vadd.f32 %v2195, %v2196
  %v2198 = vtanh.pop %v2197
  %v2199 = vmul.f32 %v2194, %v2198
  %2200 = vst [vmem:[#allocation2] sm:$0xff] %v2199
  %v2201 = vpack.c.bf16 %v2199, %v2199
  %2202 = vmatpush.bf16.msra.mxu0 %v2045
  %2203 = vmatpush.bf16.msra.mxu0 %v2041
  %2204 = vmatpush.bf16.msra.mxu0 %v2037
  %2205 = vmatpush.bf16.msra.mxu0 %v2033
  %2206 = vmatpush.bf16.msra.mxu0 %v2029
  %2207 = vmatpush.bf16.msra.mxu0 %v2025
  %2208 = vmatpush.bf16.msra.mxu0 %v2021
  %2209 = vmatpush.bf16.msra.mxu0 %v2017
  %2210 = vmatmul.bf16.gmra.mxu0 %v2201
  %v2211 = vpop.f32.mrf.mxu0
  %v2212 = vadd.f32 0.0, %v2211
  %v2213 = vpop.f32.mrf.mxu0
  %2214 = vdwg.mxu0
  %2215 = vmatpush.bf16.msra.mxu0 %v2046
  %2216 = vmatpush.bf16.msra.mxu0 %v2042
  %2217 = vmatpush.bf16.msra.mxu0 %v2038
  %2218 = vmatpush.bf16.msra.mxu0 %v2034
  %2219 = vmatpush.bf16.msra.mxu0 %v2030
  %2220 = vmatpush.bf16.msra.mxu0 %v2026
  %2221 = vmatpush.bf16.msra.mxu0 %v2022
  %2222 = vmatpush.bf16.msra.mxu0 %v2018
  %2223 = vmatmul.bf16.gmra.mxu0 %v2201
  %v2224 = vpop.f32.mrf.mxu0
  %v2225 = vadd.f32 0.0, %v2224
  %v2226 = vpop.f32.mrf.mxu0
  %2227 = vdwg.mxu0
  %2228 = vmatpush.bf16.msra.mxu0 %v2047
  %2229 = vmatpush.bf16.msra.mxu0 %v2043
  %2230 = vmatpush.bf16.msra.mxu0 %v2039
  %2231 = vmatpush.bf16.msra.mxu0 %v2035
  %2232 = vmatpush.bf16.msra.mxu0 %v2031
  %2233 = vmatpush.bf16.msra.mxu0 %v2027
  %2234 = vmatpush.bf16.msra.mxu0 %v2023
  %2235 = vmatpush.bf16.msra.mxu0 %v2019
  %2236 = vmatmul.bf16.gmra.mxu0 %v2201
  %v2237 = vpop.f32.mrf.mxu0
  %v2238 = vadd.f32 0.0, %v2237
  %v2239 = vpop.f32.mrf.mxu0
  %2240 = vdwg.mxu0
  %2241 = vmatpush.bf16.msra.mxu0 %v2048
  %2242 = vmatpush.bf16.msra.mxu0 %v2044
  %2243 = vmatpush.bf16.msra.mxu0 %v2040
  %2244 = vmatpush.bf16.msra.mxu0 %v2036
  %2245 = vmatpush.bf16.msra.mxu0 %v2032
  %2246 = vmatpush.bf16.msra.mxu0 %v2028
  %2247 = vmatpush.bf16.msra.mxu0 %v2024
  %2248 = vmatpush.bf16.msra.mxu0 %v2020
  %2249 = vmatmul.bf16.gmra.mxu0 %v2201
  %v2250 = vpop.f32.mrf.mxu0
  %v2251 = vadd.f32 0.0, %v2250
  %v2252 = vpop.f32.mrf.mxu0
  %2253 = vdwg.mxu0
  %v2254 = vadd.f32 %v1801, %v2212
  %v2255 = vadd.f32 %v1834, %v2225
  %v2256 = vadd.f32 %v1867, %v2238
  %v2257 = vadd.f32 %v1900, %v2251
  %v2258 = vxor.u32 %v2254, 2147483648
  %v2259 = vmul.f32 %v2258, 1.442695
  %v2260 = vpow.pop %v2259
  %v2261 = vadd.f32 %v2260, 1.0
  %v2262 = vrcp.pop %v2261
  %v2263 = vmul.f32 %v2261, %v2262
  %v2264 = vsub.f32 1.0, %v2263
  %v2265 = vmul.f32 %v2262, %v2264
  %v2266 = vadd.f32 %v2262, %v2265
  %vm2267 = vweird.f32 %v2261
  %vm2268 = vweird.f32 %v2262
  %vm2269 = vmor %vm2267, %vm2268
  %v2270 = vsel %vm2269, %v2262, %v2266
  %v2271 = vand.u32 2147483647, %v2261
  %vm2272 = vcmp.eq.f32.partialorder %v2271, 8.507059e+37
  %v2273 = vand.u32 %v2261, 2147483648
  %v2274 = vor.u32 1.1754944e-38, %v2273
  %v2275 = vsel %vm2272, %v2274, %v2270
  %v2276 = vmul.f32 1.0, %v2275
  %v2277 = vxor.u32 %v2255, 2147483648
  %v2278 = vmul.f32 %v2277, 1.442695
  %v2279 = vpow.pop %v2278
  %v2280 = vadd.f32 %v2279, 1.0
  %v2281 = vrcp.pop %v2280
  %v2282 = vmul.f32 %v2280, %v2281
  %v2283 = vsub.f32 1.0, %v2282
  %v2284 = vmul.f32 %v2281, %v2283
  %v2285 = vadd.f32 %v2281, %v2284
  %vm2286 = vweird.f32 %v2280
  %vm2287 = vweird.f32 %v2281
  %vm2288 = vmor %vm2286, %vm2287
  %v2289 = vsel %vm2288, %v2281, %v2285
  %v2290 = vand.u32 2147483647, %v2280
  %vm2291 = vcmp.eq.f32.partialorder %v2290, 8.507059e+37
  %v2292 = vand.u32 %v2280, 2147483648
  %v2293 = vor.u32 1.1754944e-38, %v2292
  %v2294 = vsel %vm2291, %v2293, %v2289
  %v2295 = vmul.f32 1.0, %v2294
  %v2296 = vtanh.pop %v2256
  %v2297 = vxor.u32 %v2257, 2147483648
  %v2298 = vmul.f32 %v2297, 1.442695
  %v2299 = vpow.pop %v2298
  %v2300 = vadd.f32 %v2299, 1.0
  %v2301 = vrcp.pop %v2300
  %v2302 = vmul.f32 %v2300, %v2301
  %v2303 = vsub.f32 1.0, %v2302
  %v2304 = vmul.f32 %v2301, %v2303
  %v2305 = vadd.f32 %v2301, %v2304
  %vm2306 = vweird.f32 %v2300
  %vm2307 = vweird.f32 %v2301
  %vm2308 = vmor %vm2306, %vm2307
  %v2309 = vsel %vm2308, %v2301, %v2305
  %v2310 = vand.u32 2147483647, %v2300
  %vm2311 = vcmp.eq.f32.partialorder %v2310, 8.507059e+37
  %v2312 = vand.u32 %v2300, 2147483648
  %v2313 = vor.u32 1.1754944e-38, %v2312
  %v2314 = vsel %vm2311, %v2313, %v2309
  %v2315 = vmul.f32 1.0, %v2314
  %v2316 = vmul.f32 %v2295, %v2197
  %v2317 = vmul.f32 %v2276, %v2296
  %v2318 = vadd.f32 %v2316, %v2317
  %v2319 = vtanh.pop %v2318
  %v2320 = vmul.f32 %v2315, %v2319
  %2321 = vst [vmem:[%s685] sm:$0xff] %v2320
  %v2322 = vpack.c.bf16 %v2320, %v2320
  %2323 = vmatpush.bf16.msra.mxu0 %v2045
  %2324 = vmatpush.bf16.msra.mxu0 %v2041
  %2325 = vmatpush.bf16.msra.mxu0 %v2037
  %2326 = vmatpush.bf16.msra.mxu0 %v2033
  %2327 = vmatpush.bf16.msra.mxu0 %v2029
  %2328 = vmatpush.bf16.msra.mxu0 %v2025
  %2329 = vmatpush.bf16.msra.mxu0 %v2021
  %2330 = vmatpush.bf16.msra.mxu0 %v2017
  %2331 = vmatmul.bf16.gmra.mxu0 %v2322
  %v2332 = vpop.f32.mrf.mxu0
  %v2333 = vadd.f32 0.0, %v2332
  %v2334 = vpop.f32.mrf.mxu0
  %2335 = vdwg.mxu0
  %2336 = vmatpush.bf16.msra.mxu0 %v2046
  %2337 = vmatpush.bf16.msra.mxu0 %v2042
  %2338 = vmatpush.bf16.msra.mxu0 %v2038
  %2339 = vmatpush.bf16.msra.mxu0 %v2034
  %2340 = vmatpush.bf16.msra.mxu0 %v2030
  %2341 = vmatpush.bf16.msra.mxu0 %v2026
  %2342 = vmatpush.bf16.msra.mxu0 %v2022
  %2343 = vmatpush.bf16.msra.mxu0 %v2018
  %2344 = vmatmul.bf16.gmra.mxu0 %v2322
  %v2345 = vpop.f32.mrf.mxu0
  %v2346 = vadd.f32 0.0, %v2345
  %v2347 = vpop.f32.mrf.mxu0
  %2348 = vdwg.mxu0
  %2349 = vmatpush.bf16.msra.mxu0 %v2047
  %2350 = vmatpush.bf16.msra.mxu0 %v2043
  %2351 = vmatpush.bf16.msra.mxu0 %v2039
  %2352 = vmatpush.bf16.msra.mxu0 %v2035
  %2353 = vmatpush.bf16.msra.mxu0 %v2031
  %2354 = vmatpush.bf16.msra.mxu0 %v2027
  %2355 = vmatpush.bf16.msra.mxu0 %v2023
  %2356 = vmatpush.bf16.msra.mxu0 %v2019
  %2357 = vmatmul.bf16.gmra.mxu0 %v2322
  %v2358 = vpop.f32.mrf.mxu0
  %v2359 = vadd.f32 0.0, %v2358
  %v2360 = vpop.f32.mrf.mxu0
  %2361 = vdwg.mxu0
  %2362 = vmatpush.bf16.msra.mxu0 %v2048
  %2363 = vmatpush.bf16.msra.mxu0 %v2044
  %2364 = vmatpush.bf16.msra.mxu0 %v2040
  %2365 = vmatpush.bf16.msra.mxu0 %v2036
  %2366 = vmatpush.bf16.msra.mxu0 %v2032
  %2367 = vmatpush.bf16.msra.mxu0 %v2028
  %2368 = vmatpush.bf16.msra.mxu0 %v2024
  %2369 = vmatpush.bf16.msra.mxu0 %v2020
  %2370 = vmatmul.bf16.gmra.mxu0 %v2322
  %v2371 = vpop.f32.mrf.mxu0
  %v2372 = vadd.f32 0.0, %v2371
  %v2373 = vpop.f32.mrf.mxu0
  %2374 = vdwg.mxu0
  %v2375 = vadd.f32 %v1804, %v2333
  %v2376 = vadd.f32 %v1837, %v2346
  %v2377 = vadd.f32 %v1870, %v2359
  %v2378 = vadd.f32 %v1903, %v2372
  %v2379 = vxor.u32 %v2375, 2147483648
  %v2380 = vmul.f32 %v2379, 1.442695
  %v2381 = vpow.pop %v2380
  %v2382 = vadd.f32 %v2381, 1.0
  %v2383 = vrcp.pop %v2382
  %v2384 = vmul.f32 %v2382, %v2383
  %v2385 = vsub.f32 1.0, %v2384
  %v2386 = vmul.f32 %v2383, %v2385
  %v2387 = vadd.f32 %v2383, %v2386
  %vm2388 = vweird.f32 %v2382
  %vm2389 = vweird.f32 %v2383
  %vm2390 = vmor %vm2388, %vm2389
  %v2391 = vsel %vm2390, %v2383, %v2387
  %v2392 = vand.u32 2147483647, %v2382
  %vm2393 = vcmp.eq.f32.partialorder %v2392, 8.507059e+37
  %v2394 = vand.u32 %v2382, 2147483648
  %v2395 = vor.u32 1.1754944e-38, %v2394
  %v2396 = vsel %vm2393, %v2395, %v2391
  %v2397 = vmul.f32 1.0, %v2396
  %v2398 = vxor.u32 %v2376, 2147483648
  %v2399 = vmul.f32 %v2398, 1.442695
  %v2400 = vpow.pop %v2399
  %v2401 = vadd.f32 %v2400, 1.0
  %v2402 = vrcp.pop %v2401
  %v2403 = vmul.f32 %v2401, %v2402
  %v2404 = vsub.f32 1.0, %v2403
  %v2405 = vmul.f32 %v2402, %v2404
  %v2406 = vadd.f32 %v2402, %v2405
  %vm2407 = vweird.f32 %v2401
  %vm2408 = vweird.f32 %v2402
  %vm2409 = vmor %vm2407, %vm2408
  %v2410 = vsel %vm2409, %v2402, %v2406
  %v2411 = vand.u32 2147483647, %v2401
  %vm2412 = vcmp.eq.f32.partialorder %v2411, 8.507059e+37
  %v2413 = vand.u32 %v2401, 2147483648
  %v2414 = vor.u32 1.1754944e-38, %v2413
  %v2415 = vsel %vm2412, %v2414, %v2410
  %v2416 = vmul.f32 1.0, %v2415
  %v2417 = vtanh.pop %v2377
  %v2418 = vxor.u32 %v2378, 2147483648
  %v2419 = vmul.f32 %v2418, 1.442695
  %v2420 = vpow.pop %v2419
  %v2421 = vadd.f32 %v2420, 1.0
  %v2422 = vrcp.pop %v2421
  %v2423 = vmul.f32 %v2421, %v2422
  %v2424 = vsub.f32 1.0, %v2423
  %v2425 = vmul.f32 %v2422, %v2424
  %v2426 = vadd.f32 %v2422, %v2425
  %vm2427 = vweird.f32 %v2421
  %vm2428 = vweird.f32 %v2422
  %vm2429 = vmor %vm2427, %vm2428
  %v2430 = vsel %vm2429, %v2422, %v2426
  %v2431 = vand.u32 2147483647, %v2421
  %vm2432 = vcmp.eq.f32.partialorder %v2431, 8.507059e+37
  %v2433 = vand.u32 %v2421, 2147483648
  %v2434 = vor.u32 1.1754944e-38, %v2433
  %v2435 = vsel %vm2432, %v2434, %v2430
  %v2436 = vmul.f32 1.0, %v2435
  %v2437 = vmul.f32 %v2416, %v2318
  %v2438 = vmul.f32 %v2397, %v2417
  %v2439 = vadd.f32 %v2437, %v2438
  %v2440 = vtanh.pop %v2439
  %v2441 = vmul.f32 %v2436, %v2440
  %2442 = vst [vmem:[%s807] sm:$0xff] %v2441
  %v2443 = vpack.c.bf16 %v2441, %v2441
  %2444 = vmatpush.bf16.msra.mxu0 %v2045
  %2445 = vmatpush.bf16.msra.mxu0 %v2041
  %2446 = vmatpush.bf16.msra.mxu0 %v2037
  %2447 = vmatpush.bf16.msra.mxu0 %v2033
  %2448 = vmatpush.bf16.msra.mxu0 %v2029
  %2449 = vmatpush.bf16.msra.mxu0 %v2025
  %2450 = vmatpush.bf16.msra.mxu0 %v2021
  %2451 = vmatpush.bf16.msra.mxu0 %v2017
  %2452 = vmatmul.bf16.gmra.mxu0 %v2443
  %v2453 = vpop.f32.mrf.mxu0
  %v2454 = vadd.f32 0.0, %v2453
  %v2455 = vpop.f32.mrf.mxu0
  %2456 = vdwg.mxu0
  %2457 = vmatpush.bf16.msra.mxu0 %v2046
  %2458 = vmatpush.bf16.msra.mxu0 %v2042
  %2459 = vmatpush.bf16.msra.mxu0 %v2038
  %2460 = vmatpush.bf16.msra.mxu0 %v2034
  %2461 = vmatpush.bf16.msra.mxu0 %v2030
  %2462 = vmatpush.bf16.msra.mxu0 %v2026
  %2463 = vmatpush.bf16.msra.mxu0 %v2022
  %2464 = vmatpush.bf16.msra.mxu0 %v2018
  %2465 = vmatmul.bf16.gmra.mxu0 %v2443
  %v2466 = vpop.f32.mrf.mxu0
  %v2467 = vadd.f32 0.0, %v2466
  %v2468 = vpop.f32.mrf.mxu0
  %2469 = vdwg.mxu0
  %2470 = vmatpush.bf16.msra.mxu0 %v2047
  %2471 = vmatpush.bf16.msra.mxu0 %v2043
  %2472 = vmatpush.bf16.msra.mxu0 %v2039
  %2473 = vmatpush.bf16.msra.mxu0 %v2035
  %2474 = vmatpush.bf16.msra.mxu0 %v2031
  %2475 = vmatpush.bf16.msra.mxu0 %v2027
  %2476 = vmatpush.bf16.msra.mxu0 %v2023
  %2477 = vmatpush.bf16.msra.mxu0 %v2019
  %2478 = vmatmul.bf16.gmra.mxu0 %v2443
  %v2479 = vpop.f32.mrf.mxu0
  %v2480 = vadd.f32 0.0, %v2479
  %v2481 = vpop.f32.mrf.mxu0
  %2482 = vdwg.mxu0
  %2483 = vmatpush.bf16.msra.mxu0 %v2048
  %2484 = vmatpush.bf16.msra.mxu0 %v2044
  %2485 = vmatpush.bf16.msra.mxu0 %v2040
  %2486 = vmatpush.bf16.msra.mxu0 %v2036
  %2487 = vmatpush.bf16.msra.mxu0 %v2032
  %2488 = vmatpush.bf16.msra.mxu0 %v2028
  %2489 = vmatpush.bf16.msra.mxu0 %v2024
  %2490 = vmatpush.bf16.msra.mxu0 %v2020
  %2491 = vmatmul.bf16.gmra.mxu0 %v2443
  %v2492 = vpop.f32.mrf.mxu0
  %v2493 = vadd.f32 0.0, %v2492
  %v2494 = vpop.f32.mrf.mxu0
  %2495 = vdwg.mxu0
  %v2496 = vadd.f32 %v1806, %v2454
  %v2497 = vadd.f32 %v1839, %v2467
  %v2498 = vadd.f32 %v1872, %v2480
  %v2499 = vadd.f32 %v1905, %v2493
  %v2500 = vxor.u32 %v2496, 2147483648
  %v2501 = vmul.f32 %v2500, 1.442695
  %v2502 = vpow.pop %v2501
  %v2503 = vadd.f32 %v2502, 1.0
  %v2504 = vrcp.pop %v2503
  %v2505 = vmul.f32 %v2503, %v2504
  %v2506 = vsub.f32 1.0, %v2505
  %v2507 = vmul.f32 %v2504, %v2506
  %v2508 = vadd.f32 %v2504, %v2507
  %vm2509 = vweird.f32 %v2503
  %vm2510 = vweird.f32 %v2504
  %vm2511 = vmor %vm2509, %vm2510
  %v2512 = vsel %vm2511, %v2504, %v2508
  %v2513 = vand.u32 2147483647, %v2503
  %vm2514 = vcmp.eq.f32.partialorder %v2513, 8.507059e+37
  %v2515 = vand.u32 %v2503, 2147483648
  %v2516 = vor.u32 1.1754944e-38, %v2515
  %v2517 = vsel %vm2514, %v2516, %v2512
  %v2518 = vmul.f32 1.0, %v2517
  %v2519 = vxor.u32 %v2497, 2147483648
  %v2520 = vmul.f32 %v2519, 1.442695
  %v2521 = vpow.pop %v2520
  %v2522 = vadd.f32 %v2521, 1.0
  %v2523 = vrcp.pop %v2522
  %v2524 = vmul.f32 %v2522, %v2523
  %v2525 = vsub.f32 1.0, %v2524
  %v2526 = vmul.f32 %v2523, %v2525
  %v2527 = vadd.f32 %v2523, %v2526
  %vm2528 = vweird.f32 %v2522
  %vm2529 = vweird.f32 %v2523
  %vm2530 = vmor %vm2528, %vm2529
  %v2531 = vsel %vm2530, %v2523, %v2527
  %v2532 = vand.u32 2147483647, %v2522
  %vm2533 = vcmp.eq.f32.partialorder %v2532, 8.507059e+37
  %v2534 = vand.u32 %v2522, 2147483648
  %v2535 = vor.u32 1.1754944e-38, %v2534
  %v2536 = vsel %vm2533, %v2535, %v2531
  %v2537 = vmul.f32 1.0, %v2536
  %v2538 = vtanh.pop %v2498
  %v2539 = vxor.u32 %v2499, 2147483648
  %v2540 = vmul.f32 %v2539, 1.442695
  %v2541 = vpow.pop %v2540
  %v2542 = vadd.f32 %v2541, 1.0
  %v2543 = vrcp.pop %v2542
  %v2544 = vmul.f32 %v2542, %v2543
  %v2545 = vsub.f32 1.0, %v2544
  %v2546 = vmul.f32 %v2543, %v2545
  %v2547 = vadd.f32 %v2543, %v2546
  %vm2548 = vweird.f32 %v2542
  %vm2549 = vweird.f32 %v2543
  %vm2550 = vmor %vm2548, %vm2549
  %v2551 = vsel %vm2550, %v2543, %v2547
  %v2552 = vand.u32 2147483647, %v2542
  %vm2553 = vcmp.eq.f32.partialorder %v2552, 8.507059e+37
  %v2554 = vand.u32 %v2542, 2147483648
  %v2555 = vor.u32 1.1754944e-38, %v2554
  %v2556 = vsel %vm2553, %v2555, %v2551
  %v2557 = vmul.f32 1.0, %v2556
  %v2558 = vmul.f32 %v2537, %v2439
  %v2559 = vmul.f32 %v2518, %v2538
  %v2560 = vadd.f32 %v2558, %v2559
  %v2561 = vtanh.pop %v2560
  %v2562 = vmul.f32 %v2557, %v2561
  %2563 = vst [vmem:[%s929] sm:$0xff] %v2562
  %v2564 = vpack.c.bf16 %v2562, %v2562
  %2565 = vmatpush.bf16.msra.mxu0 %v2045
  %2566 = vmatpush.bf16.msra.mxu0 %v2041
  %2567 = vmatpush.bf16.msra.mxu0 %v2037
  %2568 = vmatpush.bf16.msra.mxu0 %v2033
  %2569 = vmatpush.bf16.msra.mxu0 %v2029
  %2570 = vmatpush.bf16.msra.mxu0 %v2025
  %2571 = vmatpush.bf16.msra.mxu0 %v2021
  %2572 = vmatpush.bf16.msra.mxu0 %v2017
  %2573 = vmatmul.bf16.gmra.mxu0 %v2564
  %v2574 = vpop.f32.mrf.mxu0
  %v2575 = vadd.f32 0.0, %v2574
  %v2576 = vpop.f32.mrf.mxu0
  %2577 = vdwg.mxu0
  %2578 = vmatpush.bf16.msra.mxu0 %v2046
  %2579 = vmatpush.bf16.msra.mxu0 %v2042
  %2580 = vmatpush.bf16.msra.mxu0 %v2038
  %2581 = vmatpush.bf16.msra.mxu0 %v2034
  %2582 = vmatpush.bf16.msra.mxu0 %v2030
  %2583 = vmatpush.bf16.msra.mxu0 %v2026
  %2584 = vmatpush.bf16.msra.mxu0 %v2022
  %2585 = vmatpush.bf16.msra.mxu0 %v2018
  %2586 = vmatmul.bf16.gmra.mxu0 %v2564
  %v2587 = vpop.f32.mrf.mxu0
  %v2588 = vadd.f32 0.0, %v2587
  %v2589 = vpop.f32.mrf.mxu0
  %2590 = vdwg.mxu0
  %2591 = vmatpush.bf16.msra.mxu0 %v2047
  %2592 = vmatpush.bf16.msra.mxu0 %v2043
  %2593 = vmatpush.bf16.msra.mxu0 %v2039
  %2594 = vmatpush.bf16.msra.mxu0 %v2035
  %2595 = vmatpush.bf16.msra.mxu0 %v2031
  %2596 = vmatpush.bf16.msra.mxu0 %v2027
  %2597 = vmatpush.bf16.msra.mxu0 %v2023
  %2598 = vmatpush.bf16.msra.mxu0 %v2019
  %2599 = vmatmul.bf16.gmra.mxu0 %v2564
  %v2600 = vpop.f32.mrf.mxu0
  %v2601 = vadd.f32 0.0, %v2600
  %v2602 = vpop.f32.mrf.mxu0
  %2603 = vdwg.mxu0
  %2604 = vmatpush.bf16.msra.mxu0 %v2048
  %2605 = vmatpush.bf16.msra.mxu0 %v2044
  %2606 = vmatpush.bf16.msra.mxu0 %v2040
  %2607 = vmatpush.bf16.msra.mxu0 %v2036
  %2608 = vmatpush.bf16.msra.mxu0 %v2032
  %2609 = vmatpush.bf16.msra.mxu0 %v2028
  %2610 = vmatpush.bf16.msra.mxu0 %v2024
  %2611 = vmatpush.bf16.msra.mxu0 %v2020
  %2612 = vmatmul.bf16.gmra.mxu0 %v2564
  %v2613 = vpop.f32.mrf.mxu0
  %v2614 = vadd.f32 0.0, %v2613
  %v2615 = vpop.f32.mrf.mxu0
  %2616 = vdwg.mxu0
  %v2617 = vadd.f32 %v1809, %v2575
  %v2618 = vadd.f32 %v1842, %v2588
  %v2619 = vadd.f32 %v1875, %v2601
  %v2620 = vadd.f32 %v1908, %v2614
  %v2621 = vxor.u32 %v2617, 2147483648
  %v2622 = vmul.f32 %v2621, 1.442695
  %v2623 = vpow.pop %v2622
  %v2624 = vadd.f32 %v2623, 1.0
  %v2625 = vrcp.pop %v2624
  %v2626 = vmul.f32 %v2624, %v2625
  %v2627 = vsub.f32 1.0, %v2626
  %v2628 = vmul.f32 %v2625, %v2627
  %v2629 = vadd.f32 %v2625, %v2628
  %vm2630 = vweird.f32 %v2624
  %vm2631 = vweird.f32 %v2625
  %vm2632 = vmor %vm2630, %vm2631
  %v2633 = vsel %vm2632, %v2625, %v2629
  %v2634 = vand.u32 2147483647, %v2624
  %vm2635 = vcmp.eq.f32.partialorder %v2634, 8.507059e+37
  %v2636 = vand.u32 %v2624, 2147483648
  %v2637 = vor.u32 1.1754944e-38, %v2636
  %v2638 = vsel %vm2635, %v2637, %v2633
  %v2639 = vmul.f32 1.0, %v2638
  %v2640 = vxor.u32 %v2618, 2147483648
  %v2641 = vmul.f32 %v2640, 1.442695
  %v2642 = vpow.pop %v2641
  %v2643 = vadd.f32 %v2642, 1.0
  %v2644 = vrcp.pop %v2643
  %v2645 = vmul.f32 %v2643, %v2644
  %v2646 = vsub.f32 1.0, %v2645
  %v2647 = vmul.f32 %v2644, %v2646
  %v2648 = vadd.f32 %v2644, %v2647
  %vm2649 = vweird.f32 %v2643
  %vm2650 = vweird.f32 %v2644
  %vm2651 = vmor %vm2649, %vm2650
  %v2652 = vsel %vm2651, %v2644, %v2648
  %v2653 = vand.u32 2147483647, %v2643
  %vm2654 = vcmp.eq.f32.partialorder %v2653, 8.507059e+37
  %v2655 = vand.u32 %v2643, 2147483648
  %v2656 = vor.u32 1.1754944e-38, %v2655
  %v2657 = vsel %vm2654, %v2656, %v2652
  %v2658 = vmul.f32 1.0, %v2657
  %v2659 = vtanh.pop %v2619
  %v2660 = vxor.u32 %v2620, 2147483648
  %v2661 = vmul.f32 %v2660, 1.442695
  %v2662 = vpow.pop %v2661
  %v2663 = vadd.f32 %v2662, 1.0
  %v2664 = vrcp.pop %v2663
  %v2665 = vmul.f32 %v2663, %v2664
  %v2666 = vsub.f32 1.0, %v2665
  %v2667 = vmul.f32 %v2664, %v2666
  %v2668 = vadd.f32 %v2664, %v2667
  %vm2669 = vweird.f32 %v2663
  %vm2670 = vweird.f32 %v2664
  %vm2671 = vmor %vm2669, %vm2670
  %v2672 = vsel %vm2671, %v2664, %v2668
  %v2673 = vand.u32 2147483647, %v2663
  %vm2674 = vcmp.eq.f32.partialorder %v2673, 8.507059e+37
  %v2675 = vand.u32 %v2663, 2147483648
  %v2676 = vor.u32 1.1754944e-38, %v2675
  %v2677 = vsel %vm2674, %v2676, %v2672
  %v2678 = vmul.f32 1.0, %v2677
  %v2679 = vmul.f32 %v2658, %v2560
  %v2680 = vmul.f32 %v2639, %v2659
  %v2681 = vadd.f32 %v2679, %v2680
  %v2682 = vtanh.pop %v2681
  %v2683 = vmul.f32 %v2678, %v2682
  %2684 = vst [vmem:[%s1051] sm:$0xff] %v2683
  %v2685 = vpack.c.bf16 %v2683, %v2683
  %2686 = vmatpush.bf16.msra.mxu0 %v2045
  %2687 = vmatpush.bf16.msra.mxu0 %v2041
  %2688 = vmatpush.bf16.msra.mxu0 %v2037
  %2689 = vmatpush.bf16.msra.mxu0 %v2033
  %2690 = vmatpush.bf16.msra.mxu0 %v2029
  %2691 = vmatpush.bf16.msra.mxu0 %v2025
  %2692 = vmatpush.bf16.msra.mxu0 %v2021
  %2693 = vmatpush.bf16.msra.mxu0 %v2017
  %2694 = vmatmul.bf16.gmra.mxu0 %v2685
  %v2695 = vpop.f32.mrf.mxu0
  %v2696 = vadd.f32 0.0, %v2695
  %v2697 = vpop.f32.mrf.mxu0
  %2698 = vdwg.mxu0
  %2699 = vmatpush.bf16.msra.mxu0 %v2046
  %2700 = vmatpush.bf16.msra.mxu0 %v2042
  %2701 = vmatpush.bf16.msra.mxu0 %v2038
  %2702 = vmatpush.bf16.msra.mxu0 %v2034
  %2703 = vmatpush.bf16.msra.mxu0 %v2030
  %2704 = vmatpush.bf16.msra.mxu0 %v2026
  %2705 = vmatpush.bf16.msra.mxu0 %v2022
  %2706 = vmatpush.bf16.msra.mxu0 %v2018
  %2707 = vmatmul.bf16.gmra.mxu0 %v2685
  %v2708 = vpop.f32.mrf.mxu0
  %v2709 = vadd.f32 0.0, %v2708
  %v2710 = vpop.f32.mrf.mxu0
  %2711 = vdwg.mxu0
  %2712 = vmatpush.bf16.msra.mxu0 %v2047
  %2713 = vmatpush.bf16.msra.mxu0 %v2043
  %2714 = vmatpush.bf16.msra.mxu0 %v2039
  %2715 = vmatpush.bf16.msra.mxu0 %v2035
  %2716 = vmatpush.bf16.msra.mxu0 %v2031
  %2717 = vmatpush.bf16.msra.mxu0 %v2027
  %2718 = vmatpush.bf16.msra.mxu0 %v2023
  %2719 = vmatpush.bf16.msra.mxu0 %v2019
  %2720 = vmatmul.bf16.gmra.mxu0 %v2685
  %v2721 = vpop.f32.mrf.mxu0
  %v2722 = vadd.f32 0.0, %v2721
  %v2723 = vpop.f32.mrf.mxu0
  %2724 = vdwg.mxu0
  %2725 = vmatpush.bf16.msra.mxu0 %v2048
  %2726 = vmatpush.bf16.msra.mxu0 %v2044
  %2727 = vmatpush.bf16.msra.mxu0 %v2040
  %2728 = vmatpush.bf16.msra.mxu0 %v2036
  %2729 = vmatpush.bf16.msra.mxu0 %v2032
  %2730 = vmatpush.bf16.msra.mxu0 %v2028
  %2731 = vmatpush.bf16.msra.mxu0 %v2024
  %2732 = vmatpush.bf16.msra.mxu0 %v2020
  %2733 = vmatmul.bf16.gmra.mxu0 %v2685
  %v2734 = vpop.f32.mrf.mxu0
  %v2735 = vadd.f32 0.0, %v2734
  %v2736 = vpop.f32.mrf.mxu0
  %2737 = vdwg.mxu0
  %v2738 = vadd.f32 %v1811, %v2696
  %v2739 = vadd.f32 %v1844, %v2709
  %v2740 = vadd.f32 %v1877, %v2722
  %v2741 = vadd.f32 %v1910, %v2735
  %v2742 = vxor.u32 %v2738, 2147483648
  %v2743 = vmul.f32 %v2742, 1.442695
  %v2744 = vpow.pop %v2743
  %v2745 = vadd.f32 %v2744, 1.0
  %v2746 = vrcp.pop %v2745
  %v2747 = vmul.f32 %v2745, %v2746
  %v2748 = vsub.f32 1.0, %v2747
  %v2749 = vmul.f32 %v2746, %v2748
  %v2750 = vadd.f32 %v2746, %v2749
  %vm2751 = vweird.f32 %v2745
  %vm2752 = vweird.f32 %v2746
  %vm2753 = vmor %vm2751, %vm2752
  %v2754 = vsel %vm2753, %v2746, %v2750
  %v2755 = vand.u32 2147483647, %v2745
  %vm2756 = vcmp.eq.f32.partialorder %v2755, 8.507059e+37
  %v2757 = vand.u32 %v2745, 2147483648
  %v2758 = vor.u32 1.1754944e-38, %v2757
  %v2759 = vsel %vm2756, %v2758, %v2754
  %v2760 = vmul.f32 1.0, %v2759
  %v2761 = vxor.u32 %v2739, 2147483648
  %v2762 = vmul.f32 %v2761, 1.442695
  %v2763 = vpow.pop %v2762
  %v2764 = vadd.f32 %v2763, 1.0
  %v2765 = vrcp.pop %v2764
  %v2766 = vmul.f32 %v2764, %v2765
  %v2767 = vsub.f32 1.0, %v2766
  %v2768 = vmul.f32 %v2765, %v2767
  %v2769 = vadd.f32 %v2765, %v2768
  %vm2770 = vweird.f32 %v2764
  %vm2771 = vweird.f32 %v2765
  %vm2772 = vmor %vm2770, %vm2771
  %v2773 = vsel %vm2772, %v2765, %v2769
  %v2774 = vand.u32 2147483647, %v2764
  %vm2775 = vcmp.eq.f32.partialorder %v2774, 8.507059e+37
  %v2776 = vand.u32 %v2764, 2147483648
  %v2777 = vor.u32 1.1754944e-38, %v2776
  %v2778 = vsel %vm2775, %v2777, %v2773
  %v2779 = vmul.f32 1.0, %v2778
  %v2780 = vtanh.pop %v2740
  %v2781 = vxor.u32 %v2741, 2147483648
  %v2782 = vmul.f32 %v2781, 1.442695
  %v2783 = vpow.pop %v2782
  %v2784 = vadd.f32 %v2783, 1.0
  %v2785 = vrcp.pop %v2784
  %v2786 = vmul.f32 %v2784, %v2785
  %v2787 = vsub.f32 1.0, %v2786
  %v2788 = vmul.f32 %v2785, %v2787
  %v2789 = vadd.f32 %v2785, %v2788
  %vm2790 = vweird.f32 %v2784
  %vm2791 = vweird.f32 %v2785
  %vm2792 = vmor %vm2790, %vm2791
  %v2793 = vsel %vm2792, %v2785, %v2789
  %v2794 = vand.u32 2147483647, %v2784
  %vm2795 = vcmp.eq.f32.partialorder %v2794, 8.507059e+37
  %v2796 = vand.u32 %v2784, 2147483648
  %v2797 = vor.u32 1.1754944e-38, %v2796
  %v2798 = vsel %vm2795, %v2797, %v2793
  %v2799 = vmul.f32 1.0, %v2798
  %v2800 = vmul.f32 %v2779, %v2681
  %v2801 = vmul.f32 %v2760, %v2780
  %v2802 = vadd.f32 %v2800, %v2801
  %v2803 = vtanh.pop %v2802
  %v2804 = vmul.f32 %v2799, %v2803
  %2805 = vst [vmem:[%s1173] sm:$0xff] %v2804
  %v2806 = vpack.c.bf16 %v2804, %v2804
  %2807 = vmatpush.bf16.msra.mxu0 %v2045
  %2808 = vmatpush.bf16.msra.mxu0 %v2041
  %2809 = vmatpush.bf16.msra.mxu0 %v2037
  %2810 = vmatpush.bf16.msra.mxu0 %v2033
  %2811 = vmatpush.bf16.msra.mxu0 %v2029
  %2812 = vmatpush.bf16.msra.mxu0 %v2025
  %2813 = vmatpush.bf16.msra.mxu0 %v2021
  %2814 = vmatpush.bf16.msra.mxu0 %v2017
  %2815 = vmatmul.bf16.gmra.mxu0 %v2806
  %v2816 = vpop.f32.mrf.mxu0
  %v2817 = vadd.f32 0.0, %v2816
  %v2818 = vpop.f32.mrf.mxu0
  %2819 = vdwg.mxu0
  %2820 = vmatpush.bf16.msra.mxu0 %v2046
  %2821 = vmatpush.bf16.msra.mxu0 %v2042
  %2822 = vmatpush.bf16.msra.mxu0 %v2038
  %2823 = vmatpush.bf16.msra.mxu0 %v2034
  %2824 = vmatpush.bf16.msra.mxu0 %v2030
  %2825 = vmatpush.bf16.msra.mxu0 %v2026
  %2826 = vmatpush.bf16.msra.mxu0 %v2022
  %2827 = vmatpush.bf16.msra.mxu0 %v2018
  %2828 = vmatmul.bf16.gmra.mxu0 %v2806
  %v2829 = vpop.f32.mrf.mxu0
  %v2830 = vadd.f32 0.0, %v2829
  %v2831 = vpop.f32.mrf.mxu0
  %2832 = vdwg.mxu0
  %2833 = vmatpush.bf16.msra.mxu0 %v2047
  %2834 = vmatpush.bf16.msra.mxu0 %v2043
  %2835 = vmatpush.bf16.msra.mxu0 %v2039
  %2836 = vmatpush.bf16.msra.mxu0 %v2035
  %2837 = vmatpush.bf16.msra.mxu0 %v2031
  %2838 = vmatpush.bf16.msra.mxu0 %v2027
  %2839 = vmatpush.bf16.msra.mxu0 %v2023
  %2840 = vmatpush.bf16.msra.mxu0 %v2019
  %2841 = vmatmul.bf16.gmra.mxu0 %v2806
  %v2842 = vpop.f32.mrf.mxu0
  %v2843 = vadd.f32 0.0, %v2842
  %v2844 = vpop.f32.mrf.mxu0
  %2845 = vdwg.mxu0
  %2846 = vmatpush.bf16.msra.mxu0 %v2048
  %2847 = vmatpush.bf16.msra.mxu0 %v2044
  %2848 = vmatpush.bf16.msra.mxu0 %v2040
  %2849 = vmatpush.bf16.msra.mxu0 %v2036
  %2850 = vmatpush.bf16.msra.mxu0 %v2032
  %2851 = vmatpush.bf16.msra.mxu0 %v2028
  %2852 = vmatpush.bf16.msra.mxu0 %v2024
  %2853 = vmatpush.bf16.msra.mxu0 %v2020
  %2854 = vmatmul.bf16.gmra.mxu0 %v2806
  %v2855 = vpop.f32.mrf.mxu0
  %v2856 = vadd.f32 0.0, %v2855
  %v2857 = vpop.f32.mrf.mxu0
  %2858 = vdwg.mxu0
  %v2859 = vadd.f32 %v1814, %v2817
  %v2860 = vadd.f32 %v1847, %v2830
  %v2861 = vadd.f32 %v1880, %v2843
  %v2862 = vadd.f32 %v1913, %v2856
  %v2863 = vxor.u32 %v2859, 2147483648
  %v2864 = vmul.f32 %v2863, 1.442695
  %v2865 = vpow.pop %v2864
  %v2866 = vadd.f32 %v2865, 1.0
  %v2867 = vrcp.pop %v2866
  %v2868 = vmul.f32 %v2866, %v2867
  %v2869 = vsub.f32 1.0, %v2868
  %v2870 = vmul.f32 %v2867, %v2869
  %v2871 = vadd.f32 %v2867, %v2870
  %vm2872 = vweird.f32 %v2866
  %vm2873 = vweird.f32 %v2867
  %vm2874 = vmor %vm2872, %vm2873
  %v2875 = vsel %vm2874, %v2867, %v2871
  %v2876 = vand.u32 2147483647, %v2866
  %vm2877 = vcmp.eq.f32.partialorder %v2876, 8.507059e+37
  %v2878 = vand.u32 %v2866, 2147483648
  %v2879 = vor.u32 1.1754944e-38, %v2878
  %v2880 = vsel %vm2877, %v2879, %v2875
  %v2881 = vmul.f32 1.0, %v2880
  %v2882 = vxor.u32 %v2860, 2147483648
  %v2883 = vmul.f32 %v2882, 1.442695
  %v2884 = vpow.pop %v2883
  %v2885 = vadd.f32 %v2884, 1.0
  %v2886 = vrcp.pop %v2885
  %v2887 = vmul.f32 %v2885, %v2886
  %v2888 = vsub.f32 1.0, %v2887
  %v2889 = vmul.f32 %v2886, %v2888
  %v2890 = vadd.f32 %v2886, %v2889
  %vm2891 = vweird.f32 %v2885
  %vm2892 = vweird.f32 %v2886
  %vm2893 = vmor %vm2891, %vm2892
  %v2894 = vsel %vm2893, %v2886, %v2890
  %v2895 = vand.u32 2147483647, %v2885
  %vm2896 = vcmp.eq.f32.partialorder %v2895, 8.507059e+37
  %v2897 = vand.u32 %v2885, 2147483648
  %v2898 = vor.u32 1.1754944e-38, %v2897
  %v2899 = vsel %vm2896, %v2898, %v2894
  %v2900 = vmul.f32 1.0, %v2899
  %v2901 = vtanh.pop %v2861
  %v2902 = vxor.u32 %v2862, 2147483648
  %v2903 = vmul.f32 %v2902, 1.442695
  %v2904 = vpow.pop %v2903
  %v2905 = vadd.f32 %v2904, 1.0
  %v2906 = vrcp.pop %v2905
  %v2907 = vmul.f32 %v2905, %v2906
  %v2908 = vsub.f32 1.0, %v2907
  %v2909 = vmul.f32 %v2906, %v2908
  %v2910 = vadd.f32 %v2906, %v2909
  %vm2911 = vweird.f32 %v2905
  %vm2912 = vweird.f32 %v2906
  %vm2913 = vmor %vm2911, %vm2912
  %v2914 = vsel %vm2913, %v2906, %v2910
  %v2915 = vand.u32 2147483647, %v2905
  %vm2916 = vcmp.eq.f32.partialorder %v2915, 8.507059e+37
  %v2917 = vand.u32 %v2905, 2147483648
  %v2918 = vor.u32 1.1754944e-38, %v2917
  %v2919 = vsel %vm2916, %v2918, %v2914
  %v2920 = vmul.f32 1.0, %v2919
  %v2921 = vmul.f32 %v2900, %v2802
  %v2922 = vmul.f32 %v2881, %v2901
  %v2923 = vadd.f32 %v2921, %v2922
  %v2924 = vtanh.pop %v2923
  %v2925 = vmul.f32 %v2920, %v2924
  %2926 = vst [vmem:[%s1295] sm:$0xff] %v2925
  %v2927 = vpack.c.bf16 %v2925, %v2925
  %2928 = vmatpush.bf16.msra.mxu0 %v2045
  %2929 = vmatpush.bf16.msra.mxu0 %v2041
  %2930 = vmatpush.bf16.msra.mxu0 %v2037
  %2931 = vmatpush.bf16.msra.mxu0 %v2033
  %2932 = vmatpush.bf16.msra.mxu0 %v2029
  %2933 = vmatpush.bf16.msra.mxu0 %v2025
  %2934 = vmatpush.bf16.msra.mxu0 %v2021
  %2935 = vmatpush.bf16.msra.mxu0 %v2017
  %2936 = vmatmul.bf16.gmra.mxu0 %v2927
  %v2937 = vpop.f32.mrf.mxu0
  %v2938 = vadd.f32 0.0, %v2937
  %v2939 = vpop.f32.mrf.mxu0
  %2940 = vdwg.mxu0
  %2941 = vmatpush.bf16.msra.mxu0 %v2046
  %2942 = vmatpush.bf16.msra.mxu0 %v2042
  %2943 = vmatpush.bf16.msra.mxu0 %v2038
  %2944 = vmatpush.bf16.msra.mxu0 %v2034
  %2945 = vmatpush.bf16.msra.mxu0 %v2030
  %2946 = vmatpush.bf16.msra.mxu0 %v2026
  %2947 = vmatpush.bf16.msra.mxu0 %v2022
  %2948 = vmatpush.bf16.msra.mxu0 %v2018
  %2949 = vmatmul.bf16.gmra.mxu0 %v2927
  %v2950 = vpop.f32.mrf.mxu0
  %v2951 = vadd.f32 0.0, %v2950
  %v2952 = vpop.f32.mrf.mxu0
  %2953 = vdwg.mxu0
  %2954 = vmatpush.bf16.msra.mxu0 %v2047
  %2955 = vmatpush.bf16.msra.mxu0 %v2043
  %2956 = vmatpush.bf16.msra.mxu0 %v2039
  %2957 = vmatpush.bf16.msra.mxu0 %v2035
  %2958 = vmatpush.bf16.msra.mxu0 %v2031
  %2959 = vmatpush.bf16.msra.mxu0 %v2027
  %2960 = vmatpush.bf16.msra.mxu0 %v2023
  %2961 = vmatpush.bf16.msra.mxu0 %v2019
  %2962 = vmatmul.bf16.gmra.mxu0 %v2927
  %v2963 = vpop.f32.mrf.mxu0
  %v2964 = vadd.f32 0.0, %v2963
  %v2965 = vpop.f32.mrf.mxu0
  %2966 = vdwg.mxu0
  %2967 = vmatpush.bf16.msra.mxu0 %v2048
  %2968 = vmatpush.bf16.msra.mxu0 %v2044
  %2969 = vmatpush.bf16.msra.mxu0 %v2040
  %2970 = vmatpush.bf16.msra.mxu0 %v2036
  %2971 = vmatpush.bf16.msra.mxu0 %v2032
  %2972 = vmatpush.bf16.msra.mxu0 %v2028
  %2973 = vmatpush.bf16.msra.mxu0 %v2024
  %2974 = vmatpush.bf16.msra.mxu0 %v2020
  %2975 = vmatmul.bf16.gmra.mxu0 %v2927
  %v2976 = vpop.f32.mrf.mxu0
  %v2977 = vadd.f32 0.0, %v2976
  %v2978 = vpop.f32.mrf.mxu0
  %2979 = vdwg.mxu0
  %v2980 = vadd.f32 %v1816, %v2938
  %v2981 = vadd.f32 %v1849, %v2951
  %v2982 = vadd.f32 %v1882, %v2964
  %v2983 = vadd.f32 %v1915, %v2977
  %v2984 = vxor.u32 %v2980, 2147483648
  %v2985 = vmul.f32 %v2984, 1.442695
  %v2986 = vpow.pop %v2985
  %v2987 = vadd.f32 %v2986, 1.0
  %v2988 = vrcp.pop %v2987
  %v2989 = vmul.f32 %v2987, %v2988
  %v2990 = vsub.f32 1.0, %v2989
  %v2991 = vmul.f32 %v2988, %v2990
  %v2992 = vadd.f32 %v2988, %v2991
  %vm2993 = vweird.f32 %v2987
  %vm2994 = vweird.f32 %v2988
  %vm2995 = vmor %vm2993, %vm2994
  %v2996 = vsel %vm2995, %v2988, %v2992
  %v2997 = vand.u32 2147483647, %v2987
  %vm2998 = vcmp.eq.f32.partialorder %v2997, 8.507059e+37
  %v2999 = vand.u32 %v2987, 2147483648
  %v3000 = vor.u32 1.1754944e-38, %v2999
  %v3001 = vsel %vm2998, %v3000, %v2996
  %v3002 = vmul.f32 1.0, %v3001
  %v3003 = vxor.u32 %v2981, 2147483648
  %v3004 = vmul.f32 %v3003, 1.442695
  %v3005 = vpow.pop %v3004
  %v3006 = vadd.f32 %v3005, 1.0
  %v3007 = vrcp.pop %v3006
  %v3008 = vmul.f32 %v3006, %v3007
  %v3009 = vsub.f32 1.0, %v3008
  %v3010 = vmul.f32 %v3007, %v3009
  %v3011 = vadd.f32 %v3007, %v3010
  %vm3012 = vweird.f32 %v3006
  %vm3013 = vweird.f32 %v3007
  %vm3014 = vmor %vm3012, %vm3013
  %v3015 = vsel %vm3014, %v3007, %v3011
  %v3016 = vand.u32 2147483647, %v3006
  %vm3017 = vcmp.eq.f32.partialorder %v3016, 8.507059e+37
  %v3018 = vand.u32 %v3006, 2147483648
  %v3019 = vor.u32 1.1754944e-38, %v3018
  %v3020 = vsel %vm3017, %v3019, %v3015
  %v3021 = vmul.f32 1.0, %v3020
  %v3022 = vtanh.pop %v2982
  %v3023 = vxor.u32 %v2983, 2147483648
  %v3024 = vmul.f32 %v3023, 1.442695
  %v3025 = vpow.pop %v3024
  %v3026 = vadd.f32 %v3025, 1.0
  %v3027 = vrcp.pop %v3026
  %v3028 = vmul.f32 %v3026, %v3027
  %v3029 = vsub.f32 1.0, %v3028
  %v3030 = vmul.f32 %v3027, %v3029
  %v3031 = vadd.f32 %v3027, %v3030
  %vm3032 = vweird.f32 %v3026
  %vm3033 = vweird.f32 %v3027
  %vm3034 = vmor %vm3032, %vm3033
  %v3035 = vsel %vm3034, %v3027, %v3031
  %v3036 = vand.u32 2147483647, %v3026
  %vm3037 = vcmp.eq.f32.partialorder %v3036, 8.507059e+37
  %v3038 = vand.u32 %v3026, 2147483648
  %v3039 = vor.u32 1.1754944e-38, %v3038
  %v3040 = vsel %vm3037, %v3039, %v3035
  %v3041 = vmul.f32 1.0, %v3040
  %v3042 = vmul.f32 %v3021, %v2923
  %v3043 = vmul.f32 %v3002, %v3022
  %v3044 = vadd.f32 %v3042, %v3043
  %v3045 = vtanh.pop %v3044
  %v3046 = vmul.f32 %v3041, %v3045
  %3047 = vst [vmem:[%s1417] sm:$0xff] %v3046
  %v3048 = vpack.c.bf16 %v3046, %v3046
  %3049 = vmatpush.bf16.msra.mxu0 %v2045
  %3050 = vmatpush.bf16.msra.mxu0 %v2041
  %3051 = vmatpush.bf16.msra.mxu0 %v2037
  %3052 = vmatpush.bf16.msra.mxu0 %v2033
  %3053 = vmatpush.bf16.msra.mxu0 %v2029
  %3054 = vmatpush.bf16.msra.mxu0 %v2025
  %3055 = vmatpush.bf16.msra.mxu0 %v2021
  %3056 = vmatpush.bf16.msra.mxu0 %v2017
  %3057 = vmatmul.bf16.gmra.mxu0 %v3048
  %v3058 = vpop.f32.mrf.mxu0
  %v3059 = vadd.f32 0.0, %v3058
  %v3060 = vpop.f32.mrf.mxu0
  %3061 = vdwg.mxu0
  %3062 = vmatpush.bf16.msra.mxu0 %v2046
  %3063 = vmatpush.bf16.msra.mxu0 %v2042
  %3064 = vmatpush.bf16.msra.mxu0 %v2038
  %3065 = vmatpush.bf16.msra.mxu0 %v2034
  %3066 = vmatpush.bf16.msra.mxu0 %v2030
  %3067 = vmatpush.bf16.msra.mxu0 %v2026
  %3068 = vmatpush.bf16.msra.mxu0 %v2022
  %3069 = vmatpush.bf16.msra.mxu0 %v2018
  %3070 = vmatmul.bf16.gmra.mxu0 %v3048
  %v3071 = vpop.f32.mrf.mxu0
  %v3072 = vadd.f32 0.0, %v3071
  %v3073 = vpop.f32.mrf.mxu0
  %3074 = vdwg.mxu0
  %3075 = vmatpush.bf16.msra.mxu0 %v2047
  %3076 = vmatpush.bf16.msra.mxu0 %v2043
  %3077 = vmatpush.bf16.msra.mxu0 %v2039
  %3078 = vmatpush.bf16.msra.mxu0 %v2035
  %3079 = vmatpush.bf16.msra.mxu0 %v2031
  %3080 = vmatpush.bf16.msra.mxu0 %v2027
  %3081 = vmatpush.bf16.msra.mxu0 %v2023
  %3082 = vmatpush.bf16.msra.mxu0 %v2019
  %3083 = vmatmul.bf16.gmra.mxu0 %v3048
  %v3084 = vpop.f32.mrf.mxu0
  %v3085 = vadd.f32 0.0, %v3084
  %v3086 = vpop.f32.mrf.mxu0
  %3087 = vdwg.mxu0
  %3088 = vmatpush.bf16.msra.mxu0 %v2048
  %3089 = vmatpush.bf16.msra.mxu0 %v2044
  %3090 = vmatpush.bf16.msra.mxu0 %v2040
  %3091 = vmatpush.bf16.msra.mxu0 %v2036
  %3092 = vmatpush.bf16.msra.mxu0 %v2032
  %3093 = vmatpush.bf16.msra.mxu0 %v2028
  %3094 = vmatpush.bf16.msra.mxu0 %v2024
  %3095 = vmatpush.bf16.msra.mxu0 %v2020
  %3096 = vmatmul.bf16.gmra.mxu0 %v3048
  %v3097 = vpop.f32.mrf.mxu0
  %v3098 = vadd.f32 0.0, %v3097
  %v3099 = vpop.f32.mrf.mxu0
  %3100 = vdwg.mxu0
  %v3101 = vadd.f32 %v1819, %v3059
  %v3102 = vadd.f32 %v1852, %v3072
  %v3103 = vadd.f32 %v1885, %v3085
  %v3104 = vadd.f32 %v1918, %v3098
  %v3105 = vxor.u32 %v3101, 2147483648
  %v3106 = vmul.f32 %v3105, 1.442695
  %v3107 = vpow.pop %v3106
  %v3108 = vadd.f32 %v3107, 1.0
  %v3109 = vrcp.pop %v3108
  %v3110 = vmul.f32 %v3108, %v3109
  %v3111 = vsub.f32 1.0, %v3110
  %v3112 = vmul.f32 %v3109, %v3111
  %v3113 = vadd.f32 %v3109, %v3112
  %vm3114 = vweird.f32 %v3108
  %vm3115 = vweird.f32 %v3109
  %vm3116 = vmor %vm3114, %vm3115
  %v3117 = vsel %vm3116, %v3109, %v3113
  %v3118 = vand.u32 2147483647, %v3108
  %vm3119 = vcmp.eq.f32.partialorder %v3118, 8.507059e+37
  %v3120 = vand.u32 %v3108, 2147483648
  %v3121 = vor.u32 1.1754944e-38, %v3120
  %v3122 = vsel %vm3119, %v3121, %v3117
  %v3123 = vmul.f32 1.0, %v3122
  %v3124 = vxor.u32 %v3102, 2147483648
  %v3125 = vmul.f32 %v3124, 1.442695
  %v3126 = vpow.pop %v3125
  %v3127 = vadd.f32 %v3126, 1.0
  %v3128 = vrcp.pop %v3127
  %v3129 = vmul.f32 %v3127, %v3128
  %v3130 = vsub.f32 1.0, %v3129
  %v3131 = vmul.f32 %v3128, %v3130
  %v3132 = vadd.f32 %v3128, %v3131
  %vm3133 = vweird.f32 %v3127
  %vm3134 = vweird.f32 %v3128
  %vm3135 = vmor %vm3133, %vm3134
  %v3136 = vsel %vm3135, %v3128, %v3132
  %v3137 = vand.u32 2147483647, %v3127
  %vm3138 = vcmp.eq.f32.partialorder %v3137, 8.507059e+37
  %v3139 = vand.u32 %v3127, 2147483648
  %v3140 = vor.u32 1.1754944e-38, %v3139
  %v3141 = vsel %vm3138, %v3140, %v3136
  %v3142 = vmul.f32 1.0, %v3141
  %v3143 = vtanh.pop %v3103
  %v3144 = vxor.u32 %v3104, 2147483648
  %v3145 = vmul.f32 %v3144, 1.442695
  %v3146 = vpow.pop %v3145
  %v3147 = vadd.f32 %v3146, 1.0
  %v3148 = vrcp.pop %v3147
  %v3149 = vmul.f32 %v3147, %v3148
  %v3150 = vsub.f32 1.0, %v3149
  %v3151 = vmul.f32 %v3148, %v3150
  %v3152 = vadd.f32 %v3148, %v3151
  %vm3153 = vweird.f32 %v3147
  %vm3154 = vweird.f32 %v3148
  %vm3155 = vmor %vm3153, %vm3154
  %v3156 = vsel %vm3155, %v3148, %v3152
  %v3157 = vand.u32 2147483647, %v3147
  %vm3158 = vcmp.eq.f32.partialorder %v3157, 8.507059e+37
  %v3159 = vand.u32 %v3147, 2147483648
  %v3160 = vor.u32 1.1754944e-38, %v3159
  %v3161 = vsel %vm3158, %v3160, %v3156
  %v3162 = vmul.f32 1.0, %v3161
  %v3163 = vmul.f32 %v3142, %v3044
  %v3164 = vmul.f32 %v3123, %v3143
  %v3165 = vadd.f32 %v3163, %v3164
  %v3166 = vtanh.pop %v3165
  %v3167 = vmul.f32 %v3162, %v3166
  %3168 = vst [vmem:[%s1539] sm:$0xff] %v3167
  %v3169 = vld [vmem:[#allocation2] sm:$0xff]
  %v3170 = vld [vmem:[#allocation2 + $0x8] sm:$0xff]
  %v3171 = vld [vmem:[#allocation2 + $0x10] sm:$0xff]
  %v3172 = vld [vmem:[#allocation2 + $0x18] sm:$0xff]
  %v3173 = vld [vmem:[#allocation2 + $0x20] sm:$0xff]
  %v3174 = vld [vmem:[#allocation2 + $0x28] sm:$0xff]
  %v3175 = vld [vmem:[#allocation2 + $0x30] sm:$0xff]
  %v3176 = vld [vmem:[#allocation2 + $0x38] sm:$0xff]
  %v3177 = vld [vmem:[#allocation2 + $0x40] sm:$0xff]
  %v3178 = vld [vmem:[%s7] sm:$0xf]
  %v3179 = vld [vmem:[%s7 + $0x4] sm:$0xf]
  %v3180 = vld [vmem:[%s7 + $0x8] sm:$0xf]
  %v3181 = vld [vmem:[%s7 + $0xc] sm:$0xf]
  %v3182 = vld [vmem:[%s7 + $0x10] sm:$0xf]
  %v3183 = vld [vmem:[%s7 + $0x14] sm:$0xf]
  %v3184 = vld [vmem:[%s7 + $0x18] sm:$0xf]
  %v3185 = vld [vmem:[%s7 + $0x1c] sm:$0xf]
  %v3186 = vld [vmem:[%s7 + $0x20] sm:$0xf]
  %v3187 = vld [vmem:[%s7 + $0x24] sm:$0xf]
  %v3188 = vld [vmem:[%s7 + $0x28] sm:$0xf]
  %v3189 = vld [vmem:[%s7 + $0x2c] sm:$0xf]
  %v3190 = vld [vmem:[%s7 + $0x30] sm:$0xf]
  %v3191 = vld [vmem:[%s7 + $0x34] sm:$0xf]
  %v3192 = vld [vmem:[%s7 + $0x38] sm:$0xf]
  %v3193 = vld [vmem:[%s7 + $0x3c] sm:$0xf]
  %v3194 = vpack.c.bf16 %v3170, %v3169
  %v3195 = vpack.c.bf16 %v3172, %v3171
  %v3196 = vpack.c.bf16 %v3174, %v3173
  %v3197 = vpack.c.bf16 %v3176, %v3175
  %v3198 = vpack.c.bf16 %v3177, %v3177
  %v3199 = vld [vmem:[%s8] sm:$0x1]
  %v3201 = vperm.slane %v3199, 0
  %v3219 = vunpack.c.l.b16 %v3178
  %v3220 = vunpack.c.l.b16 %v3179
  %v3221 = vunpack.c.l.b16 %v3180
  %v3222 = vunpack.c.l.b16 %v3181
  %v3223 = vunpack.c.l.b16 %v3182
  %v3224 = vunpack.c.l.b16 %v3183
  %v3225 = vunpack.c.l.b16 %v3184
  %v3226 = vunpack.c.l.b16 %v3185
  %v3227 = vunpack.c.l.b16 %v3186
  %v3228 = vunpack.c.l.b16 %v3187
  %v3229 = vunpack.c.l.b16 %v3188
  %v3230 = vunpack.c.l.b16 %v3189
  %v3231 = vunpack.c.l.b16 %v3190
  %v3232 = vunpack.c.l.b16 %v3191
  %v3233 = vunpack.c.l.b16 %v3192
  %v3234 = vunpack.c.l.b16 %v3193
  %v3235 = vpack.c.b16 %v3220, %v3219
  %v3236 = vpack.c.b16 %v3222, %v3221
  %v3237 = vpack.c.b16 %v3224, %v3223
  %v3238 = vpack.c.b16 %v3226, %v3225
  %v3239 = vpack.c.b16 %v3228, %v3227
  %v3240 = vpack.c.b16 %v3230, %v3229
  %v3241 = vpack.c.b16 %v3232, %v3231
  %v3242 = vpack.c.b16 %v3234, %v3233
  %3251 = vmatpush.bf16.msra.mxu0 %v3242
  %3252 = vmatpush.bf16.msra.mxu0 %v3241
  %3253 = vmatpush.bf16.msra.mxu0 %v3240
  %3254 = vmatpush.bf16.msra.mxu0 %v3239
  %3255 = vmatpush.bf16.msra.mxu0 %v3238
  %3256 = vmatpush.bf16.msra.mxu0 %v3237
  %3257 = vmatpush.bf16.msra.mxu0 %v3236
  %3258 = vmatpush.bf16.msra.mxu0 %v3235
  %3259 = vmatmul.bf16.gmra.mxu0 %v3194
  %v3260 = vpop.f32.mrf.mxu0
  %v3261 = vadd.f32 %v3201, %v3260
  %v3262 = vpop.f32.mrf.mxu0
  %v3263 = vadd.f32 %v3201, %v3262
  %3264 = vmatmul.bf16.gmra.mxu0 %v3195
  %v3265 = vpop.f32.mrf.mxu0
  %v3266 = vadd.f32 %v3201, %v3265
  %v3267 = vpop.f32.mrf.mxu0
  %v3268 = vadd.f32 %v3201, %v3267
  %3269 = vmatmul.bf16.gmra.mxu0 %v3196
  %v3270 = vpop.f32.mrf.mxu0
  %v3271 = vadd.f32 %v3201, %v3270
  %v3272 = vpop.f32.mrf.mxu0
  %v3273 = vadd.f32 %v3201, %v3272
  %3274 = vmatmul.bf16.gmra.mxu0 %v3197
  %v3275 = vpop.f32.mrf.mxu0
  %v3276 = vadd.f32 %v3201, %v3275
  %v3277 = vpop.f32.mrf.mxu0
  %v3278 = vadd.f32 %v3201, %v3277
  %3279 = vmatmul.bf16.gmra.mxu0 %v3198
  %v3280 = vpop.f32.mrf.mxu0
  %v3281 = vadd.f32 %v3201, %v3280
  %v3282 = vpop.f32.mrf.mxu0
  %3283 = vdwg.mxu0
  %3284 = vst [vmem:[%s9] sm:$0xff] %v3261
  %3285 = vst [vmem:[%s9 + $0x8] sm:$0xff] %v3263
  %3286 = vst [vmem:[%s9 + $0x10] sm:$0xff] %v3266
  %3287 = vst [vmem:[%s9 + $0x18] sm:$0xff] %v3268
  %3288 = vst [vmem:[%s9 + $0x20] sm:$0xff] %v3271
  %3289 = vst [vmem:[%s9 + $0x28] sm:$0xff] %v3273
  %3290 = vst [vmem:[%s9 + $0x30] sm:$0xff] %v3276
  %3291 = vst [vmem:[%s9 + $0x38] sm:$0xff] %v3278
  %3292 = vst [vmem:[%s9 + $0x40] sm:$0xff] %v3281
  // Predicated region
  $region38: #{cnn_to_rnn_forward.5} parent=0 // pred_check
    _
  $region39: #{cnn_to_rnn_forward.5} parent=0 // pred_check_branch
    %3294 = sbr.rel (0) target = $region41
  $region40: #{cnn_to_rnn_forward.5} parent=0 // pred_region
    _
  $region41: #{cnn_to_rnn_forward.5} parent=0 // pred_fallthru
    _
  // Predicated region
  $region42: #{cnn_to_rnn_forward.5} parent=0 // pred_check
    _
  $region43: #{cnn_to_rnn_forward.5} parent=0 // pred_check_branch
    %3296 = sbr.rel (0) target = $region45
  $region44: #{cnn_to_rnn_forward.5} parent=0 // pred_region
    _
  $region45: #{cnn_to_rnn_forward.5} parent=0 // pred_fallthru
    _

</llo_original>
